<compile_context>
chip_gen: v6e
topology: v6e:2x2x1
jax: 0.10.0
libtpu: 0.0.40
codegen_flags: <defaults>
</compile_context>

<pallas_src>
import jax
import jax.numpy as jnp
import numpy as np
from jax import lax
from jax.experimental import pallas as pl
from jax.experimental.pallas import tpu as pltpu

INPUT_SIZE = 4096   # hard-coded in the module
HIDDEN = 32
EMBED = 32
VOCAB = 128         # VOCAB / len(lang.word2id) is an undefined global; pick 128
B = 2
T_ENC = 8
L_DEC = 6


def _lstm_cell(gates, c_prev, H):
  """PyTorch LSTM gate order: i, f, g, o."""
  i = jax.nn.sigmoid(gates[:, 0 * H:1 * H])
  f = jax.nn.sigmoid(gates[:, 1 * H:2 * H])
  g = jnp.tanh(gates[:, 2 * H:3 * H])
  o = jax.nn.sigmoid(gates[:, 3 * H:4 * H])
  c_new = f * c_prev + i * g
  h_new = o * jnp.tanh(c_new)
  return h_new, c_new


# ----------------------------------------------------------------------------
# Fused kernel: input projection GEMM + encoder LSTM recurrence + teacher-forced
# attention decoder, single grid step, everything resident in VMEM.
# ----------------------------------------------------------------------------
def _s2s_kernel(x_ref, wih_ref, enc_b_ref, enc_whh_ref,
                emb_ref,
                dwih_e_ref, dwih_c_ref, dwhh_ref, db_ref,
                aw_ref, ab_ref, wh_ref, wc_ref, wb_ref,
                enc_out_ref, dec_o_ref):
  Bb, T, H = enc_out_ref.shape
  L = dec_o_ref.shape[1]
  V = dec_o_ref.shape[2]

  # ---- loop-invariant weight loads, cast to bf16 ONCE (hoisted) -------------
  enc_whh = enc_whh_ref[...].astype(jnp.bfloat16)
  dwih_e = dwih_e_ref[...].astype(jnp.bfloat16)
  dwih_c = dwih_c_ref[...].astype(jnp.bfloat16)
  dwhh = dwhh_ref[...].astype(jnp.bfloat16)
  aw = aw_ref[...].astype(jnp.bfloat16)
  wh = wh_ref[...].astype(jnp.bfloat16)
  wc = wc_ref[...].astype(jnp.bfloat16)
  db = jnp.broadcast_to(db_ref[...], (Bb, 4 * H))        # pre-broadcast biases
  ab = jnp.broadcast_to(ab_ref[...], (Bb, H))
  wb = jnp.broadcast_to(wb_ref[...], (L, V))
  emb2d = emb_ref[...]                                   # (B*L, E), row = b*L+l

  # ---- encoder input projection: ONE bf16 GEMM on the MXU -------------------
  x_bf = x_ref[...].astype(jnp.bfloat16)                 # (B*T, IN)
  gx2d = (jnp.dot(x_bf, wih_ref[...], preferred_element_type=jnp.float32)
          + enc_b_ref[...])                              # (B*T, 4H), row = b*T+t

  def rows(mat, stride, idx, n):
    # static gather of rows idx, stride+idx, ... -> (n, cols); all 2-D slices
    return jnp.concatenate(
        [mat[b * stride + idx:b * stride + idx + 1, :] for b in range(n)],
        axis=0)

  # ---- encoder recurrence: only h @ Whh per step -----------------------------
  h = jnp.zeros((Bb, H), jnp.float32)
  c = jnp.zeros((Bb, H), jnp.float32)
  enc_steps = []
  for t in range(T):                                     # static -> unrolled
    gates = rows(gx2d, T, t, Bb) + jnp.dot(
        h.astype(jnp.bfloat16), enc_whh, preferred_element_type=jnp.float32)
    h, c = _lstm_cell(gates, c, H)
    enc_steps.append(h)

  # encoder outputs in final (B, T, H) layout, one store per batch row
  for b in range(Bb):
    enc_out_ref[b] = jnp.concatenate(
        [enc_steps[t][b:b + 1, :] for t in range(T)], axis=0)

  # ---- teacher-forced attention decoder (hc carried over from encoder) ------
  ctx = jnp.zeros((Bb, H), jnp.float32)
  h_steps = []
  ctx_steps = []
  for l in range(L):
    emb = rows(emb2d, L, l, Bb).astype(jnp.bfloat16)     # (B, E)
    gates = (jnp.dot(emb, dwih_e, preferred_element_type=jnp.float32)
             + jnp.dot(ctx.astype(jnp.bfloat16), dwih_c,
                       preferred_element_type=jnp.float32)
             + jnp.dot(h.astype(jnp.bfloat16), dwhh,
                       preferred_element_type=jnp.float32)
             + db)
    h, c = _lstm_cell(gates, c, H)

    # attention over encoder outputs (softmax over T), all 2-D vector ops
    attn_h = (jnp.dot(h.astype(jnp.bfloat16), aw,
                      preferred_element_type=jnp.float32) + ab)    # (B, H)
    energies = jnp.concatenate(
        [jnp.sum(attn_h * enc_steps[t], axis=-1, keepdims=True)
         for t in range(T)], axis=-1)                              # (B, T)
    m = jnp.max(energies, axis=-1, keepdims=True)
    e = jnp.exp(energies - m)
    a = e * pl.reciprocal(jnp.sum(e, axis=-1, keepdims=True), approx=True)
    ctx = jnp.zeros((Bb, H), jnp.float32)
    for t in range(T):
      ctx = ctx + a[:, t:t + 1] * enc_steps[t]                     # (B, H)

    h_steps.append(h)
    ctx_steps.append(ctx)

  # ---- deferred, batched output projection: lane-dense (L, V) stores --------
  for b in range(Bb):
    h_all = jnp.concatenate([h_steps[l][b:b + 1, :] for l in range(L)],
                            axis=0).astype(jnp.bfloat16)           # (L, H)
    c_all = jnp.concatenate([ctx_steps[l][b:b + 1, :] for l in range(L)],
                            axis=0).astype(jnp.bfloat16)           # (L, H)
    dec_o_ref[b] = (jnp.dot(h_all, wh, preferred_element_type=jnp.float32)
                    + jnp.dot(c_all, wc, preferred_element_type=jnp.float32)
                    + wb)                                          # (L, V)


@jax.jit
def s2s_pallas(params, x_bt, target_symbols):
  """x_bt: (B, T, 4096) f32 ; target_symbols: (B, L) int32 (teacher forcing)."""
  Bb, T, IN = x_bt.shape
  L = target_symbols.shape[1]
  H, E, V = HIDDEN, EMBED, VOCAB

  x2d = x_bt.reshape(Bb * T, IN)                          # free, row = b*T + t
  # tiny pre-gather of target embeddings (also clamps any out-of-range ids)
  emb2d = params["embed"][target_symbols].reshape(Bb * L, E)  # row = b*L + l

  enc_out, dec_o = pl.pallas_call(
      _s2s_kernel,
      out_shape=(jax.ShapeDtypeStruct((Bb, T, H), jnp.float32),
                 jax.ShapeDtypeStruct((Bb, L, V), jnp.float32)),
      grid=(1,),
      in_specs=[
          pl.BlockSpec((Bb * T, IN), lambda i: (0, 0)),       # x (f32)
          pl.BlockSpec((IN, 4 * H), lambda i: (0, 0)),        # enc Wih (bf16)
          pl.BlockSpec((1, 4 * H), lambda i: (0, 0)),         # enc bias
          pl.BlockSpec((H, 4 * H), lambda i: (0, 0)),         # enc Whh
          pl.BlockSpec((Bb * L, E), lambda i: (0, 0)),        # target embeddings
          pl.BlockSpec((E, 4 * H), lambda i: (0, 0)),         # dec Wih (embed rows)
          pl.BlockSpec((H, 4 * H), lambda i: (0, 0)),         # dec Wih (ctx rows)
          pl.BlockSpec((H, 4 * H), lambda i: (0, 0)),         # dec Whh
          pl.BlockSpec((1, 4 * H), lambda i: (0, 0)),         # dec bias
          pl.BlockSpec((H, H), lambda i: (0, 0)),             # attn W
          pl.BlockSpec((1, H), lambda i: (0, 0)),             # attn b
          pl.BlockSpec((H, V), lambda i: (0, 0)),             # W (h rows)
          pl.BlockSpec((H, V), lambda i: (0, 0)),             # W (ctx rows)
          pl.BlockSpec((1, V), lambda i: (0, 0)),             # W bias
      ],
      out_specs=(
          pl.BlockSpec((Bb, T, H), lambda i: (0, 0, 0)),      # enc_out (B,T,H)
          pl.BlockSpec((Bb, L, V), lambda i: (0, 0, 0)),      # dec_o   (B,L,V)
      ),
      compiler_params=pltpu.CompilerParams(
          dimension_semantics=("arbitrary",)),
  )(x2d, params["enc_wih_bf16"], params["enc_b"], params["enc_whh_T"],
    emb2d, params["dec_wih_e_T"], params["dec_wih_c_T"], params["dec_whh_T"],
    params["dec_b"], params["attn_w_T"], params["attn_b"],
    params["W_h_T"], params["W_c_T"], params["W_b"])

  syms = jnp.argmax(dec_o, axis=-1).astype(jnp.int32)      # post-processing
  return dec_o, syms, enc_out


# ----------------------------------------------------------------------------
# Pure-JAX reference (for correctness check only)
# ----------------------------------------------------------------------------
def s2s_reference(params, x_bt, target_symbols):
  H = HIDDEN
  hp = lax.Precision.HIGHEST
  Bb = x_bt.shape[0]

  def enc_step(carry, x_t):
    h, c = carry
    gates = (jnp.dot(x_t, params["enc_wih_T"], precision=hp)
             + jnp.dot(h, params["enc_whh_T"], precision=hp) + params["enc_b"])
    h, c = _lstm_cell(gates, c, H)
    return (h, c), h

  h0 = jnp.zeros((Bb, H), jnp.float32)
  c0 = jnp.zeros((Bb, H), jnp.float32)
  (h, c), enc_tm = lax.scan(enc_step, (h0, c0), jnp.transpose(x_bt, (1, 0, 2)))
  enc_out = jnp.transpose(enc_tm, (1, 0, 2))                # (B, T, H)

  emb_all = params["embed"][target_symbols]                 # (B, L, E)

  def dec_step(carry, emb_t):
    h, c, ctx = carry
    gates = (jnp.dot(emb_t, params["dec_wih_e_T"], precision=hp)
             + jnp.dot(ctx, params["dec_wih_c_T"], precision=hp)
             + jnp.dot(h, params["dec_whh_T"], precision=hp) + params["dec_b"])
    h, c = _lstm_cell(gates, c, H)
    attn_h = jnp.dot(h, params["attn_w_T"], precision=hp) + params["attn_b"]
    energies = jnp.einsum("bh,bth->bt", attn_h, enc_out, precision=hp)
    A = jax.nn.softmax(energies, axis=-1)
    ctx = jnp.einsum("bt,bth->bh", A, enc_out, precision=hp)
    dec_o = (jnp.dot(h, params["W_h_T"], precision=hp)
             + jnp.dot(ctx, params["W_c_T"], precision=hp) + params["W_b"])
    sym = jnp.argmax(dec_o, axis=-1).astype(jnp.int32)
    return (h, c, ctx), (dec_o, sym)

  ctx0 = jnp.zeros((Bb, H), jnp.float32)
  _, (dec_o_tm, sym_tm) = lax.scan(dec_step, (h, c, ctx0),
                                   jnp.transpose(emb_all, (1, 0, 2)))
  return (jnp.transpose(dec_o_tm, (1, 0, 2)),
          jnp.transpose(sym_tm, (1, 0)),
          enc_out)


def init_params(key):
  H, E, V, IN = HIDDEN, EMBED, VOCAB, INPUT_SIZE
  ks = jax.random.split(key, 13)
  s = 1.0 / float(np.sqrt(H))
  s2 = 1.0 / float(np.sqrt(2 * H))
  u = lambda k, shape, sc: jax.random.uniform(k, shape, jnp.float32, -sc, sc)
  enc_wih_T = u(ks[0], (IN, 4 * H), s)
  return dict(
      enc_wih_T=enc_wih_T,                                # f32 (reference only)
      enc_wih_bf16=enc_wih_T.astype(jnp.bfloat16),        # kernel copy, cast ONCE
      enc_whh_T=u(ks[1], (H, 4 * H), s),
      enc_b=u(ks[2], (1, 4 * H), s),                      # b_ih + b_hh pre-summed
      embed=jax.random.normal(ks[3], (V, E), jnp.float32),
      dec_wih_e_T=u(ks[4], (E, 4 * H), s),                # dec LSTM wih, embed rows
      dec_wih_c_T=u(ks[5], (H, 4 * H), s),                # dec LSTM wih, context rows
      dec_whh_T=u(ks[6], (H, 4 * H), s),
      dec_b=u(ks[7], (1, 4 * H), s),
      attn_w_T=u(ks[8], (H, H), s),
      attn_b=u(ks[9], (1, H), s),
      W_h_T=u(ks[10], (H, V), s2),                        # output W rows for y
      W_c_T=u(ks[11], (H, V), s2),                        # output W rows for ctx
      W_b=u(ks[12], (1, V), s2),
  )


if __name__ == "__main__":
  key = jax.random.PRNGKey(0)
  kp, kx, kt = jax.random.split(key, 3)
  params = init_params(kp)

  x = jax.random.normal(kx, (B, T_ENC, INPUT_SIZE), jnp.float32) * 0.1
  target = jax.random.randint(kt, (B, L_DEC), 0, VOCAB, jnp.int32)

  dec_o, syms, enc_out = s2s_pallas(params, x, target)
  jax.block_until_ready((dec_o, syms, enc_out))

  dec_o_ref, syms_ref, enc_out_ref = s2s_reference(params, x, target)
  # bf16 matmul operands (f32 accumulation) -> looser tolerance than pure f32
  np.testing.assert_allclose(np.asarray(enc_out), np.asarray(enc_out_ref),
                             rtol=3e-2, atol=3e-2)
  np.testing.assert_allclose(np.asarray(dec_o), np.asarray(dec_o_ref),
                             rtol=3e-2, atol=3e-2)
  # argmax symbols: only require equality where the reference top-2 margin
  # comfortably exceeds bf16-induced numeric noise.
  top2 = np.asarray(lax.top_k(dec_o_ref, 2)[0])
  safe = (top2[..., 0] - top2[..., 1]) > 1e-1
  assert np.array_equal(np.asarray(syms)[safe], np.asarray(syms_ref)[safe])

  print("KERNEL_OK")
</pallas_src>

<mosaic_0001>
module attributes {stable_mosaic.version = 11 : i64} {
  func.func @_s2s_kernel(%arg0: i32, %arg1: memref<16x4096xf32, #tpu.memory_space<vmem>>, %arg2: memref<4096x128xbf16, #tpu.memory_space<vmem>>, %arg3: memref<1x128xf32, #tpu.memory_space<vmem>>, %arg4: memref<32x128xf32, #tpu.memory_space<vmem>>, %arg5: memref<12x32xf32, #tpu.memory_space<vmem>>, %arg6: memref<32x128xf32, #tpu.memory_space<vmem>>, %arg7: memref<32x128xf32, #tpu.memory_space<vmem>>, %arg8: memref<32x128xf32, #tpu.memory_space<vmem>>, %arg9: memref<1x128xf32, #tpu.memory_space<vmem>>, %arg10: memref<32x32xf32, #tpu.memory_space<vmem>>, %arg11: memref<1x32xf32, #tpu.memory_space<vmem>>, %arg12: memref<32x128xf32, #tpu.memory_space<vmem>>, %arg13: memref<32x128xf32, #tpu.memory_space<vmem>>, %arg14: memref<1x128xf32, #tpu.memory_space<vmem>>, %arg15: memref<2x8x32xf32, #tpu.memory_space<vmem>>, %arg16: memref<2x6x128xf32, #tpu.memory_space<vmem>>) attributes {dimension_semantics = [#tpu.dimension_semantics<arbitrary>], iteration_bounds = array<i64: 1>, scalar_prefetch = 0 : i64, scratch_operands = 0 : i64, tpu.core_type = #tpu.core_type<tc>, window_params = [{pipeline_mode = #tpu.pipeline_mode<synchronous>, transform_indices = @transform_0, window_bounds = array<i64: 16, 4096>}, {pipeline_mode = #tpu.pipeline_mode<synchronous>, transform_indices = @transform_1, window_bounds = array<i64: 4096, 128>}, {pipeline_mode = #tpu.pipeline_mode<synchronous>, transform_indices = @transform_2, window_bounds = array<i64: 1, 128>}, {pipeline_mode = #tpu.pipeline_mode<synchronous>, transform_indices = @transform_3, window_bounds = array<i64: 32, 128>}, {pipeline_mode = #tpu.pipeline_mode<synchronous>, transform_indices = @transform_4, window_bounds = array<i64: 12, 32>}, {pipeline_mode = #tpu.pipeline_mode<synchronous>, transform_indices = @transform_5, window_bounds = array<i64: 32, 128>}, {pipeline_mode = #tpu.pipeline_mode<synchronous>, transform_indices = @transform_6, window_bounds = array<i64: 32, 128>}, {pipeline_mode = #tpu.pipeline_mode<synchronous>, transform_indices = @transform_7, window_bounds = array<i64: 32, 128>}, {pipeline_mode = #tpu.pipeline_mode<synchronous>, transform_indices = @transform_8, window_bounds = array<i64: 1, 128>}, {pipeline_mode = #tpu.pipeline_mode<synchronous>, transform_indices = @transform_9, window_bounds = array<i64: 32, 32>}, {pipeline_mode = #tpu.pipeline_mode<synchronous>, transform_indices = @transform_10, window_bounds = array<i64: 1, 32>}, {pipeline_mode = #tpu.pipeline_mode<synchronous>, transform_indices = @transform_11, window_bounds = array<i64: 32, 128>}, {pipeline_mode = #tpu.pipeline_mode<synchronous>, transform_indices = @transform_12, window_bounds = array<i64: 32, 128>}, {pipeline_mode = #tpu.pipeline_mode<synchronous>, transform_indices = @transform_13, window_bounds = array<i64: 1, 128>}, {pipeline_mode = #tpu.pipeline_mode<synchronous>, transform_indices = @transform_14, window_bounds = array<i64: 2, 8, 32>}, {pipeline_mode = #tpu.pipeline_mode<synchronous>, transform_indices = @transform_15, window_bounds = array<i64: 2, 6, 128>}]} {
    %c0 = arith.constant 0 : index
    %c0_0 = arith.constant 0 : index
    %0 = vector.load %arg4[%c0, %c0_0] : memref<32x128xf32, #tpu.memory_space<vmem>>, vector<32x128xf32>
    %1 = arith.truncf %0 : vector<32x128xf32> to vector<32x128xbf16>
    %c0_1 = arith.constant 0 : index
    %c0_2 = arith.constant 0 : index
    %2 = vector.load %arg6[%c0_1, %c0_2] : memref<32x128xf32, #tpu.memory_space<vmem>>, vector<32x128xf32>
    %3 = arith.truncf %2 : vector<32x128xf32> to vector<32x128xbf16>
    %c0_3 = arith.constant 0 : index
    %c0_4 = arith.constant 0 : index
    %4 = vector.load %arg7[%c0_3, %c0_4] : memref<32x128xf32, #tpu.memory_space<vmem>>, vector<32x128xf32>
    %5 = arith.truncf %4 : vector<32x128xf32> to vector<32x128xbf16>
    %c0_5 = arith.constant 0 : index
    %c0_6 = arith.constant 0 : index
    %6 = vector.load %arg8[%c0_5, %c0_6] : memref<32x128xf32, #tpu.memory_space<vmem>>, vector<32x128xf32>
    %7 = arith.truncf %6 : vector<32x128xf32> to vector<32x128xbf16>
    %c0_7 = arith.constant 0 : index
    %c0_8 = arith.constant 0 : index
    %8 = vector.load %arg10[%c0_7, %c0_8] : memref<32x32xf32, #tpu.memory_space<vmem>>, vector<32x32xf32>
    %9 = arith.truncf %8 : vector<32x32xf32> to vector<32x32xbf16>
    %c0_9 = arith.constant 0 : index
    %c0_10 = arith.constant 0 : index
    %10 = vector.load %arg12[%c0_9, %c0_10] : memref<32x128xf32, #tpu.memory_space<vmem>>, vector<32x128xf32>
    %11 = arith.truncf %10 : vector<32x128xf32> to vector<32x128xbf16>
    %c0_11 = arith.constant 0 : index
    %c0_12 = arith.constant 0 : index
    %12 = vector.load %arg13[%c0_11, %c0_12] : memref<32x128xf32, #tpu.memory_space<vmem>>, vector<32x128xf32>
    %13 = arith.truncf %12 : vector<32x128xf32> to vector<32x128xbf16>
    %c0_13 = arith.constant 0 : index
    %c0_14 = arith.constant 0 : index
    %14 = vector.load %arg9[%c0_13, %c0_14] : memref<1x128xf32, #tpu.memory_space<vmem>>, vector<1x128xf32>
    %15 = vector.shape_cast %14 : vector<1x128xf32> to vector<1x128xf32>
    %16 = vector.broadcast %15 : vector<1x128xf32> to vector<2x128xf32>
    %c0_15 = arith.constant 0 : index
    %c0_16 = arith.constant 0 : index
    %17 = vector.load %arg11[%c0_15, %c0_16] : memref<1x32xf32, #tpu.memory_space<vmem>>, vector<1x32xf32>
    %18 = vector.shape_cast %17 : vector<1x32xf32> to vector<1x32xf32>
    %19 = vector.broadcast %18 : vector<1x32xf32> to vector<2x32xf32>
    %c0_17 = arith.constant 0 : index
    %c0_18 = arith.constant 0 : index
    %20 = vector.load %arg14[%c0_17, %c0_18] : memref<1x128xf32, #tpu.memory_space<vmem>>, vector<1x128xf32>
    %21 = vector.shape_cast %20 : vector<1x128xf32> to vector<1x128xf32>
    %22 = vector.broadcast %21 : vector<1x128xf32> to vector<6x128xf32>
    %c0_19 = arith.constant 0 : index
    %c0_20 = arith.constant 0 : index
    %23 = vector.load %arg5[%c0_19, %c0_20] : memref<12x32xf32, #tpu.memory_space<vmem>>, vector<12x32xf32>
    %c0_21 = arith.constant 0 : index
    %c0_22 = arith.constant 0 : index
    %24 = vector.load %arg1[%c0_21, %c0_22] : memref<16x4096xf32, #tpu.memory_space<vmem>>, vector<16x4096xf32>
    %25 = arith.truncf %24 : vector<16x4096xf32> to vector<16x4096xbf16>
    %c0_23 = arith.constant 0 : index
    %c0_24 = arith.constant 0 : index
    %26 = vector.load %arg2[%c0_23, %c0_24] : memref<4096x128xbf16, #tpu.memory_space<vmem>>, vector<4096x128xbf16>
    %cst = arith.constant dense<0.000000e+00> : vector<16x128xf32>
    %27 = tpu.matmul %25, %26, %cst {dimension_numbers = #tpu.dot_dimension_numbers<[1], [0], [0], [1], [0, 0, 1, 1], [], []>} : vector<16x4096xbf16>, vector<4096x128xbf16>, vector<16x128xf32> -> vector<16x128xf32>
    %c0_25 = arith.constant 0 : index
    %c0_26 = arith.constant 0 : index
    %28 = vector.load %arg3[%c0_25, %c0_26] : memref<1x128xf32, #tpu.memory_space<vmem>>, vector<1x128xf32>
    %29 = vector.broadcast %28 : vector<1x128xf32> to vector<16x128xf32>
    %30 = arith.addf %27, %29 : vector<16x128xf32>
    %cst_27 = arith.constant 0.000000e+00 : f32
    %31 = vector.broadcast %cst_27 : f32 to vector<2x32xf32>
    %cst_28 = arith.constant 0.000000e+00 : f32
    %32 = vector.broadcast %cst_28 : f32 to vector<2x32xf32>
    %33 = vector.extract_strided_slice %30 {offsets = [0, 0], sizes = [1, 128], strides = [1, 1]} : vector<16x128xf32> to vector<1x128xf32>
    %34 = vector.extract_strided_slice %30 {offsets = [8, 0], sizes = [1, 128], strides = [1, 1]} : vector<16x128xf32> to vector<1x128xf32>
    %35 = tpu.concatenate %33, %34 in 0 : vector<1x128xf32>, vector<1x128xf32> -> vector<2x128xf32>
    %36 = arith.truncf %31 : vector<2x32xf32> to vector<2x32xbf16>
    %cst_29 = arith.constant dense<0.000000e+00> : vector<2x128xf32>
    %37 = tpu.matmul %36, %1, %cst_29 {dimension_numbers = #tpu.dot_dimension_numbers<[1], [0], [0], [1], [0, 0, 1, 1], [], []>} : vector<2x32xbf16>, vector<32x128xbf16>, vector<2x128xf32> -> vector<2x128xf32>
    %38 = arith.addf %35, %37 : vector<2x128xf32>
    %39 = vector.extract_strided_slice %38 {offsets = [0, 0], sizes = [2, 32], strides = [1, 1]} : vector<2x128xf32> to vector<2x32xf32>
    %40 = arith.negf %39 : vector<2x32xf32>
    %41 = math.exp %40 : vector<2x32xf32>
    %cst_30 = arith.constant 1.000000e+00 : f32
    %42 = vector.broadcast %cst_30 : f32 to vector<2x32xf32>
    %43 = arith.addf %42, %41 : vector<2x32xf32>
    %44 = arith.divf %42, %43 : vector<2x32xf32>
    %45 = vector.extract_strided_slice %38 {offsets = [0, 32], sizes = [2, 32], strides = [1, 1]} : vector<2x128xf32> to vector<2x32xf32>
    %46 = arith.negf %45 : vector<2x32xf32>
    %47 = math.exp %46 : vector<2x32xf32>
    %cst_31 = arith.constant 1.000000e+00 : f32
    %48 = vector.broadcast %cst_31 : f32 to vector<2x32xf32>
    %49 = arith.addf %48, %47 : vector<2x32xf32>
    %50 = arith.divf %48, %49 : vector<2x32xf32>
    %51 = vector.extract_strided_slice %38 {offsets = [0, 64], sizes = [2, 32], strides = [1, 1]} : vector<2x128xf32> to vector<2x32xf32>
    %52 = math.tanh %51 : vector<2x32xf32>
    %53 = vector.extract_strided_slice %38 {offsets = [0, 96], sizes = [2, 32], strides = [1, 1]} : vector<2x128xf32> to vector<2x32xf32>
    %54 = arith.negf %53 : vector<2x32xf32>
    %55 = math.exp %54 : vector<2x32xf32>
    %cst_32 = arith.constant 1.000000e+00 : f32
    %56 = vector.broadcast %cst_32 : f32 to vector<2x32xf32>
    %57 = arith.addf %56, %55 : vector<2x32xf32>
    %58 = arith.divf %56, %57 : vector<2x32xf32>
    %59 = arith.mulf %50, %32 : vector<2x32xf32>
    %60 = arith.mulf %44, %52 : vector<2x32xf32>
    %61 = arith.addf %59, %60 : vector<2x32xf32>
    %62 = math.tanh %61 : vector<2x32xf32>
    %63 = arith.mulf %58, %62 : vector<2x32xf32>
    %64 = vector.extract_strided_slice %30 {offsets = [1, 0], sizes = [1, 128], strides = [1, 1]} : vector<16x128xf32> to vector<1x128xf32>
    %65 = vector.extract_strided_slice %30 {offsets = [9, 0], sizes = [1, 128], strides = [1, 1]} : vector<16x128xf32> to vector<1x128xf32>
    %66 = tpu.concatenate %64, %65 in 0 : vector<1x128xf32>, vector<1x128xf32> -> vector<2x128xf32>
    %67 = arith.truncf %63 : vector<2x32xf32> to vector<2x32xbf16>
    %cst_33 = arith.constant dense<0.000000e+00> : vector<2x128xf32>
    %68 = tpu.matmul %67, %1, %cst_33 {dimension_numbers = #tpu.dot_dimension_numbers<[1], [0], [0], [1], [0, 0, 1, 1], [], []>} : vector<2x32xbf16>, vector<32x128xbf16>, vector<2x128xf32> -> vector<2x128xf32>
    %69 = arith.addf %66, %68 : vector<2x128xf32>
    %70 = vector.extract_strided_slice %69 {offsets = [0, 0], sizes = [2, 32], strides = [1, 1]} : vector<2x128xf32> to vector<2x32xf32>
    %71 = arith.negf %70 : vector<2x32xf32>
    %72 = math.exp %71 : vector<2x32xf32>
    %cst_34 = arith.constant 1.000000e+00 : f32
    %73 = vector.broadcast %cst_34 : f32 to vector<2x32xf32>
    %74 = arith.addf %73, %72 : vector<2x32xf32>
    %75 = arith.divf %73, %74 : vector<2x32xf32>
    %76 = vector.extract_strided_slice %69 {offsets = [0, 32], sizes = [2, 32], strides = [1, 1]} : vector<2x128xf32> to vector<2x32xf32>
    %77 = arith.negf %76 : vector<2x32xf32>
    %78 = math.exp %77 : vector<2x32xf32>
    %cst_35 = arith.constant 1.000000e+00 : f32
    %79 = vector.broadcast %cst_35 : f32 to vector<2x32xf32>
    %80 = arith.addf %79, %78 : vector<2x32xf32>
    %81 = arith.divf %79, %80 : vector<2x32xf32>
    %82 = vector.extract_strided_slice %69 {offsets = [0, 64], sizes = [2, 32], strides = [1, 1]} : vector<2x128xf32> to vector<2x32xf32>
    %83 = math.tanh %82 : vector<2x32xf32>
    %84 = vector.extract_strided_slice %69 {offsets = [0, 96], sizes = [2, 32], strides = [1, 1]} : vector<2x128xf32> to vector<2x32xf32>
    %85 = arith.negf %84 : vector<2x32xf32>
    %86 = math.exp %85 : vector<2x32xf32>
    %cst_36 = arith.constant 1.000000e+00 : f32
    %87 = vector.broadcast %cst_36 : f32 to vector<2x32xf32>
    %88 = arith.addf %87, %86 : vector<2x32xf32>
    %89 = arith.divf %87, %88 : vector<2x32xf32>
    %90 = arith.mulf %81, %61 : vector<2x32xf32>
    %91 = arith.mulf %75, %83 : vector<2x32xf32>
    %92 = arith.addf %90, %91 : vector<2x32xf32>
    %93 = math.tanh %92 : vector<2x32xf32>
    %94 = arith.mulf %89, %93 : vector<2x32xf32>
    %95 = vector.extract_strided_slice %30 {offsets = [2, 0], sizes = [1, 128], strides = [1, 1]} : vector<16x128xf32> to vector<1x128xf32>
    %96 = vector.extract_strided_slice %30 {offsets = [10, 0], sizes = [1, 128], strides = [1, 1]} : vector<16x128xf32> to vector<1x128xf32>
    %97 = tpu.concatenate %95, %96 in 0 : vector<1x128xf32>, vector<1x128xf32> -> vector<2x128xf32>
    %98 = arith.truncf %94 : vector<2x32xf32> to vector<2x32xbf16>
    %cst_37 = arith.constant dense<0.000000e+00> : vector<2x128xf32>
    %99 = tpu.matmul %98, %1, %cst_37 {dimension_numbers = #tpu.dot_dimension_numbers<[1], [0], [0], [1], [0, 0, 1, 1], [], []>} : vector<2x32xbf16>, vector<32x128xbf16>, vector<2x128xf32> -> vector<2x128xf32>
    %100 = arith.addf %97, %99 : vector<2x128xf32>
    %101 = vector.extract_strided_slice %100 {offsets = [0, 0], sizes = [2, 32], strides = [1, 1]} : vector<2x128xf32> to vector<2x32xf32>
    %102 = arith.negf %101 : vector<2x32xf32>
    %103 = math.exp %102 : vector<2x32xf32>
    %cst_38 = arith.constant 1.000000e+00 : f32
    %104 = vector.broadcast %cst_38 : f32 to vector<2x32xf32>
    %105 = arith.addf %104, %103 : vector<2x32xf32>
    %106 = arith.divf %104, %105 : vector<2x32xf32>
    %107 = vector.extract_strided_slice %100 {offsets = [0, 32], sizes = [2, 32], strides = [1, 1]} : vector<2x128xf32> to vector<2x32xf32>
    %108 = arith.negf %107 : vector<2x32xf32>
    %109 = math.exp %108 : vector<2x32xf32>
    %cst_39 = arith.constant 1.000000e+00 : f32
    %110 = vector.broadcast %cst_39 : f32 to vector<2x32xf32>
    %111 = arith.addf %110, %109 : vector<2x32xf32>
    %112 = arith.divf %110, %111 : vector<2x32xf32>
    %113 = vector.extract_strided_slice %100 {offsets = [0, 64], sizes = [2, 32], strides = [1, 1]} : vector<2x128xf32> to vector<2x32xf32>
    %114 = math.tanh %113 : vector<2x32xf32>
    %115 = vector.extract_strided_slice %100 {offsets = [0, 96], sizes = [2, 32], strides = [1, 1]} : vector<2x128xf32> to vector<2x32xf32>
    %116 = arith.negf %115 : vector<2x32xf32>
    %117 = math.exp %116 : vector<2x32xf32>
    %cst_40 = arith.constant 1.000000e+00 : f32
    %118 = vector.broadcast %cst_40 : f32 to vector<2x32xf32>
    %119 = arith.addf %118, %117 : vector<2x32xf32>
    %120 = arith.divf %118, %119 : vector<2x32xf32>
    %121 = arith.mulf %112, %92 : vector<2x32xf32>
    %122 = arith.mulf %106, %114 : vector<2x32xf32>
    %123 = arith.addf %121, %122 : vector<2x32xf32>
    %124 = math.tanh %123 : vector<2x32xf32>
    %125 = arith.mulf %120, %124 : vector<2x32xf32>
    %126 = vector.extract_strided_slice %30 {offsets = [3, 0], sizes = [1, 128], strides = [1, 1]} : vector<16x128xf32> to vector<1x128xf32>
    %127 = vector.extract_strided_slice %30 {offsets = [11, 0], sizes = [1, 128], strides = [1, 1]} : vector<16x128xf32> to vector<1x128xf32>
    %128 = tpu.concatenate %126, %127 in 0 : vector<1x128xf32>, vector<1x128xf32> -> vector<2x128xf32>
    %129 = arith.truncf %125 : vector<2x32xf32> to vector<2x32xbf16>
    %cst_41 = arith.constant dense<0.000000e+00> : vector<2x128xf32>
    %130 = tpu.matmul %129, %1, %cst_41 {dimension_numbers = #tpu.dot_dimension_numbers<[1], [0], [0], [1], [0, 0, 1, 1], [], []>} : vector<2x32xbf16>, vector<32x128xbf16>, vector<2x128xf32> -> vector<2x128xf32>
    %131 = arith.addf %128, %130 : vector<2x128xf32>
    %132 = vector.extract_strided_slice %131 {offsets = [0, 0], sizes = [2, 32], strides = [1, 1]} : vector<2x128xf32> to vector<2x32xf32>
    %133 = arith.negf %132 : vector<2x32xf32>
    %134 = math.exp %133 : vector<2x32xf32>
    %cst_42 = arith.constant 1.000000e+00 : f32
    %135 = vector.broadcast %cst_42 : f32 to vector<2x32xf32>
    %136 = arith.addf %135, %134 : vector<2x32xf32>
    %137 = arith.divf %135, %136 : vector<2x32xf32>
    %138 = vector.extract_strided_slice %131 {offsets = [0, 32], sizes = [2, 32], strides = [1, 1]} : vector<2x128xf32> to vector<2x32xf32>
    %139 = arith.negf %138 : vector<2x32xf32>
    %140 = math.exp %139 : vector<2x32xf32>
    %cst_43 = arith.constant 1.000000e+00 : f32
    %141 = vector.broadcast %cst_43 : f32 to vector<2x32xf32>
    %142 = arith.addf %141, %140 : vector<2x32xf32>
    %143 = arith.divf %141, %142 : vector<2x32xf32>
    %144 = vector.extract_strided_slice %131 {offsets = [0, 64], sizes = [2, 32], strides = [1, 1]} : vector<2x128xf32> to vector<2x32xf32>
    %145 = math.tanh %144 : vector<2x32xf32>
    %146 = vector.extract_strided_slice %131 {offsets = [0, 96], sizes = [2, 32], strides = [1, 1]} : vector<2x128xf32> to vector<2x32xf32>
    %147 = arith.negf %146 : vector<2x32xf32>
    %148 = math.exp %147 : vector<2x32xf32>
    %cst_44 = arith.constant 1.000000e+00 : f32
    %149 = vector.broadcast %cst_44 : f32 to vector<2x32xf32>
    %150 = arith.addf %149, %148 : vector<2x32xf32>
    %151 = arith.divf %149, %150 : vector<2x32xf32>
    %152 = arith.mulf %143, %123 : vector<2x32xf32>
    %153 = arith.mulf %137, %145 : vector<2x32xf32>
    %154 = arith.addf %152, %153 : vector<2x32xf32>
    %155 = math.tanh %154 : vector<2x32xf32>
    %156 = arith.mulf %151, %155 : vector<2x32xf32>
    %157 = vector.extract_strided_slice %30 {offsets = [4, 0], sizes = [1, 128], strides = [1, 1]} : vector<16x128xf32> to vector<1x128xf32>
    %158 = vector.extract_strided_slice %30 {offsets = [12, 0], sizes = [1, 128], strides = [1, 1]} : vector<16x128xf32> to vector<1x128xf32>
    %159 = tpu.concatenate %157, %158 in 0 : vector<1x128xf32>, vector<1x128xf32> -> vector<2x128xf32>
    %160 = arith.truncf %156 : vector<2x32xf32> to vector<2x32xbf16>
    %cst_45 = arith.constant dense<0.000000e+00> : vector<2x128xf32>
    %161 = tpu.matmul %160, %1, %cst_45 {dimension_numbers = #tpu.dot_dimension_numbers<[1], [0], [0], [1], [0, 0, 1, 1], [], []>} : vector<2x32xbf16>, vector<32x128xbf16>, vector<2x128xf32> -> vector<2x128xf32>
    %162 = arith.addf %159, %161 : vector<2x128xf32>
    %163 = vector.extract_strided_slice %162 {offsets = [0, 0], sizes = [2, 32], strides = [1, 1]} : vector<2x128xf32> to vector<2x32xf32>
    %164 = arith.negf %163 : vector<2x32xf32>
    %165 = math.exp %164 : vector<2x32xf32>
    %cst_46 = arith.constant 1.000000e+00 : f32
    %166 = vector.broadcast %cst_46 : f32 to vector<2x32xf32>
    %167 = arith.addf %166, %165 : vector<2x32xf32>
    %168 = arith.divf %166, %167 : vector<2x32xf32>
    %169 = vector.extract_strided_slice %162 {offsets = [0, 32], sizes = [2, 32], strides = [1, 1]} : vector<2x128xf32> to vector<2x32xf32>
    %170 = arith.negf %169 : vector<2x32xf32>
    %171 = math.exp %170 : vector<2x32xf32>
    %cst_47 = arith.constant 1.000000e+00 : f32
    %172 = vector.broadcast %cst_47 : f32 to vector<2x32xf32>
    %173 = arith.addf %172, %171 : vector<2x32xf32>
    %174 = arith.divf %172, %173 : vector<2x32xf32>
    %175 = vector.extract_strided_slice %162 {offsets = [0, 64], sizes = [2, 32], strides = [1, 1]} : vector<2x128xf32> to vector<2x32xf32>
    %176 = math.tanh %175 : vector<2x32xf32>
    %177 = vector.extract_strided_slice %162 {offsets = [0, 96], sizes = [2, 32], strides = [1, 1]} : vector<2x128xf32> to vector<2x32xf32>
    %178 = arith.negf %177 : vector<2x32xf32>
    %179 = math.exp %178 : vector<2x32xf32>
    %cst_48 = arith.constant 1.000000e+00 : f32
    %180 = vector.broadcast %cst_48 : f32 to vector<2x32xf32>
    %181 = arith.addf %180, %179 : vector<2x32xf32>
    %182 = arith.divf %180, %181 : vector<2x32xf32>
    %183 = arith.mulf %174, %154 : vector<2x32xf32>
    %184 = arith.mulf %168, %176 : vector<2x32xf32>
    %185 = arith.addf %183, %184 : vector<2x32xf32>
    %186 = math.tanh %185 : vector<2x32xf32>
    %187 = arith.mulf %182, %186 : vector<2x32xf32>
    %188 = vector.extract_strided_slice %30 {offsets = [5, 0], sizes = [1, 128], strides = [1, 1]} : vector<16x128xf32> to vector<1x128xf32>
    %189 = vector.extract_strided_slice %30 {offsets = [13, 0], sizes = [1, 128], strides = [1, 1]} : vector<16x128xf32> to vector<1x128xf32>
    %190 = tpu.concatenate %188, %189 in 0 : vector<1x128xf32>, vector<1x128xf32> -> vector<2x128xf32>
    %191 = arith.truncf %187 : vector<2x32xf32> to vector<2x32xbf16>
    %cst_49 = arith.constant dense<0.000000e+00> : vector<2x128xf32>
    %192 = tpu.matmul %191, %1, %cst_49 {dimension_numbers = #tpu.dot_dimension_numbers<[1], [0], [0], [1], [0, 0, 1, 1], [], []>} : vector<2x32xbf16>, vector<32x128xbf16>, vector<2x128xf32> -> vector<2x128xf32>
    %193 = arith.addf %190, %192 : vector<2x128xf32>
    %194 = vector.extract_strided_slice %193 {offsets = [0, 0], sizes = [2, 32], strides = [1, 1]} : vector<2x128xf32> to vector<2x32xf32>
    %195 = arith.negf %194 : vector<2x32xf32>
    %196 = math.exp %195 : vector<2x32xf32>
    %cst_50 = arith.constant 1.000000e+00 : f32
    %197 = vector.broadcast %cst_50 : f32 to vector<2x32xf32>
    %198 = arith.addf %197, %196 : vector<2x32xf32>
    %199 = arith.divf %197, %198 : vector<2x32xf32>
    %200 = vector.extract_strided_slice %193 {offsets = [0, 32], sizes = [2, 32], strides = [1, 1]} : vector<2x128xf32> to vector<2x32xf32>
    %201 = arith.negf %200 : vector<2x32xf32>
    %202 = math.exp %201 : vector<2x32xf32>
    %cst_51 = arith.constant 1.000000e+00 : f32
    %203 = vector.broadcast %cst_51 : f32 to vector<2x32xf32>
    %204 = arith.addf %203, %202 : vector<2x32xf32>
    %205 = arith.divf %203, %204 : vector<2x32xf32>
    %206 = vector.extract_strided_slice %193 {offsets = [0, 64], sizes = [2, 32], strides = [1, 1]} : vector<2x128xf32> to vector<2x32xf32>
    %207 = math.tanh %206 : vector<2x32xf32>
    %208 = vector.extract_strided_slice %193 {offsets = [0, 96], sizes = [2, 32], strides = [1, 1]} : vector<2x128xf32> to vector<2x32xf32>
    %209 = arith.negf %208 : vector<2x32xf32>
    %210 = math.exp %209 : vector<2x32xf32>
    %cst_52 = arith.constant 1.000000e+00 : f32
    %211 = vector.broadcast %cst_52 : f32 to vector<2x32xf32>
    %212 = arith.addf %211, %210 : vector<2x32xf32>
    %213 = arith.divf %211, %212 : vector<2x32xf32>
    %214 = arith.mulf %205, %185 : vector<2x32xf32>
    %215 = arith.mulf %199, %207 : vector<2x32xf32>
    %216 = arith.addf %214, %215 : vector<2x32xf32>
    %217 = math.tanh %216 : vector<2x32xf32>
    %218 = arith.mulf %213, %217 : vector<2x32xf32>
    %219 = vector.extract_strided_slice %30 {offsets = [6, 0], sizes = [1, 128], strides = [1, 1]} : vector<16x128xf32> to vector<1x128xf32>
    %220 = vector.extract_strided_slice %30 {offsets = [14, 0], sizes = [1, 128], strides = [1, 1]} : vector<16x128xf32> to vector<1x128xf32>
    %221 = tpu.concatenate %219, %220 in 0 : vector<1x128xf32>, vector<1x128xf32> -> vector<2x128xf32>
    %222 = arith.truncf %218 : vector<2x32xf32> to vector<2x32xbf16>
    %cst_53 = arith.constant dense<0.000000e+00> : vector<2x128xf32>
    %223 = tpu.matmul %222, %1, %cst_53 {dimension_numbers = #tpu.dot_dimension_numbers<[1], [0], [0], [1], [0, 0, 1, 1], [], []>} : vector<2x32xbf16>, vector<32x128xbf16>, vector<2x128xf32> -> vector<2x128xf32>
    %224 = arith.addf %221, %223 : vector<2x128xf32>
    %225 = vector.extract_strided_slice %224 {offsets = [0, 0], sizes = [2, 32], strides = [1, 1]} : vector<2x128xf32> to vector<2x32xf32>
    %226 = arith.negf %225 : vector<2x32xf32>
    %227 = math.exp %226 : vector<2x32xf32>
    %cst_54 = arith.constant 1.000000e+00 : f32
    %228 = vector.broadcast %cst_54 : f32 to vector<2x32xf32>
    %229 = arith.addf %228, %227 : vector<2x32xf32>
    %230 = arith.divf %228, %229 : vector<2x32xf32>
    %231 = vector.extract_strided_slice %224 {offsets = [0, 32], sizes = [2, 32], strides = [1, 1]} : vector<2x128xf32> to vector<2x32xf32>
    %232 = arith.negf %231 : vector<2x32xf32>
    %233 = math.exp %232 : vector<2x32xf32>
    %cst_55 = arith.constant 1.000000e+00 : f32
    %234 = vector.broadcast %cst_55 : f32 to vector<2x32xf32>
    %235 = arith.addf %234, %233 : vector<2x32xf32>
    %236 = arith.divf %234, %235 : vector<2x32xf32>
    %237 = vector.extract_strided_slice %224 {offsets = [0, 64], sizes = [2, 32], strides = [1, 1]} : vector<2x128xf32> to vector<2x32xf32>
    %238 = math.tanh %237 : vector<2x32xf32>
    %239 = vector.extract_strided_slice %224 {offsets = [0, 96], sizes = [2, 32], strides = [1, 1]} : vector<2x128xf32> to vector<2x32xf32>
    %240 = arith.negf %239 : vector<2x32xf32>
    %241 = math.exp %240 : vector<2x32xf32>
    %cst_56 = arith.constant 1.000000e+00 : f32
    %242 = vector.broadcast %cst_56 : f32 to vector<2x32xf32>
    %243 = arith.addf %242, %241 : vector<2x32xf32>
    %244 = arith.divf %242, %243 : vector<2x32xf32>
    %245 = arith.mulf %236, %216 : vector<2x32xf32>
    %246 = arith.mulf %230, %238 : vector<2x32xf32>
    %247 = arith.addf %245, %246 : vector<2x32xf32>
    %248 = math.tanh %247 : vector<2x32xf32>
    %249 = arith.mulf %244, %248 : vector<2x32xf32>
    %250 = vector.extract_strided_slice %30 {offsets = [7, 0], sizes = [1, 128], strides = [1, 1]} : vector<16x128xf32> to vector<1x128xf32>
    %251 = vector.extract_strided_slice %30 {offsets = [15, 0], sizes = [1, 128], strides = [1, 1]} : vector<16x128xf32> to vector<1x128xf32>
    %252 = tpu.concatenate %250, %251 in 0 : vector<1x128xf32>, vector<1x128xf32> -> vector<2x128xf32>
    %253 = arith.truncf %249 : vector<2x32xf32> to vector<2x32xbf16>
    %cst_57 = arith.constant dense<0.000000e+00> : vector<2x128xf32>
    %254 = tpu.matmul %253, %1, %cst_57 {dimension_numbers = #tpu.dot_dimension_numbers<[1], [0], [0], [1], [0, 0, 1, 1], [], []>} : vector<2x32xbf16>, vector<32x128xbf16>, vector<2x128xf32> -> vector<2x128xf32>
    %255 = arith.addf %252, %254 : vector<2x128xf32>
    %256 = vector.extract_strided_slice %255 {offsets = [0, 0], sizes = [2, 32], strides = [1, 1]} : vector<2x128xf32> to vector<2x32xf32>
    %257 = arith.negf %256 : vector<2x32xf32>
    %258 = math.exp %257 : vector<2x32xf32>
    %cst_58 = arith.constant 1.000000e+00 : f32
    %259 = vector.broadcast %cst_58 : f32 to vector<2x32xf32>
    %260 = arith.addf %259, %258 : vector<2x32xf32>
    %261 = arith.divf %259, %260 : vector<2x32xf32>
    %262 = vector.extract_strided_slice %255 {offsets = [0, 32], sizes = [2, 32], strides = [1, 1]} : vector<2x128xf32> to vector<2x32xf32>
    %263 = arith.negf %262 : vector<2x32xf32>
    %264 = math.exp %263 : vector<2x32xf32>
    %cst_59 = arith.constant 1.000000e+00 : f32
    %265 = vector.broadcast %cst_59 : f32 to vector<2x32xf32>
    %266 = arith.addf %265, %264 : vector<2x32xf32>
    %267 = arith.divf %265, %266 : vector<2x32xf32>
    %268 = vector.extract_strided_slice %255 {offsets = [0, 64], sizes = [2, 32], strides = [1, 1]} : vector<2x128xf32> to vector<2x32xf32>
    %269 = math.tanh %268 : vector<2x32xf32>
    %270 = vector.extract_strided_slice %255 {offsets = [0, 96], sizes = [2, 32], strides = [1, 1]} : vector<2x128xf32> to vector<2x32xf32>
    %271 = arith.negf %270 : vector<2x32xf32>
    %272 = math.exp %271 : vector<2x32xf32>
    %cst_60 = arith.constant 1.000000e+00 : f32
    %273 = vector.broadcast %cst_60 : f32 to vector<2x32xf32>
    %274 = arith.addf %273, %272 : vector<2x32xf32>
    %275 = arith.divf %273, %274 : vector<2x32xf32>
    %276 = arith.mulf %267, %247 : vector<2x32xf32>
    %277 = arith.mulf %261, %269 : vector<2x32xf32>
    %278 = arith.addf %276, %277 : vector<2x32xf32>
    %279 = math.tanh %278 : vector<2x32xf32>
    %280 = arith.mulf %275, %279 : vector<2x32xf32>
    %281 = vector.extract_strided_slice %63 {offsets = [0, 0], sizes = [1, 32], strides = [1, 1]} : vector<2x32xf32> to vector<1x32xf32>
    %282 = vector.extract_strided_slice %94 {offsets = [0, 0], sizes = [1, 32], strides = [1, 1]} : vector<2x32xf32> to vector<1x32xf32>
    %283 = vector.extract_strided_slice %125 {offsets = [0, 0], sizes = [1, 32], strides = [1, 1]} : vector<2x32xf32> to vector<1x32xf32>
    %284 = vector.extract_strided_slice %156 {offsets = [0, 0], sizes = [1, 32], strides = [1, 1]} : vector<2x32xf32> to vector<1x32xf32>
    %285 = vector.extract_strided_slice %187 {offsets = [0, 0], sizes = [1, 32], strides = [1, 1]} : vector<2x32xf32> to vector<1x32xf32>
    %286 = vector.extract_strided_slice %218 {offsets = [0, 0], sizes = [1, 32], strides = [1, 1]} : vector<2x32xf32> to vector<1x32xf32>
    %287 = vector.extract_strided_slice %249 {offsets = [0, 0], sizes = [1, 32], strides = [1, 1]} : vector<2x32xf32> to vector<1x32xf32>
    %288 = vector.extract_strided_slice %280 {offsets = [0, 0], sizes = [1, 32], strides = [1, 1]} : vector<2x32xf32> to vector<1x32xf32>
    %289 = tpu.concatenate %281, %282, %283, %284, %285, %286, %287, %288 in 0 : vector<1x32xf32>, vector<1x32xf32>, vector<1x32xf32>, vector<1x32xf32>, vector<1x32xf32>, vector<1x32xf32>, vector<1x32xf32>, vector<1x32xf32> -> vector<8x32xf32>
    %c0_61 = arith.constant 0 : index
    %c0_62 = arith.constant 0 : index
    %c0_63 = arith.constant 0 : index
    %290 = vector.load %arg15[%c0_61, %c0_62, %c0_63] : memref<2x8x32xf32, #tpu.memory_space<vmem>>, vector<1x8x32xf32>
    %291 = vector.shape_cast %290 : vector<1x8x32xf32> to vector<8x32xf32>
    %292 = vector.shape_cast %289 : vector<8x32xf32> to vector<1x8x32xf32>
    tpu.vector_store %arg15[%c0_61, %c0_62, %c0_63], %292 {strides = array<i32>} : memref<2x8x32xf32, #tpu.memory_space<vmem>>, vector<1x8x32xf32>,
    %293 = vector.extract_strided_slice %63 {offsets = [1, 0], sizes = [1, 32], strides = [1, 1]} : vector<2x32xf32> to vector<1x32xf32>
    %294 = vector.extract_strided_slice %94 {offsets = [1, 0], sizes = [1, 32], strides = [1, 1]} : vector<2x32xf32> to vector<1x32xf32>
    %295 = vector.extract_strided_slice %125 {offsets = [1, 0], sizes = [1, 32], strides = [1, 1]} : vector<2x32xf32> to vector<1x32xf32>
    %296 = vector.extract_strided_slice %156 {offsets = [1, 0], sizes = [1, 32], strides = [1, 1]} : vector<2x32xf32> to vector<1x32xf32>
    %297 = vector.extract_strided_slice %187 {offsets = [1, 0], sizes = [1, 32], strides = [1, 1]} : vector<2x32xf32> to vector<1x32xf32>
    %298 = vector.extract_strided_slice %218 {offsets = [1, 0], sizes = [1, 32], strides = [1, 1]} : vector<2x32xf32> to vector<1x32xf32>
    %299 = vector.extract_strided_slice %249 {offsets = [1, 0], sizes = [1, 32], strides = [1, 1]} : vector<2x32xf32> to vector<1x32xf32>
    %300 = vector.extract_strided_slice %280 {offsets = [1, 0], sizes = [1, 32], strides = [1, 1]} : vector<2x32xf32> to vector<1x32xf32>
    %301 = tpu.concatenate %293, %294, %295, %296, %297, %298, %299, %300 in 0 : vector<1x32xf32>, vector<1x32xf32>, vector<1x32xf32>, vector<1x32xf32>, vector<1x32xf32>, vector<1x32xf32>, vector<1x32xf32>, vector<1x32xf32> -> vector<8x32xf32>
    %c1 = arith.constant 1 : index
    %c0_64 = arith.constant 0 : index
    %c0_65 = arith.constant 0 : index
    %302 = vector.load %arg15[%c1, %c0_64, %c0_65] : memref<2x8x32xf32, #tpu.memory_space<vmem>>, vector<1x8x32xf32>
    %303 = vector.shape_cast %302 : vector<1x8x32xf32> to vector<8x32xf32>
    %304 = vector.shape_cast %301 : vector<8x32xf32> to vector<1x8x32xf32>
    tpu.vector_store %arg15[%c1, %c0_64, %c0_65], %304 {strides = array<i32>} : memref<2x8x32xf32, #tpu.memory_space<vmem>>, vector<1x8x32xf32>,
    %cst_66 = arith.constant 0.000000e+00 : f32
    %305 = vector.broadcast %cst_66 : f32 to vector<2x32xf32>
    %306 = vector.extract_strided_slice %23 {offsets = [0, 0], sizes = [1, 32], strides = [1, 1]} : vector<12x32xf32> to vector<1x32xf32>
    %307 = vector.extract_strided_slice %23 {offsets = [6, 0], sizes = [1, 32], strides = [1, 1]} : vector<12x32xf32> to vector<1x32xf32>
    %308 = tpu.concatenate %306, %307 in 0 : vector<1x32xf32>, vector<1x32xf32> -> vector<2x32xf32>
    %309 = arith.truncf %308 : vector<2x32xf32> to vector<2x32xbf16>
    %cst_67 = arith.constant dense<0.000000e+00> : vector<2x128xf32>
    %310 = tpu.matmul %309, %3, %cst_67 {dimension_numbers = #tpu.dot_dimension_numbers<[1], [0], [0], [1], [0, 0, 1, 1], [], []>} : vector<2x32xbf16>, vector<32x128xbf16>, vector<2x128xf32> -> vector<2x128xf32>
    %311 = arith.truncf %305 : vector<2x32xf32> to vector<2x32xbf16>
    %cst_68 = arith.constant dense<0.000000e+00> : vector<2x128xf32>
    %312 = tpu.matmul %311, %5, %cst_68 {dimension_numbers = #tpu.dot_dimension_numbers<[1], [0], [0], [1], [0, 0, 1, 1], [], []>} : vector<2x32xbf16>, vector<32x128xbf16>, vector<2x128xf32> -> vector<2x128xf32>
    %313 = arith.addf %310, %312 : vector<2x128xf32>
    %314 = arith.truncf %280 : vector<2x32xf32> to vector<2x32xbf16>
    %cst_69 = arith.constant dense<0.000000e+00> : vector<2x128xf32>
    %315 = tpu.matmul %314, %7, %cst_69 {dimension_numbers = #tpu.dot_dimension_numbers<[1], [0], [0], [1], [0, 0, 1, 1], [], []>} : vector<2x32xbf16>, vector<32x128xbf16>, vector<2x128xf32> -> vector<2x128xf32>
    %316 = arith.addf %313, %315 : vector<2x128xf32>
    %317 = arith.addf %316, %16 : vector<2x128xf32>
    %318 = vector.extract_strided_slice %317 {offsets = [0, 0], sizes = [2, 32], strides = [1, 1]} : vector<2x128xf32> to vector<2x32xf32>
    %319 = arith.negf %318 : vector<2x32xf32>
    %320 = math.exp %319 : vector<2x32xf32>
    %cst_70 = arith.constant 1.000000e+00 : f32
    %321 = vector.broadcast %cst_70 : f32 to vector<2x32xf32>
    %322 = arith.addf %321, %320 : vector<2x32xf32>
    %323 = arith.divf %321, %322 : vector<2x32xf32>
    %324 = vector.extract_strided_slice %317 {offsets = [0, 32], sizes = [2, 32], strides = [1, 1]} : vector<2x128xf32> to vector<2x32xf32>
    %325 = arith.negf %324 : vector<2x32xf32>
    %326 = math.exp %325 : vector<2x32xf32>
    %cst_71 = arith.constant 1.000000e+00 : f32
    %327 = vector.broadcast %cst_71 : f32 to vector<2x32xf32>
    %328 = arith.addf %327, %326 : vector<2x32xf32>
    %329 = arith.divf %327, %328 : vector<2x32xf32>
    %330 = vector.extract_strided_slice %317 {offsets = [0, 64], sizes = [2, 32], strides = [1, 1]} : vector<2x128xf32> to vector<2x32xf32>
    %331 = math.tanh %330 : vector<2x32xf32>
    %332 = vector.extract_strided_slice %317 {offsets = [0, 96], sizes = [2, 32], strides = [1, 1]} : vector<2x128xf32> to vector<2x32xf32>
    %333 = arith.negf %332 : vector<2x32xf32>
    %334 = math.exp %333 : vector<2x32xf32>
    %cst_72 = arith.constant 1.000000e+00 : f32
    %335 = vector.broadcast %cst_72 : f32 to vector<2x32xf32>
    %336 = arith.addf %335, %334 : vector<2x32xf32>
    %337 = arith.divf %335, %336 : vector<2x32xf32>
    %338 = arith.mulf %329, %278 : vector<2x32xf32>
    %339 = arith.mulf %323, %331 : vector<2x32xf32>
    %340 = arith.addf %338, %339 : vector<2x32xf32>
    %341 = math.tanh %340 : vector<2x32xf32>
    %342 = arith.mulf %337, %341 : vector<2x32xf32>
    %343 = arith.truncf %342 : vector<2x32xf32> to vector<2x32xbf16>
    %cst_73 = arith.constant dense<0.000000e+00> : vector<2x32xf32>
    %344 = tpu.matmul %343, %9, %cst_73 {dimension_numbers = #tpu.dot_dimension_numbers<[1], [0], [0], [1], [0, 0, 1, 1], [], []>} : vector<2x32xbf16>, vector<32x32xbf16>, vector<2x32xf32> -> vector<2x32xf32>
    %345 = arith.addf %344, %19 : vector<2x32xf32>
    %346 = arith.mulf %345, %63 : vector<2x32xf32>
    %cst_74 = arith.constant dense<0.000000e+00> : vector<2xf32>
    %347 = vector.multi_reduction <add>, %346, %cst_74 [1] : vector<2x32xf32> to vector<2xf32>
    %348 = vector.shape_cast %347 : vector<2xf32> to vector<2x1xf32>
    %349 = arith.mulf %345, %94 : vector<2x32xf32>
    %cst_75 = arith.constant dense<0.000000e+00> : vector<2xf32>
    %350 = vector.multi_reduction <add>, %349, %cst_75 [1] : vector<2x32xf32> to vector<2xf32>
    %351 = vector.shape_cast %350 : vector<2xf32> to vector<2x1xf32>
    %352 = arith.mulf %345, %125 : vector<2x32xf32>
    %cst_76 = arith.constant dense<0.000000e+00> : vector<2xf32>
    %353 = vector.multi_reduction <add>, %352, %cst_76 [1] : vector<2x32xf32> to vector<2xf32>
    %354 = vector.shape_cast %353 : vector<2xf32> to vector<2x1xf32>
    %355 = arith.mulf %345, %156 : vector<2x32xf32>
    %cst_77 = arith.constant dense<0.000000e+00> : vector<2xf32>
    %356 = vector.multi_reduction <add>, %355, %cst_77 [1] : vector<2x32xf32> to vector<2xf32>
    %357 = vector.shape_cast %356 : vector<2xf32> to vector<2x1xf32>
    %358 = arith.mulf %345, %187 : vector<2x32xf32>
    %cst_78 = arith.constant dense<0.000000e+00> : vector<2xf32>
    %359 = vector.multi_reduction <add>, %358, %cst_78 [1] : vector<2x32xf32> to vector<2xf32>
    %360 = vector.shape_cast %359 : vector<2xf32> to vector<2x1xf32>
    %361 = arith.mulf %345, %218 : vector<2x32xf32>
    %cst_79 = arith.constant dense<0.000000e+00> : vector<2xf32>
    %362 = vector.multi_reduction <add>, %361, %cst_79 [1] : vector<2x32xf32> to vector<2xf32>
    %363 = vector.shape_cast %362 : vector<2xf32> to vector<2x1xf32>
    %364 = arith.mulf %345, %249 : vector<2x32xf32>
    %cst_80 = arith.constant dense<0.000000e+00> : vector<2xf32>
    %365 = vector.multi_reduction <add>, %364, %cst_80 [1] : vector<2x32xf32> to vector<2xf32>
    %366 = vector.shape_cast %365 : vector<2xf32> to vector<2x1xf32>
    %367 = arith.mulf %345, %280 : vector<2x32xf32>
    %cst_81 = arith.constant dense<0.000000e+00> : vector<2xf32>
    %368 = vector.multi_reduction <add>, %367, %cst_81 [1] : vector<2x32xf32> to vector<2xf32>
    %369 = vector.shape_cast %368 : vector<2xf32> to vector<2x1xf32>
    %370 = tpu.concatenate %348, %351, %354, %357, %360, %363, %366, %369 in 1 : vector<2x1xf32>, vector<2x1xf32>, vector<2x1xf32>, vector<2x1xf32>, vector<2x1xf32>, vector<2x1xf32>, vector<2x1xf32>, vector<2x1xf32> -> vector<2x8xf32>
    %cst_82 = arith.constant dense<0xFF800000> : vector<2xf32>
    %371 = vector.multi_reduction <maximumf>, %370, %cst_82 [1] : vector<2x8xf32> to vector<2xf32>
    %372 = vector.shape_cast %371 : vector<2xf32> to vector<2x1xf32>
    %373 = vector.broadcast %372 : vector<2x1xf32> to vector<2x8xf32>
    %374 = arith.subf %370, %373 : vector<2x8xf32>
    %375 = math.exp %374 : vector<2x8xf32>
    %cst_83 = arith.constant dense<0.000000e+00> : vector<2xf32>
    %376 = vector.multi_reduction <add>, %375, %cst_83 [1] : vector<2x8xf32> to vector<2xf32>
    %377 = vector.shape_cast %376 : vector<2xf32> to vector<2x1xf32>
    %378 = tpu.reciprocal %377 {approx = true} : vector<2x1xf32> -> vector<2x1xf32>
    %379 = vector.broadcast %378 : vector<2x1xf32> to vector<2x8xf32>
    %380 = arith.mulf %375, %379 : vector<2x8xf32>
    %cst_84 = arith.constant 0.000000e+00 : f32
    %381 = vector.broadcast %cst_84 : f32 to vector<2x32xf32>
    %382 = vector.extract_strided_slice %380 {offsets = [0, 0], sizes = [2, 1], strides = [1, 1]} : vector<2x8xf32> to vector<2x1xf32>
    %383 = vector.broadcast %382 : vector<2x1xf32> to vector<2x32xf32>
    %384 = arith.mulf %383, %63 : vector<2x32xf32>
    %385 = arith.addf %381, %384 : vector<2x32xf32>
    %386 = vector.extract_strided_slice %380 {offsets = [0, 1], sizes = [2, 1], strides = [1, 1]} : vector<2x8xf32> to vector<2x1xf32>
    %387 = vector.broadcast %386 : vector<2x1xf32> to vector<2x32xf32>
    %388 = arith.mulf %387, %94 : vector<2x32xf32>
    %389 = arith.addf %385, %388 : vector<2x32xf32>
    %390 = vector.extract_strided_slice %380 {offsets = [0, 2], sizes = [2, 1], strides = [1, 1]} : vector<2x8xf32> to vector<2x1xf32>
    %391 = vector.broadcast %390 : vector<2x1xf32> to vector<2x32xf32>
    %392 = arith.mulf %391, %125 : vector<2x32xf32>
    %393 = arith.addf %389, %392 : vector<2x32xf32>
    %394 = vector.extract_strided_slice %380 {offsets = [0, 3], sizes = [2, 1], strides = [1, 1]} : vector<2x8xf32> to vector<2x1xf32>
    %395 = vector.broadcast %394 : vector<2x1xf32> to vector<2x32xf32>
    %396 = arith.mulf %395, %156 : vector<2x32xf32>
    %397 = arith.addf %393, %396 : vector<2x32xf32>
    %398 = vector.extract_strided_slice %380 {offsets = [0, 4], sizes = [2, 1], strides = [1, 1]} : vector<2x8xf32> to vector<2x1xf32>
    %399 = vector.broadcast %398 : vector<2x1xf32> to vector<2x32xf32>
    %400 = arith.mulf %399, %187 : vector<2x32xf32>
    %401 = arith.addf %397, %400 : vector<2x32xf32>
    %402 = vector.extract_strided_slice %380 {offsets = [0, 5], sizes = [2, 1], strides = [1, 1]} : vector<2x8xf32> to vector<2x1xf32>
    %403 = vector.broadcast %402 : vector<2x1xf32> to vector<2x32xf32>
    %404 = arith.mulf %403, %218 : vector<2x32xf32>
    %405 = arith.addf %401, %404 : vector<2x32xf32>
    %406 = vector.extract_strided_slice %380 {offsets = [0, 6], sizes = [2, 1], strides = [1, 1]} : vector<2x8xf32> to vector<2x1xf32>
    %407 = vector.broadcast %406 : vector<2x1xf32> to vector<2x32xf32>
    %408 = arith.mulf %407, %249 : vector<2x32xf32>
    %409 = arith.addf %405, %408 : vector<2x32xf32>
    %410 = vector.extract_strided_slice %380 {offsets = [0, 7], sizes = [2, 1], strides = [1, 1]} : vector<2x8xf32> to vector<2x1xf32>
    %411 = vector.broadcast %410 : vector<2x1xf32> to vector<2x32xf32>
    %412 = arith.mulf %411, %280 : vector<2x32xf32>
    %413 = arith.addf %409, %412 : vector<2x32xf32>
    %414 = vector.extract_strided_slice %23 {offsets = [1, 0], sizes = [1, 32], strides = [1, 1]} : vector<12x32xf32> to vector<1x32xf32>
    %415 = vector.extract_strided_slice %23 {offsets = [7, 0], sizes = [1, 32], strides = [1, 1]} : vector<12x32xf32> to vector<1x32xf32>
    %416 = tpu.concatenate %414, %415 in 0 : vector<1x32xf32>, vector<1x32xf32> -> vector<2x32xf32>
    %417 = arith.truncf %416 : vector<2x32xf32> to vector<2x32xbf16>
    %cst_85 = arith.constant dense<0.000000e+00> : vector<2x128xf32>
    %418 = tpu.matmul %417, %3, %cst_85 {dimension_numbers = #tpu.dot_dimension_numbers<[1], [0], [0], [1], [0, 0, 1, 1], [], []>} : vector<2x32xbf16>, vector<32x128xbf16>, vector<2x128xf32> -> vector<2x128xf32>
    %419 = arith.truncf %413 : vector<2x32xf32> to vector<2x32xbf16>
    %cst_86 = arith.constant dense<0.000000e+00> : vector<2x128xf32>
    %420 = tpu.matmul %419, %5, %cst_86 {dimension_numbers = #tpu.dot_dimension_numbers<[1], [0], [0], [1], [0, 0, 1, 1], [], []>} : vector<2x32xbf16>, vector<32x128xbf16>, vector<2x128xf32> -> vector<2x128xf32>
    %421 = arith.addf %418, %420 : vector<2x128xf32>
    %422 = arith.truncf %342 : vector<2x32xf32> to vector<2x32xbf16>
    %cst_87 = arith.constant dense<0.000000e+00> : vector<2x128xf32>
    %423 = tpu.matmul %422, %7, %cst_87 {dimension_numbers = #tpu.dot_dimension_numbers<[1], [0], [0], [1], [0, 0, 1, 1], [], []>} : vector<2x32xbf16>, vector<32x128xbf16>, vector<2x128xf32> -> vector<2x128xf32>
    %424 = arith.addf %421, %423 : vector<2x128xf32>
    %425 = arith.addf %424, %16 : vector<2x128xf32>
    %426 = vector.extract_strided_slice %425 {offsets = [0, 0], sizes = [2, 32], strides = [1, 1]} : vector<2x128xf32> to vector<2x32xf32>
    %427 = arith.negf %426 : vector<2x32xf32>
    %428 = math.exp %427 : vector<2x32xf32>
    %cst_88 = arith.constant 1.000000e+00 : f32
    %429 = vector.broadcast %cst_88 : f32 to vector<2x32xf32>
    %430 = arith.addf %429, %428 : vector<2x32xf32>
    %431 = arith.divf %429, %430 : vector<2x32xf32>
    %432 = vector.extract_strided_slice %425 {offsets = [0, 32], sizes = [2, 32], strides = [1, 1]} : vector<2x128xf32> to vector<2x32xf32>
    %433 = arith.negf %432 : vector<2x32xf32>
    %434 = math.exp %433 : vector<2x32xf32>
    %cst_89 = arith.constant 1.000000e+00 : f32
    %435 = vector.broadcast %cst_89 : f32 to vector<2x32xf32>
    %436 = arith.addf %435, %434 : vector<2x32xf32>
    %437 = arith.divf %435, %436 : vector<2x32xf32>
    %438 = vector.extract_strided_slice %425 {offsets = [0, 64], sizes = [2, 32], strides = [1, 1]} : vector<2x128xf32> to vector<2x32xf32>
    %439 = math.tanh %438 : vector<2x32xf32>
    %440 = vector.extract_strided_slice %425 {offsets = [0, 96], sizes = [2, 32], strides = [1, 1]} : vector<2x128xf32> to vector<2x32xf32>
    %441 = arith.negf %440 : vector<2x32xf32>
    %442 = math.exp %441 : vector<2x32xf32>
    %cst_90 = arith.constant 1.000000e+00 : f32
    %443 = vector.broadcast %cst_90 : f32 to vector<2x32xf32>
    %444 = arith.addf %443, %442 : vector<2x32xf32>
    %445 = arith.divf %443, %444 : vector<2x32xf32>
    %446 = arith.mulf %437, %340 : vector<2x32xf32>
    %447 = arith.mulf %431, %439 : vector<2x32xf32>
    %448 = arith.addf %446, %447 : vector<2x32xf32>
    %449 = math.tanh %448 : vector<2x32xf32>
    %450 = arith.mulf %445, %449 : vector<2x32xf32>
    %451 = arith.truncf %450 : vector<2x32xf32> to vector<2x32xbf16>
    %cst_91 = arith.constant dense<0.000000e+00> : vector<2x32xf32>
    %452 = tpu.matmul %451, %9, %cst_91 {dimension_numbers = #tpu.dot_dimension_numbers<[1], [0], [0], [1], [0, 0, 1, 1], [], []>} : vector<2x32xbf16>, vector<32x32xbf16>, vector<2x32xf32> -> vector<2x32xf32>
    %453 = arith.addf %452, %19 : vector<2x32xf32>
    %454 = arith.mulf %453, %63 : vector<2x32xf32>
    %cst_92 = arith.constant dense<0.000000e+00> : vector<2xf32>
    %455 = vector.multi_reduction <add>, %454, %cst_92 [1] : vector<2x32xf32> to vector<2xf32>
    %456 = vector.shape_cast %455 : vector<2xf32> to vector<2x1xf32>
    %457 = arith.mulf %453, %94 : vector<2x32xf32>
    %cst_93 = arith.constant dense<0.000000e+00> : vector<2xf32>
    %458 = vector.multi_reduction <add>, %457, %cst_93 [1] : vector<2x32xf32> to vector<2xf32>
    %459 = vector.shape_cast %458 : vector<2xf32> to vector<2x1xf32>
    %460 = arith.mulf %453, %125 : vector<2x32xf32>
    %cst_94 = arith.constant dense<0.000000e+00> : vector<2xf32>
    %461 = vector.multi_reduction <add>, %460, %cst_94 [1] : vector<2x32xf32> to vector<2xf32>
    %462 = vector.shape_cast %461 : vector<2xf32> to vector<2x1xf32>
    %463 = arith.mulf %453, %156 : vector<2x32xf32>
    %cst_95 = arith.constant dense<0.000000e+00> : vector<2xf32>
    %464 = vector.multi_reduction <add>, %463, %cst_95 [1] : vector<2x32xf32> to vector<2xf32>
    %465 = vector.shape_cast %464 : vector<2xf32> to vector<2x1xf32>
    %466 = arith.mulf %453, %187 : vector<2x32xf32>
    %cst_96 = arith.constant dense<0.000000e+00> : vector<2xf32>
    %467 = vector.multi_reduction <add>, %466, %cst_96 [1] : vector<2x32xf32> to vector<2xf32>
    %468 = vector.shape_cast %467 : vector<2xf32> to vector<2x1xf32>
    %469 = arith.mulf %453, %218 : vector<2x32xf32>
    %cst_97 = arith.constant dense<0.000000e+00> : vector<2xf32>
    %470 = vector.multi_reduction <add>, %469, %cst_97 [1] : vector<2x32xf32> to vector<2xf32>
    %471 = vector.shape_cast %470 : vector<2xf32> to vector<2x1xf32>
    %472 = arith.mulf %453, %249 : vector<2x32xf32>
    %cst_98 = arith.constant dense<0.000000e+00> : vector<2xf32>
    %473 = vector.multi_reduction <add>, %472, %cst_98 [1] : vector<2x32xf32> to vector<2xf32>
    %474 = vector.shape_cast %473 : vector<2xf32> to vector<2x1xf32>
    %475 = arith.mulf %453, %280 : vector<2x32xf32>
    %cst_99 = arith.constant dense<0.000000e+00> : vector<2xf32>
    %476 = vector.multi_reduction <add>, %475, %cst_99 [1] : vector<2x32xf32> to vector<2xf32>
    %477 = vector.shape_cast %476 : vector<2xf32> to vector<2x1xf32>
    %478 = tpu.concatenate %456, %459, %462, %465, %468, %471, %474, %477 in 1 : vector<2x1xf32>, vector<2x1xf32>, vector<2x1xf32>, vector<2x1xf32>, vector<2x1xf32>, vector<2x1xf32>, vector<2x1xf32>, vector<2x1xf32> -> vector<2x8xf32>
    %cst_100 = arith.constant dense<0xFF800000> : vector<2xf32>
    %479 = vector.multi_reduction <maximumf>, %478, %cst_100 [1] : vector<2x8xf32> to vector<2xf32>
    %480 = vector.shape_cast %479 : vector<2xf32> to vector<2x1xf32>
    %481 = vector.broadcast %480 : vector<2x1xf32> to vector<2x8xf32>
    %482 = arith.subf %478, %481 : vector<2x8xf32>
    %483 = math.exp %482 : vector<2x8xf32>
    %cst_101 = arith.constant dense<0.000000e+00> : vector<2xf32>
    %484 = vector.multi_reduction <add>, %483, %cst_101 [1] : vector<2x8xf32> to vector<2xf32>
    %485 = vector.shape_cast %484 : vector<2xf32> to vector<2x1xf32>
    %486 = tpu.reciprocal %485 {approx = true} : vector<2x1xf32> -> vector<2x1xf32>
    %487 = vector.broadcast %486 : vector<2x1xf32> to vector<2x8xf32>
    %488 = arith.mulf %483, %487 : vector<2x8xf32>
    %cst_102 = arith.constant 0.000000e+00 : f32
    %489 = vector.broadcast %cst_102 : f32 to vector<2x32xf32>
    %490 = vector.extract_strided_slice %488 {offsets = [0, 0], sizes = [2, 1], strides = [1, 1]} : vector<2x8xf32> to vector<2x1xf32>
    %491 = vector.broadcast %490 : vector<2x1xf32> to vector<2x32xf32>
    %492 = arith.mulf %491, %63 : vector<2x32xf32>
    %493 = arith.addf %489, %492 : vector<2x32xf32>
    %494 = vector.extract_strided_slice %488 {offsets = [0, 1], sizes = [2, 1], strides = [1, 1]} : vector<2x8xf32> to vector<2x1xf32>
    %495 = vector.broadcast %494 : vector<2x1xf32> to vector<2x32xf32>
    %496 = arith.mulf %495, %94 : vector<2x32xf32>
    %497 = arith.addf %493, %496 : vector<2x32xf32>
    %498 = vector.extract_strided_slice %488 {offsets = [0, 2], sizes = [2, 1], strides = [1, 1]} : vector<2x8xf32> to vector<2x1xf32>
    %499 = vector.broadcast %498 : vector<2x1xf32> to vector<2x32xf32>
    %500 = arith.mulf %499, %125 : vector<2x32xf32>
    %501 = arith.addf %497, %500 : vector<2x32xf32>
    %502 = vector.extract_strided_slice %488 {offsets = [0, 3], sizes = [2, 1], strides = [1, 1]} : vector<2x8xf32> to vector<2x1xf32>
    %503 = vector.broadcast %502 : vector<2x1xf32> to vector<2x32xf32>
    %504 = arith.mulf %503, %156 : vector<2x32xf32>
    %505 = arith.addf %501, %504 : vector<2x32xf32>
    %506 = vector.extract_strided_slice %488 {offsets = [0, 4], sizes = [2, 1], strides = [1, 1]} : vector<2x8xf32> to vector<2x1xf32>
    %507 = vector.broadcast %506 : vector<2x1xf32> to vector<2x32xf32>
    %508 = arith.mulf %507, %187 : vector<2x32xf32>
    %509 = arith.addf %505, %508 : vector<2x32xf32>
    %510 = vector.extract_strided_slice %488 {offsets = [0, 5], sizes = [2, 1], strides = [1, 1]} : vector<2x8xf32> to vector<2x1xf32>
    %511 = vector.broadcast %510 : vector<2x1xf32> to vector<2x32xf32>
    %512 = arith.mulf %511, %218 : vector<2x32xf32>
    %513 = arith.addf %509, %512 : vector<2x32xf32>
    %514 = vector.extract_strided_slice %488 {offsets = [0, 6], sizes = [2, 1], strides = [1, 1]} : vector<2x8xf32> to vector<2x1xf32>
    %515 = vector.broadcast %514 : vector<2x1xf32> to vector<2x32xf32>
    %516 = arith.mulf %515, %249 : vector<2x32xf32>
    %517 = arith.addf %513, %516 : vector<2x32xf32>
    %518 = vector.extract_strided_slice %488 {offsets = [0, 7], sizes = [2, 1], strides = [1, 1]} : vector<2x8xf32> to vector<2x1xf32>
    %519 = vector.broadcast %518 : vector<2x1xf32> to vector<2x32xf32>
    %520 = arith.mulf %519, %280 : vector<2x32xf32>
    %521 = arith.addf %517, %520 : vector<2x32xf32>
    %522 = vector.extract_strided_slice %23 {offsets = [2, 0], sizes = [1, 32], strides = [1, 1]} : vector<12x32xf32> to vector<1x32xf32>
    %523 = vector.extract_strided_slice %23 {offsets = [8, 0], sizes = [1, 32], strides = [1, 1]} : vector<12x32xf32> to vector<1x32xf32>
    %524 = tpu.concatenate %522, %523 in 0 : vector<1x32xf32>, vector<1x32xf32> -> vector<2x32xf32>
    %525 = arith.truncf %524 : vector<2x32xf32> to vector<2x32xbf16>
    %cst_103 = arith.constant dense<0.000000e+00> : vector<2x128xf32>
    %526 = tpu.matmul %525, %3, %cst_103 {dimension_numbers = #tpu.dot_dimension_numbers<[1], [0], [0], [1], [0, 0, 1, 1], [], []>} : vector<2x32xbf16>, vector<32x128xbf16>, vector<2x128xf32> -> vector<2x128xf32>
    %527 = arith.truncf %521 : vector<2x32xf32> to vector<2x32xbf16>
    %cst_104 = arith.constant dense<0.000000e+00> : vector<2x128xf32>
    %528 = tpu.matmul %527, %5, %cst_104 {dimension_numbers = #tpu.dot_dimension_numbers<[1], [0], [0], [1], [0, 0, 1, 1], [], []>} : vector<2x32xbf16>, vector<32x128xbf16>, vector<2x128xf32> -> vector<2x128xf32>
    %529 = arith.addf %526, %528 : vector<2x128xf32>
    %530 = arith.truncf %450 : vector<2x32xf32> to vector<2x32xbf16>
    %cst_105 = arith.constant dense<0.000000e+00> : vector<2x128xf32>
    %531 = tpu.matmul %530, %7, %cst_105 {dimension_numbers = #tpu.dot_dimension_numbers<[1], [0], [0], [1], [0, 0, 1, 1], [], []>} : vector<2x32xbf16>, vector<32x128xbf16>, vector<2x128xf32> -> vector<2x128xf32>
    %532 = arith.addf %529, %531 : vector<2x128xf32>
    %533 = arith.addf %532, %16 : vector<2x128xf32>
    %534 = vector.extract_strided_slice %533 {offsets = [0, 0], sizes = [2, 32], strides = [1, 1]} : vector<2x128xf32> to vector<2x32xf32>
    %535 = arith.negf %534 : vector<2x32xf32>
    %536 = math.exp %535 : vector<2x32xf32>
    %cst_106 = arith.constant 1.000000e+00 : f32
    %537 = vector.broadcast %cst_106 : f32 to vector<2x32xf32>
    %538 = arith.addf %537, %536 : vector<2x32xf32>
    %539 = arith.divf %537, %538 : vector<2x32xf32>
    %540 = vector.extract_strided_slice %533 {offsets = [0, 32], sizes = [2, 32], strides = [1, 1]} : vector<2x128xf32> to vector<2x32xf32>
    %541 = arith.negf %540 : vector<2x32xf32>
    %542 = math.exp %541 : vector<2x32xf32>
    %cst_107 = arith.constant 1.000000e+00 : f32
    %543 = vector.broadcast %cst_107 : f32 to vector<2x32xf32>
    %544 = arith.addf %543, %542 : vector<2x32xf32>
    %545 = arith.divf %543, %544 : vector<2x32xf32>
    %546 = vector.extract_strided_slice %533 {offsets = [0, 64], sizes = [2, 32], strides = [1, 1]} : vector<2x128xf32> to vector<2x32xf32>
    %547 = math.tanh %546 : vector<2x32xf32>
    %548 = vector.extract_strided_slice %533 {offsets = [0, 96], sizes = [2, 32], strides = [1, 1]} : vector<2x128xf32> to vector<2x32xf32>
    %549 = arith.negf %548 : vector<2x32xf32>
    %550 = math.exp %549 : vector<2x32xf32>
    %cst_108 = arith.constant 1.000000e+00 : f32
    %551 = vector.broadcast %cst_108 : f32 to vector<2x32xf32>
    %552 = arith.addf %551, %550 : vector<2x32xf32>
    %553 = arith.divf %551, %552 : vector<2x32xf32>
    %554 = arith.mulf %545, %448 : vector<2x32xf32>
    %555 = arith.mulf %539, %547 : vector<2x32xf32>
    %556 = arith.addf %554, %555 : vector<2x32xf32>
    %557 = math.tanh %556 : vector<2x32xf32>
    %558 = arith.mulf %553, %557 : vector<2x32xf32>
    %559 = arith.truncf %558 : vector<2x32xf32> to vector<2x32xbf16>
    %cst_109 = arith.constant dense<0.000000e+00> : vector<2x32xf32>
    %560 = tpu.matmul %559, %9, %cst_109 {dimension_numbers = #tpu.dot_dimension_numbers<[1], [0], [0], [1], [0, 0, 1, 1], [], []>} : vector<2x32xbf16>, vector<32x32xbf16>, vector<2x32xf32> -> vector<2x32xf32>
    %561 = arith.addf %560, %19 : vector<2x32xf32>
    %562 = arith.mulf %561, %63 : vector<2x32xf32>
    %cst_110 = arith.constant dense<0.000000e+00> : vector<2xf32>
    %563 = vector.multi_reduction <add>, %562, %cst_110 [1] : vector<2x32xf32> to vector<2xf32>
    %564 = vector.shape_cast %563 : vector<2xf32> to vector<2x1xf32>
    %565 = arith.mulf %561, %94 : vector<2x32xf32>
    %cst_111 = arith.constant dense<0.000000e+00> : vector<2xf32>
    %566 = vector.multi_reduction <add>, %565, %cst_111 [1] : vector<2x32xf32> to vector<2xf32>
    %567 = vector.shape_cast %566 : vector<2xf32> to vector<2x1xf32>
    %568 = arith.mulf %561, %125 : vector<2x32xf32>
    %cst_112 = arith.constant dense<0.000000e+00> : vector<2xf32>
    %569 = vector.multi_reduction <add>, %568, %cst_112 [1] : vector<2x32xf32> to vector<2xf32>
    %570 = vector.shape_cast %569 : vector<2xf32> to vector<2x1xf32>
    %571 = arith.mulf %561, %156 : vector<2x32xf32>
    %cst_113 = arith.constant dense<0.000000e+00> : vector<2xf32>
    %572 = vector.multi_reduction <add>, %571, %cst_113 [1] : vector<2x32xf32> to vector<2xf32>
    %573 = vector.shape_cast %572 : vector<2xf32> to vector<2x1xf32>
    %574 = arith.mulf %561, %187 : vector<2x32xf32>
    %cst_114 = arith.constant dense<0.000000e+00> : vector<2xf32>
    %575 = vector.multi_reduction <add>, %574, %cst_114 [1] : vector<2x32xf32> to vector<2xf32>
    %576 = vector.shape_cast %575 : vector<2xf32> to vector<2x1xf32>
    %577 = arith.mulf %561, %218 : vector<2x32xf32>
    %cst_115 = arith.constant dense<0.000000e+00> : vector<2xf32>
    %578 = vector.multi_reduction <add>, %577, %cst_115 [1] : vector<2x32xf32> to vector<2xf32>
    %579 = vector.shape_cast %578 : vector<2xf32> to vector<2x1xf32>
    %580 = arith.mulf %561, %249 : vector<2x32xf32>
    %cst_116 = arith.constant dense<0.000000e+00> : vector<2xf32>
    %581 = vector.multi_reduction <add>, %580, %cst_116 [1] : vector<2x32xf32> to vector<2xf32>
    %582 = vector.shape_cast %581 : vector<2xf32> to vector<2x1xf32>
    %583 = arith.mulf %561, %280 : vector<2x32xf32>
    %cst_117 = arith.constant dense<0.000000e+00> : vector<2xf32>
    %584 = vector.multi_reduction <add>, %583, %cst_117 [1] : vector<2x32xf32> to vector<2xf32>
    %585 = vector.shape_cast %584 : vector<2xf32> to vector<2x1xf32>
    %586 = tpu.concatenate %564, %567, %570, %573, %576, %579, %582, %585 in 1 : vector<2x1xf32>, vector<2x1xf32>, vector<2x1xf32>, vector<2x1xf32>, vector<2x1xf32>, vector<2x1xf32>, vector<2x1xf32>, vector<2x1xf32> -> vector<2x8xf32>
    %cst_118 = arith.constant dense<0xFF800000> : vector<2xf32>
    %587 = vector.multi_reduction <maximumf>, %586, %cst_118 [1] : vector<2x8xf32> to vector<2xf32>
    %588 = vector.shape_cast %587 : vector<2xf32> to vector<2x1xf32>
    %589 = vector.broadcast %588 : vector<2x1xf32> to vector<2x8xf32>
    %590 = arith.subf %586, %589 : vector<2x8xf32>
    %591 = math.exp %590 : vector<2x8xf32>
    %cst_119 = arith.constant dense<0.000000e+00> : vector<2xf32>
    %592 = vector.multi_reduction <add>, %591, %cst_119 [1] : vector<2x8xf32> to vector<2xf32>
    %593 = vector.shape_cast %592 : vector<2xf32> to vector<2x1xf32>
    %594 = tpu.reciprocal %593 {approx = true} : vector<2x1xf32> -> vector<2x1xf32>
    %595 = vector.broadcast %594 : vector<2x1xf32> to vector<2x8xf32>
    %596 = arith.mulf %591, %595 : vector<2x8xf32>
    %cst_120 = arith.constant 0.000000e+00 : f32
    %597 = vector.broadcast %cst_120 : f32 to vector<2x32xf32>
    %598 = vector.extract_strided_slice %596 {offsets = [0, 0], sizes = [2, 1], strides = [1, 1]} : vector<2x8xf32> to vector<2x1xf32>
    %599 = vector.broadcast %598 : vector<2x1xf32> to vector<2x32xf32>
    %600 = arith.mulf %599, %63 : vector<2x32xf32>
    %601 = arith.addf %597, %600 : vector<2x32xf32>
    %602 = vector.extract_strided_slice %596 {offsets = [0, 1], sizes = [2, 1], strides = [1, 1]} : vector<2x8xf32> to vector<2x1xf32>
    %603 = vector.broadcast %602 : vector<2x1xf32> to vector<2x32xf32>
    %604 = arith.mulf %603, %94 : vector<2x32xf32>
    %605 = arith.addf %601, %604 : vector<2x32xf32>
    %606 = vector.extract_strided_slice %596 {offsets = [0, 2], sizes = [2, 1], strides = [1, 1]} : vector<2x8xf32> to vector<2x1xf32>
    %607 = vector.broadcast %606 : vector<2x1xf32> to vector<2x32xf32>
    %608 = arith.mulf %607, %125 : vector<2x32xf32>
    %609 = arith.addf %605, %608 : vector<2x32xf32>
    %610 = vector.extract_strided_slice %596 {offsets = [0, 3], sizes = [2, 1], strides = [1, 1]} : vector<2x8xf32> to vector<2x1xf32>
    %611 = vector.broadcast %610 : vector<2x1xf32> to vector<2x32xf32>
    %612 = arith.mulf %611, %156 : vector<2x32xf32>
    %613 = arith.addf %609, %612 : vector<2x32xf32>
    %614 = vector.extract_strided_slice %596 {offsets = [0, 4], sizes = [2, 1], strides = [1, 1]} : vector<2x8xf32> to vector<2x1xf32>
    %615 = vector.broadcast %614 : vector<2x1xf32> to vector<2x32xf32>
    %616 = arith.mulf %615, %187 : vector<2x32xf32>
    %617 = arith.addf %613, %616 : vector<2x32xf32>
    %618 = vector.extract_strided_slice %596 {offsets = [0, 5], sizes = [2, 1], strides = [1, 1]} : vector<2x8xf32> to vector<2x1xf32>
    %619 = vector.broadcast %618 : vector<2x1xf32> to vector<2x32xf32>
    %620 = arith.mulf %619, %218 : vector<2x32xf32>
    %621 = arith.addf %617, %620 : vector<2x32xf32>
    %622 = vector.extract_strided_slice %596 {offsets = [0, 6], sizes = [2, 1], strides = [1, 1]} : vector<2x8xf32> to vector<2x1xf32>
    %623 = vector.broadcast %622 : vector<2x1xf32> to vector<2x32xf32>
    %624 = arith.mulf %623, %249 : vector<2x32xf32>
    %625 = arith.addf %621, %624 : vector<2x32xf32>
    %626 = vector.extract_strided_slice %596 {offsets = [0, 7], sizes = [2, 1], strides = [1, 1]} : vector<2x8xf32> to vector<2x1xf32>
    %627 = vector.broadcast %626 : vector<2x1xf32> to vector<2x32xf32>
    %628 = arith.mulf %627, %280 : vector<2x32xf32>
    %629 = arith.addf %625, %628 : vector<2x32xf32>
    %630 = vector.extract_strided_slice %23 {offsets = [3, 0], sizes = [1, 32], strides = [1, 1]} : vector<12x32xf32> to vector<1x32xf32>
    %631 = vector.extract_strided_slice %23 {offsets = [9, 0], sizes = [1, 32], strides = [1, 1]} : vector<12x32xf32> to vector<1x32xf32>
    %632 = tpu.concatenate %630, %631 in 0 : vector<1x32xf32>, vector<1x32xf32> -> vector<2x32xf32>
    %633 = arith.truncf %632 : vector<2x32xf32> to vector<2x32xbf16>
    %cst_121 = arith.constant dense<0.000000e+00> : vector<2x128xf32>
    %634 = tpu.matmul %633, %3, %cst_121 {dimension_numbers = #tpu.dot_dimension_numbers<[1], [0], [0], [1], [0, 0, 1, 1], [], []>} : vector<2x32xbf16>, vector<32x128xbf16>, vector<2x128xf32> -> vector<2x128xf32>
    %635 = arith.truncf %629 : vector<2x32xf32> to vector<2x32xbf16>
    %cst_122 = arith.constant dense<0.000000e+00> : vector<2x128xf32>
    %636 = tpu.matmul %635, %5, %cst_122 {dimension_numbers = #tpu.dot_dimension_numbers<[1], [0], [0], [1], [0, 0, 1, 1], [], []>} : vector<2x32xbf16>, vector<32x128xbf16>, vector<2x128xf32> -> vector<2x128xf32>
    %637 = arith.addf %634, %636 : vector<2x128xf32>
    %638 = arith.truncf %558 : vector<2x32xf32> to vector<2x32xbf16>
    %cst_123 = arith.constant dense<0.000000e+00> : vector<2x128xf32>
    %639 = tpu.matmul %638, %7, %cst_123 {dimension_numbers = #tpu.dot_dimension_numbers<[1], [0], [0], [1], [0, 0, 1, 1], [], []>} : vector<2x32xbf16>, vector<32x128xbf16>, vector<2x128xf32> -> vector<2x128xf32>
    %640 = arith.addf %637, %639 : vector<2x128xf32>
    %641 = arith.addf %640, %16 : vector<2x128xf32>
    %642 = vector.extract_strided_slice %641 {offsets = [0, 0], sizes = [2, 32], strides = [1, 1]} : vector<2x128xf32> to vector<2x32xf32>
    %643 = arith.negf %642 : vector<2x32xf32>
    %644 = math.exp %643 : vector<2x32xf32>
    %cst_124 = arith.constant 1.000000e+00 : f32
    %645 = vector.broadcast %cst_124 : f32 to vector<2x32xf32>
    %646 = arith.addf %645, %644 : vector<2x32xf32>
    %647 = arith.divf %645, %646 : vector<2x32xf32>
    %648 = vector.extract_strided_slice %641 {offsets = [0, 32], sizes = [2, 32], strides = [1, 1]} : vector<2x128xf32> to vector<2x32xf32>
    %649 = arith.negf %648 : vector<2x32xf32>
    %650 = math.exp %649 : vector<2x32xf32>
    %cst_125 = arith.constant 1.000000e+00 : f32
    %651 = vector.broadcast %cst_125 : f32 to vector<2x32xf32>
    %652 = arith.addf %651, %650 : vector<2x32xf32>
    %653 = arith.divf %651, %652 : vector<2x32xf32>
    %654 = vector.extract_strided_slice %641 {offsets = [0, 64], sizes = [2, 32], strides = [1, 1]} : vector<2x128xf32> to vector<2x32xf32>
    %655 = math.tanh %654 : vector<2x32xf32>
    %656 = vector.extract_strided_slice %641 {offsets = [0, 96], sizes = [2, 32], strides = [1, 1]} : vector<2x128xf32> to vector<2x32xf32>
    %657 = arith.negf %656 : vector<2x32xf32>
    %658 = math.exp %657 : vector<2x32xf32>
    %cst_126 = arith.constant 1.000000e+00 : f32
    %659 = vector.broadcast %cst_126 : f32 to vector<2x32xf32>
    %660 = arith.addf %659, %658 : vector<2x32xf32>
    %661 = arith.divf %659, %660 : vector<2x32xf32>
    %662 = arith.mulf %653, %556 : vector<2x32xf32>
    %663 = arith.mulf %647, %655 : vector<2x32xf32>
    %664 = arith.addf %662, %663 : vector<2x32xf32>
    %665 = math.tanh %664 : vector<2x32xf32>
    %666 = arith.mulf %661, %665 : vector<2x32xf32>
    %667 = arith.truncf %666 : vector<2x32xf32> to vector<2x32xbf16>
    %cst_127 = arith.constant dense<0.000000e+00> : vector<2x32xf32>
    %668 = tpu.matmul %667, %9, %cst_127 {dimension_numbers = #tpu.dot_dimension_numbers<[1], [0], [0], [1], [0, 0, 1, 1], [], []>} : vector<2x32xbf16>, vector<32x32xbf16>, vector<2x32xf32> -> vector<2x32xf32>
    %669 = arith.addf %668, %19 : vector<2x32xf32>
    %670 = arith.mulf %669, %63 : vector<2x32xf32>
    %cst_128 = arith.constant dense<0.000000e+00> : vector<2xf32>
    %671 = vector.multi_reduction <add>, %670, %cst_128 [1] : vector<2x32xf32> to vector<2xf32>
    %672 = vector.shape_cast %671 : vector<2xf32> to vector<2x1xf32>
    %673 = arith.mulf %669, %94 : vector<2x32xf32>
    %cst_129 = arith.constant dense<0.000000e+00> : vector<2xf32>
    %674 = vector.multi_reduction <add>, %673, %cst_129 [1] : vector<2x32xf32> to vector<2xf32>
    %675 = vector.shape_cast %674 : vector<2xf32> to vector<2x1xf32>
    %676 = arith.mulf %669, %125 : vector<2x32xf32>
    %cst_130 = arith.constant dense<0.000000e+00> : vector<2xf32>
    %677 = vector.multi_reduction <add>, %676, %cst_130 [1] : vector<2x32xf32> to vector<2xf32>
    %678 = vector.shape_cast %677 : vector<2xf32> to vector<2x1xf32>
    %679 = arith.mulf %669, %156 : vector<2x32xf32>
    %cst_131 = arith.constant dense<0.000000e+00> : vector<2xf32>
    %680 = vector.multi_reduction <add>, %679, %cst_131 [1] : vector<2x32xf32> to vector<2xf32>
    %681 = vector.shape_cast %680 : vector<2xf32> to vector<2x1xf32>
    %682 = arith.mulf %669, %187 : vector<2x32xf32>
    %cst_132 = arith.constant dense<0.000000e+00> : vector<2xf32>
    %683 = vector.multi_reduction <add>, %682, %cst_132 [1] : vector<2x32xf32> to vector<2xf32>
    %684 = vector.shape_cast %683 : vector<2xf32> to vector<2x1xf32>
    %685 = arith.mulf %669, %218 : vector<2x32xf32>
    %cst_133 = arith.constant dense<0.000000e+00> : vector<2xf32>
    %686 = vector.multi_reduction <add>, %685, %cst_133 [1] : vector<2x32xf32> to vector<2xf32>
    %687 = vector.shape_cast %686 : vector<2xf32> to vector<2x1xf32>
    %688 = arith.mulf %669, %249 : vector<2x32xf32>
    %cst_134 = arith.constant dense<0.000000e+00> : vector<2xf32>
    %689 = vector.multi_reduction <add>, %688, %cst_134 [1] : vector<2x32xf32> to vector<2xf32>
    %690 = vector.shape_cast %689 : vector<2xf32> to vector<2x1xf32>
    %691 = arith.mulf %669, %280 : vector<2x32xf32>
    %cst_135 = arith.constant dense<0.000000e+00> : vector<2xf32>
    %692 = vector.multi_reduction <add>, %691, %cst_135 [1] : vector<2x32xf32> to vector<2xf32>
    %693 = vector.shape_cast %692 : vector<2xf32> to vector<2x1xf32>
    %694 = tpu.concatenate %672, %675, %678, %681, %684, %687, %690, %693 in 1 : vector<2x1xf32>, vector<2x1xf32>, vector<2x1xf32>, vector<2x1xf32>, vector<2x1xf32>, vector<2x1xf32>, vector<2x1xf32>, vector<2x1xf32> -> vector<2x8xf32>
    %cst_136 = arith.constant dense<0xFF800000> : vector<2xf32>
    %695 = vector.multi_reduction <maximumf>, %694, %cst_136 [1] : vector<2x8xf32> to vector<2xf32>
    %696 = vector.shape_cast %695 : vector<2xf32> to vector<2x1xf32>
    %697 = vector.broadcast %696 : vector<2x1xf32> to vector<2x8xf32>
    %698 = arith.subf %694, %697 : vector<2x8xf32>
    %699 = math.exp %698 : vector<2x8xf32>
    %cst_137 = arith.constant dense<0.000000e+00> : vector<2xf32>
    %700 = vector.multi_reduction <add>, %699, %cst_137 [1] : vector<2x8xf32> to vector<2xf32>
    %701 = vector.shape_cast %700 : vector<2xf32> to vector<2x1xf32>
    %702 = tpu.reciprocal %701 {approx = true} : vector<2x1xf32> -> vector<2x1xf32>
    %703 = vector.broadcast %702 : vector<2x1xf32> to vector<2x8xf32>
    %704 = arith.mulf %699, %703 : vector<2x8xf32>
    %cst_138 = arith.constant 0.000000e+00 : f32
    %705 = vector.broadcast %cst_138 : f32 to vector<2x32xf32>
    %706 = vector.extract_strided_slice %704 {offsets = [0, 0], sizes = [2, 1], strides = [1, 1]} : vector<2x8xf32> to vector<2x1xf32>
    %707 = vector.broadcast %706 : vector<2x1xf32> to vector<2x32xf32>
    %708 = arith.mulf %707, %63 : vector<2x32xf32>
    %709 = arith.addf %705, %708 : vector<2x32xf32>
    %710 = vector.extract_strided_slice %704 {offsets = [0, 1], sizes = [2, 1], strides = [1, 1]} : vector<2x8xf32> to vector<2x1xf32>
    %711 = vector.broadcast %710 : vector<2x1xf32> to vector<2x32xf32>
    %712 = arith.mulf %711, %94 : vector<2x32xf32>
    %713 = arith.addf %709, %712 : vector<2x32xf32>
    %714 = vector.extract_strided_slice %704 {offsets = [0, 2], sizes = [2, 1], strides = [1, 1]} : vector<2x8xf32> to vector<2x1xf32>
    %715 = vector.broadcast %714 : vector<2x1xf32> to vector<2x32xf32>
    %716 = arith.mulf %715, %125 : vector<2x32xf32>
    %717 = arith.addf %713, %716 : vector<2x32xf32>
    %718 = vector.extract_strided_slice %704 {offsets = [0, 3], sizes = [2, 1], strides = [1, 1]} : vector<2x8xf32> to vector<2x1xf32>
    %719 = vector.broadcast %718 : vector<2x1xf32> to vector<2x32xf32>
    %720 = arith.mulf %719, %156 : vector<2x32xf32>
    %721 = arith.addf %717, %720 : vector<2x32xf32>
    %722 = vector.extract_strided_slice %704 {offsets = [0, 4], sizes = [2, 1], strides = [1, 1]} : vector<2x8xf32> to vector<2x1xf32>
    %723 = vector.broadcast %722 : vector<2x1xf32> to vector<2x32xf32>
    %724 = arith.mulf %723, %187 : vector<2x32xf32>
    %725 = arith.addf %721, %724 : vector<2x32xf32>
    %726 = vector.extract_strided_slice %704 {offsets = [0, 5], sizes = [2, 1], strides = [1, 1]} : vector<2x8xf32> to vector<2x1xf32>
    %727 = vector.broadcast %726 : vector<2x1xf32> to vector<2x32xf32>
    %728 = arith.mulf %727, %218 : vector<2x32xf32>
    %729 = arith.addf %725, %728 : vector<2x32xf32>
    %730 = vector.extract_strided_slice %704 {offsets = [0, 6], sizes = [2, 1], strides = [1, 1]} : vector<2x8xf32> to vector<2x1xf32>
    %731 = vector.broadcast %730 : vector<2x1xf32> to vector<2x32xf32>
    %732 = arith.mulf %731, %249 : vector<2x32xf32>
    %733 = arith.addf %729, %732 : vector<2x32xf32>
    %734 = vector.extract_strided_slice %704 {offsets = [0, 7], sizes = [2, 1], strides = [1, 1]} : vector<2x8xf32> to vector<2x1xf32>
    %735 = vector.broadcast %734 : vector<2x1xf32> to vector<2x32xf32>
    %736 = arith.mulf %735, %280 : vector<2x32xf32>
    %737 = arith.addf %733, %736 : vector<2x32xf32>
    %738 = vector.extract_strided_slice %23 {offsets = [4, 0], sizes = [1, 32], strides = [1, 1]} : vector<12x32xf32> to vector<1x32xf32>
    %739 = vector.extract_strided_slice %23 {offsets = [10, 0], sizes = [1, 32], strides = [1, 1]} : vector<12x32xf32> to vector<1x32xf32>
    %740 = tpu.concatenate %738, %739 in 0 : vector<1x32xf32>, vector<1x32xf32> -> vector<2x32xf32>
    %741 = arith.truncf %740 : vector<2x32xf32> to vector<2x32xbf16>
    %cst_139 = arith.constant dense<0.000000e+00> : vector<2x128xf32>
    %742 = tpu.matmul %741, %3, %cst_139 {dimension_numbers = #tpu.dot_dimension_numbers<[1], [0], [0], [1], [0, 0, 1, 1], [], []>} : vector<2x32xbf16>, vector<32x128xbf16>, vector<2x128xf32> -> vector<2x128xf32>
    %743 = arith.truncf %737 : vector<2x32xf32> to vector<2x32xbf16>
    %cst_140 = arith.constant dense<0.000000e+00> : vector<2x128xf32>
    %744 = tpu.matmul %743, %5, %cst_140 {dimension_numbers = #tpu.dot_dimension_numbers<[1], [0], [0], [1], [0, 0, 1, 1], [], []>} : vector<2x32xbf16>, vector<32x128xbf16>, vector<2x128xf32> -> vector<2x128xf32>
    %745 = arith.addf %742, %744 : vector<2x128xf32>
    %746 = arith.truncf %666 : vector<2x32xf32> to vector<2x32xbf16>
    %cst_141 = arith.constant dense<0.000000e+00> : vector<2x128xf32>
    %747 = tpu.matmul %746, %7, %cst_141 {dimension_numbers = #tpu.dot_dimension_numbers<[1], [0], [0], [1], [0, 0, 1, 1], [], []>} : vector<2x32xbf16>, vector<32x128xbf16>, vector<2x128xf32> -> vector<2x128xf32>
    %748 = arith.addf %745, %747 : vector<2x128xf32>
    %749 = arith.addf %748, %16 : vector<2x128xf32>
    %750 = vector.extract_strided_slice %749 {offsets = [0, 0], sizes = [2, 32], strides = [1, 1]} : vector<2x128xf32> to vector<2x32xf32>
    %751 = arith.negf %750 : vector<2x32xf32>
    %752 = math.exp %751 : vector<2x32xf32>
    %cst_142 = arith.constant 1.000000e+00 : f32
    %753 = vector.broadcast %cst_142 : f32 to vector<2x32xf32>
    %754 = arith.addf %753, %752 : vector<2x32xf32>
    %755 = arith.divf %753, %754 : vector<2x32xf32>
    %756 = vector.extract_strided_slice %749 {offsets = [0, 32], sizes = [2, 32], strides = [1, 1]} : vector<2x128xf32> to vector<2x32xf32>
    %757 = arith.negf %756 : vector<2x32xf32>
    %758 = math.exp %757 : vector<2x32xf32>
    %cst_143 = arith.constant 1.000000e+00 : f32
    %759 = vector.broadcast %cst_143 : f32 to vector<2x32xf32>
    %760 = arith.addf %759, %758 : vector<2x32xf32>
    %761 = arith.divf %759, %760 : vector<2x32xf32>
    %762 = vector.extract_strided_slice %749 {offsets = [0, 64], sizes = [2, 32], strides = [1, 1]} : vector<2x128xf32> to vector<2x32xf32>
    %763 = math.tanh %762 : vector<2x32xf32>
    %764 = vector.extract_strided_slice %749 {offsets = [0, 96], sizes = [2, 32], strides = [1, 1]} : vector<2x128xf32> to vector<2x32xf32>
    %765 = arith.negf %764 : vector<2x32xf32>
    %766 = math.exp %765 : vector<2x32xf32>
    %cst_144 = arith.constant 1.000000e+00 : f32
    %767 = vector.broadcast %cst_144 : f32 to vector<2x32xf32>
    %768 = arith.addf %767, %766 : vector<2x32xf32>
    %769 = arith.divf %767, %768 : vector<2x32xf32>
    %770 = arith.mulf %761, %664 : vector<2x32xf32>
    %771 = arith.mulf %755, %763 : vector<2x32xf32>
    %772 = arith.addf %770, %771 : vector<2x32xf32>
    %773 = math.tanh %772 : vector<2x32xf32>
    %774 = arith.mulf %769, %773 : vector<2x32xf32>
    %775 = arith.truncf %774 : vector<2x32xf32> to vector<2x32xbf16>
    %cst_145 = arith.constant dense<0.000000e+00> : vector<2x32xf32>
    %776 = tpu.matmul %775, %9, %cst_145 {dimension_numbers = #tpu.dot_dimension_numbers<[1], [0], [0], [1], [0, 0, 1, 1], [], []>} : vector<2x32xbf16>, vector<32x32xbf16>, vector<2x32xf32> -> vector<2x32xf32>
    %777 = arith.addf %776, %19 : vector<2x32xf32>
    %778 = arith.mulf %777, %63 : vector<2x32xf32>
    %cst_146 = arith.constant dense<0.000000e+00> : vector<2xf32>
    %779 = vector.multi_reduction <add>, %778, %cst_146 [1] : vector<2x32xf32> to vector<2xf32>
    %780 = vector.shape_cast %779 : vector<2xf32> to vector<2x1xf32>
    %781 = arith.mulf %777, %94 : vector<2x32xf32>
    %cst_147 = arith.constant dense<0.000000e+00> : vector<2xf32>
    %782 = vector.multi_reduction <add>, %781, %cst_147 [1] : vector<2x32xf32> to vector<2xf32>
    %783 = vector.shape_cast %782 : vector<2xf32> to vector<2x1xf32>
    %784 = arith.mulf %777, %125 : vector<2x32xf32>
    %cst_148 = arith.constant dense<0.000000e+00> : vector<2xf32>
    %785 = vector.multi_reduction <add>, %784, %cst_148 [1] : vector<2x32xf32> to vector<2xf32>
    %786 = vector.shape_cast %785 : vector<2xf32> to vector<2x1xf32>
    %787 = arith.mulf %777, %156 : vector<2x32xf32>
    %cst_149 = arith.constant dense<0.000000e+00> : vector<2xf32>
    %788 = vector.multi_reduction <add>, %787, %cst_149 [1] : vector<2x32xf32> to vector<2xf32>
    %789 = vector.shape_cast %788 : vector<2xf32> to vector<2x1xf32>
    %790 = arith.mulf %777, %187 : vector<2x32xf32>
    %cst_150 = arith.constant dense<0.000000e+00> : vector<2xf32>
    %791 = vector.multi_reduction <add>, %790, %cst_150 [1] : vector<2x32xf32> to vector<2xf32>
    %792 = vector.shape_cast %791 : vector<2xf32> to vector<2x1xf32>
    %793 = arith.mulf %777, %218 : vector<2x32xf32>
    %cst_151 = arith.constant dense<0.000000e+00> : vector<2xf32>
    %794 = vector.multi_reduction <add>, %793, %cst_151 [1] : vector<2x32xf32> to vector<2xf32>
    %795 = vector.shape_cast %794 : vector<2xf32> to vector<2x1xf32>
    %796 = arith.mulf %777, %249 : vector<2x32xf32>
    %cst_152 = arith.constant dense<0.000000e+00> : vector<2xf32>
    %797 = vector.multi_reduction <add>, %796, %cst_152 [1] : vector<2x32xf32> to vector<2xf32>
    %798 = vector.shape_cast %797 : vector<2xf32> to vector<2x1xf32>
    %799 = arith.mulf %777, %280 : vector<2x32xf32>
    %cst_153 = arith.constant dense<0.000000e+00> : vector<2xf32>
    %800 = vector.multi_reduction <add>, %799, %cst_153 [1] : vector<2x32xf32> to vector<2xf32>
    %801 = vector.shape_cast %800 : vector<2xf32> to vector<2x1xf32>
    %802 = tpu.concatenate %780, %783, %786, %789, %792, %795, %798, %801 in 1 : vector<2x1xf32>, vector<2x1xf32>, vector<2x1xf32>, vector<2x1xf32>, vector<2x1xf32>, vector<2x1xf32>, vector<2x1xf32>, vector<2x1xf32> -> vector<2x8xf32>
    %cst_154 = arith.constant dense<0xFF800000> : vector<2xf32>
    %803 = vector.multi_reduction <maximumf>, %802, %cst_154 [1] : vector<2x8xf32> to vector<2xf32>
    %804 = vector.shape_cast %803 : vector<2xf32> to vector<2x1xf32>
    %805 = vector.broadcast %804 : vector<2x1xf32> to vector<2x8xf32>
    %806 = arith.subf %802, %805 : vector<2x8xf32>
    %807 = math.exp %806 : vector<2x8xf32>
    %cst_155 = arith.constant dense<0.000000e+00> : vector<2xf32>
    %808 = vector.multi_reduction <add>, %807, %cst_155 [1] : vector<2x8xf32> to vector<2xf32>
    %809 = vector.shape_cast %808 : vector<2xf32> to vector<2x1xf32>
    %810 = tpu.reciprocal %809 {approx = true} : vector<2x1xf32> -> vector<2x1xf32>
    %811 = vector.broadcast %810 : vector<2x1xf32> to vector<2x8xf32>
    %812 = arith.mulf %807, %811 : vector<2x8xf32>
    %cst_156 = arith.constant 0.000000e+00 : f32
    %813 = vector.broadcast %cst_156 : f32 to vector<2x32xf32>
    %814 = vector.extract_strided_slice %812 {offsets = [0, 0], sizes = [2, 1], strides = [1, 1]} : vector<2x8xf32> to vector<2x1xf32>
    %815 = vector.broadcast %814 : vector<2x1xf32> to vector<2x32xf32>
    %816 = arith.mulf %815, %63 : vector<2x32xf32>
    %817 = arith.addf %813, %816 : vector<2x32xf32>
    %818 = vector.extract_strided_slice %812 {offsets = [0, 1], sizes = [2, 1], strides = [1, 1]} : vector<2x8xf32> to vector<2x1xf32>
    %819 = vector.broadcast %818 : vector<2x1xf32> to vector<2x32xf32>
    %820 = arith.mulf %819, %94 : vector<2x32xf32>
    %821 = arith.addf %817, %820 : vector<2x32xf32>
    %822 = vector.extract_strided_slice %812 {offsets = [0, 2], sizes = [2, 1], strides = [1, 1]} : vector<2x8xf32> to vector<2x1xf32>
    %823 = vector.broadcast %822 : vector<2x1xf32> to vector<2x32xf32>
    %824 = arith.mulf %823, %125 : vector<2x32xf32>
    %825 = arith.addf %821, %824 : vector<2x32xf32>
    %826 = vector.extract_strided_slice %812 {offsets = [0, 3], sizes = [2, 1], strides = [1, 1]} : vector<2x8xf32> to vector<2x1xf32>
    %827 = vector.broadcast %826 : vector<2x1xf32> to vector<2x32xf32>
    %828 = arith.mulf %827, %156 : vector<2x32xf32>
    %829 = arith.addf %825, %828 : vector<2x32xf32>
    %830 = vector.extract_strided_slice %812 {offsets = [0, 4], sizes = [2, 1], strides = [1, 1]} : vector<2x8xf32> to vector<2x1xf32>
    %831 = vector.broadcast %830 : vector<2x1xf32> to vector<2x32xf32>
    %832 = arith.mulf %831, %187 : vector<2x32xf32>
    %833 = arith.addf %829, %832 : vector<2x32xf32>
    %834 = vector.extract_strided_slice %812 {offsets = [0, 5], sizes = [2, 1], strides = [1, 1]} : vector<2x8xf32> to vector<2x1xf32>
    %835 = vector.broadcast %834 : vector<2x1xf32> to vector<2x32xf32>
    %836 = arith.mulf %835, %218 : vector<2x32xf32>
    %837 = arith.addf %833, %836 : vector<2x32xf32>
    %838 = vector.extract_strided_slice %812 {offsets = [0, 6], sizes = [2, 1], strides = [1, 1]} : vector<2x8xf32> to vector<2x1xf32>
    %839 = vector.broadcast %838 : vector<2x1xf32> to vector<2x32xf32>
    %840 = arith.mulf %839, %249 : vector<2x32xf32>
    %841 = arith.addf %837, %840 : vector<2x32xf32>
    %842 = vector.extract_strided_slice %812 {offsets = [0, 7], sizes = [2, 1], strides = [1, 1]} : vector<2x8xf32> to vector<2x1xf32>
    %843 = vector.broadcast %842 : vector<2x1xf32> to vector<2x32xf32>
    %844 = arith.mulf %843, %280 : vector<2x32xf32>
    %845 = arith.addf %841, %844 : vector<2x32xf32>
    %846 = vector.extract_strided_slice %23 {offsets = [5, 0], sizes = [1, 32], strides = [1, 1]} : vector<12x32xf32> to vector<1x32xf32>
    %847 = vector.extract_strided_slice %23 {offsets = [11, 0], sizes = [1, 32], strides = [1, 1]} : vector<12x32xf32> to vector<1x32xf32>
    %848 = tpu.concatenate %846, %847 in 0 : vector<1x32xf32>, vector<1x32xf32> -> vector<2x32xf32>
    %849 = arith.truncf %848 : vector<2x32xf32> to vector<2x32xbf16>
    %cst_157 = arith.constant dense<0.000000e+00> : vector<2x128xf32>
    %850 = tpu.matmul %849, %3, %cst_157 {dimension_numbers = #tpu.dot_dimension_numbers<[1], [0], [0], [1], [0, 0, 1, 1], [], []>} : vector<2x32xbf16>, vector<32x128xbf16>, vector<2x128xf32> -> vector<2x128xf32>
    %851 = arith.truncf %845 : vector<2x32xf32> to vector<2x32xbf16>
    %cst_158 = arith.constant dense<0.000000e+00> : vector<2x128xf32>
    %852 = tpu.matmul %851, %5, %cst_158 {dimension_numbers = #tpu.dot_dimension_numbers<[1], [0], [0], [1], [0, 0, 1, 1], [], []>} : vector<2x32xbf16>, vector<32x128xbf16>, vector<2x128xf32> -> vector<2x128xf32>
    %853 = arith.addf %850, %852 : vector<2x128xf32>
    %854 = arith.truncf %774 : vector<2x32xf32> to vector<2x32xbf16>
    %cst_159 = arith.constant dense<0.000000e+00> : vector<2x128xf32>
    %855 = tpu.matmul %854, %7, %cst_159 {dimension_numbers = #tpu.dot_dimension_numbers<[1], [0], [0], [1], [0, 0, 1, 1], [], []>} : vector<2x32xbf16>, vector<32x128xbf16>, vector<2x128xf32> -> vector<2x128xf32>
    %856 = arith.addf %853, %855 : vector<2x128xf32>
    %857 = arith.addf %856, %16 : vector<2x128xf32>
    %858 = vector.extract_strided_slice %857 {offsets = [0, 0], sizes = [2, 32], strides = [1, 1]} : vector<2x128xf32> to vector<2x32xf32>
    %859 = arith.negf %858 : vector<2x32xf32>
    %860 = math.exp %859 : vector<2x32xf32>
    %cst_160 = arith.constant 1.000000e+00 : f32
    %861 = vector.broadcast %cst_160 : f32 to vector<2x32xf32>
    %862 = arith.addf %861, %860 : vector<2x32xf32>
    %863 = arith.divf %861, %862 : vector<2x32xf32>
    %864 = vector.extract_strided_slice %857 {offsets = [0, 32], sizes = [2, 32], strides = [1, 1]} : vector<2x128xf32> to vector<2x32xf32>
    %865 = arith.negf %864 : vector<2x32xf32>
    %866 = math.exp %865 : vector<2x32xf32>
    %cst_161 = arith.constant 1.000000e+00 : f32
    %867 = vector.broadcast %cst_161 : f32 to vector<2x32xf32>
    %868 = arith.addf %867, %866 : vector<2x32xf32>
    %869 = arith.divf %867, %868 : vector<2x32xf32>
    %870 = vector.extract_strided_slice %857 {offsets = [0, 64], sizes = [2, 32], strides = [1, 1]} : vector<2x128xf32> to vector<2x32xf32>
    %871 = math.tanh %870 : vector<2x32xf32>
    %872 = vector.extract_strided_slice %857 {offsets = [0, 96], sizes = [2, 32], strides = [1, 1]} : vector<2x128xf32> to vector<2x32xf32>
    %873 = arith.negf %872 : vector<2x32xf32>
    %874 = math.exp %873 : vector<2x32xf32>
    %cst_162 = arith.constant 1.000000e+00 : f32
    %875 = vector.broadcast %cst_162 : f32 to vector<2x32xf32>
    %876 = arith.addf %875, %874 : vector<2x32xf32>
    %877 = arith.divf %875, %876 : vector<2x32xf32>
    %878 = arith.mulf %869, %772 : vector<2x32xf32>
    %879 = arith.mulf %863, %871 : vector<2x32xf32>
    %880 = arith.addf %878, %879 : vector<2x32xf32>
    %881 = math.tanh %880 : vector<2x32xf32>
    %882 = arith.mulf %877, %881 : vector<2x32xf32>
    %883 = arith.truncf %882 : vector<2x32xf32> to vector<2x32xbf16>
    %cst_163 = arith.constant dense<0.000000e+00> : vector<2x32xf32>
    %884 = tpu.matmul %883, %9, %cst_163 {dimension_numbers = #tpu.dot_dimension_numbers<[1], [0], [0], [1], [0, 0, 1, 1], [], []>} : vector<2x32xbf16>, vector<32x32xbf16>, vector<2x32xf32> -> vector<2x32xf32>
    %885 = arith.addf %884, %19 : vector<2x32xf32>
    %886 = arith.mulf %885, %63 : vector<2x32xf32>
    %cst_164 = arith.constant dense<0.000000e+00> : vector<2xf32>
    %887 = vector.multi_reduction <add>, %886, %cst_164 [1] : vector<2x32xf32> to vector<2xf32>
    %888 = vector.shape_cast %887 : vector<2xf32> to vector<2x1xf32>
    %889 = arith.mulf %885, %94 : vector<2x32xf32>
    %cst_165 = arith.constant dense<0.000000e+00> : vector<2xf32>
    %890 = vector.multi_reduction <add>, %889, %cst_165 [1] : vector<2x32xf32> to vector<2xf32>
    %891 = vector.shape_cast %890 : vector<2xf32> to vector<2x1xf32>
    %892 = arith.mulf %885, %125 : vector<2x32xf32>
    %cst_166 = arith.constant dense<0.000000e+00> : vector<2xf32>
    %893 = vector.multi_reduction <add>, %892, %cst_166 [1] : vector<2x32xf32> to vector<2xf32>
    %894 = vector.shape_cast %893 : vector<2xf32> to vector<2x1xf32>
    %895 = arith.mulf %885, %156 : vector<2x32xf32>
    %cst_167 = arith.constant dense<0.000000e+00> : vector<2xf32>
    %896 = vector.multi_reduction <add>, %895, %cst_167 [1] : vector<2x32xf32> to vector<2xf32>
    %897 = vector.shape_cast %896 : vector<2xf32> to vector<2x1xf32>
    %898 = arith.mulf %885, %187 : vector<2x32xf32>
    %cst_168 = arith.constant dense<0.000000e+00> : vector<2xf32>
    %899 = vector.multi_reduction <add>, %898, %cst_168 [1] : vector<2x32xf32> to vector<2xf32>
    %900 = vector.shape_cast %899 : vector<2xf32> to vector<2x1xf32>
    %901 = arith.mulf %885, %218 : vector<2x32xf32>
    %cst_169 = arith.constant dense<0.000000e+00> : vector<2xf32>
    %902 = vector.multi_reduction <add>, %901, %cst_169 [1] : vector<2x32xf32> to vector<2xf32>
    %903 = vector.shape_cast %902 : vector<2xf32> to vector<2x1xf32>
    %904 = arith.mulf %885, %249 : vector<2x32xf32>
    %cst_170 = arith.constant dense<0.000000e+00> : vector<2xf32>
    %905 = vector.multi_reduction <add>, %904, %cst_170 [1] : vector<2x32xf32> to vector<2xf32>
    %906 = vector.shape_cast %905 : vector<2xf32> to vector<2x1xf32>
    %907 = arith.mulf %885, %280 : vector<2x32xf32>
    %cst_171 = arith.constant dense<0.000000e+00> : vector<2xf32>
    %908 = vector.multi_reduction <add>, %907, %cst_171 [1] : vector<2x32xf32> to vector<2xf32>
    %909 = vector.shape_cast %908 : vector<2xf32> to vector<2x1xf32>
    %910 = tpu.concatenate %888, %891, %894, %897, %900, %903, %906, %909 in 1 : vector<2x1xf32>, vector<2x1xf32>, vector<2x1xf32>, vector<2x1xf32>, vector<2x1xf32>, vector<2x1xf32>, vector<2x1xf32>, vector<2x1xf32> -> vector<2x8xf32>
    %cst_172 = arith.constant dense<0xFF800000> : vector<2xf32>
    %911 = vector.multi_reduction <maximumf>, %910, %cst_172 [1] : vector<2x8xf32> to vector<2xf32>
    %912 = vector.shape_cast %911 : vector<2xf32> to vector<2x1xf32>
    %913 = vector.broadcast %912 : vector<2x1xf32> to vector<2x8xf32>
    %914 = arith.subf %910, %913 : vector<2x8xf32>
    %915 = math.exp %914 : vector<2x8xf32>
    %cst_173 = arith.constant dense<0.000000e+00> : vector<2xf32>
    %916 = vector.multi_reduction <add>, %915, %cst_173 [1] : vector<2x8xf32> to vector<2xf32>
    %917 = vector.shape_cast %916 : vector<2xf32> to vector<2x1xf32>
    %918 = tpu.reciprocal %917 {approx = true} : vector<2x1xf32> -> vector<2x1xf32>
    %919 = vector.broadcast %918 : vector<2x1xf32> to vector<2x8xf32>
    %920 = arith.mulf %915, %919 : vector<2x8xf32>
    %cst_174 = arith.constant 0.000000e+00 : f32
    %921 = vector.broadcast %cst_174 : f32 to vector<2x32xf32>
    %922 = vector.extract_strided_slice %920 {offsets = [0, 0], sizes = [2, 1], strides = [1, 1]} : vector<2x8xf32> to vector<2x1xf32>
    %923 = vector.broadcast %922 : vector<2x1xf32> to vector<2x32xf32>
    %924 = arith.mulf %923, %63 : vector<2x32xf32>
    %925 = arith.addf %921, %924 : vector<2x32xf32>
    %926 = vector.extract_strided_slice %920 {offsets = [0, 1], sizes = [2, 1], strides = [1, 1]} : vector<2x8xf32> to vector<2x1xf32>
    %927 = vector.broadcast %926 : vector<2x1xf32> to vector<2x32xf32>
    %928 = arith.mulf %927, %94 : vector<2x32xf32>
    %929 = arith.addf %925, %928 : vector<2x32xf32>
    %930 = vector.extract_strided_slice %920 {offsets = [0, 2], sizes = [2, 1], strides = [1, 1]} : vector<2x8xf32> to vector<2x1xf32>
    %931 = vector.broadcast %930 : vector<2x1xf32> to vector<2x32xf32>
    %932 = arith.mulf %931, %125 : vector<2x32xf32>
    %933 = arith.addf %929, %932 : vector<2x32xf32>
    %934 = vector.extract_strided_slice %920 {offsets = [0, 3], sizes = [2, 1], strides = [1, 1]} : vector<2x8xf32> to vector<2x1xf32>
    %935 = vector.broadcast %934 : vector<2x1xf32> to vector<2x32xf32>
    %936 = arith.mulf %935, %156 : vector<2x32xf32>
    %937 = arith.addf %933, %936 : vector<2x32xf32>
    %938 = vector.extract_strided_slice %920 {offsets = [0, 4], sizes = [2, 1], strides = [1, 1]} : vector<2x8xf32> to vector<2x1xf32>
    %939 = vector.broadcast %938 : vector<2x1xf32> to vector<2x32xf32>
    %940 = arith.mulf %939, %187 : vector<2x32xf32>
    %941 = arith.addf %937, %940 : vector<2x32xf32>
    %942 = vector.extract_strided_slice %920 {offsets = [0, 5], sizes = [2, 1], strides = [1, 1]} : vector<2x8xf32> to vector<2x1xf32>
    %943 = vector.broadcast %942 : vector<2x1xf32> to vector<2x32xf32>
    %944 = arith.mulf %943, %218 : vector<2x32xf32>
    %945 = arith.addf %941, %944 : vector<2x32xf32>
    %946 = vector.extract_strided_slice %920 {offsets = [0, 6], sizes = [2, 1], strides = [1, 1]} : vector<2x8xf32> to vector<2x1xf32>
    %947 = vector.broadcast %946 : vector<2x1xf32> to vector<2x32xf32>
    %948 = arith.mulf %947, %249 : vector<2x32xf32>
    %949 = arith.addf %945, %948 : vector<2x32xf32>
    %950 = vector.extract_strided_slice %920 {offsets = [0, 7], sizes = [2, 1], strides = [1, 1]} : vector<2x8xf32> to vector<2x1xf32>
    %951 = vector.broadcast %950 : vector<2x1xf32> to vector<2x32xf32>
    %952 = arith.mulf %951, %280 : vector<2x32xf32>
    %953 = arith.addf %949, %952 : vector<2x32xf32>
    %954 = vector.extract_strided_slice %342 {offsets = [0, 0], sizes = [1, 32], strides = [1, 1]} : vector<2x32xf32> to vector<1x32xf32>
    %955 = vector.extract_strided_slice %450 {offsets = [0, 0], sizes = [1, 32], strides = [1, 1]} : vector<2x32xf32> to vector<1x32xf32>
    %956 = vector.extract_strided_slice %558 {offsets = [0, 0], sizes = [1, 32], strides = [1, 1]} : vector<2x32xf32> to vector<1x32xf32>
    %957 = vector.extract_strided_slice %666 {offsets = [0, 0], sizes = [1, 32], strides = [1, 1]} : vector<2x32xf32> to vector<1x32xf32>
    %958 = vector.extract_strided_slice %774 {offsets = [0, 0], sizes = [1, 32], strides = [1, 1]} : vector<2x32xf32> to vector<1x32xf32>
    %959 = vector.extract_strided_slice %882 {offsets = [0, 0], sizes = [1, 32], strides = [1, 1]} : vector<2x32xf32> to vector<1x32xf32>
    %960 = tpu.concatenate %954, %955, %956, %957, %958, %959 in 0 : vector<1x32xf32>, vector<1x32xf32>, vector<1x32xf32>, vector<1x32xf32>, vector<1x32xf32>, vector<1x32xf32> -> vector<6x32xf32>
    %961 = arith.truncf %960 : vector<6x32xf32> to vector<6x32xbf16>
    %962 = vector.extract_strided_slice %413 {offsets = [0, 0], sizes = [1, 32], strides = [1, 1]} : vector<2x32xf32> to vector<1x32xf32>
    %963 = vector.extract_strided_slice %521 {offsets = [0, 0], sizes = [1, 32], strides = [1, 1]} : vector<2x32xf32> to vector<1x32xf32>
    %964 = vector.extract_strided_slice %629 {offsets = [0, 0], sizes = [1, 32], strides = [1, 1]} : vector<2x32xf32> to vector<1x32xf32>
    %965 = vector.extract_strided_slice %737 {offsets = [0, 0], sizes = [1, 32], strides = [1, 1]} : vector<2x32xf32> to vector<1x32xf32>
    %966 = vector.extract_strided_slice %845 {offsets = [0, 0], sizes = [1, 32], strides = [1, 1]} : vector<2x32xf32> to vector<1x32xf32>
    %967 = vector.extract_strided_slice %953 {offsets = [0, 0], sizes = [1, 32], strides = [1, 1]} : vector<2x32xf32> to vector<1x32xf32>
    %968 = tpu.concatenate %962, %963, %964, %965, %966, %967 in 0 : vector<1x32xf32>, vector<1x32xf32>, vector<1x32xf32>, vector<1x32xf32>, vector<1x32xf32>, vector<1x32xf32> -> vector<6x32xf32>
    %969 = arith.truncf %968 : vector<6x32xf32> to vector<6x32xbf16>
    %cst_175 = arith.constant dense<0.000000e+00> : vector<6x128xf32>
    %970 = tpu.matmul %961, %11, %cst_175 {dimension_numbers = #tpu.dot_dimension_numbers<[1], [0], [0], [1], [0, 0, 1, 1], [], []>} : vector<6x32xbf16>, vector<32x128xbf16>, vector<6x128xf32> -> vector<6x128xf32>
    %cst_176 = arith.constant dense<0.000000e+00> : vector<6x128xf32>
    %971 = tpu.matmul %969, %13, %cst_176 {dimension_numbers = #tpu.dot_dimension_numbers<[1], [0], [0], [1], [0, 0, 1, 1], [], []>} : vector<6x32xbf16>, vector<32x128xbf16>, vector<6x128xf32> -> vector<6x128xf32>
    %972 = arith.addf %970, %971 : vector<6x128xf32>
    %973 = arith.addf %972, %22 : vector<6x128xf32>
    %c0_177 = arith.constant 0 : index
    %c0_178 = arith.constant 0 : index
    %c0_179 = arith.constant 0 : index
    %974 = vector.load %arg16[%c0_177, %c0_178, %c0_179] : memref<2x6x128xf32, #tpu.memory_space<vmem>>, vector<1x6x128xf32>
    %975 = vector.shape_cast %974 : vector<1x6x128xf32> to vector<6x128xf32>
    %976 = vector.shape_cast %973 : vector<6x128xf32> to vector<1x6x128xf32>
    tpu.vector_store %arg16[%c0_177, %c0_178, %c0_179], %976 {strides = array<i32>} : memref<2x6x128xf32, #tpu.memory_space<vmem>>, vector<1x6x128xf32>,
    %977 = vector.extract_strided_slice %342 {offsets = [1, 0], sizes = [1, 32], strides = [1, 1]} : vector<2x32xf32> to vector<1x32xf32>
    %978 = vector.extract_strided_slice %450 {offsets = [1, 0], sizes = [1, 32], strides = [1, 1]} : vector<2x32xf32> to vector<1x32xf32>
    %979 = vector.extract_strided_slice %558 {offsets = [1, 0], sizes = [1, 32], strides = [1, 1]} : vector<2x32xf32> to vector<1x32xf32>
    %980 = vector.extract_strided_slice %666 {offsets = [1, 0], sizes = [1, 32], strides = [1, 1]} : vector<2x32xf32> to vector<1x32xf32>
    %981 = vector.extract_strided_slice %774 {offsets = [1, 0], sizes = [1, 32], strides = [1, 1]} : vector<2x32xf32> to vector<1x32xf32>
    %982 = vector.extract_strided_slice %882 {offsets = [1, 0], sizes = [1, 32], strides = [1, 1]} : vector<2x32xf32> to vector<1x32xf32>
    %983 = tpu.concatenate %977, %978, %979, %980, %981, %982 in 0 : vector<1x32xf32>, vector<1x32xf32>, vector<1x32xf32>, vector<1x32xf32>, vector<1x32xf32>, vector<1x32xf32> -> vector<6x32xf32>
    %984 = arith.truncf %983 : vector<6x32xf32> to vector<6x32xbf16>
    %985 = vector.extract_strided_slice %413 {offsets = [1, 0], sizes = [1, 32], strides = [1, 1]} : vector<2x32xf32> to vector<1x32xf32>
    %986 = vector.extract_strided_slice %521 {offsets = [1, 0], sizes = [1, 32], strides = [1, 1]} : vector<2x32xf32> to vector<1x32xf32>
    %987 = vector.extract_strided_slice %629 {offsets = [1, 0], sizes = [1, 32], strides = [1, 1]} : vector<2x32xf32> to vector<1x32xf32>
    %988 = vector.extract_strided_slice %737 {offsets = [1, 0], sizes = [1, 32], strides = [1, 1]} : vector<2x32xf32> to vector<1x32xf32>
    %989 = vector.extract_strided_slice %845 {offsets = [1, 0], sizes = [1, 32], strides = [1, 1]} : vector<2x32xf32> to vector<1x32xf32>
    %990 = vector.extract_strided_slice %953 {offsets = [1, 0], sizes = [1, 32], strides = [1, 1]} : vector<2x32xf32> to vector<1x32xf32>
    %991 = tpu.concatenate %985, %986, %987, %988, %989, %990 in 0 : vector<1x32xf32>, vector<1x32xf32>, vector<1x32xf32>, vector<1x32xf32>, vector<1x32xf32>, vector<1x32xf32> -> vector<6x32xf32>
    %992 = arith.truncf %991 : vector<6x32xf32> to vector<6x32xbf16>
    %cst_180 = arith.constant dense<0.000000e+00> : vector<6x128xf32>
    %993 = tpu.matmul %984, %11, %cst_180 {dimension_numbers = #tpu.dot_dimension_numbers<[1], [0], [0], [1], [0, 0, 1, 1], [], []>} : vector<6x32xbf16>, vector<32x128xbf16>, vector<6x128xf32> -> vector<6x128xf32>
    %cst_181 = arith.constant dense<0.000000e+00> : vector<6x128xf32>
    %994 = tpu.matmul %992, %13, %cst_181 {dimension_numbers = #tpu.dot_dimension_numbers<[1], [0], [0], [1], [0, 0, 1, 1], [], []>} : vector<6x32xbf16>, vector<32x128xbf16>, vector<6x128xf32> -> vector<6x128xf32>
    %995 = arith.addf %993, %994 : vector<6x128xf32>
    %996 = arith.addf %995, %22 : vector<6x128xf32>
    %c1_182 = arith.constant 1 : index
    %c0_183 = arith.constant 0 : index
    %c0_184 = arith.constant 0 : index
    %997 = vector.load %arg16[%c1_182, %c0_183, %c0_184] : memref<2x6x128xf32, #tpu.memory_space<vmem>>, vector<1x6x128xf32>
    %998 = vector.shape_cast %997 : vector<1x6x128xf32> to vector<6x128xf32>
    %999 = vector.shape_cast %996 : vector<6x128xf32> to vector<1x6x128xf32>
    tpu.vector_store %arg16[%c1_182, %c0_183, %c0_184], %999 {strides = array<i32>} : memref<2x6x128xf32, #tpu.memory_space<vmem>>, vector<1x6x128xf32>,
    return
  }
  func.func @transform_0(%arg0: i32) -> (i32, i32) {
    %c0_i32 = arith.constant 0 : i32
    %c0_i32_0 = arith.constant 0 : i32
    %c0_i32_1 = arith.constant 0 : i32
    return %c0_i32, %c0_i32_0 : i32, i32
  }
  func.func @transform_1(%arg0: i32) -> (i32, i32) {
    %c0_i32 = arith.constant 0 : i32
    %c0_i32_0 = arith.constant 0 : i32
    %c0_i32_1 = arith.constant 0 : i32
    return %c0_i32, %c0_i32_0 : i32, i32
  }
  func.func @transform_2(%arg0: i32) -> (i32, i32) {
    %c0_i32 = arith.constant 0 : i32
    %c0_i32_0 = arith.constant 0 : i32
    %c0_i32_1 = arith.constant 0 : i32
    return %c0_i32, %c0_i32_0 : i32, i32
  }
  func.func @transform_3(%arg0: i32) -> (i32, i32) {
    %c0_i32 = arith.constant 0 : i32
    %c0_i32_0 = arith.constant 0 : i32
    %c0_i32_1 = arith.constant 0 : i32
    return %c0_i32, %c0_i32_0 : i32, i32
  }
  func.func @transform_4(%arg0: i32) -> (i32, i32) {
    %c0_i32 = arith.constant 0 : i32
    %c0_i32_0 = arith.constant 0 : i32
    %c0_i32_1 = arith.constant 0 : i32
    return %c0_i32, %c0_i32_0 : i32, i32
  }
  func.func @transform_5(%arg0: i32) -> (i32, i32) {
    %c0_i32 = arith.constant 0 : i32
    %c0_i32_0 = arith.constant 0 : i32
    %c0_i32_1 = arith.constant 0 : i32
    return %c0_i32, %c0_i32_0 : i32, i32
  }
  func.func @transform_6(%arg0: i32) -> (i32, i32) {
    %c0_i32 = arith.constant 0 : i32
    %c0_i32_0 = arith.constant 0 : i32
    %c0_i32_1 = arith.constant 0 : i32
    return %c0_i32, %c0_i32_0 : i32, i32
  }
  func.func @transform_7(%arg0: i32) -> (i32, i32) {
    %c0_i32 = arith.constant 0 : i32
    %c0_i32_0 = arith.constant 0 : i32
    %c0_i32_1 = arith.constant 0 : i32
    return %c0_i32, %c0_i32_0 : i32, i32
  }
  func.func @transform_8(%arg0: i32) -> (i32, i32) {
    %c0_i32 = arith.constant 0 : i32
    %c0_i32_0 = arith.constant 0 : i32
    %c0_i32_1 = arith.constant 0 : i32
    return %c0_i32, %c0_i32_0 : i32, i32
  }
  func.func @transform_9(%arg0: i32) -> (i32, i32) {
    %c0_i32 = arith.constant 0 : i32
    %c0_i32_0 = arith.constant 0 : i32
    %c0_i32_1 = arith.constant 0 : i32
    return %c0_i32, %c0_i32_0 : i32, i32
  }
  func.func @transform_10(%arg0: i32) -> (i32, i32) {
    %c0_i32 = arith.constant 0 : i32
    %c0_i32_0 = arith.constant 0 : i32
    %c0_i32_1 = arith.constant 0 : i32
    return %c0_i32, %c0_i32_0 : i32, i32
  }
  func.func @transform_11(%arg0: i32) -> (i32, i32) {
    %c0_i32 = arith.constant 0 : i32
    %c0_i32_0 = arith.constant 0 : i32
    %c0_i32_1 = arith.constant 0 : i32
    return %c0_i32, %c0_i32_0 : i32, i32
  }
  func.func @transform_12(%arg0: i32) -> (i32, i32) {
    %c0_i32 = arith.constant 0 : i32
    %c0_i32_0 = arith.constant 0 : i32
    %c0_i32_1 = arith.constant 0 : i32
    return %c0_i32, %c0_i32_0 : i32, i32
  }
  func.func @transform_13(%arg0: i32) -> (i32, i32) {
    %c0_i32 = arith.constant 0 : i32
    %c0_i32_0 = arith.constant 0 : i32
    %c0_i32_1 = arith.constant 0 : i32
    return %c0_i32, %c0_i32_0 : i32, i32
  }
  func.func @transform_14(%arg0: i32) -> (i32, i32, i32) {
    %c0_i32 = arith.constant 0 : i32
    %c0_i32_0 = arith.constant 0 : i32
    %c0_i32_1 = arith.constant 0 : i32
    %c0_i32_2 = arith.constant 0 : i32
    return %c0_i32, %c0_i32_0, %c0_i32_1 : i32, i32, i32
  }
  func.func @transform_15(%arg0: i32) -> (i32, i32, i32) {
    %c0_i32 = arith.constant 0 : i32
    %c0_i32_0 = arith.constant 0 : i32
    %c0_i32_1 = arith.constant 0 : i32
    %c0_i32_2 = arith.constant 0 : i32
    return %c0_i32, %c0_i32_0, %c0_i32_1 : i32, i32, i32
  }
}

</mosaic_0001>

<llo_original>
// kernel: s2s_pallas.1
$region0: #{s2s_pallas.1}
  #allocation0 [shape = 'u32[]', space=smem, size = 0x4, offset = 0x4, fixed_abs, tag = 'smem constant byte address 0x4 - core index']
  #allocation1 [shape = 'u32[144,128]{1,0:T(1,128)}', space=vmem, size = 0x12000, scoped, tag = 'internal scratch']
  %s0 = inlined_call_operand.hbm [shape: f32[16,4096], index: 0, kind: input, shape index: {}]
  %s1 = inlined_call_operand.hbm [shape: bf16[4096,128], index: 1, kind: input, shape index: {}]
  %s2 = inlined_call_operand.vmem [shape: f32[1,128], index: 2, kind: input, shape index: {}]
  %s3 = inlined_call_operand.vmem [shape: f32[32,128], index: 3, kind: input, shape index: {}]
  %s4 = inlined_call_operand.vmem [shape: f32[12,32], index: 4, kind: input, shape index: {}]
  %s5 = inlined_call_operand.vmem [shape: f32[32,128], index: 5, kind: input, shape index: {}]
  %s6 = inlined_call_operand.vmem [shape: f32[32,128], index: 6, kind: input, shape index: {}]
  %s7 = inlined_call_operand.vmem [shape: f32[32,128], index: 7, kind: input, shape index: {}]
  %s8 = inlined_call_operand.vmem [shape: f32[1,128], index: 8, kind: input, shape index: {}]
  %s9 = inlined_call_operand.vmem [shape: f32[32,32], index: 9, kind: input, shape index: {}]
  %s10 = inlined_call_operand.vmem [shape: f32[1,32], index: 10, kind: input, shape index: {}]
  %s11 = inlined_call_operand.vmem [shape: f32[32,128], index: 11, kind: input, shape index: {}]
  %s12 = inlined_call_operand.vmem [shape: f32[32,128], index: 12, kind: input, shape index: {}]
  %s13 = inlined_call_operand.vmem [shape: f32[1,128], index: 13, kind: input, shape index: {}]
  %s14 = inlined_call_operand.hbm [shape: f32[2,8,32], index: 14, kind: output, shape index: {0}]
  %s15 = inlined_call_operand.vmem [shape: f32[2,6,128], index: 15, kind: output, shape index: {1}]
  %16 = xla_tuple %s14, %s15
  %s17 = sld [smem:[#allocation0]]
  $region82: #{s2s_pallas.1} parent=0
    _
  %s19 = ssub.s32 1, %s17
  %s20 = scalar_select 0, %s19, %s17
  $region1: #{s2s_pallas.1} parent=0
    #allocation2 [shape = 'u8[262144]{0}', space=vmem, size = 0x40000, scoped, tag = 'input window, operand 0, single buffered']
    #allocation3 [shape = 's32[1]{0}', space=sflag, size = 0x4, scoped, tag = 'scoped memory for s2s_pallas.1']
    #allocation4 [shape = 's32[1]{0}', space=sflag, size = 0x4, scoped, tag = 'scoped memory for s2s_pallas.1']
    #allocation5 [shape = 'u8[1048576]{0}', space=vmem, size = 0x100000, scoped, tag = 'input window, operand 1, single buffered']
    #allocation6 [shape = 's32[1]{0}', space=sflag, size = 0x4, scoped, tag = 'scoped memory for s2s_pallas.1']
    #allocation7 [shape = 'u8[8192]{0}', space=vmem, size = 0x2000, scoped, tag = 'output window, operand 0, single buffered']
    %21 = vsyncpa [#allocation3], 0
    %22 = vsyncpa [#allocation6], 0
    %23 = vsyncpa [#allocation4], 0
    // Predicated region
    $region2: #{s2s_pallas.1} parent=1 // pred_check
      _
    $region3: #{s2s_pallas.1} parent=1 // pred_check_branch
      %25 = sbr.rel (0) target = $region5
    $region4: #{s2s_pallas.1} parent=1 // pred_region
      %s27 = ssub.s32 8192, 8192
      %28 = vsyncadd [#allocation3], %s27
      %s29 = sshll.u32 [#allocation2], 4
      %s30 = int_to_ptr.vmem [resolvable:$true] %s29
      %35 = dma.hbm_to_vmem [thread:$0]  %s0, 8192, %s30, [#allocation3], 4096, 4096, 256
    $region5: #{s2s_pallas.1} parent=1 // pred_fallthru
      _
    // Predicated region
    $region6: #{s2s_pallas.1} parent=1 // pred_check
      _
    $region7: #{s2s_pallas.1} parent=1 // pred_check_branch
      %37 = sbr.rel (0) target = $region9
    $region8: #{s2s_pallas.1} parent=1 // pred_region
      %s39 = ssub.s32 32768, 32768
      %40 = vsyncadd [#allocation6], %s39
      %s41 = sshll.u32 [#allocation5], 4
      %s42 = int_to_ptr.vmem [resolvable:$true] %s41
      %47 = dma.hbm_to_vmem [thread:$0]  %s1, 32768, %s42, [#allocation6], 64, 64, 4
    $region9: #{s2s_pallas.1} parent=1 // pred_fallthru
      _
    // Predicated region
    $region10: #{s2s_pallas.1} parent=1 // pred_check
      _
    $region11: #{s2s_pallas.1} parent=1 // pred_check_branch
      %49 = sbr.rel (0) target = $region13
    $region12: #{s2s_pallas.1} parent=1 // pred_region
      _
    $region13: #{s2s_pallas.1} parent=1 // pred_fallthru
      _
    // Predicated region
    $region14: #{s2s_pallas.1} parent=1 // pred_check
      _
    $region15: #{s2s_pallas.1} parent=1 // pred_check_branch
      %51 = sbr.rel (0) target = $region17
    $region16: #{s2s_pallas.1} parent=1 // pred_region
      _
    $region17: #{s2s_pallas.1} parent=1 // pred_fallthru
      _
    // Predicated region
    $region18: #{s2s_pallas.1} parent=1 // pred_check
      _
    $region19: #{s2s_pallas.1} parent=1 // pred_check_branch
      %53 = sbr.rel (0) target = $region21
    $region20: #{s2s_pallas.1} parent=1 // pred_region
      _
    $region21: #{s2s_pallas.1} parent=1 // pred_fallthru
      _
    // Predicated region
    $region22: #{s2s_pallas.1} parent=1 // pred_check
      _
    $region23: #{s2s_pallas.1} parent=1 // pred_check_branch
      %55 = sbr.rel (0) target = $region25
    $region24: #{s2s_pallas.1} parent=1 // pred_region
      _
    $region25: #{s2s_pallas.1} parent=1 // pred_fallthru
      _
    // Predicated region
    $region26: #{s2s_pallas.1} parent=1 // pred_check
      _
    $region27: #{s2s_pallas.1} parent=1 // pred_check_branch
      %57 = sbr.rel (0) target = $region29
    $region28: #{s2s_pallas.1} parent=1 // pred_region
      _
    $region29: #{s2s_pallas.1} parent=1 // pred_fallthru
      _
    // Predicated region
    $region30: #{s2s_pallas.1} parent=1 // pred_check
      _
    $region31: #{s2s_pallas.1} parent=1 // pred_check_branch
      %59 = sbr.rel (0) target = $region33
    $region32: #{s2s_pallas.1} parent=1 // pred_region
      _
    $region33: #{s2s_pallas.1} parent=1 // pred_fallthru
      _
    // Predicated region
    $region34: #{s2s_pallas.1} parent=1 // pred_check
      _
    $region35: #{s2s_pallas.1} parent=1 // pred_check_branch
      %61 = sbr.rel (0) target = $region37
    $region36: #{s2s_pallas.1} parent=1 // pred_region
      _
    $region37: #{s2s_pallas.1} parent=1 // pred_fallthru
      _
    // Predicated region
    $region38: #{s2s_pallas.1} parent=1 // pred_check
      _
    $region39: #{s2s_pallas.1} parent=1 // pred_check_branch
      %63 = sbr.rel (0) target = $region41
    $region40: #{s2s_pallas.1} parent=1 // pred_region
      _
    $region41: #{s2s_pallas.1} parent=1 // pred_fallthru
      _
    // Predicated region
    $region42: #{s2s_pallas.1} parent=1 // pred_check
      _
    $region43: #{s2s_pallas.1} parent=1 // pred_check_branch
      %65 = sbr.rel (0) target = $region45
    $region44: #{s2s_pallas.1} parent=1 // pred_region
      _
    $region45: #{s2s_pallas.1} parent=1 // pred_fallthru
      _
    // Predicated region
    $region46: #{s2s_pallas.1} parent=1 // pred_check
      _
    $region47: #{s2s_pallas.1} parent=1 // pred_check_branch
      %67 = sbr.rel (0) target = $region49
    $region48: #{s2s_pallas.1} parent=1 // pred_region
      _
    $region49: #{s2s_pallas.1} parent=1 // pred_fallthru
      _
    // Predicated region
    $region50: #{s2s_pallas.1} parent=1 // pred_check
      _
    $region51: #{s2s_pallas.1} parent=1 // pred_check_branch
      %69 = sbr.rel (0) target = $region53
    $region52: #{s2s_pallas.1} parent=1 // pred_region
      _
    $region53: #{s2s_pallas.1} parent=1 // pred_fallthru
      _
    // Predicated region
    $region54: #{s2s_pallas.1} parent=1 // pred_check
      _
    $region55: #{s2s_pallas.1} parent=1 // pred_check_branch
      %71 = sbr.rel (0) target = $region57
    $region56: #{s2s_pallas.1} parent=1 // pred_region
      _
    $region57: #{s2s_pallas.1} parent=1 // pred_fallthru
      _
    // Predicated region
    $region58: #{s2s_pallas.1} parent=1 // pred_check
      _
    $region59: #{s2s_pallas.1} parent=1 // pred_check_branch
      %73 = sbr.rel (0) target = $region61
    $region60: #{s2s_pallas.1} parent=1 // pred_region
      %74 = dma.done [#allocation3], 8192
    $region61: #{s2s_pallas.1} parent=1 // pred_fallthru
      _
    // Predicated region
    $region62: #{s2s_pallas.1} parent=1 // pred_check
      _
    $region63: #{s2s_pallas.1} parent=1 // pred_check_branch
      %76 = sbr.rel (0) target = $region65
    $region64: #{s2s_pallas.1} parent=1 // pred_region
      %77 = dma.done [#allocation6], 32768
    $region65: #{s2s_pallas.1} parent=1 // pred_fallthru
      _
    %v79 = vld [vmem:[%s3] sm:$0xff]
    %v80 = vld [vmem:[%s3 + $0x8] sm:$0xff]
    %v81 = vld [vmem:[%s3 + $0x10] sm:$0xff]
    %v82 = vld [vmem:[%s3 + $0x18] sm:$0xff]
    %v83 = vpack.c.bf16 %v80, %v79
    %v84 = vpack.c.bf16 %v82, %v81
    %v85 = vld [vmem:[%s5] sm:$0xff]
    %v86 = vld [vmem:[%s5 + $0x8] sm:$0xff]
    %v87 = vld [vmem:[%s5 + $0x10] sm:$0xff]
    %v88 = vld [vmem:[%s5 + $0x18] sm:$0xff]
    %v89 = vpack.c.bf16 %v86, %v85
    %v90 = vpack.c.bf16 %v88, %v87
    %v91 = vld [vmem:[%s6] sm:$0xff]
    %v92 = vld [vmem:[%s6 + $0x8] sm:$0xff]
    %v93 = vld [vmem:[%s6 + $0x10] sm:$0xff]
    %v94 = vld [vmem:[%s6 + $0x18] sm:$0xff]
    %v95 = vpack.c.bf16 %v92, %v91
    %v96 = vpack.c.bf16 %v94, %v93
    %v97 = vld [vmem:[%s7] sm:$0xff]
    %v98 = vld [vmem:[%s7 + $0x8] sm:$0xff]
    %v99 = vld [vmem:[%s7 + $0x10] sm:$0xff]
    %v100 = vld [vmem:[%s7 + $0x18] sm:$0xff]
    %v101 = vpack.c.bf16 %v98, %v97
    %v102 = vpack.c.bf16 %v100, %v99
    %v103 = vld [vmem:[%s9] sm:$0xff]
    %v104 = vld [vmem:[%s9 + $0x8] sm:$0xff]
    %v105 = vld [vmem:[%s9 + $0x10] sm:$0xff]
    %v106 = vld [vmem:[%s9 + $0x18] sm:$0xff]
    %v107 = vpack.c.bf16 %v104, %v103
    %v108 = vpack.c.bf16 %v106, %v105
    %v109 = vld [vmem:[%s11] sm:$0xff]
    %v110 = vld [vmem:[%s11 + $0x8] sm:$0xff]
    %v111 = vld [vmem:[%s11 + $0x10] sm:$0xff]
    %v112 = vld [vmem:[%s11 + $0x18] sm:$0xff]
    %v113 = vpack.c.bf16 %v110, %v109
    %v114 = vpack.c.bf16 %v112, %v111
    %v115 = vld [vmem:[%s12] sm:$0xff]
    %v116 = vld [vmem:[%s12 + $0x8] sm:$0xff]
    %v117 = vld [vmem:[%s12 + $0x10] sm:$0xff]
    %v118 = vld [vmem:[%s12 + $0x18] sm:$0xff]
    %v119 = vpack.c.bf16 %v116, %v115
    %v120 = vpack.c.bf16 %v118, %v117
    %v121 = vld [vmem:[%s8] sm:$0x1]
    %v123 = vlaneseq
    %v124 = vshrl.u32 %v123, 7
    %v125 = vsub.s32 0, %v124
    %v126 = vrot.slane %v121, %v125
    %v128 = vld [vmem:[%s10] sm:$0x1]
    %v130 = vlaneseq
    %v131 = vshrl.u32 %v130, 7
    %v132 = vsub.s32 0, %v131
    %v133 = vrot.slane %v128, %v132
    %v135 = vld [vmem:[%s13] sm:$0x1]
    %v137 = vlaneseq
    %v138 = vshrl.u32 %v137, 7
    %v139 = vsub.s32 0, %v138
    %v140 = vrot.slane %v135, %v139
    %v142 = vld [vmem:[%s4] sm:$0xff]
    %v143 = vld [vmem:[%s4 + $0x8] sm:$0xf]
    %v144 = vld [vmem:[#allocation2] sm:$0xff]
    %v145 = vld [vmem:[#allocation2 + $0x8] sm:$0xff]
    %v146 = vld [vmem:[#allocation2 + $0x10] sm:$0xff]
    %v147 = vld [vmem:[#allocation2 + $0x18] sm:$0xff]
    %v148 = vld [vmem:[#allocation2 + $0x20] sm:$0xff]
    %v149 = vld [vmem:[#allocation2 + $0x28] sm:$0xff]
    %v150 = vld [vmem:[#allocation2 + $0x30] sm:$0xff]
    %v151 = vld [vmem:[#allocation2 + $0x38] sm:$0xff]
    %v152 = vld [vmem:[#allocation2 + $0x40] sm:$0xff]
    %v153 = vld [vmem:[#allocation2 + $0x48] sm:$0xff]
    %v154 = vld [vmem:[#allocation2 + $0x50] sm:$0xff]
    %v155 = vld [vmem:[#allocation2 + $0x58] sm:$0xff]
    %v156 = vld [vmem:[#allocation2 + $0x60] sm:$0xff]
    %v157 = vld [vmem:[#allocation2 + $0x68] sm:$0xff]
    %v158 = vld [vmem:[#allocation2 + $0x70] sm:$0xff]
    %v159 = vld [vmem:[#allocation2 + $0x78] sm:$0xff]
    %v160 = vld [vmem:[#allocation2 + $0x80] sm:$0xff]
    %v161 = vld [vmem:[#allocation2 + $0x88] sm:$0xff]
    %v162 = vld [vmem:[#allocation2 + $0x90] sm:$0xff]
    %v163 = vld [vmem:[#allocation2 + $0x98] sm:$0xff]
    %v164 = vld [vmem:[#allocation2 + $0xa0] sm:$0xff]
    %v165 = vld [vmem:[#allocation2 + $0xa8] sm:$0xff]
    %v166 = vld [vmem:[#allocation2 + $0xb0] sm:$0xff]
    %v167 = vld [vmem:[#allocation2 + $0xb8] sm:$0xff]
    %v168 = vld [vmem:[#allocation2 + $0xc0] sm:$0xff]
    %v169 = vld [vmem:[#allocation2 + $0xc8] sm:$0xff]
    %v170 = vld [vmem:[#allocation2 + $0xd0] sm:$0xff]
    %v171 = vld [vmem:[#allocation2 + $0xd8] sm:$0xff]
    %v172 = vld [vmem:[#allocation2 + $0xe0] sm:$0xff]
    %v173 = vld [vmem:[#allocation2 + $0xe8] sm:$0xff]
    %v174 = vld [vmem:[#allocation2 + $0xf0] sm:$0xff]
    %v175 = vld [vmem:[#allocation2 + $0xf8] sm:$0xff]
    %v176 = vld [vmem:[#allocation2 + $0x100] sm:$0xff]
    %v177 = vld [vmem:[#allocation2 + $0x108] sm:$0xff]
    %v178 = vld [vmem:[#allocation2 + $0x110] sm:$0xff]
    %v179 = vld [vmem:[#allocation2 + $0x118] sm:$0xff]
    %v180 = vld [vmem:[#allocation2 + $0x120] sm:$0xff]
    %v181 = vld [vmem:[#allocation2 + $0x128] sm:$0xff]
    %v182 = vld [vmem:[#allocation2 + $0x130] sm:$0xff]
    %v183 = vld [vmem:[#allocation2 + $0x138] sm:$0xff]
    %v184 = vld [vmem:[#allocation2 + $0x140] sm:$0xff]
    %v185 = vld [vmem:[#allocation2 + $0x148] sm:$0xff]
    %v186 = vld [vmem:[#allocation2 + $0x150] sm:$0xff]
    %v187 = vld [vmem:[#allocation2 + $0x158] sm:$0xff]
    %v188 = vld [vmem:[#allocation2 + $0x160] sm:$0xff]
    %v189 = vld [vmem:[#allocation2 + $0x168] sm:$0xff]
    %v190 = vld [vmem:[#allocation2 + $0x170] sm:$0xff]
    %v191 = vld [vmem:[#allocation2 + $0x178] sm:$0xff]
    %v192 = vld [vmem:[#allocation2 + $0x180] sm:$0xff]
    %v193 = vld [vmem:[#allocation2 + $0x188] sm:$0xff]
    %v194 = vld [vmem:[#allocation2 + $0x190] sm:$0xff]
    %v195 = vld [vmem:[#allocation2 + $0x198] sm:$0xff]
    %v196 = vld [vmem:[#allocation2 + $0x1a0] sm:$0xff]
    %v197 = vld [vmem:[#allocation2 + $0x1a8] sm:$0xff]
    %v198 = vld [vmem:[#allocation2 + $0x1b0] sm:$0xff]
    %v199 = vld [vmem:[#allocation2 + $0x1b8] sm:$0xff]
    %v200 = vld [vmem:[#allocation2 + $0x1c0] sm:$0xff]
    %v201 = vld [vmem:[#allocation2 + $0x1c8] sm:$0xff]
    %v202 = vld [vmem:[#allocation2 + $0x1d0] sm:$0xff]
    %v203 = vld [vmem:[#allocation2 + $0x1d8] sm:$0xff]
    %v204 = vld [vmem:[#allocation2 + $0x1e0] sm:$0xff]
    %v205 = vld [vmem:[#allocation2 + $0x1e8] sm:$0xff]
    %v206 = vld [vmem:[#allocation2 + $0x1f0] sm:$0xff]
    %v207 = vld [vmem:[#allocation2 + $0x1f8] sm:$0xff]
    %v208 = vpack.c.bf16 %v176, %v144
    %v209 = vpack.c.bf16 %v177, %v145
    %v210 = vpack.c.bf16 %v178, %v146
    %v211 = vpack.c.bf16 %v179, %v147
    %v212 = vpack.c.bf16 %v180, %v148
    %v213 = vpack.c.bf16 %v181, %v149
    %v214 = vpack.c.bf16 %v182, %v150
    %v215 = vpack.c.bf16 %v183, %v151
    %v216 = vpack.c.bf16 %v184, %v152
    %v217 = vpack.c.bf16 %v185, %v153
    %v218 = vpack.c.bf16 %v186, %v154
    %v219 = vpack.c.bf16 %v187, %v155
    %v220 = vpack.c.bf16 %v188, %v156
    %v221 = vpack.c.bf16 %v189, %v157
    %v222 = vpack.c.bf16 %v190, %v158
    %v223 = vpack.c.bf16 %v191, %v159
    %v224 = vpack.c.bf16 %v192, %v160
    %v225 = vpack.c.bf16 %v193, %v161
    %v226 = vpack.c.bf16 %v194, %v162
    %v227 = vpack.c.bf16 %v195, %v163
    %v228 = vpack.c.bf16 %v196, %v164
    %v229 = vpack.c.bf16 %v197, %v165
    %v230 = vpack.c.bf16 %v198, %v166
    %v231 = vpack.c.bf16 %v199, %v167
    %v232 = vpack.c.bf16 %v200, %v168
    %v233 = vpack.c.bf16 %v201, %v169
    %v234 = vpack.c.bf16 %v202, %v170
    %v235 = vpack.c.bf16 %v203, %v171
    %v236 = vpack.c.bf16 %v204, %v172
    %v237 = vpack.c.bf16 %v205, %v173
    %v238 = vpack.c.bf16 %v206, %v174
    %v239 = vpack.c.bf16 %v207, %v175
    %v240 = vld [vmem:[#allocation5] sm:$0xf]
    %v241 = vld [vmem:[#allocation5 + $0x4] sm:$0xf]
    %v242 = vld [vmem:[#allocation5 + $0x8] sm:$0xf]
    %v243 = vld [vmem:[#allocation5 + $0xc] sm:$0xf]
    %v244 = vld [vmem:[#allocation5 + $0x10] sm:$0xf]
    %v245 = vld [vmem:[#allocation5 + $0x14] sm:$0xf]
    %v246 = vld [vmem:[#allocation5 + $0x18] sm:$0xf]
    %v247 = vld [vmem:[#allocation5 + $0x1c] sm:$0xf]
    %v248 = vld [vmem:[#allocation5 + $0x20] sm:$0xf]
    %v249 = vld [vmem:[#allocation5 + $0x24] sm:$0xf]
    %v250 = vld [vmem:[#allocation5 + $0x28] sm:$0xf]
    %v251 = vld [vmem:[#allocation5 + $0x2c] sm:$0xf]
    %v252 = vld [vmem:[#allocation5 + $0x30] sm:$0xf]
    %v253 = vld [vmem:[#allocation5 + $0x34] sm:$0xf]
    %v254 = vld [vmem:[#allocation5 + $0x38] sm:$0xf]
    %v255 = vld [vmem:[#allocation5 + $0x3c] sm:$0xf]
    %v256 = vld [vmem:[#allocation5 + $0x40] sm:$0xf]
    %v257 = vld [vmem:[#allocation5 + $0x44] sm:$0xf]
    %v258 = vld [vmem:[#allocation5 + $0x48] sm:$0xf]
    %v259 = vld [vmem:[#allocation5 + $0x4c] sm:$0xf]
    %v260 = vld [vmem:[#allocation5 + $0x50] sm:$0xf]
    %v261 = vld [vmem:[#allocation5 + $0x54] sm:$0xf]
    %v262 = vld [vmem:[#allocation5 + $0x58] sm:$0xf]
    %v263 = vld [vmem:[#allocation5 + $0x5c] sm:$0xf]
    %v264 = vld [vmem:[#allocation5 + $0x60] sm:$0xf]
    %v265 = vld [vmem:[#allocation5 + $0x64] sm:$0xf]
    %v266 = vld [vmem:[#allocation5 + $0x68] sm:$0xf]
    %v267 = vld [vmem:[#allocation5 + $0x6c] sm:$0xf]
    %v268 = vld [vmem:[#allocation5 + $0x70] sm:$0xf]
    %v269 = vld [vmem:[#allocation5 + $0x74] sm:$0xf]
    %v270 = vld [vmem:[#allocation5 + $0x78] sm:$0xf]
    %v271 = vld [vmem:[#allocation5 + $0x7c] sm:$0xf]
    %v272 = vld [vmem:[#allocation5 + $0x80] sm:$0xf]
    %v273 = vld [vmem:[#allocation5 + $0x84] sm:$0xf]
    %v274 = vld [vmem:[#allocation5 + $0x88] sm:$0xf]
    %v275 = vld [vmem:[#allocation5 + $0x8c] sm:$0xf]
    %v276 = vld [vmem:[#allocation5 + $0x90] sm:$0xf]
    %v277 = vld [vmem:[#allocation5 + $0x94] sm:$0xf]
    %v278 = vld [vmem:[#allocation5 + $0x98] sm:$0xf]
    %v279 = vld [vmem:[#allocation5 + $0x9c] sm:$0xf]
    %v280 = vld [vmem:[#allocation5 + $0xa0] sm:$0xf]
    %v281 = vld [vmem:[#allocation5 + $0xa4] sm:$0xf]
    %v282 = vld [vmem:[#allocation5 + $0xa8] sm:$0xf]
    %v283 = vld [vmem:[#allocation5 + $0xac] sm:$0xf]
    %v284 = vld [vmem:[#allocation5 + $0xb0] sm:$0xf]
    %v285 = vld [vmem:[#allocation5 + $0xb4] sm:$0xf]
    %v286 = vld [vmem:[#allocation5 + $0xb8] sm:$0xf]
    %v287 = vld [vmem:[#allocation5 + $0xbc] sm:$0xf]
    %v288 = vld [vmem:[#allocation5 + $0xc0] sm:$0xf]
    %v289 = vld [vmem:[#allocation5 + $0xc4] sm:$0xf]
    %v290 = vld [vmem:[#allocation5 + $0xc8] sm:$0xf]
    %v291 = vld [vmem:[#allocation5 + $0xcc] sm:$0xf]
    %v292 = vld [vmem:[#allocation5 + $0xd0] sm:$0xf]
    %v293 = vld [vmem:[#allocation5 + $0xd4] sm:$0xf]
    %v294 = vld [vmem:[#allocation5 + $0xd8] sm:$0xf]
    %v295 = vld [vmem:[#allocation5 + $0xdc] sm:$0xf]
    %v296 = vld [vmem:[#allocation5 + $0xe0] sm:$0xf]
    %v297 = vld [vmem:[#allocation5 + $0xe4] sm:$0xf]
    %v298 = vld [vmem:[#allocation5 + $0xe8] sm:$0xf]
    %v299 = vld [vmem:[#allocation5 + $0xec] sm:$0xf]
    %v300 = vld [vmem:[#allocation5 + $0xf0] sm:$0xf]
    %v301 = vld [vmem:[#allocation5 + $0xf4] sm:$0xf]
    %v302 = vld [vmem:[#allocation5 + $0xf8] sm:$0xf]
    %v303 = vld [vmem:[#allocation5 + $0xfc] sm:$0xf]
    %v304 = vld [vmem:[#allocation5 + $0x100] sm:$0xf]
    %v305 = vld [vmem:[#allocation5 + $0x104] sm:$0xf]
    %v306 = vld [vmem:[#allocation5 + $0x108] sm:$0xf]
    %v307 = vld [vmem:[#allocation5 + $0x10c] sm:$0xf]
    %v308 = vld [vmem:[#allocation5 + $0x110] sm:$0xf]
    %v309 = vld [vmem:[#allocation5 + $0x114] sm:$0xf]
    %v310 = vld [vmem:[#allocation5 + $0x118] sm:$0xf]
    %v311 = vld [vmem:[#allocation5 + $0x11c] sm:$0xf]
    %v312 = vld [vmem:[#allocation5 + $0x120] sm:$0xf]
    %v313 = vld [vmem:[#allocation5 + $0x124] sm:$0xf]
    %v314 = vld [vmem:[#allocation5 + $0x128] sm:$0xf]
    %v315 = vld [vmem:[#allocation5 + $0x12c] sm:$0xf]
    %v316 = vld [vmem:[#allocation5 + $0x130] sm:$0xf]
    %v317 = vld [vmem:[#allocation5 + $0x134] sm:$0xf]
    %v318 = vld [vmem:[#allocation5 + $0x138] sm:$0xf]
    %v319 = vld [vmem:[#allocation5 + $0x13c] sm:$0xf]
    %v320 = vld [vmem:[#allocation5 + $0x140] sm:$0xf]
    %v321 = vld [vmem:[#allocation5 + $0x144] sm:$0xf]
    %v322 = vld [vmem:[#allocation5 + $0x148] sm:$0xf]
    %v323 = vld [vmem:[#allocation5 + $0x14c] sm:$0xf]
    %v324 = vld [vmem:[#allocation5 + $0x150] sm:$0xf]
    %v325 = vld [vmem:[#allocation5 + $0x154] sm:$0xf]
    %v326 = vld [vmem:[#allocation5 + $0x158] sm:$0xf]
    %v327 = vld [vmem:[#allocation5 + $0x15c] sm:$0xf]
    %v328 = vld [vmem:[#allocation5 + $0x160] sm:$0xf]
    %v329 = vld [vmem:[#allocation5 + $0x164] sm:$0xf]
    %v330 = vld [vmem:[#allocation5 + $0x168] sm:$0xf]
    %v331 = vld [vmem:[#allocation5 + $0x16c] sm:$0xf]
    %v332 = vld [vmem:[#allocation5 + $0x170] sm:$0xf]
    %v333 = vld [vmem:[#allocation5 + $0x174] sm:$0xf]
    %v334 = vld [vmem:[#allocation5 + $0x178] sm:$0xf]
    %v335 = vld [vmem:[#allocation5 + $0x17c] sm:$0xf]
    %v336 = vld [vmem:[#allocation5 + $0x180] sm:$0xf]
    %v337 = vld [vmem:[#allocation5 + $0x184] sm:$0xf]
    %v338 = vld [vmem:[#allocation5 + $0x188] sm:$0xf]
    %v339 = vld [vmem:[#allocation5 + $0x18c] sm:$0xf]
    %v340 = vld [vmem:[#allocation5 + $0x190] sm:$0xf]
    %v341 = vld [vmem:[#allocation5 + $0x194] sm:$0xf]
    %v342 = vld [vmem:[#allocation5 + $0x198] sm:$0xf]
    %v343 = vld [vmem:[#allocation5 + $0x19c] sm:$0xf]
    %v344 = vld [vmem:[#allocation5 + $0x1a0] sm:$0xf]
    %v345 = vld [vmem:[#allocation5 + $0x1a4] sm:$0xf]
    %v346 = vld [vmem:[#allocation5 + $0x1a8] sm:$0xf]
    %v347 = vld [vmem:[#allocation5 + $0x1ac] sm:$0xf]
    %v348 = vld [vmem:[#allocation5 + $0x1b0] sm:$0xf]
    %v349 = vld [vmem:[#allocation5 + $0x1b4] sm:$0xf]
    %v350 = vld [vmem:[#allocation5 + $0x1b8] sm:$0xf]
    %v351 = vld [vmem:[#allocation5 + $0x1bc] sm:$0xf]
    %v352 = vld [vmem:[#allocation5 + $0x1c0] sm:$0xf]
    %v353 = vld [vmem:[#allocation5 + $0x1c4] sm:$0xf]
    %v354 = vld [vmem:[#allocation5 + $0x1c8] sm:$0xf]
    %v355 = vld [vmem:[#allocation5 + $0x1cc] sm:$0xf]
    %v356 = vld [vmem:[#allocation5 + $0x1d0] sm:$0xf]
    %v357 = vld [vmem:[#allocation5 + $0x1d4] sm:$0xf]
    %v358 = vld [vmem:[#allocation5 + $0x1d8] sm:$0xf]
    %v359 = vld [vmem:[#allocation5 + $0x1dc] sm:$0xf]
    %v360 = vld [vmem:[#allocation5 + $0x1e0] sm:$0xf]
    %v361 = vld [vmem:[#allocation5 + $0x1e4] sm:$0xf]
    %v362 = vld [vmem:[#allocation5 + $0x1e8] sm:$0xf]
    %v363 = vld [vmem:[#allocation5 + $0x1ec] sm:$0xf]
    %v364 = vld [vmem:[#allocation5 + $0x1f0] sm:$0xf]
    %v365 = vld [vmem:[#allocation5 + $0x1f4] sm:$0xf]
    %v366 = vld [vmem:[#allocation5 + $0x1f8] sm:$0xf]
    %v367 = vld [vmem:[#allocation5 + $0x1fc] sm:$0xf]
    %v368 = vld [vmem:[#allocation5 + $0x200] sm:$0xf]
    %v369 = vld [vmem:[#allocation5 + $0x204] sm:$0xf]
    %v370 = vld [vmem:[#allocation5 + $0x208] sm:$0xf]
    %v371 = vld [vmem:[#allocation5 + $0x20c] sm:$0xf]
    %v372 = vld [vmem:[#allocation5 + $0x210] sm:$0xf]
    %v373 = vld [vmem:[#allocation5 + $0x214] sm:$0xf]
    %v374 = vld [vmem:[#allocation5 + $0x218] sm:$0xf]
    %v375 = vld [vmem:[#allocation5 + $0x21c] sm:$0xf]
    %v376 = vld [vmem:[#allocation5 + $0x220] sm:$0xf]
    %v377 = vld [vmem:[#allocation5 + $0x224] sm:$0xf]
    %v378 = vld [vmem:[#allocation5 + $0x228] sm:$0xf]
    %v379 = vld [vmem:[#allocation5 + $0x22c] sm:$0xf]
    %v380 = vld [vmem:[#allocation5 + $0x230] sm:$0xf]
    %v381 = vld [vmem:[#allocation5 + $0x234] sm:$0xf]
    %v382 = vld [vmem:[#allocation5 + $0x238] sm:$0xf]
    %v383 = vld [vmem:[#allocation5 + $0x23c] sm:$0xf]
    %v384 = vld [vmem:[#allocation5 + $0x240] sm:$0xf]
    %v385 = vld [vmem:[#allocation5 + $0x244] sm:$0xf]
    %v386 = vld [vmem:[#allocation5 + $0x248] sm:$0xf]
    %v387 = vld [vmem:[#allocation5 + $0x24c] sm:$0xf]
    %v388 = vld [vmem:[#allocation5 + $0x250] sm:$0xf]
    %v389 = vld [vmem:[#allocation5 + $0x254] sm:$0xf]
    %v390 = vld [vmem:[#allocation5 + $0x258] sm:$0xf]
    %v391 = vld [vmem:[#allocation5 + $0x25c] sm:$0xf]
    %v392 = vld [vmem:[#allocation5 + $0x260] sm:$0xf]
    %v393 = vld [vmem:[#allocation5 + $0x264] sm:$0xf]
    %v394 = vld [vmem:[#allocation5 + $0x268] sm:$0xf]
    %v395 = vld [vmem:[#allocation5 + $0x26c] sm:$0xf]
    %v396 = vld [vmem:[#allocation5 + $0x270] sm:$0xf]
    %v397 = vld [vmem:[#allocation5 + $0x274] sm:$0xf]
    %v398 = vld [vmem:[#allocation5 + $0x278] sm:$0xf]
    %v399 = vld [vmem:[#allocation5 + $0x27c] sm:$0xf]
    %v400 = vld [vmem:[#allocation5 + $0x280] sm:$0xf]
    %v401 = vld [vmem:[#allocation5 + $0x284] sm:$0xf]
    %v402 = vld [vmem:[#allocation5 + $0x288] sm:$0xf]
    %v403 = vld [vmem:[#allocation5 + $0x28c] sm:$0xf]
    %v404 = vld [vmem:[#allocation5 + $0x290] sm:$0xf]
    %v405 = vld [vmem:[#allocation5 + $0x294] sm:$0xf]
    %v406 = vld [vmem:[#allocation5 + $0x298] sm:$0xf]
    %v407 = vld [vmem:[#allocation5 + $0x29c] sm:$0xf]
    %v408 = vld [vmem:[#allocation5 + $0x2a0] sm:$0xf]
    %v409 = vld [vmem:[#allocation5 + $0x2a4] sm:$0xf]
    %v410 = vld [vmem:[#allocation5 + $0x2a8] sm:$0xf]
    %v411 = vld [vmem:[#allocation5 + $0x2ac] sm:$0xf]
    %v412 = vld [vmem:[#allocation5 + $0x2b0] sm:$0xf]
    %v413 = vld [vmem:[#allocation5 + $0x2b4] sm:$0xf]
    %v414 = vld [vmem:[#allocation5 + $0x2b8] sm:$0xf]
    %v415 = vld [vmem:[#allocation5 + $0x2bc] sm:$0xf]
    %v416 = vld [vmem:[#allocation5 + $0x2c0] sm:$0xf]
    %v417 = vld [vmem:[#allocation5 + $0x2c4] sm:$0xf]
    %v418 = vld [vmem:[#allocation5 + $0x2c8] sm:$0xf]
    %v419 = vld [vmem:[#allocation5 + $0x2cc] sm:$0xf]
    %v420 = vld [vmem:[#allocation5 + $0x2d0] sm:$0xf]
    %v421 = vld [vmem:[#allocation5 + $0x2d4] sm:$0xf]
    %v422 = vld [vmem:[#allocation5 + $0x2d8] sm:$0xf]
    %v423 = vld [vmem:[#allocation5 + $0x2dc] sm:$0xf]
    %v424 = vld [vmem:[#allocation5 + $0x2e0] sm:$0xf]
    %v425 = vld [vmem:[#allocation5 + $0x2e4] sm:$0xf]
    %v426 = vld [vmem:[#allocation5 + $0x2e8] sm:$0xf]
    %v427 = vld [vmem:[#allocation5 + $0x2ec] sm:$0xf]
    %v428 = vld [vmem:[#allocation5 + $0x2f0] sm:$0xf]
    %v429 = vld [vmem:[#allocation5 + $0x2f4] sm:$0xf]
    %v430 = vld [vmem:[#allocation5 + $0x2f8] sm:$0xf]
    %v431 = vld [vmem:[#allocation5 + $0x2fc] sm:$0xf]
    %v432 = vld [vmem:[#allocation5 + $0x300] sm:$0xf]
    %v433 = vld [vmem:[#allocation5 + $0x304] sm:$0xf]
    %v434 = vld [vmem:[#allocation5 + $0x308] sm:$0xf]
    %v435 = vld [vmem:[#allocation5 + $0x30c] sm:$0xf]
    %v436 = vld [vmem:[#allocation5 + $0x310] sm:$0xf]
    %v437 = vld [vmem:[#allocation5 + $0x314] sm:$0xf]
    %v438 = vld [vmem:[#allocation5 + $0x318] sm:$0xf]
    %v439 = vld [vmem:[#allocation5 + $0x31c] sm:$0xf]
    %v440 = vld [vmem:[#allocation5 + $0x320] sm:$0xf]
    %v441 = vld [vmem:[#allocation5 + $0x324] sm:$0xf]
    %v442 = vld [vmem:[#allocation5 + $0x328] sm:$0xf]
    %v443 = vld [vmem:[#allocation5 + $0x32c] sm:$0xf]
    %v444 = vld [vmem:[#allocation5 + $0x330] sm:$0xf]
    %v445 = vld [vmem:[#allocation5 + $0x334] sm:$0xf]
    %v446 = vld [vmem:[#allocation5 + $0x338] sm:$0xf]
    %v447 = vld [vmem:[#allocation5 + $0x33c] sm:$0xf]
    %v448 = vld [vmem:[#allocation5 + $0x340] sm:$0xf]
    %v449 = vld [vmem:[#allocation5 + $0x344] sm:$0xf]
    %v450 = vld [vmem:[#allocation5 + $0x348] sm:$0xf]
    %v451 = vld [vmem:[#allocation5 + $0x34c] sm:$0xf]
    %v452 = vld [vmem:[#allocation5 + $0x350] sm:$0xf]
    %v453 = vld [vmem:[#allocation5 + $0x354] sm:$0xf]
    %v454 = vld [vmem:[#allocation5 + $0x358] sm:$0xf]
    %v455 = vld [vmem:[#allocation5 + $0x35c] sm:$0xf]
    %v456 = vld [vmem:[#allocation5 + $0x360] sm:$0xf]
    %v457 = vld [vmem:[#allocation5 + $0x364] sm:$0xf]
    %v458 = vld [vmem:[#allocation5 + $0x368] sm:$0xf]
    %v459 = vld [vmem:[#allocation5 + $0x36c] sm:$0xf]
    %v460 = vld [vmem:[#allocation5 + $0x370] sm:$0xf]
    %v461 = vld [vmem:[#allocation5 + $0x374] sm:$0xf]
    %v462 = vld [vmem:[#allocation5 + $0x378] sm:$0xf]
    %v463 = vld [vmem:[#allocation5 + $0x37c] sm:$0xf]
    %v464 = vld [vmem:[#allocation5 + $0x380] sm:$0xf]
    %v465 = vld [vmem:[#allocation5 + $0x384] sm:$0xf]
    %v466 = vld [vmem:[#allocation5 + $0x388] sm:$0xf]
    %v467 = vld [vmem:[#allocation5 + $0x38c] sm:$0xf]
    %v468 = vld [vmem:[#allocation5 + $0x390] sm:$0xf]
    %v469 = vld [vmem:[#allocation5 + $0x394] sm:$0xf]
    %v470 = vld [vmem:[#allocation5 + $0x398] sm:$0xf]
    %v471 = vld [vmem:[#allocation5 + $0x39c] sm:$0xf]
    %v472 = vld [vmem:[#allocation5 + $0x3a0] sm:$0xf]
    %v473 = vld [vmem:[#allocation5 + $0x3a4] sm:$0xf]
    %v474 = vld [vmem:[#allocation5 + $0x3a8] sm:$0xf]
    %v475 = vld [vmem:[#allocation5 + $0x3ac] sm:$0xf]
    %v476 = vld [vmem:[#allocation5 + $0x3b0] sm:$0xf]
    %v477 = vld [vmem:[#allocation5 + $0x3b4] sm:$0xf]
    %v478 = vld [vmem:[#allocation5 + $0x3b8] sm:$0xf]
    %v479 = vld [vmem:[#allocation5 + $0x3bc] sm:$0xf]
    %v480 = vld [vmem:[#allocation5 + $0x3c0] sm:$0xf]
    %v481 = vld [vmem:[#allocation5 + $0x3c4] sm:$0xf]
    %v482 = vld [vmem:[#allocation5 + $0x3c8] sm:$0xf]
    %v483 = vld [vmem:[#allocation5 + $0x3cc] sm:$0xf]
    %v484 = vld [vmem:[#allocation5 + $0x3d0] sm:$0xf]
    %v485 = vld [vmem:[#allocation5 + $0x3d4] sm:$0xf]
    %v486 = vld [vmem:[#allocation5 + $0x3d8] sm:$0xf]
    %v487 = vld [vmem:[#allocation5 + $0x3dc] sm:$0xf]
    %v488 = vld [vmem:[#allocation5 + $0x3e0] sm:$0xf]
    %v489 = vld [vmem:[#allocation5 + $0x3e4] sm:$0xf]
    %v490 = vld [vmem:[#allocation5 + $0x3e8] sm:$0xf]
    %v491 = vld [vmem:[#allocation5 + $0x3ec] sm:$0xf]
    %v492 = vld [vmem:[#allocation5 + $0x3f0] sm:$0xf]
    %v493 = vld [vmem:[#allocation5 + $0x3f4] sm:$0xf]
    %v494 = vld [vmem:[#allocation5 + $0x3f8] sm:$0xf]
    %v495 = vld [vmem:[#allocation5 + $0x3fc] sm:$0xf]
    %v496 = vld [vmem:[#allocation5 + $0x400] sm:$0xf]
    %v497 = vld [vmem:[#allocation5 + $0x404] sm:$0xf]
    %v498 = vld [vmem:[#allocation5 + $0x408] sm:$0xf]
    %v499 = vld [vmem:[#allocation5 + $0x40c] sm:$0xf]
    %v500 = vld [vmem:[#allocation5 + $0x410] sm:$0xf]
    %v501 = vld [vmem:[#allocation5 + $0x414] sm:$0xf]
    %v502 = vld [vmem:[#allocation5 + $0x418] sm:$0xf]
    %v503 = vld [vmem:[#allocation5 + $0x41c] sm:$0xf]
    %v504 = vld [vmem:[#allocation5 + $0x420] sm:$0xf]
    %v505 = vld [vmem:[#allocation5 + $0x424] sm:$0xf]
    %v506 = vld [vmem:[#allocation5 + $0x428] sm:$0xf]
    %v507 = vld [vmem:[#allocation5 + $0x42c] sm:$0xf]
    %v508 = vld [vmem:[#allocation5 + $0x430] sm:$0xf]
    %v509 = vld [vmem:[#allocation5 + $0x434] sm:$0xf]
    %v510 = vld [vmem:[#allocation5 + $0x438] sm:$0xf]
    %v511 = vld [vmem:[#allocation5 + $0x43c] sm:$0xf]
    %v512 = vld [vmem:[#allocation5 + $0x440] sm:$0xf]
    %v513 = vld [vmem:[#allocation5 + $0x444] sm:$0xf]
    %v514 = vld [vmem:[#allocation5 + $0x448] sm:$0xf]
    %v515 = vld [vmem:[#allocation5 + $0x44c] sm:$0xf]
    %v516 = vld [vmem:[#allocation5 + $0x450] sm:$0xf]
    %v517 = vld [vmem:[#allocation5 + $0x454] sm:$0xf]
    %v518 = vld [vmem:[#allocation5 + $0x458] sm:$0xf]
    %v519 = vld [vmem:[#allocation5 + $0x45c] sm:$0xf]
    %v520 = vld [vmem:[#allocation5 + $0x460] sm:$0xf]
    %v521 = vld [vmem:[#allocation5 + $0x464] sm:$0xf]
    %v522 = vld [vmem:[#allocation5 + $0x468] sm:$0xf]
    %v523 = vld [vmem:[#allocation5 + $0x46c] sm:$0xf]
    %v524 = vld [vmem:[#allocation5 + $0x470] sm:$0xf]
    %v525 = vld [vmem:[#allocation5 + $0x474] sm:$0xf]
    %v526 = vld [vmem:[#allocation5 + $0x478] sm:$0xf]
    %v527 = vld [vmem:[#allocation5 + $0x47c] sm:$0xf]
    %v528 = vld [vmem:[#allocation5 + $0x480] sm:$0xf]
    %v529 = vld [vmem:[#allocation5 + $0x484] sm:$0xf]
    %v530 = vld [vmem:[#allocation5 + $0x488] sm:$0xf]
    %v531 = vld [vmem:[#allocation5 + $0x48c] sm:$0xf]
    %v532 = vld [vmem:[#allocation5 + $0x490] sm:$0xf]
    %v533 = vld [vmem:[#allocation5 + $0x494] sm:$0xf]
    %v534 = vld [vmem:[#allocation5 + $0x498] sm:$0xf]
    %v535 = vld [vmem:[#allocation5 + $0x49c] sm:$0xf]
    %v536 = vld [vmem:[#allocation5 + $0x4a0] sm:$0xf]
    %v537 = vld [vmem:[#allocation5 + $0x4a4] sm:$0xf]
    %v538 = vld [vmem:[#allocation5 + $0x4a8] sm:$0xf]
    %v539 = vld [vmem:[#allocation5 + $0x4ac] sm:$0xf]
    %v540 = vld [vmem:[#allocation5 + $0x4b0] sm:$0xf]
    %v541 = vld [vmem:[#allocation5 + $0x4b4] sm:$0xf]
    %v542 = vld [vmem:[#allocation5 + $0x4b8] sm:$0xf]
    %v543 = vld [vmem:[#allocation5 + $0x4bc] sm:$0xf]
    %v544 = vld [vmem:[#allocation5 + $0x4c0] sm:$0xf]
    %v545 = vld [vmem:[#allocation5 + $0x4c4] sm:$0xf]
    %v546 = vld [vmem:[#allocation5 + $0x4c8] sm:$0xf]
    %v547 = vld [vmem:[#allocation5 + $0x4cc] sm:$0xf]
    %v548 = vld [vmem:[#allocation5 + $0x4d0] sm:$0xf]
    %v549 = vld [vmem:[#allocation5 + $0x4d4] sm:$0xf]
    %v550 = vld [vmem:[#allocation5 + $0x4d8] sm:$0xf]
    %v551 = vld [vmem:[#allocation5 + $0x4dc] sm:$0xf]
    %v552 = vld [vmem:[#allocation5 + $0x4e0] sm:$0xf]
    %v553 = vld [vmem:[#allocation5 + $0x4e4] sm:$0xf]
    %v554 = vld [vmem:[#allocation5 + $0x4e8] sm:$0xf]
    %v555 = vld [vmem:[#allocation5 + $0x4ec] sm:$0xf]
    %v556 = vld [vmem:[#allocation5 + $0x4f0] sm:$0xf]
    %v557 = vld [vmem:[#allocation5 + $0x4f4] sm:$0xf]
    %v558 = vld [vmem:[#allocation5 + $0x4f8] sm:$0xf]
    %v559 = vld [vmem:[#allocation5 + $0x4fc] sm:$0xf]
    %v560 = vld [vmem:[#allocation5 + $0x500] sm:$0xf]
    %v561 = vld [vmem:[#allocation5 + $0x504] sm:$0xf]
    %v562 = vld [vmem:[#allocation5 + $0x508] sm:$0xf]
    %v563 = vld [vmem:[#allocation5 + $0x50c] sm:$0xf]
    %v564 = vld [vmem:[#allocation5 + $0x510] sm:$0xf]
    %v565 = vld [vmem:[#allocation5 + $0x514] sm:$0xf]
    %v566 = vld [vmem:[#allocation5 + $0x518] sm:$0xf]
    %v567 = vld [vmem:[#allocation5 + $0x51c] sm:$0xf]
    %v568 = vld [vmem:[#allocation5 + $0x520] sm:$0xf]
    %v569 = vld [vmem:[#allocation5 + $0x524] sm:$0xf]
    %v570 = vld [vmem:[#allocation5 + $0x528] sm:$0xf]
    %v571 = vld [vmem:[#allocation5 + $0x52c] sm:$0xf]
    %v572 = vld [vmem:[#allocation5 + $0x530] sm:$0xf]
    %v573 = vld [vmem:[#allocation5 + $0x534] sm:$0xf]
    %v574 = vld [vmem:[#allocation5 + $0x538] sm:$0xf]
    %v575 = vld [vmem:[#allocation5 + $0x53c] sm:$0xf]
    %v576 = vld [vmem:[#allocation5 + $0x540] sm:$0xf]
    %v577 = vld [vmem:[#allocation5 + $0x544] sm:$0xf]
    %v578 = vld [vmem:[#allocation5 + $0x548] sm:$0xf]
    %v579 = vld [vmem:[#allocation5 + $0x54c] sm:$0xf]
    %v580 = vld [vmem:[#allocation5 + $0x550] sm:$0xf]
    %v581 = vld [vmem:[#allocation5 + $0x554] sm:$0xf]
    %v582 = vld [vmem:[#allocation5 + $0x558] sm:$0xf]
    %v583 = vld [vmem:[#allocation5 + $0x55c] sm:$0xf]
    %v584 = vld [vmem:[#allocation5 + $0x560] sm:$0xf]
    %v585 = vld [vmem:[#allocation5 + $0x564] sm:$0xf]
    %v586 = vld [vmem:[#allocation5 + $0x568] sm:$0xf]
    %v587 = vld [vmem:[#allocation5 + $0x56c] sm:$0xf]
    %v588 = vld [vmem:[#allocation5 + $0x570] sm:$0xf]
    %v589 = vld [vmem:[#allocation5 + $0x574] sm:$0xf]
    %v590 = vld [vmem:[#allocation5 + $0x578] sm:$0xf]
    %v591 = vld [vmem:[#allocation5 + $0x57c] sm:$0xf]
    %v592 = vld [vmem:[#allocation5 + $0x580] sm:$0xf]
    %v593 = vld [vmem:[#allocation5 + $0x584] sm:$0xf]
    %v594 = vld [vmem:[#allocation5 + $0x588] sm:$0xf]
    %v595 = vld [vmem:[#allocation5 + $0x58c] sm:$0xf]
    %v596 = vld [vmem:[#allocation5 + $0x590] sm:$0xf]
    %v597 = vld [vmem:[#allocation5 + $0x594] sm:$0xf]
    %v598 = vld [vmem:[#allocation5 + $0x598] sm:$0xf]
    %v599 = vld [vmem:[#allocation5 + $0x59c] sm:$0xf]
    %v600 = vld [vmem:[#allocation5 + $0x5a0] sm:$0xf]
    %v601 = vld [vmem:[#allocation5 + $0x5a4] sm:$0xf]
    %v602 = vld [vmem:[#allocation5 + $0x5a8] sm:$0xf]
    %v603 = vld [vmem:[#allocation5 + $0x5ac] sm:$0xf]
    %v604 = vld [vmem:[#allocation5 + $0x5b0] sm:$0xf]
    %v605 = vld [vmem:[#allocation5 + $0x5b4] sm:$0xf]
    %v606 = vld [vmem:[#allocation5 + $0x5b8] sm:$0xf]
    %v607 = vld [vmem:[#allocation5 + $0x5bc] sm:$0xf]
    %v608 = vld [vmem:[#allocation5 + $0x5c0] sm:$0xf]
    %v609 = vld [vmem:[#allocation5 + $0x5c4] sm:$0xf]
    %v610 = vld [vmem:[#allocation5 + $0x5c8] sm:$0xf]
    %v611 = vld [vmem:[#allocation5 + $0x5cc] sm:$0xf]
    %v612 = vld [vmem:[#allocation5 + $0x5d0] sm:$0xf]
    %v613 = vld [vmem:[#allocation5 + $0x5d4] sm:$0xf]
    %v614 = vld [vmem:[#allocation5 + $0x5d8] sm:$0xf]
    %v615 = vld [vmem:[#allocation5 + $0x5dc] sm:$0xf]
    %v616 = vld [vmem:[#allocation5 + $0x5e0] sm:$0xf]
    %v617 = vld [vmem:[#allocation5 + $0x5e4] sm:$0xf]
    %v618 = vld [vmem:[#allocation5 + $0x5e8] sm:$0xf]
    %v619 = vld [vmem:[#allocation5 + $0x5ec] sm:$0xf]
    %v620 = vld [vmem:[#allocation5 + $0x5f0] sm:$0xf]
    %v621 = vld [vmem:[#allocation5 + $0x5f4] sm:$0xf]
    %v622 = vld [vmem:[#allocation5 + $0x5f8] sm:$0xf]
    %v623 = vld [vmem:[#allocation5 + $0x5fc] sm:$0xf]
    %v624 = vld [vmem:[#allocation5 + $0x600] sm:$0xf]
    %v625 = vld [vmem:[#allocation5 + $0x604] sm:$0xf]
    %v626 = vld [vmem:[#allocation5 + $0x608] sm:$0xf]
    %v627 = vld [vmem:[#allocation5 + $0x60c] sm:$0xf]
    %v628 = vld [vmem:[#allocation5 + $0x610] sm:$0xf]
    %v629 = vld [vmem:[#allocation5 + $0x614] sm:$0xf]
    %v630 = vld [vmem:[#allocation5 + $0x618] sm:$0xf]
    %v631 = vld [vmem:[#allocation5 + $0x61c] sm:$0xf]
    %v632 = vld [vmem:[#allocation5 + $0x620] sm:$0xf]
    %v633 = vld [vmem:[#allocation5 + $0x624] sm:$0xf]
    %v634 = vld [vmem:[#allocation5 + $0x628] sm:$0xf]
    %v635 = vld [vmem:[#allocation5 + $0x62c] sm:$0xf]
    %v636 = vld [vmem:[#allocation5 + $0x630] sm:$0xf]
    %v637 = vld [vmem:[#allocation5 + $0x634] sm:$0xf]
    %v638 = vld [vmem:[#allocation5 + $0x638] sm:$0xf]
    %v639 = vld [vmem:[#allocation5 + $0x63c] sm:$0xf]
    %v640 = vld [vmem:[#allocation5 + $0x640] sm:$0xf]
    %v641 = vld [vmem:[#allocation5 + $0x644] sm:$0xf]
    %v642 = vld [vmem:[#allocation5 + $0x648] sm:$0xf]
    %v643 = vld [vmem:[#allocation5 + $0x64c] sm:$0xf]
    %v644 = vld [vmem:[#allocation5 + $0x650] sm:$0xf]
    %v645 = vld [vmem:[#allocation5 + $0x654] sm:$0xf]
    %v646 = vld [vmem:[#allocation5 + $0x658] sm:$0xf]
    %v647 = vld [vmem:[#allocation5 + $0x65c] sm:$0xf]
    %v648 = vld [vmem:[#allocation5 + $0x660] sm:$0xf]
    %v649 = vld [vmem:[#allocation5 + $0x664] sm:$0xf]
    %v650 = vld [vmem:[#allocation5 + $0x668] sm:$0xf]
    %v651 = vld [vmem:[#allocation5 + $0x66c] sm:$0xf]
    %v652 = vld [vmem:[#allocation5 + $0x670] sm:$0xf]
    %v653 = vld [vmem:[#allocation5 + $0x674] sm:$0xf]
    %v654 = vld [vmem:[#allocation5 + $0x678] sm:$0xf]
    %v655 = vld [vmem:[#allocation5 + $0x67c] sm:$0xf]
    %v656 = vld [vmem:[#allocation5 + $0x680] sm:$0xf]
    %v657 = vld [vmem:[#allocation5 + $0x684] sm:$0xf]
    %v658 = vld [vmem:[#allocation5 + $0x688] sm:$0xf]
    %v659 = vld [vmem:[#allocation5 + $0x68c] sm:$0xf]
    %v660 = vld [vmem:[#allocation5 + $0x690] sm:$0xf]
    %v661 = vld [vmem:[#allocation5 + $0x694] sm:$0xf]
    %v662 = vld [vmem:[#allocation5 + $0x698] sm:$0xf]
    %v663 = vld [vmem:[#allocation5 + $0x69c] sm:$0xf]
    %v664 = vld [vmem:[#allocation5 + $0x6a0] sm:$0xf]
    %v665 = vld [vmem:[#allocation5 + $0x6a4] sm:$0xf]
    %v666 = vld [vmem:[#allocation5 + $0x6a8] sm:$0xf]
    %v667 = vld [vmem:[#allocation5 + $0x6ac] sm:$0xf]
    %v668 = vld [vmem:[#allocation5 + $0x6b0] sm:$0xf]
    %v669 = vld [vmem:[#allocation5 + $0x6b4] sm:$0xf]
    %v670 = vld [vmem:[#allocation5 + $0x6b8] sm:$0xf]
    %v671 = vld [vmem:[#allocation5 + $0x6bc] sm:$0xf]
    %v672 = vld [vmem:[#allocation5 + $0x6c0] sm:$0xf]
    %v673 = vld [vmem:[#allocation5 + $0x6c4] sm:$0xf]
    %v674 = vld [vmem:[#allocation5 + $0x6c8] sm:$0xf]
    %v675 = vld [vmem:[#allocation5 + $0x6cc] sm:$0xf]
    %v676 = vld [vmem:[#allocation5 + $0x6d0] sm:$0xf]
    %v677 = vld [vmem:[#allocation5 + $0x6d4] sm:$0xf]
    %v678 = vld [vmem:[#allocation5 + $0x6d8] sm:$0xf]
    %v679 = vld [vmem:[#allocation5 + $0x6dc] sm:$0xf]
    %v680 = vld [vmem:[#allocation5 + $0x6e0] sm:$0xf]
    %v681 = vld [vmem:[#allocation5 + $0x6e4] sm:$0xf]
    %v682 = vld [vmem:[#allocation5 + $0x6e8] sm:$0xf]
    %v683 = vld [vmem:[#allocation5 + $0x6ec] sm:$0xf]
    %v684 = vld [vmem:[#allocation5 + $0x6f0] sm:$0xf]
    %v685 = vld [vmem:[#allocation5 + $0x6f4] sm:$0xf]
    %v686 = vld [vmem:[#allocation5 + $0x6f8] sm:$0xf]
    %v687 = vld [vmem:[#allocation5 + $0x6fc] sm:$0xf]
    %v688 = vld [vmem:[#allocation5 + $0x700] sm:$0xf]
    %v689 = vld [vmem:[#allocation5 + $0x704] sm:$0xf]
    %v690 = vld [vmem:[#allocation5 + $0x708] sm:$0xf]
    %v691 = vld [vmem:[#allocation5 + $0x70c] sm:$0xf]
    %v692 = vld [vmem:[#allocation5 + $0x710] sm:$0xf]
    %v693 = vld [vmem:[#allocation5 + $0x714] sm:$0xf]
    %v694 = vld [vmem:[#allocation5 + $0x718] sm:$0xf]
    %v695 = vld [vmem:[#allocation5 + $0x71c] sm:$0xf]
    %v696 = vld [vmem:[#allocation5 + $0x720] sm:$0xf]
    %v697 = vld [vmem:[#allocation5 + $0x724] sm:$0xf]
    %v698 = vld [vmem:[#allocation5 + $0x728] sm:$0xf]
    %v699 = vld [vmem:[#allocation5 + $0x72c] sm:$0xf]
    %v700 = vld [vmem:[#allocation5 + $0x730] sm:$0xf]
    %v701 = vld [vmem:[#allocation5 + $0x734] sm:$0xf]
    %v702 = vld [vmem:[#allocation5 + $0x738] sm:$0xf]
    %v703 = vld [vmem:[#allocation5 + $0x73c] sm:$0xf]
    %v704 = vld [vmem:[#allocation5 + $0x740] sm:$0xf]
    %v705 = vld [vmem:[#allocation5 + $0x744] sm:$0xf]
    %v706 = vld [vmem:[#allocation5 + $0x748] sm:$0xf]
    %v707 = vld [vmem:[#allocation5 + $0x74c] sm:$0xf]
    %v708 = vld [vmem:[#allocation5 + $0x750] sm:$0xf]
    %v709 = vld [vmem:[#allocation5 + $0x754] sm:$0xf]
    %v710 = vld [vmem:[#allocation5 + $0x758] sm:$0xf]
    %v711 = vld [vmem:[#allocation5 + $0x75c] sm:$0xf]
    %v712 = vld [vmem:[#allocation5 + $0x760] sm:$0xf]
    %v713 = vld [vmem:[#allocation5 + $0x764] sm:$0xf]
    %v714 = vld [vmem:[#allocation5 + $0x768] sm:$0xf]
    %v715 = vld [vmem:[#allocation5 + $0x76c] sm:$0xf]
    %v716 = vld [vmem:[#allocation5 + $0x770] sm:$0xf]
    %v717 = vld [vmem:[#allocation5 + $0x774] sm:$0xf]
    %v718 = vld [vmem:[#allocation5 + $0x778] sm:$0xf]
    %v719 = vld [vmem:[#allocation5 + $0x77c] sm:$0xf]
    %v720 = vld [vmem:[#allocation5 + $0x780] sm:$0xf]
    %v721 = vld [vmem:[#allocation5 + $0x784] sm:$0xf]
    %v722 = vld [vmem:[#allocation5 + $0x788] sm:$0xf]
    %v723 = vld [vmem:[#allocation5 + $0x78c] sm:$0xf]
    %v724 = vld [vmem:[#allocation5 + $0x790] sm:$0xf]
    %v725 = vld [vmem:[#allocation5 + $0x794] sm:$0xf]
    %v726 = vld [vmem:[#allocation5 + $0x798] sm:$0xf]
    %v727 = vld [vmem:[#allocation5 + $0x79c] sm:$0xf]
    %v728 = vld [vmem:[#allocation5 + $0x7a0] sm:$0xf]
    %v729 = vld [vmem:[#allocation5 + $0x7a4] sm:$0xf]
    %v730 = vld [vmem:[#allocation5 + $0x7a8] sm:$0xf]
    %v731 = vld [vmem:[#allocation5 + $0x7ac] sm:$0xf]
    %v732 = vld [vmem:[#allocation5 + $0x7b0] sm:$0xf]
    %v733 = vld [vmem:[#allocation5 + $0x7b4] sm:$0xf]
    %v734 = vld [vmem:[#allocation5 + $0x7b8] sm:$0xf]
    %v735 = vld [vmem:[#allocation5 + $0x7bc] sm:$0xf]
    %v736 = vld [vmem:[#allocation5 + $0x7c0] sm:$0xf]
    %v737 = vld [vmem:[#allocation5 + $0x7c4] sm:$0xf]
    %v738 = vld [vmem:[#allocation5 + $0x7c8] sm:$0xf]
    %v739 = vld [vmem:[#allocation5 + $0x7cc] sm:$0xf]
    %v740 = vld [vmem:[#allocation5 + $0x7d0] sm:$0xf]
    %v741 = vld [vmem:[#allocation5 + $0x7d4] sm:$0xf]
    %v742 = vld [vmem:[#allocation5 + $0x7d8] sm:$0xf]
    %v743 = vld [vmem:[#allocation5 + $0x7dc] sm:$0xf]
    %v744 = vld [vmem:[#allocation5 + $0x7e0] sm:$0xf]
    %v745 = vld [vmem:[#allocation5 + $0x7e4] sm:$0xf]
    %v746 = vld [vmem:[#allocation5 + $0x7e8] sm:$0xf]
    %v747 = vld [vmem:[#allocation5 + $0x7ec] sm:$0xf]
    %v748 = vld [vmem:[#allocation5 + $0x7f0] sm:$0xf]
    %v749 = vld [vmem:[#allocation5 + $0x7f4] sm:$0xf]
    %v750 = vld [vmem:[#allocation5 + $0x7f8] sm:$0xf]
    %v751 = vld [vmem:[#allocation5 + $0x7fc] sm:$0xf]
    %v752 = vld [vmem:[%s2] sm:$0x1]
    %v754 = vlaneseq
    %v755 = vshrl.u32 %v754, 7
    %v756 = vsub.s32 0, %v755
    %v757 = vrot.slane %v752, %v756
    %v1271 = vunpack.c.l.b16 %v240
    %v1272 = vunpack.c.l.b16 %v241
    %v1273 = vunpack.c.l.b16 %v242
    %v1274 = vunpack.c.l.b16 %v243
    %v1275 = vunpack.c.l.b16 %v244
    %v1276 = vunpack.c.l.b16 %v245
    %v1277 = vunpack.c.l.b16 %v246
    %v1278 = vunpack.c.l.b16 %v247
    %v1279 = vunpack.c.l.b16 %v248
    %v1280 = vunpack.c.l.b16 %v249
    %v1281 = vunpack.c.l.b16 %v250
    %v1282 = vunpack.c.l.b16 %v251
    %v1283 = vunpack.c.l.b16 %v252
    %v1284 = vunpack.c.l.b16 %v253
    %v1285 = vunpack.c.l.b16 %v254
    %v1286 = vunpack.c.l.b16 %v255
    %v1287 = vunpack.c.l.b16 %v256
    %v1288 = vunpack.c.l.b16 %v257
    %v1289 = vunpack.c.l.b16 %v258
    %v1290 = vunpack.c.l.b16 %v259
    %v1291 = vunpack.c.l.b16 %v260
    %v1292 = vunpack.c.l.b16 %v261
    %v1293 = vunpack.c.l.b16 %v262
    %v1294 = vunpack.c.l.b16 %v263
    %v1295 = vunpack.c.l.b16 %v264
    %v1296 = vunpack.c.l.b16 %v265
    %v1297 = vunpack.c.l.b16 %v266
    %v1298 = vunpack.c.l.b16 %v267
    %v1299 = vunpack.c.l.b16 %v268
    %v1300 = vunpack.c.l.b16 %v269
    %v1301 = vunpack.c.l.b16 %v270
    %v1302 = vunpack.c.l.b16 %v271
    %v1303 = vunpack.c.l.b16 %v272
    %v1304 = vunpack.c.l.b16 %v273
    %v1305 = vunpack.c.l.b16 %v274
    %v1306 = vunpack.c.l.b16 %v275
    %v1307 = vunpack.c.l.b16 %v276
    %v1308 = vunpack.c.l.b16 %v277
    %v1309 = vunpack.c.l.b16 %v278
    %v1310 = vunpack.c.l.b16 %v279
    %v1311 = vunpack.c.l.b16 %v280
    %v1312 = vunpack.c.l.b16 %v281
    %v1313 = vunpack.c.l.b16 %v282
    %v1314 = vunpack.c.l.b16 %v283
    %v1315 = vunpack.c.l.b16 %v284
    %v1316 = vunpack.c.l.b16 %v285
    %v1317 = vunpack.c.l.b16 %v286
    %v1318 = vunpack.c.l.b16 %v287
    %v1319 = vunpack.c.l.b16 %v288
    %v1320 = vunpack.c.l.b16 %v289
    %v1321 = vunpack.c.l.b16 %v290
    %v1322 = vunpack.c.l.b16 %v291
    %v1323 = vunpack.c.l.b16 %v292
    %v1324 = vunpack.c.l.b16 %v293
    %v1325 = vunpack.c.l.b16 %v294
    %v1326 = vunpack.c.l.b16 %v295
    %v1327 = vunpack.c.l.b16 %v296
    %v1328 = vunpack.c.l.b16 %v297
    %v1329 = vunpack.c.l.b16 %v298
    %v1330 = vunpack.c.l.b16 %v299
    %v1331 = vunpack.c.l.b16 %v300
    %v1332 = vunpack.c.l.b16 %v301
    %v1333 = vunpack.c.l.b16 %v302
    %v1334 = vunpack.c.l.b16 %v303
    %v1335 = vunpack.c.l.b16 %v304
    %v1336 = vunpack.c.l.b16 %v305
    %v1337 = vunpack.c.l.b16 %v306
    %v1338 = vunpack.c.l.b16 %v307
    %v1339 = vunpack.c.l.b16 %v308
    %v1340 = vunpack.c.l.b16 %v309
    %v1341 = vunpack.c.l.b16 %v310
    %v1342 = vunpack.c.l.b16 %v311
    %v1343 = vunpack.c.l.b16 %v312
    %v1344 = vunpack.c.l.b16 %v313
    %v1345 = vunpack.c.l.b16 %v314
    %v1346 = vunpack.c.l.b16 %v315
    %v1347 = vunpack.c.l.b16 %v316
    %v1348 = vunpack.c.l.b16 %v317
    %v1349 = vunpack.c.l.b16 %v318
    %v1350 = vunpack.c.l.b16 %v319
    %v1351 = vunpack.c.l.b16 %v320
    %v1352 = vunpack.c.l.b16 %v321
    %v1353 = vunpack.c.l.b16 %v322
    %v1354 = vunpack.c.l.b16 %v323
    %v1355 = vunpack.c.l.b16 %v324
    %v1356 = vunpack.c.l.b16 %v325
    %v1357 = vunpack.c.l.b16 %v326
    %v1358 = vunpack.c.l.b16 %v327
    %v1359 = vunpack.c.l.b16 %v328
    %v1360 = vunpack.c.l.b16 %v329
    %v1361 = vunpack.c.l.b16 %v330
    %v1362 = vunpack.c.l.b16 %v331
    %v1363 = vunpack.c.l.b16 %v332
    %v1364 = vunpack.c.l.b16 %v333
    %v1365 = vunpack.c.l.b16 %v334
    %v1366 = vunpack.c.l.b16 %v335
    %v1367 = vunpack.c.l.b16 %v336
    %v1368 = vunpack.c.l.b16 %v337
    %v1369 = vunpack.c.l.b16 %v338
    %v1370 = vunpack.c.l.b16 %v339
    %v1371 = vunpack.c.l.b16 %v340
    %v1372 = vunpack.c.l.b16 %v341
    %v1373 = vunpack.c.l.b16 %v342
    %v1374 = vunpack.c.l.b16 %v343
    %v1375 = vunpack.c.l.b16 %v344
    %v1376 = vunpack.c.l.b16 %v345
    %v1377 = vunpack.c.l.b16 %v346
    %v1378 = vunpack.c.l.b16 %v347
    %v1379 = vunpack.c.l.b16 %v348
    %v1380 = vunpack.c.l.b16 %v349
    %v1381 = vunpack.c.l.b16 %v350
    %v1382 = vunpack.c.l.b16 %v351
    %v1383 = vunpack.c.l.b16 %v352
    %v1384 = vunpack.c.l.b16 %v353
    %v1385 = vunpack.c.l.b16 %v354
    %v1386 = vunpack.c.l.b16 %v355
    %v1387 = vunpack.c.l.b16 %v356
    %v1388 = vunpack.c.l.b16 %v357
    %v1389 = vunpack.c.l.b16 %v358
    %v1390 = vunpack.c.l.b16 %v359
    %v1391 = vunpack.c.l.b16 %v360
    %v1392 = vunpack.c.l.b16 %v361
    %v1393 = vunpack.c.l.b16 %v362
    %v1394 = vunpack.c.l.b16 %v363
    %v1395 = vunpack.c.l.b16 %v364
    %v1396 = vunpack.c.l.b16 %v365
    %v1397 = vunpack.c.l.b16 %v366
    %v1398 = vunpack.c.l.b16 %v367
    %v1399 = vunpack.c.l.b16 %v368
    %v1400 = vunpack.c.l.b16 %v369
    %v1401 = vunpack.c.l.b16 %v370
    %v1402 = vunpack.c.l.b16 %v371
    %v1403 = vunpack.c.l.b16 %v372
    %v1404 = vunpack.c.l.b16 %v373
    %v1405 = vunpack.c.l.b16 %v374
    %v1406 = vunpack.c.l.b16 %v375
    %v1407 = vunpack.c.l.b16 %v376
    %v1408 = vunpack.c.l.b16 %v377
    %v1409 = vunpack.c.l.b16 %v378
    %v1410 = vunpack.c.l.b16 %v379
    %v1411 = vunpack.c.l.b16 %v380
    %v1412 = vunpack.c.l.b16 %v381
    %v1413 = vunpack.c.l.b16 %v382
    %v1414 = vunpack.c.l.b16 %v383
    %v1415 = vunpack.c.l.b16 %v384
    %v1416 = vunpack.c.l.b16 %v385
    %v1417 = vunpack.c.l.b16 %v386
    %v1418 = vunpack.c.l.b16 %v387
    %v1419 = vunpack.c.l.b16 %v388
    %v1420 = vunpack.c.l.b16 %v389
    %v1421 = vunpack.c.l.b16 %v390
    %v1422 = vunpack.c.l.b16 %v391
    %v1423 = vunpack.c.l.b16 %v392
    %v1424 = vunpack.c.l.b16 %v393
    %v1425 = vunpack.c.l.b16 %v394
    %v1426 = vunpack.c.l.b16 %v395
    %v1427 = vunpack.c.l.b16 %v396
    %v1428 = vunpack.c.l.b16 %v397
    %v1429 = vunpack.c.l.b16 %v398
    %v1430 = vunpack.c.l.b16 %v399
    %v1431 = vunpack.c.l.b16 %v400
    %v1432 = vunpack.c.l.b16 %v401
    %v1433 = vunpack.c.l.b16 %v402
    %v1434 = vunpack.c.l.b16 %v403
    %v1435 = vunpack.c.l.b16 %v404
    %v1436 = vunpack.c.l.b16 %v405
    %v1437 = vunpack.c.l.b16 %v406
    %v1438 = vunpack.c.l.b16 %v407
    %v1439 = vunpack.c.l.b16 %v408
    %v1440 = vunpack.c.l.b16 %v409
    %v1441 = vunpack.c.l.b16 %v410
    %v1442 = vunpack.c.l.b16 %v411
    %v1443 = vunpack.c.l.b16 %v412
    %v1444 = vunpack.c.l.b16 %v413
    %v1445 = vunpack.c.l.b16 %v414
    %v1446 = vunpack.c.l.b16 %v415
    %v1447 = vunpack.c.l.b16 %v416
    %v1448 = vunpack.c.l.b16 %v417
    %v1449 = vunpack.c.l.b16 %v418
    %v1450 = vunpack.c.l.b16 %v419
    %v1451 = vunpack.c.l.b16 %v420
    %v1452 = vunpack.c.l.b16 %v421
    %v1453 = vunpack.c.l.b16 %v422
    %v1454 = vunpack.c.l.b16 %v423
    %v1455 = vunpack.c.l.b16 %v424
    %v1456 = vunpack.c.l.b16 %v425
    %v1457 = vunpack.c.l.b16 %v426
    %v1458 = vunpack.c.l.b16 %v427
    %v1459 = vunpack.c.l.b16 %v428
    %v1460 = vunpack.c.l.b16 %v429
    %v1461 = vunpack.c.l.b16 %v430
    %v1462 = vunpack.c.l.b16 %v431
    %v1463 = vunpack.c.l.b16 %v432
    %v1464 = vunpack.c.l.b16 %v433
    %v1465 = vunpack.c.l.b16 %v434
    %v1466 = vunpack.c.l.b16 %v435
    %v1467 = vunpack.c.l.b16 %v436
    %v1468 = vunpack.c.l.b16 %v437
    %v1469 = vunpack.c.l.b16 %v438
    %v1470 = vunpack.c.l.b16 %v439
    %v1471 = vunpack.c.l.b16 %v440
    %v1472 = vunpack.c.l.b16 %v441
    %v1473 = vunpack.c.l.b16 %v442
    %v1474 = vunpack.c.l.b16 %v443
    %v1475 = vunpack.c.l.b16 %v444
    %v1476 = vunpack.c.l.b16 %v445
    %v1477 = vunpack.c.l.b16 %v446
    %v1478 = vunpack.c.l.b16 %v447
    %v1479 = vunpack.c.l.b16 %v448
    %v1480 = vunpack.c.l.b16 %v449
    %v1481 = vunpack.c.l.b16 %v450
    %v1482 = vunpack.c.l.b16 %v451
    %v1483 = vunpack.c.l.b16 %v452
    %v1484 = vunpack.c.l.b16 %v453
    %v1485 = vunpack.c.l.b16 %v454
    %v1486 = vunpack.c.l.b16 %v455
    %v1487 = vunpack.c.l.b16 %v456
    %v1488 = vunpack.c.l.b16 %v457
    %v1489 = vunpack.c.l.b16 %v458
    %v1490 = vunpack.c.l.b16 %v459
    %v1491 = vunpack.c.l.b16 %v460
    %v1492 = vunpack.c.l.b16 %v461
    %v1493 = vunpack.c.l.b16 %v462
    %v1494 = vunpack.c.l.b16 %v463
    %v1495 = vunpack.c.l.b16 %v464
    %v1496 = vunpack.c.l.b16 %v465
    %v1497 = vunpack.c.l.b16 %v466
    %v1498 = vunpack.c.l.b16 %v467
    %v1499 = vunpack.c.l.b16 %v468
    %v1500 = vunpack.c.l.b16 %v469
    %v1501 = vunpack.c.l.b16 %v470
    %v1502 = vunpack.c.l.b16 %v471
    %v1503 = vunpack.c.l.b16 %v472
    %v1504 = vunpack.c.l.b16 %v473
    %v1505 = vunpack.c.l.b16 %v474
    %v1506 = vunpack.c.l.b16 %v475
    %v1507 = vunpack.c.l.b16 %v476
    %v1508 = vunpack.c.l.b16 %v477
    %v1509 = vunpack.c.l.b16 %v478
    %v1510 = vunpack.c.l.b16 %v479
    %v1511 = vunpack.c.l.b16 %v480
    %v1512 = vunpack.c.l.b16 %v481
    %v1513 = vunpack.c.l.b16 %v482
    %v1514 = vunpack.c.l.b16 %v483
    %v1515 = vunpack.c.l.b16 %v484
    %v1516 = vunpack.c.l.b16 %v485
    %v1517 = vunpack.c.l.b16 %v486
    %v1518 = vunpack.c.l.b16 %v487
    %v1519 = vunpack.c.l.b16 %v488
    %v1520 = vunpack.c.l.b16 %v489
    %v1521 = vunpack.c.l.b16 %v490
    %v1522 = vunpack.c.l.b16 %v491
    %v1523 = vunpack.c.l.b16 %v492
    %v1524 = vunpack.c.l.b16 %v493
    %v1525 = vunpack.c.l.b16 %v494
    %v1526 = vunpack.c.l.b16 %v495
    %v1527 = vunpack.c.l.b16 %v496
    %v1528 = vunpack.c.l.b16 %v497
    %v1529 = vunpack.c.l.b16 %v498
    %v1530 = vunpack.c.l.b16 %v499
    %v1531 = vunpack.c.l.b16 %v500
    %v1532 = vunpack.c.l.b16 %v501
    %v1533 = vunpack.c.l.b16 %v502
    %v1534 = vunpack.c.l.b16 %v503
    %v1535 = vunpack.c.l.b16 %v504
    %v1536 = vunpack.c.l.b16 %v505
    %v1537 = vunpack.c.l.b16 %v506
    %v1538 = vunpack.c.l.b16 %v507
    %v1539 = vunpack.c.l.b16 %v508
    %v1540 = vunpack.c.l.b16 %v509
    %v1541 = vunpack.c.l.b16 %v510
    %v1542 = vunpack.c.l.b16 %v511
    %v1543 = vunpack.c.l.b16 %v512
    %v1544 = vunpack.c.l.b16 %v513
    %v1545 = vunpack.c.l.b16 %v514
    %v1546 = vunpack.c.l.b16 %v515
    %v1547 = vunpack.c.l.b16 %v516
    %v1548 = vunpack.c.l.b16 %v517
    %v1549 = vunpack.c.l.b16 %v518
    %v1550 = vunpack.c.l.b16 %v519
    %v1551 = vunpack.c.l.b16 %v520
    %v1552 = vunpack.c.l.b16 %v521
    %v1553 = vunpack.c.l.b16 %v522
    %v1554 = vunpack.c.l.b16 %v523
    %v1555 = vunpack.c.l.b16 %v524
    %v1556 = vunpack.c.l.b16 %v525
    %v1557 = vunpack.c.l.b16 %v526
    %v1558 = vunpack.c.l.b16 %v527
    %v1559 = vunpack.c.l.b16 %v528
    %v1560 = vunpack.c.l.b16 %v529
    %v1561 = vunpack.c.l.b16 %v530
    %v1562 = vunpack.c.l.b16 %v531
    %v1563 = vunpack.c.l.b16 %v532
    %v1564 = vunpack.c.l.b16 %v533
    %v1565 = vunpack.c.l.b16 %v534
    %v1566 = vunpack.c.l.b16 %v535
    %v1567 = vunpack.c.l.b16 %v536
    %v1568 = vunpack.c.l.b16 %v537
    %v1569 = vunpack.c.l.b16 %v538
    %v1570 = vunpack.c.l.b16 %v539
    %v1571 = vunpack.c.l.b16 %v540
    %v1572 = vunpack.c.l.b16 %v541
    %v1573 = vunpack.c.l.b16 %v542
    %v1574 = vunpack.c.l.b16 %v543
    %v1575 = vunpack.c.l.b16 %v544
    %v1576 = vunpack.c.l.b16 %v545
    %v1577 = vunpack.c.l.b16 %v546
    %v1578 = vunpack.c.l.b16 %v547
    %v1579 = vunpack.c.l.b16 %v548
    %v1580 = vunpack.c.l.b16 %v549
    %v1581 = vunpack.c.l.b16 %v550
    %v1582 = vunpack.c.l.b16 %v551
    %v1583 = vunpack.c.l.b16 %v552
    %v1584 = vunpack.c.l.b16 %v553
    %v1585 = vunpack.c.l.b16 %v554
    %v1586 = vunpack.c.l.b16 %v555
    %v1587 = vunpack.c.l.b16 %v556
    %v1588 = vunpack.c.l.b16 %v557
    %v1589 = vunpack.c.l.b16 %v558
    %v1590 = vunpack.c.l.b16 %v559
    %v1591 = vunpack.c.l.b16 %v560
    %v1592 = vunpack.c.l.b16 %v561
    %v1593 = vunpack.c.l.b16 %v562
    %v1594 = vunpack.c.l.b16 %v563
    %v1595 = vunpack.c.l.b16 %v564
    %v1596 = vunpack.c.l.b16 %v565
    %v1597 = vunpack.c.l.b16 %v566
    %v1598 = vunpack.c.l.b16 %v567
    %v1599 = vunpack.c.l.b16 %v568
    %v1600 = vunpack.c.l.b16 %v569
    %v1601 = vunpack.c.l.b16 %v570
    %v1602 = vunpack.c.l.b16 %v571
    %v1603 = vunpack.c.l.b16 %v572
    %v1604 = vunpack.c.l.b16 %v573
    %v1605 = vunpack.c.l.b16 %v574
    %v1606 = vunpack.c.l.b16 %v575
    %v1607 = vunpack.c.l.b16 %v576
    %v1608 = vunpack.c.l.b16 %v577
    %v1609 = vunpack.c.l.b16 %v578
    %v1610 = vunpack.c.l.b16 %v579
    %v1611 = vunpack.c.l.b16 %v580
    %v1612 = vunpack.c.l.b16 %v581
    %v1613 = vunpack.c.l.b16 %v582
    %v1614 = vunpack.c.l.b16 %v583
    %v1615 = vunpack.c.l.b16 %v584
    %v1616 = vunpack.c.l.b16 %v585
    %v1617 = vunpack.c.l.b16 %v586
    %v1618 = vunpack.c.l.b16 %v587
    %v1619 = vunpack.c.l.b16 %v588
    %v1620 = vunpack.c.l.b16 %v589
    %v1621 = vunpack.c.l.b16 %v590
    %v1622 = vunpack.c.l.b16 %v591
    %v1623 = vunpack.c.l.b16 %v592
    %v1624 = vunpack.c.l.b16 %v593
    %v1625 = vunpack.c.l.b16 %v594
    %v1626 = vunpack.c.l.b16 %v595
    %v1627 = vunpack.c.l.b16 %v596
    %v1628 = vunpack.c.l.b16 %v597
    %v1629 = vunpack.c.l.b16 %v598
    %v1630 = vunpack.c.l.b16 %v599
    %v1631 = vunpack.c.l.b16 %v600
    %v1632 = vunpack.c.l.b16 %v601
    %v1633 = vunpack.c.l.b16 %v602
    %v1634 = vunpack.c.l.b16 %v603
    %v1635 = vunpack.c.l.b16 %v604
    %v1636 = vunpack.c.l.b16 %v605
    %v1637 = vunpack.c.l.b16 %v606
    %v1638 = vunpack.c.l.b16 %v607
    %v1639 = vunpack.c.l.b16 %v608
    %v1640 = vunpack.c.l.b16 %v609
    %v1641 = vunpack.c.l.b16 %v610
    %v1642 = vunpack.c.l.b16 %v611
    %v1643 = vunpack.c.l.b16 %v612
    %v1644 = vunpack.c.l.b16 %v613
    %v1645 = vunpack.c.l.b16 %v614
    %v1646 = vunpack.c.l.b16 %v615
    %v1647 = vunpack.c.l.b16 %v616
    %v1648 = vunpack.c.l.b16 %v617
    %v1649 = vunpack.c.l.b16 %v618
    %v1650 = vunpack.c.l.b16 %v619
    %v1651 = vunpack.c.l.b16 %v620
    %v1652 = vunpack.c.l.b16 %v621
    %v1653 = vunpack.c.l.b16 %v622
    %v1654 = vunpack.c.l.b16 %v623
    %v1655 = vunpack.c.l.b16 %v624
    %v1656 = vunpack.c.l.b16 %v625
    %v1657 = vunpack.c.l.b16 %v626
    %v1658 = vunpack.c.l.b16 %v627
    %v1659 = vunpack.c.l.b16 %v628
    %v1660 = vunpack.c.l.b16 %v629
    %v1661 = vunpack.c.l.b16 %v630
    %v1662 = vunpack.c.l.b16 %v631
    %v1663 = vunpack.c.l.b16 %v632
    %v1664 = vunpack.c.l.b16 %v633
    %v1665 = vunpack.c.l.b16 %v634
    %v1666 = vunpack.c.l.b16 %v635
    %v1667 = vunpack.c.l.b16 %v636
    %v1668 = vunpack.c.l.b16 %v637
    %v1669 = vunpack.c.l.b16 %v638
    %v1670 = vunpack.c.l.b16 %v639
    %v1671 = vunpack.c.l.b16 %v640
    %v1672 = vunpack.c.l.b16 %v641
    %v1673 = vunpack.c.l.b16 %v642
    %v1674 = vunpack.c.l.b16 %v643
    %v1675 = vunpack.c.l.b16 %v644
    %v1676 = vunpack.c.l.b16 %v645
    %v1677 = vunpack.c.l.b16 %v646
    %v1678 = vunpack.c.l.b16 %v647
    %v1679 = vunpack.c.l.b16 %v648
    %v1680 = vunpack.c.l.b16 %v649
    %v1681 = vunpack.c.l.b16 %v650
    %v1682 = vunpack.c.l.b16 %v651
    %v1683 = vunpack.c.l.b16 %v652
    %v1684 = vunpack.c.l.b16 %v653
    %v1685 = vunpack.c.l.b16 %v654
    %v1686 = vunpack.c.l.b16 %v655
    %v1687 = vunpack.c.l.b16 %v656
    %v1688 = vunpack.c.l.b16 %v657
    %v1689 = vunpack.c.l.b16 %v658
    %v1690 = vunpack.c.l.b16 %v659
    %v1691 = vunpack.c.l.b16 %v660
    %v1692 = vunpack.c.l.b16 %v661
    %v1693 = vunpack.c.l.b16 %v662
    %v1694 = vunpack.c.l.b16 %v663
    %v1695 = vunpack.c.l.b16 %v664
    %v1696 = vunpack.c.l.b16 %v665
    %v1697 = vunpack.c.l.b16 %v666
    %v1698 = vunpack.c.l.b16 %v667
    %v1699 = vunpack.c.l.b16 %v668
    %v1700 = vunpack.c.l.b16 %v669
    %v1701 = vunpack.c.l.b16 %v670
    %v1702 = vunpack.c.l.b16 %v671
    %v1703 = vunpack.c.l.b16 %v672
    %v1704 = vunpack.c.l.b16 %v673
    %v1705 = vunpack.c.l.b16 %v674
    %v1706 = vunpack.c.l.b16 %v675
    %v1707 = vunpack.c.l.b16 %v676
    %v1708 = vunpack.c.l.b16 %v677
    %v1709 = vunpack.c.l.b16 %v678
    %v1710 = vunpack.c.l.b16 %v679
    %v1711 = vunpack.c.l.b16 %v680
    %v1712 = vunpack.c.l.b16 %v681
    %v1713 = vunpack.c.l.b16 %v682
    %v1714 = vunpack.c.l.b16 %v683
    %v1715 = vunpack.c.l.b16 %v684
    %v1716 = vunpack.c.l.b16 %v685
    %v1717 = vunpack.c.l.b16 %v686
    %v1718 = vunpack.c.l.b16 %v687
    %v1719 = vunpack.c.l.b16 %v688
    %v1720 = vunpack.c.l.b16 %v689
    %v1721 = vunpack.c.l.b16 %v690
    %v1722 = vunpack.c.l.b16 %v691
    %v1723 = vunpack.c.l.b16 %v692
    %v1724 = vunpack.c.l.b16 %v693
    %v1725 = vunpack.c.l.b16 %v694
    %v1726 = vunpack.c.l.b16 %v695
    %v1727 = vunpack.c.l.b16 %v696
    %v1728 = vunpack.c.l.b16 %v697
    %v1729 = vunpack.c.l.b16 %v698
    %v1730 = vunpack.c.l.b16 %v699
    %v1731 = vunpack.c.l.b16 %v700
    %v1732 = vunpack.c.l.b16 %v701
    %v1733 = vunpack.c.l.b16 %v702
    %v1734 = vunpack.c.l.b16 %v703
    %v1735 = vunpack.c.l.b16 %v704
    %v1736 = vunpack.c.l.b16 %v705
    %v1737 = vunpack.c.l.b16 %v706
    %v1738 = vunpack.c.l.b16 %v707
    %v1739 = vunpack.c.l.b16 %v708
    %v1740 = vunpack.c.l.b16 %v709
    %v1741 = vunpack.c.l.b16 %v710
    %v1742 = vunpack.c.l.b16 %v711
    %v1743 = vunpack.c.l.b16 %v712
    %v1744 = vunpack.c.l.b16 %v713
    %v1745 = vunpack.c.l.b16 %v714
    %v1746 = vunpack.c.l.b16 %v715
    %v1747 = vunpack.c.l.b16 %v716
    %v1748 = vunpack.c.l.b16 %v717
    %v1749 = vunpack.c.l.b16 %v718
    %v1750 = vunpack.c.l.b16 %v719
    %v1751 = vunpack.c.l.b16 %v720
    %v1752 = vunpack.c.l.b16 %v721
    %v1753 = vunpack.c.l.b16 %v722
    %v1754 = vunpack.c.l.b16 %v723
    %v1755 = vunpack.c.l.b16 %v724
    %v1756 = vunpack.c.l.b16 %v725
    %v1757 = vunpack.c.l.b16 %v726
    %v1758 = vunpack.c.l.b16 %v727
    %v1759 = vunpack.c.l.b16 %v728
    %v1760 = vunpack.c.l.b16 %v729
    %v1761 = vunpack.c.l.b16 %v730
    %v1762 = vunpack.c.l.b16 %v731
    %v1763 = vunpack.c.l.b16 %v732
    %v1764 = vunpack.c.l.b16 %v733
    %v1765 = vunpack.c.l.b16 %v734
    %v1766 = vunpack.c.l.b16 %v735
    %v1767 = vunpack.c.l.b16 %v736
    %v1768 = vunpack.c.l.b16 %v737
    %v1769 = vunpack.c.l.b16 %v738
    %v1770 = vunpack.c.l.b16 %v739
    %v1771 = vunpack.c.l.b16 %v740
    %v1772 = vunpack.c.l.b16 %v741
    %v1773 = vunpack.c.l.b16 %v742
    %v1774 = vunpack.c.l.b16 %v743
    %v1775 = vunpack.c.l.b16 %v744
    %v1776 = vunpack.c.l.b16 %v745
    %v1777 = vunpack.c.l.b16 %v746
    %v1778 = vunpack.c.l.b16 %v747
    %v1779 = vunpack.c.l.b16 %v748
    %v1780 = vunpack.c.l.b16 %v749
    %v1781 = vunpack.c.l.b16 %v750
    %v1782 = vunpack.c.l.b16 %v751
    %v1783 = vpack.c.b16 %v1272, %v1271
    %v1784 = vpack.c.b16 %v1274, %v1273
    %v1785 = vpack.c.b16 %v1276, %v1275
    %v1786 = vpack.c.b16 %v1278, %v1277
    %v1787 = vpack.c.b16 %v1280, %v1279
    %v1788 = vpack.c.b16 %v1282, %v1281
    %v1789 = vpack.c.b16 %v1284, %v1283
    %v1790 = vpack.c.b16 %v1286, %v1285
    %v1791 = vpack.c.b16 %v1288, %v1287
    %v1792 = vpack.c.b16 %v1290, %v1289
    %v1793 = vpack.c.b16 %v1292, %v1291
    %v1794 = vpack.c.b16 %v1294, %v1293
    %v1795 = vpack.c.b16 %v1296, %v1295
    %v1796 = vpack.c.b16 %v1298, %v1297
    %v1797 = vpack.c.b16 %v1300, %v1299
    %v1798 = vpack.c.b16 %v1302, %v1301
    %v1799 = vpack.c.b16 %v1304, %v1303
    %v1800 = vpack.c.b16 %v1306, %v1305
    %v1801 = vpack.c.b16 %v1308, %v1307
    %v1802 = vpack.c.b16 %v1310, %v1309
    %v1803 = vpack.c.b16 %v1312, %v1311
    %v1804 = vpack.c.b16 %v1314, %v1313
    %v1805 = vpack.c.b16 %v1316, %v1315
    %v1806 = vpack.c.b16 %v1318, %v1317
    %v1807 = vpack.c.b16 %v1320, %v1319
    %v1808 = vpack.c.b16 %v1322, %v1321
    %v1809 = vpack.c.b16 %v1324, %v1323
    %v1810 = vpack.c.b16 %v1326, %v1325
    %v1811 = vpack.c.b16 %v1328, %v1327
    %v1812 = vpack.c.b16 %v1330, %v1329
    %v1813 = vpack.c.b16 %v1332, %v1331
    %v1814 = vpack.c.b16 %v1334, %v1333
    %v1815 = vpack.c.b16 %v1336, %v1335
    %v1816 = vpack.c.b16 %v1338, %v1337
    %v1817 = vpack.c.b16 %v1340, %v1339
    %v1818 = vpack.c.b16 %v1342, %v1341
    %v1819 = vpack.c.b16 %v1344, %v1343
    %v1820 = vpack.c.b16 %v1346, %v1345
    %v1821 = vpack.c.b16 %v1348, %v1347
    %v1822 = vpack.c.b16 %v1350, %v1349
    %v1823 = vpack.c.b16 %v1352, %v1351
    %v1824 = vpack.c.b16 %v1354, %v1353
    %v1825 = vpack.c.b16 %v1356, %v1355
    %v1826 = vpack.c.b16 %v1358, %v1357
    %v1827 = vpack.c.b16 %v1360, %v1359
    %v1828 = vpack.c.b16 %v1362, %v1361
    %v1829 = vpack.c.b16 %v1364, %v1363
    %v1830 = vpack.c.b16 %v1366, %v1365
    %v1831 = vpack.c.b16 %v1368, %v1367
    %v1832 = vpack.c.b16 %v1370, %v1369
    %v1833 = vpack.c.b16 %v1372, %v1371
    %v1834 = vpack.c.b16 %v1374, %v1373
    %v1835 = vpack.c.b16 %v1376, %v1375
    %v1836 = vpack.c.b16 %v1378, %v1377
    %v1837 = vpack.c.b16 %v1380, %v1379
    %v1838 = vpack.c.b16 %v1382, %v1381
    %v1839 = vpack.c.b16 %v1384, %v1383
    %v1840 = vpack.c.b16 %v1386, %v1385
    %v1841 = vpack.c.b16 %v1388, %v1387
    %v1842 = vpack.c.b16 %v1390, %v1389
    %v1843 = vpack.c.b16 %v1392, %v1391
    %v1844 = vpack.c.b16 %v1394, %v1393
    %v1845 = vpack.c.b16 %v1396, %v1395
    %v1846 = vpack.c.b16 %v1398, %v1397
    %v1847 = vpack.c.b16 %v1400, %v1399
    %v1848 = vpack.c.b16 %v1402, %v1401
    %v1849 = vpack.c.b16 %v1404, %v1403
    %v1850 = vpack.c.b16 %v1406, %v1405
    %v1851 = vpack.c.b16 %v1408, %v1407
    %v1852 = vpack.c.b16 %v1410, %v1409
    %v1853 = vpack.c.b16 %v1412, %v1411
    %v1854 = vpack.c.b16 %v1414, %v1413
    %v1855 = vpack.c.b16 %v1416, %v1415
    %v1856 = vpack.c.b16 %v1418, %v1417
    %v1857 = vpack.c.b16 %v1420, %v1419
    %v1858 = vpack.c.b16 %v1422, %v1421
    %v1859 = vpack.c.b16 %v1424, %v1423
    %v1860 = vpack.c.b16 %v1426, %v1425
    %v1861 = vpack.c.b16 %v1428, %v1427
    %v1862 = vpack.c.b16 %v1430, %v1429
    %v1863 = vpack.c.b16 %v1432, %v1431
    %v1864 = vpack.c.b16 %v1434, %v1433
    %v1865 = vpack.c.b16 %v1436, %v1435
    %v1866 = vpack.c.b16 %v1438, %v1437
    %v1867 = vpack.c.b16 %v1440, %v1439
    %v1868 = vpack.c.b16 %v1442, %v1441
    %v1869 = vpack.c.b16 %v1444, %v1443
    %v1870 = vpack.c.b16 %v1446, %v1445
    %v1871 = vpack.c.b16 %v1448, %v1447
    %v1872 = vpack.c.b16 %v1450, %v1449
    %v1873 = vpack.c.b16 %v1452, %v1451
    %v1874 = vpack.c.b16 %v1454, %v1453
    %v1875 = vpack.c.b16 %v1456, %v1455
    %v1876 = vpack.c.b16 %v1458, %v1457
    %v1877 = vpack.c.b16 %v1460, %v1459
    %v1878 = vpack.c.b16 %v1462, %v1461
    %v1879 = vpack.c.b16 %v1464, %v1463
    %v1880 = vpack.c.b16 %v1466, %v1465
    %v1881 = vpack.c.b16 %v1468, %v1467
    %v1882 = vpack.c.b16 %v1470, %v1469
    %v1883 = vpack.c.b16 %v1472, %v1471
    %v1884 = vpack.c.b16 %v1474, %v1473
    %v1885 = vpack.c.b16 %v1476, %v1475
    %v1886 = vpack.c.b16 %v1478, %v1477
    %v1887 = vpack.c.b16 %v1480, %v1479
    %v1888 = vpack.c.b16 %v1482, %v1481
    %v1889 = vpack.c.b16 %v1484, %v1483
    %v1890 = vpack.c.b16 %v1486, %v1485
    %v1891 = vpack.c.b16 %v1488, %v1487
    %v1892 = vpack.c.b16 %v1490, %v1489
    %v1893 = vpack.c.b16 %v1492, %v1491
    %v1894 = vpack.c.b16 %v1494, %v1493
    %v1895 = vpack.c.b16 %v1496, %v1495
    %v1896 = vpack.c.b16 %v1498, %v1497
    %v1897 = vpack.c.b16 %v1500, %v1499
    %v1898 = vpack.c.b16 %v1502, %v1501
    %v1899 = vpack.c.b16 %v1504, %v1503
    %v1900 = vpack.c.b16 %v1506, %v1505
    %v1901 = vpack.c.b16 %v1508, %v1507
    %v1902 = vpack.c.b16 %v1510, %v1509
    %v1903 = vpack.c.b16 %v1512, %v1511
    %v1904 = vpack.c.b16 %v1514, %v1513
    %v1905 = vpack.c.b16 %v1516, %v1515
    %v1906 = vpack.c.b16 %v1518, %v1517
    %v1907 = vpack.c.b16 %v1520, %v1519
    %v1908 = vpack.c.b16 %v1522, %v1521
    %v1909 = vpack.c.b16 %v1524, %v1523
    %v1910 = vpack.c.b16 %v1526, %v1525
    %v1911 = vpack.c.b16 %v1528, %v1527
    %v1912 = vpack.c.b16 %v1530, %v1529
    %v1913 = vpack.c.b16 %v1532, %v1531
    %v1914 = vpack.c.b16 %v1534, %v1533
    %v1915 = vpack.c.b16 %v1536, %v1535
    %v1916 = vpack.c.b16 %v1538, %v1537
    %v1917 = vpack.c.b16 %v1540, %v1539
    %v1918 = vpack.c.b16 %v1542, %v1541
    %v1919 = vpack.c.b16 %v1544, %v1543
    %v1920 = vpack.c.b16 %v1546, %v1545
    %v1921 = vpack.c.b16 %v1548, %v1547
    %v1922 = vpack.c.b16 %v1550, %v1549
    %v1923 = vpack.c.b16 %v1552, %v1551
    %v1924 = vpack.c.b16 %v1554, %v1553
    %v1925 = vpack.c.b16 %v1556, %v1555
    %v1926 = vpack.c.b16 %v1558, %v1557
    %v1927 = vpack.c.b16 %v1560, %v1559
    %v1928 = vpack.c.b16 %v1562, %v1561
    %v1929 = vpack.c.b16 %v1564, %v1563
    %v1930 = vpack.c.b16 %v1566, %v1565
    %v1931 = vpack.c.b16 %v1568, %v1567
    %v1932 = vpack.c.b16 %v1570, %v1569
    %v1933 = vpack.c.b16 %v1572, %v1571
    %v1934 = vpack.c.b16 %v1574, %v1573
    %v1935 = vpack.c.b16 %v1576, %v1575
    %v1936 = vpack.c.b16 %v1578, %v1577
    %v1937 = vpack.c.b16 %v1580, %v1579
    %v1938 = vpack.c.b16 %v1582, %v1581
    %v1939 = vpack.c.b16 %v1584, %v1583
    %v1940 = vpack.c.b16 %v1586, %v1585
    %v1941 = vpack.c.b16 %v1588, %v1587
    %v1942 = vpack.c.b16 %v1590, %v1589
    %v1943 = vpack.c.b16 %v1592, %v1591
    %v1944 = vpack.c.b16 %v1594, %v1593
    %v1945 = vpack.c.b16 %v1596, %v1595
    %v1946 = vpack.c.b16 %v1598, %v1597
    %v1947 = vpack.c.b16 %v1600, %v1599
    %v1948 = vpack.c.b16 %v1602, %v1601
    %v1949 = vpack.c.b16 %v1604, %v1603
    %v1950 = vpack.c.b16 %v1606, %v1605
    %v1951 = vpack.c.b16 %v1608, %v1607
    %v1952 = vpack.c.b16 %v1610, %v1609
    %v1953 = vpack.c.b16 %v1612, %v1611
    %v1954 = vpack.c.b16 %v1614, %v1613
    %v1955 = vpack.c.b16 %v1616, %v1615
    %v1956 = vpack.c.b16 %v1618, %v1617
    %v1957 = vpack.c.b16 %v1620, %v1619
    %v1958 = vpack.c.b16 %v1622, %v1621
    %v1959 = vpack.c.b16 %v1624, %v1623
    %v1960 = vpack.c.b16 %v1626, %v1625
    %v1961 = vpack.c.b16 %v1628, %v1627
    %v1962 = vpack.c.b16 %v1630, %v1629
    %v1963 = vpack.c.b16 %v1632, %v1631
    %v1964 = vpack.c.b16 %v1634, %v1633
    %v1965 = vpack.c.b16 %v1636, %v1635
    %v1966 = vpack.c.b16 %v1638, %v1637
    %v1967 = vpack.c.b16 %v1640, %v1639
    %v1968 = vpack.c.b16 %v1642, %v1641
    %v1969 = vpack.c.b16 %v1644, %v1643
    %v1970 = vpack.c.b16 %v1646, %v1645
    %v1971 = vpack.c.b16 %v1648, %v1647
    %v1972 = vpack.c.b16 %v1650, %v1649
    %v1973 = vpack.c.b16 %v1652, %v1651
    %v1974 = vpack.c.b16 %v1654, %v1653
    %v1975 = vpack.c.b16 %v1656, %v1655
    %v1976 = vpack.c.b16 %v1658, %v1657
    %v1977 = vpack.c.b16 %v1660, %v1659
    %v1978 = vpack.c.b16 %v1662, %v1661
    %v1979 = vpack.c.b16 %v1664, %v1663
    %v1980 = vpack.c.b16 %v1666, %v1665
    %v1981 = vpack.c.b16 %v1668, %v1667
    %v1982 = vpack.c.b16 %v1670, %v1669
    %v1983 = vpack.c.b16 %v1672, %v1671
    %v1984 = vpack.c.b16 %v1674, %v1673
    %v1985 = vpack.c.b16 %v1676, %v1675
    %v1986 = vpack.c.b16 %v1678, %v1677
    %v1987 = vpack.c.b16 %v1680, %v1679
    %v1988 = vpack.c.b16 %v1682, %v1681
    %v1989 = vpack.c.b16 %v1684, %v1683
    %v1990 = vpack.c.b16 %v1686, %v1685
    %v1991 = vpack.c.b16 %v1688, %v1687
    %v1992 = vpack.c.b16 %v1690, %v1689
    %v1993 = vpack.c.b16 %v1692, %v1691
    %v1994 = vpack.c.b16 %v1694, %v1693
    %v1995 = vpack.c.b16 %v1696, %v1695
    %v1996 = vpack.c.b16 %v1698, %v1697
    %v1997 = vpack.c.b16 %v1700, %v1699
    %v1998 = vpack.c.b16 %v1702, %v1701
    %v1999 = vpack.c.b16 %v1704, %v1703
    %v2000 = vpack.c.b16 %v1706, %v1705
    %v2001 = vpack.c.b16 %v1708, %v1707
    %v2002 = vpack.c.b16 %v1710, %v1709
    %v2003 = vpack.c.b16 %v1712, %v1711
    %v2004 = vpack.c.b16 %v1714, %v1713
    %v2005 = vpack.c.b16 %v1716, %v1715
    %v2006 = vpack.c.b16 %v1718, %v1717
    %v2007 = vpack.c.b16 %v1720, %v1719
    %v2008 = vpack.c.b16 %v1722, %v1721
    %v2009 = vpack.c.b16 %v1724, %v1723
    %v2010 = vpack.c.b16 %v1726, %v1725
    %v2011 = vpack.c.b16 %v1728, %v1727
    %v2012 = vpack.c.b16 %v1730, %v1729
    %v2013 = vpack.c.b16 %v1732, %v1731
    %v2014 = vpack.c.b16 %v1734, %v1733
    %v2015 = vpack.c.b16 %v1736, %v1735
    %v2016 = vpack.c.b16 %v1738, %v1737
    %v2017 = vpack.c.b16 %v1740, %v1739
    %v2018 = vpack.c.b16 %v1742, %v1741
    %v2019 = vpack.c.b16 %v1744, %v1743
    %v2020 = vpack.c.b16 %v1746, %v1745
    %v2021 = vpack.c.b16 %v1748, %v1747
    %v2022 = vpack.c.b16 %v1750, %v1749
    %v2023 = vpack.c.b16 %v1752, %v1751
    %v2024 = vpack.c.b16 %v1754, %v1753
    %v2025 = vpack.c.b16 %v1756, %v1755
    %v2026 = vpack.c.b16 %v1758, %v1757
    %v2027 = vpack.c.b16 %v1760, %v1759
    %v2028 = vpack.c.b16 %v1762, %v1761
    %v2029 = vpack.c.b16 %v1764, %v1763
    %v2030 = vpack.c.b16 %v1766, %v1765
    %v2031 = vpack.c.b16 %v1768, %v1767
    %v2032 = vpack.c.b16 %v1770, %v1769
    %v2033 = vpack.c.b16 %v1772, %v1771
    %v2034 = vpack.c.b16 %v1774, %v1773
    %v2035 = vpack.c.b16 %v1776, %v1775
    %v2036 = vpack.c.b16 %v1778, %v1777
    %v2037 = vpack.c.b16 %v1780, %v1779
    %v2038 = vpack.c.b16 %v1782, %v1781
    %2295 = vmatprep.subr.bf16.mxu0 0
    %2296 = vmatpush1.bf16.msra.mxu0 %v1790
    %2297 = vmatprep.subr.bf16.mxu0 0
    %2298 = vmatpush1.bf16.msra.mxu0 %v1789
    %2299 = vmatprep.subr.bf16.mxu0 0
    %2300 = vmatpush1.bf16.msra.mxu0 %v1788
    %2301 = vmatprep.subr.bf16.mxu0 0
    %2302 = vmatpush1.bf16.msra.mxu0 %v1787
    %2303 = vmatprep.subr.bf16.mxu0 0
    %2304 = vmatpush1.bf16.msra.mxu0 %v1786
    %2305 = vmatprep.subr.bf16.mxu0 0
    %2306 = vmatpush1.bf16.msra.mxu0 %v1785
    %2307 = vmatprep.subr.bf16.mxu0 0
    %2308 = vmatpush1.bf16.msra.mxu0 %v1784
    %2309 = vmatprep.subr.bf16.mxu0 0
    %2310 = vmatpush1.bf16.msra.mxu0 %v1783
    %2311 = vmatprep.subr.bf16.mxu0 0
    %2312 = vmatpush2.bf16.msra.mxu0 %v1798
    %2313 = vmatprep.subr.bf16.mxu0 0
    %2314 = vmatpush2.bf16.msra.mxu0 %v1797
    %2315 = vmatprep.subr.bf16.mxu0 0
    %2316 = vmatpush2.bf16.msra.mxu0 %v1796
    %2317 = vmatprep.subr.bf16.mxu0 0
    %2318 = vmatpush2.bf16.msra.mxu0 %v1795
    %2319 = vmatprep.subr.bf16.mxu0 0
    %2320 = vmatpush2.bf16.msra.mxu0 %v1794
    %2321 = vmatprep.subr.bf16.mxu0 0
    %2322 = vmatpush2.bf16.msra.mxu0 %v1793
    %2323 = vmatprep.subr.bf16.mxu0 0
    %2324 = vmatpush2.bf16.msra.mxu0 %v1792
    %2325 = vmatprep.subr.bf16.mxu0 0
    %2326 = vmatpush2.bf16.msra.mxu0 %v1791
    %2327 = vmatprep.mubr.bf16.mxu0 %v209
    %2328 = vmatmul.mubr.bf16.gmra.mxu0 %v208
    %v2329 = vpop.f32.mrf.mxu0
    %v2330 = vadd.f32 %v757, %v2329
    %v2331 = vpop.f32.mrf.mxu0
    %v2332 = vpop.f32.mrf.mxu0
    %v2333 = vadd.f32 %v757, %v2332
    %v2334 = vpop.f32.mrf.mxu0
    %2335 = vdwg.mxu0
    %2336 = vmatprep.subr.bf16.mxu0 0
    %2337 = vmatpush1.bf16.msra.mxu0 %v1806
    %2338 = vmatprep.subr.bf16.mxu0 0
    %2339 = vmatpush1.bf16.msra.mxu0 %v1805
    %2340 = vmatprep.subr.bf16.mxu0 0
    %2341 = vmatpush1.bf16.msra.mxu0 %v1804
    %2342 = vmatprep.subr.bf16.mxu0 0
    %2343 = vmatpush1.bf16.msra.mxu0 %v1803
    %2344 = vmatprep.subr.bf16.mxu0 0
    %2345 = vmatpush1.bf16.msra.mxu0 %v1802
    %2346 = vmatprep.subr.bf16.mxu0 0
    %2347 = vmatpush1.bf16.msra.mxu0 %v1801
    %2348 = vmatprep.subr.bf16.mxu0 0
    %2349 = vmatpush1.bf16.msra.mxu0 %v1800
    %2350 = vmatprep.subr.bf16.mxu0 0
    %2351 = vmatpush1.bf16.msra.mxu0 %v1799
    %2352 = vmatprep.subr.bf16.mxu0 0
    %2353 = vmatpush2.bf16.msra.mxu0 %v1814
    %2354 = vmatprep.subr.bf16.mxu0 0
    %2355 = vmatpush2.bf16.msra.mxu0 %v1813
    %2356 = vmatprep.subr.bf16.mxu0 0
    %2357 = vmatpush2.bf16.msra.mxu0 %v1812
    %2358 = vmatprep.subr.bf16.mxu0 0
    %2359 = vmatpush2.bf16.msra.mxu0 %v1811
    %2360 = vmatprep.subr.bf16.mxu0 0
    %2361 = vmatpush2.bf16.msra.mxu0 %v1810
    %2362 = vmatprep.subr.bf16.mxu0 0
    %2363 = vmatpush2.bf16.msra.mxu0 %v1809
    %2364 = vmatprep.subr.bf16.mxu0 0
    %2365 = vmatpush2.bf16.msra.mxu0 %v1808
    %2366 = vmatprep.subr.bf16.mxu0 0
    %2367 = vmatpush2.bf16.msra.mxu0 %v1807
    %2368 = vmatprep.mubr.bf16.mxu0 %v211
    %2369 = vmatmul.mubr.bf16.gmra.mxu0 %v210
    %v2370 = vpop.f32.mrf.mxu0
    %v2371 = vadd.f32 %v2330, %v2370
    %v2372 = vpop.f32.mrf.mxu0
    %v2373 = vpop.f32.mrf.mxu0
    %v2374 = vadd.f32 %v2333, %v2373
    %v2375 = vpop.f32.mrf.mxu0
    %2376 = vdwg.mxu0
    %2377 = vmatprep.subr.bf16.mxu0 0
    %2378 = vmatpush1.bf16.msra.mxu0 %v1822
    %2379 = vmatprep.subr.bf16.mxu0 0
    %2380 = vmatpush1.bf16.msra.mxu0 %v1821
    %2381 = vmatprep.subr.bf16.mxu0 0
    %2382 = vmatpush1.bf16.msra.mxu0 %v1820
    %2383 = vmatprep.subr.bf16.mxu0 0
    %2384 = vmatpush1.bf16.msra.mxu0 %v1819
    %2385 = vmatprep.subr.bf16.mxu0 0
    %2386 = vmatpush1.bf16.msra.mxu0 %v1818
    %2387 = vmatprep.subr.bf16.mxu0 0
    %2388 = vmatpush1.bf16.msra.mxu0 %v1817
    %2389 = vmatprep.subr.bf16.mxu0 0
    %2390 = vmatpush1.bf16.msra.mxu0 %v1816
    %2391 = vmatprep.subr.bf16.mxu0 0
    %2392 = vmatpush1.bf16.msra.mxu0 %v1815
    %2393 = vmatprep.subr.bf16.mxu0 0
    %2394 = vmatpush2.bf16.msra.mxu0 %v1830
    %2395 = vmatprep.subr.bf16.mxu0 0
    %2396 = vmatpush2.bf16.msra.mxu0 %v1829
    %2397 = vmatprep.subr.bf16.mxu0 0
    %2398 = vmatpush2.bf16.msra.mxu0 %v1828
    %2399 = vmatprep.subr.bf16.mxu0 0
    %2400 = vmatpush2.bf16.msra.mxu0 %v1827
    %2401 = vmatprep.subr.bf16.mxu0 0
    %2402 = vmatpush2.bf16.msra.mxu0 %v1826
    %2403 = vmatprep.subr.bf16.mxu0 0
    %2404 = vmatpush2.bf16.msra.mxu0 %v1825
    %2405 = vmatprep.subr.bf16.mxu0 0
    %2406 = vmatpush2.bf16.msra.mxu0 %v1824
    %2407 = vmatprep.subr.bf16.mxu0 0
    %2408 = vmatpush2.bf16.msra.mxu0 %v1823
    %2409 = vmatprep.mubr.bf16.mxu0 %v213
    %2410 = vmatmul.mubr.bf16.gmra.mxu0 %v212
    %v2411 = vpop.f32.mrf.mxu0
    %v2412 = vadd.f32 %v2371, %v2411
    %v2413 = vpop.f32.mrf.mxu0
    %v2414 = vpop.f32.mrf.mxu0
    %v2415 = vadd.f32 %v2374, %v2414
    %v2416 = vpop.f32.mrf.mxu0
    %2417 = vdwg.mxu0
    %2418 = vmatprep.subr.bf16.mxu0 0
    %2419 = vmatpush1.bf16.msra.mxu0 %v1838
    %2420 = vmatprep.subr.bf16.mxu0 0
    %2421 = vmatpush1.bf16.msra.mxu0 %v1837
    %2422 = vmatprep.subr.bf16.mxu0 0
    %2423 = vmatpush1.bf16.msra.mxu0 %v1836
    %2424 = vmatprep.subr.bf16.mxu0 0
    %2425 = vmatpush1.bf16.msra.mxu0 %v1835
    %2426 = vmatprep.subr.bf16.mxu0 0
    %2427 = vmatpush1.bf16.msra.mxu0 %v1834
    %2428 = vmatprep.subr.bf16.mxu0 0
    %2429 = vmatpush1.bf16.msra.mxu0 %v1833
    %2430 = vmatprep.subr.bf16.mxu0 0
    %2431 = vmatpush1.bf16.msra.mxu0 %v1832
    %2432 = vmatprep.subr.bf16.mxu0 0
    %2433 = vmatpush1.bf16.msra.mxu0 %v1831
    %2434 = vmatprep.subr.bf16.mxu0 0
    %2435 = vmatpush2.bf16.msra.mxu0 %v1846
    %2436 = vmatprep.subr.bf16.mxu0 0
    %2437 = vmatpush2.bf16.msra.mxu0 %v1845
    %2438 = vmatprep.subr.bf16.mxu0 0
    %2439 = vmatpush2.bf16.msra.mxu0 %v1844
    %2440 = vmatprep.subr.bf16.mxu0 0
    %2441 = vmatpush2.bf16.msra.mxu0 %v1843
    %2442 = vmatprep.subr.bf16.mxu0 0
    %2443 = vmatpush2.bf16.msra.mxu0 %v1842
    %2444 = vmatprep.subr.bf16.mxu0 0
    %2445 = vmatpush2.bf16.msra.mxu0 %v1841
    %2446 = vmatprep.subr.bf16.mxu0 0
    %2447 = vmatpush2.bf16.msra.mxu0 %v1840
    %2448 = vmatprep.subr.bf16.mxu0 0
    %2449 = vmatpush2.bf16.msra.mxu0 %v1839
    %2450 = vmatprep.mubr.bf16.mxu0 %v215
    %2451 = vmatmul.mubr.bf16.gmra.mxu0 %v214
    %v2452 = vpop.f32.mrf.mxu0
    %v2453 = vadd.f32 %v2412, %v2452
    %v2454 = vpop.f32.mrf.mxu0
    %v2455 = vpop.f32.mrf.mxu0
    %v2456 = vadd.f32 %v2415, %v2455
    %v2457 = vpop.f32.mrf.mxu0
    %2458 = vdwg.mxu0
    %2459 = vmatprep.subr.bf16.mxu0 0
    %2460 = vmatpush1.bf16.msra.mxu0 %v1854
    %2461 = vmatprep.subr.bf16.mxu0 0
    %2462 = vmatpush1.bf16.msra.mxu0 %v1853
    %2463 = vmatprep.subr.bf16.mxu0 0
    %2464 = vmatpush1.bf16.msra.mxu0 %v1852
    %2465 = vmatprep.subr.bf16.mxu0 0
    %2466 = vmatpush1.bf16.msra.mxu0 %v1851
    %2467 = vmatprep.subr.bf16.mxu0 0
    %2468 = vmatpush1.bf16.msra.mxu0 %v1850
    %2469 = vmatprep.subr.bf16.mxu0 0
    %2470 = vmatpush1.bf16.msra.mxu0 %v1849
    %2471 = vmatprep.subr.bf16.mxu0 0
    %2472 = vmatpush1.bf16.msra.mxu0 %v1848
    %2473 = vmatprep.subr.bf16.mxu0 0
    %2474 = vmatpush1.bf16.msra.mxu0 %v1847
    %2475 = vmatprep.subr.bf16.mxu0 0
    %2476 = vmatpush2.bf16.msra.mxu0 %v1862
    %2477 = vmatprep.subr.bf16.mxu0 0
    %2478 = vmatpush2.bf16.msra.mxu0 %v1861
    %2479 = vmatprep.subr.bf16.mxu0 0
    %2480 = vmatpush2.bf16.msra.mxu0 %v1860
    %2481 = vmatprep.subr.bf16.mxu0 0
    %2482 = vmatpush2.bf16.msra.mxu0 %v1859
    %2483 = vmatprep.subr.bf16.mxu0 0
    %2484 = vmatpush2.bf16.msra.mxu0 %v1858
    %2485 = vmatprep.subr.bf16.mxu0 0
    %2486 = vmatpush2.bf16.msra.mxu0 %v1857
    %2487 = vmatprep.subr.bf16.mxu0 0
    %2488 = vmatpush2.bf16.msra.mxu0 %v1856
    %2489 = vmatprep.subr.bf16.mxu0 0
    %2490 = vmatpush2.bf16.msra.mxu0 %v1855
    %2491 = vmatprep.mubr.bf16.mxu0 %v217
    %2492 = vmatmul.mubr.bf16.gmra.mxu0 %v216
    %v2493 = vpop.f32.mrf.mxu0
    %v2494 = vadd.f32 %v2453, %v2493
    %v2495 = vpop.f32.mrf.mxu0
    %v2496 = vpop.f32.mrf.mxu0
    %v2497 = vadd.f32 %v2456, %v2496
    %v2498 = vpop.f32.mrf.mxu0
    %2499 = vdwg.mxu0
    %2500 = vmatprep.subr.bf16.mxu0 0
    %2501 = vmatpush1.bf16.msra.mxu0 %v1870
    %2502 = vmatprep.subr.bf16.mxu0 0
    %2503 = vmatpush1.bf16.msra.mxu0 %v1869
    %2504 = vmatprep.subr.bf16.mxu0 0
    %2505 = vmatpush1.bf16.msra.mxu0 %v1868
    %2506 = vmatprep.subr.bf16.mxu0 0
    %2507 = vmatpush1.bf16.msra.mxu0 %v1867
    %2508 = vmatprep.subr.bf16.mxu0 0
    %2509 = vmatpush1.bf16.msra.mxu0 %v1866
    %2510 = vmatprep.subr.bf16.mxu0 0
    %2511 = vmatpush1.bf16.msra.mxu0 %v1865
    %2512 = vmatprep.subr.bf16.mxu0 0
    %2513 = vmatpush1.bf16.msra.mxu0 %v1864
    %2514 = vmatprep.subr.bf16.mxu0 0
    %2515 = vmatpush1.bf16.msra.mxu0 %v1863
    %2516 = vmatprep.subr.bf16.mxu0 0
    %2517 = vmatpush2.bf16.msra.mxu0 %v1878
    %2518 = vmatprep.subr.bf16.mxu0 0
    %2519 = vmatpush2.bf16.msra.mxu0 %v1877
    %2520 = vmatprep.subr.bf16.mxu0 0
    %2521 = vmatpush2.bf16.msra.mxu0 %v1876
    %2522 = vmatprep.subr.bf16.mxu0 0
    %2523 = vmatpush2.bf16.msra.mxu0 %v1875
    %2524 = vmatprep.subr.bf16.mxu0 0
    %2525 = vmatpush2.bf16.msra.mxu0 %v1874
    %2526 = vmatprep.subr.bf16.mxu0 0
    %2527 = vmatpush2.bf16.msra.mxu0 %v1873
    %2528 = vmatprep.subr.bf16.mxu0 0
    %2529 = vmatpush2.bf16.msra.mxu0 %v1872
    %2530 = vmatprep.subr.bf16.mxu0 0
    %2531 = vmatpush2.bf16.msra.mxu0 %v1871
    %2532 = vmatprep.mubr.bf16.mxu0 %v219
    %2533 = vmatmul.mubr.bf16.gmra.mxu0 %v218
    %v2534 = vpop.f32.mrf.mxu0
    %v2535 = vadd.f32 %v2494, %v2534
    %v2536 = vpop.f32.mrf.mxu0
    %v2537 = vpop.f32.mrf.mxu0
    %v2538 = vadd.f32 %v2497, %v2537
    %v2539 = vpop.f32.mrf.mxu0
    %2540 = vdwg.mxu0
    %2541 = vmatprep.subr.bf16.mxu0 0
    %2542 = vmatpush1.bf16.msra.mxu0 %v1886
    %2543 = vmatprep.subr.bf16.mxu0 0
    %2544 = vmatpush1.bf16.msra.mxu0 %v1885
    %2545 = vmatprep.subr.bf16.mxu0 0
    %2546 = vmatpush1.bf16.msra.mxu0 %v1884
    %2547 = vmatprep.subr.bf16.mxu0 0
    %2548 = vmatpush1.bf16.msra.mxu0 %v1883
    %2549 = vmatprep.subr.bf16.mxu0 0
    %2550 = vmatpush1.bf16.msra.mxu0 %v1882
    %2551 = vmatprep.subr.bf16.mxu0 0
    %2552 = vmatpush1.bf16.msra.mxu0 %v1881
    %2553 = vmatprep.subr.bf16.mxu0 0
    %2554 = vmatpush1.bf16.msra.mxu0 %v1880
    %2555 = vmatprep.subr.bf16.mxu0 0
    %2556 = vmatpush1.bf16.msra.mxu0 %v1879
    %2557 = vmatprep.subr.bf16.mxu0 0
    %2558 = vmatpush2.bf16.msra.mxu0 %v1894
    %2559 = vmatprep.subr.bf16.mxu0 0
    %2560 = vmatpush2.bf16.msra.mxu0 %v1893
    %2561 = vmatprep.subr.bf16.mxu0 0
    %2562 = vmatpush2.bf16.msra.mxu0 %v1892
    %2563 = vmatprep.subr.bf16.mxu0 0
    %2564 = vmatpush2.bf16.msra.mxu0 %v1891
    %2565 = vmatprep.subr.bf16.mxu0 0
    %2566 = vmatpush2.bf16.msra.mxu0 %v1890
    %2567 = vmatprep.subr.bf16.mxu0 0
    %2568 = vmatpush2.bf16.msra.mxu0 %v1889
    %2569 = vmatprep.subr.bf16.mxu0 0
    %2570 = vmatpush2.bf16.msra.mxu0 %v1888
    %2571 = vmatprep.subr.bf16.mxu0 0
    %2572 = vmatpush2.bf16.msra.mxu0 %v1887
    %2573 = vmatprep.mubr.bf16.mxu0 %v221
    %2574 = vmatmul.mubr.bf16.gmra.mxu0 %v220
    %v2575 = vpop.f32.mrf.mxu0
    %v2576 = vadd.f32 %v2535, %v2575
    %v2577 = vpop.f32.mrf.mxu0
    %v2578 = vpop.f32.mrf.mxu0
    %v2579 = vadd.f32 %v2538, %v2578
    %v2580 = vpop.f32.mrf.mxu0
    %2581 = vdwg.mxu0
    %2582 = vmatprep.subr.bf16.mxu0 0
    %2583 = vmatpush1.bf16.msra.mxu0 %v1902
    %2584 = vmatprep.subr.bf16.mxu0 0
    %2585 = vmatpush1.bf16.msra.mxu0 %v1901
    %2586 = vmatprep.subr.bf16.mxu0 0
    %2587 = vmatpush1.bf16.msra.mxu0 %v1900
    %2588 = vmatprep.subr.bf16.mxu0 0
    %2589 = vmatpush1.bf16.msra.mxu0 %v1899
    %2590 = vmatprep.subr.bf16.mxu0 0
    %2591 = vmatpush1.bf16.msra.mxu0 %v1898
    %2592 = vmatprep.subr.bf16.mxu0 0
    %2593 = vmatpush1.bf16.msra.mxu0 %v1897
    %2594 = vmatprep.subr.bf16.mxu0 0
    %2595 = vmatpush1.bf16.msra.mxu0 %v1896
    %2596 = vmatprep.subr.bf16.mxu0 0
    %2597 = vmatpush1.bf16.msra.mxu0 %v1895
    %2598 = vmatprep.subr.bf16.mxu0 0
    %2599 = vmatpush2.bf16.msra.mxu0 %v1910
    %2600 = vmatprep.subr.bf16.mxu0 0
    %2601 = vmatpush2.bf16.msra.mxu0 %v1909
    %2602 = vmatprep.subr.bf16.mxu0 0
    %2603 = vmatpush2.bf16.msra.mxu0 %v1908
    %2604 = vmatprep.subr.bf16.mxu0 0
    %2605 = vmatpush2.bf16.msra.mxu0 %v1907
    %2606 = vmatprep.subr.bf16.mxu0 0
    %2607 = vmatpush2.bf16.msra.mxu0 %v1906
    %2608 = vmatprep.subr.bf16.mxu0 0
    %2609 = vmatpush2.bf16.msra.mxu0 %v1905
    %2610 = vmatprep.subr.bf16.mxu0 0
    %2611 = vmatpush2.bf16.msra.mxu0 %v1904
    %2612 = vmatprep.subr.bf16.mxu0 0
    %2613 = vmatpush2.bf16.msra.mxu0 %v1903
    %2614 = vmatprep.mubr.bf16.mxu0 %v223
    %2615 = vmatmul.mubr.bf16.gmra.mxu0 %v222
    %v2616 = vpop.f32.mrf.mxu0
    %v2617 = vadd.f32 %v2576, %v2616
    %v2618 = vpop.f32.mrf.mxu0
    %v2619 = vpop.f32.mrf.mxu0
    %v2620 = vadd.f32 %v2579, %v2619
    %v2621 = vpop.f32.mrf.mxu0
    %2622 = vdwg.mxu0
    %2623 = vmatprep.subr.bf16.mxu0 0
    %2624 = vmatpush1.bf16.msra.mxu0 %v1918
    %2625 = vmatprep.subr.bf16.mxu0 0
    %2626 = vmatpush1.bf16.msra.mxu0 %v1917
    %2627 = vmatprep.subr.bf16.mxu0 0
    %2628 = vmatpush1.bf16.msra.mxu0 %v1916
    %2629 = vmatprep.subr.bf16.mxu0 0
    %2630 = vmatpush1.bf16.msra.mxu0 %v1915
    %2631 = vmatprep.subr.bf16.mxu0 0
    %2632 = vmatpush1.bf16.msra.mxu0 %v1914
    %2633 = vmatprep.subr.bf16.mxu0 0
    %2634 = vmatpush1.bf16.msra.mxu0 %v1913
    %2635 = vmatprep.subr.bf16.mxu0 0
    %2636 = vmatpush1.bf16.msra.mxu0 %v1912
    %2637 = vmatprep.subr.bf16.mxu0 0
    %2638 = vmatpush1.bf16.msra.mxu0 %v1911
    %2639 = vmatprep.subr.bf16.mxu0 0
    %2640 = vmatpush2.bf16.msra.mxu0 %v1926
    %2641 = vmatprep.subr.bf16.mxu0 0
    %2642 = vmatpush2.bf16.msra.mxu0 %v1925
    %2643 = vmatprep.subr.bf16.mxu0 0
    %2644 = vmatpush2.bf16.msra.mxu0 %v1924
    %2645 = vmatprep.subr.bf16.mxu0 0
    %2646 = vmatpush2.bf16.msra.mxu0 %v1923
    %2647 = vmatprep.subr.bf16.mxu0 0
    %2648 = vmatpush2.bf16.msra.mxu0 %v1922
    %2649 = vmatprep.subr.bf16.mxu0 0
    %2650 = vmatpush2.bf16.msra.mxu0 %v1921
    %2651 = vmatprep.subr.bf16.mxu0 0
    %2652 = vmatpush2.bf16.msra.mxu0 %v1920
    %2653 = vmatprep.subr.bf16.mxu0 0
    %2654 = vmatpush2.bf16.msra.mxu0 %v1919
    %2655 = vmatprep.mubr.bf16.mxu0 %v225
    %2656 = vmatmul.mubr.bf16.gmra.mxu0 %v224
    %v2657 = vpop.f32.mrf.mxu0
    %v2658 = vadd.f32 %v2617, %v2657
    %v2659 = vpop.f32.mrf.mxu0
    %v2660 = vpop.f32.mrf.mxu0
    %v2661 = vadd.f32 %v2620, %v2660
    %v2662 = vpop.f32.mrf.mxu0
    %2663 = vdwg.mxu0
    %2664 = vmatprep.subr.bf16.mxu0 0
    %2665 = vmatpush1.bf16.msra.mxu0 %v1934
    %2666 = vmatprep.subr.bf16.mxu0 0
    %2667 = vmatpush1.bf16.msra.mxu0 %v1933
    %2668 = vmatprep.subr.bf16.mxu0 0
    %2669 = vmatpush1.bf16.msra.mxu0 %v1932
    %2670 = vmatprep.subr.bf16.mxu0 0
    %2671 = vmatpush1.bf16.msra.mxu0 %v1931
    %2672 = vmatprep.subr.bf16.mxu0 0
    %2673 = vmatpush1.bf16.msra.mxu0 %v1930
    %2674 = vmatprep.subr.bf16.mxu0 0
    %2675 = vmatpush1.bf16.msra.mxu0 %v1929
    %2676 = vmatprep.subr.bf16.mxu0 0
    %2677 = vmatpush1.bf16.msra.mxu0 %v1928
    %2678 = vmatprep.subr.bf16.mxu0 0
    %2679 = vmatpush1.bf16.msra.mxu0 %v1927
    %2680 = vmatprep.subr.bf16.mxu0 0
    %2681 = vmatpush2.bf16.msra.mxu0 %v1942
    %2682 = vmatprep.subr.bf16.mxu0 0
    %2683 = vmatpush2.bf16.msra.mxu0 %v1941
    %2684 = vmatprep.subr.bf16.mxu0 0
    %2685 = vmatpush2.bf16.msra.mxu0 %v1940
    %2686 = vmatprep.subr.bf16.mxu0 0
    %2687 = vmatpush2.bf16.msra.mxu0 %v1939
    %2688 = vmatprep.subr.bf16.mxu0 0
    %2689 = vmatpush2.bf16.msra.mxu0 %v1938
    %2690 = vmatprep.subr.bf16.mxu0 0
    %2691 = vmatpush2.bf16.msra.mxu0 %v1937
    %2692 = vmatprep.subr.bf16.mxu0 0
    %2693 = vmatpush2.bf16.msra.mxu0 %v1936
    %2694 = vmatprep.subr.bf16.mxu0 0
    %2695 = vmatpush2.bf16.msra.mxu0 %v1935
    %2696 = vmatprep.mubr.bf16.mxu0 %v227
    %2697 = vmatmul.mubr.bf16.gmra.mxu0 %v226
    %v2698 = vpop.f32.mrf.mxu0
    %v2699 = vadd.f32 %v2658, %v2698
    %v2700 = vpop.f32.mrf.mxu0
    %v2701 = vpop.f32.mrf.mxu0
    %v2702 = vadd.f32 %v2661, %v2701
    %v2703 = vpop.f32.mrf.mxu0
    %2704 = vdwg.mxu0
    %2705 = vmatprep.subr.bf16.mxu0 0
    %2706 = vmatpush1.bf16.msra.mxu0 %v1950
    %2707 = vmatprep.subr.bf16.mxu0 0
    %2708 = vmatpush1.bf16.msra.mxu0 %v1949
    %2709 = vmatprep.subr.bf16.mxu0 0
    %2710 = vmatpush1.bf16.msra.mxu0 %v1948
    %2711 = vmatprep.subr.bf16.mxu0 0
    %2712 = vmatpush1.bf16.msra.mxu0 %v1947
    %2713 = vmatprep.subr.bf16.mxu0 0
    %2714 = vmatpush1.bf16.msra.mxu0 %v1946
    %2715 = vmatprep.subr.bf16.mxu0 0
    %2716 = vmatpush1.bf16.msra.mxu0 %v1945
    %2717 = vmatprep.subr.bf16.mxu0 0
    %2718 = vmatpush1.bf16.msra.mxu0 %v1944
    %2719 = vmatprep.subr.bf16.mxu0 0
    %2720 = vmatpush1.bf16.msra.mxu0 %v1943
    %2721 = vmatprep.subr.bf16.mxu0 0
    %2722 = vmatpush2.bf16.msra.mxu0 %v1958
    %2723 = vmatprep.subr.bf16.mxu0 0
    %2724 = vmatpush2.bf16.msra.mxu0 %v1957
    %2725 = vmatprep.subr.bf16.mxu0 0
    %2726 = vmatpush2.bf16.msra.mxu0 %v1956
    %2727 = vmatprep.subr.bf16.mxu0 0
    %2728 = vmatpush2.bf16.msra.mxu0 %v1955
    %2729 = vmatprep.subr.bf16.mxu0 0
    %2730 = vmatpush2.bf16.msra.mxu0 %v1954
    %2731 = vmatprep.subr.bf16.mxu0 0
    %2732 = vmatpush2.bf16.msra.mxu0 %v1953
    %2733 = vmatprep.subr.bf16.mxu0 0
    %2734 = vmatpush2.bf16.msra.mxu0 %v1952
    %2735 = vmatprep.subr.bf16.mxu0 0
    %2736 = vmatpush2.bf16.msra.mxu0 %v1951
    %2737 = vmatprep.mubr.bf16.mxu0 %v229
    %2738 = vmatmul.mubr.bf16.gmra.mxu0 %v228
    %v2739 = vpop.f32.mrf.mxu0
    %v2740 = vadd.f32 %v2699, %v2739
    %v2741 = vpop.f32.mrf.mxu0
    %v2742 = vpop.f32.mrf.mxu0
    %v2743 = vadd.f32 %v2702, %v2742
    %v2744 = vpop.f32.mrf.mxu0
    %2745 = vdwg.mxu0
    %2746 = vmatprep.subr.bf16.mxu0 0
    %2747 = vmatpush1.bf16.msra.mxu0 %v1966
    %2748 = vmatprep.subr.bf16.mxu0 0
    %2749 = vmatpush1.bf16.msra.mxu0 %v1965
    %2750 = vmatprep.subr.bf16.mxu0 0
    %2751 = vmatpush1.bf16.msra.mxu0 %v1964
    %2752 = vmatprep.subr.bf16.mxu0 0
    %2753 = vmatpush1.bf16.msra.mxu0 %v1963
    %2754 = vmatprep.subr.bf16.mxu0 0
    %2755 = vmatpush1.bf16.msra.mxu0 %v1962
    %2756 = vmatprep.subr.bf16.mxu0 0
    %2757 = vmatpush1.bf16.msra.mxu0 %v1961
    %2758 = vmatprep.subr.bf16.mxu0 0
    %2759 = vmatpush1.bf16.msra.mxu0 %v1960
    %2760 = vmatprep.subr.bf16.mxu0 0
    %2761 = vmatpush1.bf16.msra.mxu0 %v1959
    %2762 = vmatprep.subr.bf16.mxu0 0
    %2763 = vmatpush2.bf16.msra.mxu0 %v1974
    %2764 = vmatprep.subr.bf16.mxu0 0
    %2765 = vmatpush2.bf16.msra.mxu0 %v1973
    %2766 = vmatprep.subr.bf16.mxu0 0
    %2767 = vmatpush2.bf16.msra.mxu0 %v1972
    %2768 = vmatprep.subr.bf16.mxu0 0
    %2769 = vmatpush2.bf16.msra.mxu0 %v1971
    %2770 = vmatprep.subr.bf16.mxu0 0
    %2771 = vmatpush2.bf16.msra.mxu0 %v1970
    %2772 = vmatprep.subr.bf16.mxu0 0
    %2773 = vmatpush2.bf16.msra.mxu0 %v1969
    %2774 = vmatprep.subr.bf16.mxu0 0
    %2775 = vmatpush2.bf16.msra.mxu0 %v1968
    %2776 = vmatprep.subr.bf16.mxu0 0
    %2777 = vmatpush2.bf16.msra.mxu0 %v1967
    %2778 = vmatprep.mubr.bf16.mxu0 %v231
    %2779 = vmatmul.mubr.bf16.gmra.mxu0 %v230
    %v2780 = vpop.f32.mrf.mxu0
    %v2781 = vadd.f32 %v2740, %v2780
    %v2782 = vpop.f32.mrf.mxu0
    %v2783 = vpop.f32.mrf.mxu0
    %v2784 = vadd.f32 %v2743, %v2783
    %v2785 = vpop.f32.mrf.mxu0
    %2786 = vdwg.mxu0
    %2787 = vmatprep.subr.bf16.mxu0 0
    %2788 = vmatpush1.bf16.msra.mxu0 %v1982
    %2789 = vmatprep.subr.bf16.mxu0 0
    %2790 = vmatpush1.bf16.msra.mxu0 %v1981
    %2791 = vmatprep.subr.bf16.mxu0 0
    %2792 = vmatpush1.bf16.msra.mxu0 %v1980
    %2793 = vmatprep.subr.bf16.mxu0 0
    %2794 = vmatpush1.bf16.msra.mxu0 %v1979
    %2795 = vmatprep.subr.bf16.mxu0 0
    %2796 = vmatpush1.bf16.msra.mxu0 %v1978
    %2797 = vmatprep.subr.bf16.mxu0 0
    %2798 = vmatpush1.bf16.msra.mxu0 %v1977
    %2799 = vmatprep.subr.bf16.mxu0 0
    %2800 = vmatpush1.bf16.msra.mxu0 %v1976
    %2801 = vmatprep.subr.bf16.mxu0 0
    %2802 = vmatpush1.bf16.msra.mxu0 %v1975
    %2803 = vmatprep.subr.bf16.mxu0 0
    %2804 = vmatpush2.bf16.msra.mxu0 %v1990
    %2805 = vmatprep.subr.bf16.mxu0 0
    %2806 = vmatpush2.bf16.msra.mxu0 %v1989
    %2807 = vmatprep.subr.bf16.mxu0 0
    %2808 = vmatpush2.bf16.msra.mxu0 %v1988
    %2809 = vmatprep.subr.bf16.mxu0 0
    %2810 = vmatpush2.bf16.msra.mxu0 %v1987
    %2811 = vmatprep.subr.bf16.mxu0 0
    %2812 = vmatpush2.bf16.msra.mxu0 %v1986
    %2813 = vmatprep.subr.bf16.mxu0 0
    %2814 = vmatpush2.bf16.msra.mxu0 %v1985
    %2815 = vmatprep.subr.bf16.mxu0 0
    %2816 = vmatpush2.bf16.msra.mxu0 %v1984
    %2817 = vmatprep.subr.bf16.mxu0 0
    %2818 = vmatpush2.bf16.msra.mxu0 %v1983
    %2819 = vmatprep.mubr.bf16.mxu0 %v233
    %2820 = vmatmul.mubr.bf16.gmra.mxu0 %v232
    %v2821 = vpop.f32.mrf.mxu0
    %v2822 = vadd.f32 %v2781, %v2821
    %v2823 = vpop.f32.mrf.mxu0
    %v2824 = vpop.f32.mrf.mxu0
    %v2825 = vadd.f32 %v2784, %v2824
    %v2826 = vpop.f32.mrf.mxu0
    %2827 = vdwg.mxu0
    %2828 = vmatprep.subr.bf16.mxu0 0
    %2829 = vmatpush1.bf16.msra.mxu0 %v1998
    %2830 = vmatprep.subr.bf16.mxu0 0
    %2831 = vmatpush1.bf16.msra.mxu0 %v1997
    %2832 = vmatprep.subr.bf16.mxu0 0
    %2833 = vmatpush1.bf16.msra.mxu0 %v1996
    %2834 = vmatprep.subr.bf16.mxu0 0
    %2835 = vmatpush1.bf16.msra.mxu0 %v1995
    %2836 = vmatprep.subr.bf16.mxu0 0
    %2837 = vmatpush1.bf16.msra.mxu0 %v1994
    %2838 = vmatprep.subr.bf16.mxu0 0
    %2839 = vmatpush1.bf16.msra.mxu0 %v1993
    %2840 = vmatprep.subr.bf16.mxu0 0
    %2841 = vmatpush1.bf16.msra.mxu0 %v1992
    %2842 = vmatprep.subr.bf16.mxu0 0
    %2843 = vmatpush1.bf16.msra.mxu0 %v1991
    %2844 = vmatprep.subr.bf16.mxu0 0
    %2845 = vmatpush2.bf16.msra.mxu0 %v2006
    %2846 = vmatprep.subr.bf16.mxu0 0
    %2847 = vmatpush2.bf16.msra.mxu0 %v2005
    %2848 = vmatprep.subr.bf16.mxu0 0
    %2849 = vmatpush2.bf16.msra.mxu0 %v2004
    %2850 = vmatprep.subr.bf16.mxu0 0
    %2851 = vmatpush2.bf16.msra.mxu0 %v2003
    %2852 = vmatprep.subr.bf16.mxu0 0
    %2853 = vmatpush2.bf16.msra.mxu0 %v2002
    %2854 = vmatprep.subr.bf16.mxu0 0
    %2855 = vmatpush2.bf16.msra.mxu0 %v2001
    %2856 = vmatprep.subr.bf16.mxu0 0
    %2857 = vmatpush2.bf16.msra.mxu0 %v2000
    %2858 = vmatprep.subr.bf16.mxu0 0
    %2859 = vmatpush2.bf16.msra.mxu0 %v1999
    %2860 = vmatprep.mubr.bf16.mxu0 %v235
    %2861 = vmatmul.mubr.bf16.gmra.mxu0 %v234
    %v2862 = vpop.f32.mrf.mxu0
    %v2863 = vadd.f32 %v2822, %v2862
    %v2864 = vpop.f32.mrf.mxu0
    %v2865 = vpop.f32.mrf.mxu0
    %v2866 = vadd.f32 %v2825, %v2865
    %v2867 = vpop.f32.mrf.mxu0
    %2868 = vdwg.mxu0
    %2869 = vmatprep.subr.bf16.mxu0 0
    %2870 = vmatpush1.bf16.msra.mxu0 %v2014
    %2871 = vmatprep.subr.bf16.mxu0 0
    %2872 = vmatpush1.bf16.msra.mxu0 %v2013
    %2873 = vmatprep.subr.bf16.mxu0 0
    %2874 = vmatpush1.bf16.msra.mxu0 %v2012
    %2875 = vmatprep.subr.bf16.mxu0 0
    %2876 = vmatpush1.bf16.msra.mxu0 %v2011
    %2877 = vmatprep.subr.bf16.mxu0 0
    %2878 = vmatpush1.bf16.msra.mxu0 %v2010
    %2879 = vmatprep.subr.bf16.mxu0 0
    %2880 = vmatpush1.bf16.msra.mxu0 %v2009
    %2881 = vmatprep.subr.bf16.mxu0 0
    %2882 = vmatpush1.bf16.msra.mxu0 %v2008
    %2883 = vmatprep.subr.bf16.mxu0 0
    %2884 = vmatpush1.bf16.msra.mxu0 %v2007
    %2885 = vmatprep.subr.bf16.mxu0 0
    %2886 = vmatpush2.bf16.msra.mxu0 %v2022
    %2887 = vmatprep.subr.bf16.mxu0 0
    %2888 = vmatpush2.bf16.msra.mxu0 %v2021
    %2889 = vmatprep.subr.bf16.mxu0 0
    %2890 = vmatpush2.bf16.msra.mxu0 %v2020
    %2891 = vmatprep.subr.bf16.mxu0 0
    %2892 = vmatpush2.bf16.msra.mxu0 %v2019
    %2893 = vmatprep.subr.bf16.mxu0 0
    %2894 = vmatpush2.bf16.msra.mxu0 %v2018
    %2895 = vmatprep.subr.bf16.mxu0 0
    %2896 = vmatpush2.bf16.msra.mxu0 %v2017
    %2897 = vmatprep.subr.bf16.mxu0 0
    %2898 = vmatpush2.bf16.msra.mxu0 %v2016
    %2899 = vmatprep.subr.bf16.mxu0 0
    %2900 = vmatpush2.bf16.msra.mxu0 %v2015
    %2901 = vmatprep.mubr.bf16.mxu0 %v237
    %2902 = vmatmul.mubr.bf16.gmra.mxu0 %v236
    %v2903 = vpop.f32.mrf.mxu0
    %v2904 = vadd.f32 %v2863, %v2903
    %v2905 = vpop.f32.mrf.mxu0
    %v2906 = vpop.f32.mrf.mxu0
    %v2907 = vadd.f32 %v2866, %v2906
    %v2908 = vpop.f32.mrf.mxu0
    %2909 = vdwg.mxu0
    %2910 = vmatprep.subr.bf16.mxu0 0
    %2911 = vmatpush1.bf16.msra.mxu0 %v2030
    %2912 = vmatprep.subr.bf16.mxu0 0
    %2913 = vmatpush1.bf16.msra.mxu0 %v2029
    %2914 = vmatprep.subr.bf16.mxu0 0
    %2915 = vmatpush1.bf16.msra.mxu0 %v2028
    %2916 = vmatprep.subr.bf16.mxu0 0
    %2917 = vmatpush1.bf16.msra.mxu0 %v2027
    %2918 = vmatprep.subr.bf16.mxu0 0
    %2919 = vmatpush1.bf16.msra.mxu0 %v2026
    %2920 = vmatprep.subr.bf16.mxu0 0
    %2921 = vmatpush1.bf16.msra.mxu0 %v2025
    %2922 = vmatprep.subr.bf16.mxu0 0
    %2923 = vmatpush1.bf16.msra.mxu0 %v2024
    %2924 = vmatprep.subr.bf16.mxu0 0
    %2925 = vmatpush1.bf16.msra.mxu0 %v2023
    %2926 = vmatprep.subr.bf16.mxu0 0
    %2927 = vmatpush2.bf16.msra.mxu0 %v2038
    %2928 = vmatprep.subr.bf16.mxu0 0
    %2929 = vmatpush2.bf16.msra.mxu0 %v2037
    %2930 = vmatprep.subr.bf16.mxu0 0
    %2931 = vmatpush2.bf16.msra.mxu0 %v2036
    %2932 = vmatprep.subr.bf16.mxu0 0
    %2933 = vmatpush2.bf16.msra.mxu0 %v2035
    %2934 = vmatprep.subr.bf16.mxu0 0
    %2935 = vmatpush2.bf16.msra.mxu0 %v2034
    %2936 = vmatprep.subr.bf16.mxu0 0
    %2937 = vmatpush2.bf16.msra.mxu0 %v2033
    %2938 = vmatprep.subr.bf16.mxu0 0
    %2939 = vmatpush2.bf16.msra.mxu0 %v2032
    %2940 = vmatprep.subr.bf16.mxu0 0
    %2941 = vmatpush2.bf16.msra.mxu0 %v2031
    %2942 = vmatprep.mubr.bf16.mxu0 %v239
    %2943 = vmatmul.mubr.bf16.gmra.mxu0 %v238
    %v2944 = vpop.f32.mrf.mxu0
    %v2945 = vadd.f32 %v2904, %v2944
    %v2946 = vpop.f32.mrf.mxu0
    %v2947 = vpop.f32.mrf.mxu0
    %v2948 = vadd.f32 %v2907, %v2947
    %v2949 = vpop.f32.mrf.mxu0
    %2950 = vdwg.mxu0
    %v2952 = vrot.slane %v2948, 7
    %vm2954 = vcmask 1040384
    %v2955 = vsel %vm2954, %v2945, %v2952
    %vm2956 = vcmask 261120
    %v2958 = vsel %vm2956, 0, 0
    %2960 = vmatprep.subr.bf16.mxu0 0
    %2961 = vmatpush1.bf16.msra.mxu0 0
    %2962 = vmatprep.subr.bf16.mxu0 0
    %2963 = vmatpush1.bf16.msra.mxu0 0
    %2964 = vmatprep.subr.bf16.mxu0 0
    %2965 = vmatpush1.bf16.msra.mxu0 0
    %2966 = vmatprep.subr.bf16.mxu0 0
    %2967 = vmatpush1.bf16.msra.mxu0 0
    %2968 = vmatprep.subr.bf16.mxu0 0
    %2969 = vmatpush1.bf16.msra.mxu0 0
    %2970 = vmatprep.subr.bf16.mxu0 0
    %2971 = vmatpush1.bf16.msra.mxu0 0
    %2972 = vmatprep.subr.bf16.mxu0 0
    %2973 = vmatpush1.bf16.msra.mxu0 %v84
    %2974 = vmatprep.subr.bf16.mxu0 0
    %2975 = vmatpush1.bf16.msra.mxu0 %v83
    %2976 = vmatprep.subr.bf16.mxu0 0
    %2977 = vmatpush2.bf16.msra.mxu0 0
    %2978 = vmatprep.subr.bf16.mxu0 0
    %2979 = vmatpush2.bf16.msra.mxu0 0
    %2980 = vmatprep.subr.bf16.mxu0 0
    %2981 = vmatpush2.bf16.msra.mxu0 0
    %2982 = vmatprep.subr.bf16.mxu0 0
    %2983 = vmatpush2.bf16.msra.mxu0 0
    %2984 = vmatprep.subr.bf16.mxu0 0
    %2985 = vmatpush2.bf16.msra.mxu0 0
    %2986 = vmatprep.subr.bf16.mxu0 0
    %2987 = vmatpush2.bf16.msra.mxu0 0
    %2988 = vmatprep.subr.bf16.mxu0 0
    %2989 = vmatpush2.bf16.msra.mxu0 0
    %2990 = vmatprep.subr.bf16.mxu0 0
    %2991 = vmatpush2.bf16.msra.mxu0 0
    %2992 = vmatprep.mubr.bf16.mxu0 0
    %2993 = vmatmul.mubr.bf16.gmra.mxu0 %v2958
    %v2994 = vpop.f32.mrf.mxu0
    %v2995 = vadd.f32 0.0, %v2994
    %v2996 = vpop.f32.mrf.mxu0
    %v2997 = vpop.f32.mrf.mxu0
    %v2998 = vpop.f32.mrf.mxu0
    %2999 = vdwg.mxu0
    %v3000 = vadd.f32 %v2955, %v2995
    %v3001 = vxor.u32 %v3000, 2147483648
    %v3002 = vmul.f32 %v3001, 1.442695
    %v3003 = vpow.pop %v3002
    %v3004 = vadd.f32 %v3003, 1.0
    %v3005 = vrcp.pop %v3004
    %v3006 = vmul.f32 1.0, %v3005
    %v3007 = vtanh.pop %v3000
    %v3008 = vmul.f32 %v3006, 0.0
    %3010 = vrot.lane.b32.xlu0 %v3007, 64
    %v3011 = vpop.permute.xlu0 %3010
    %v3013 = vmul.f32 %v3006, %v3011
    %3015 = vrot.lane.b32.xlu0 %v3013, 32
    %v3016 = vpop.permute.xlu0 %3015
    %v3018 = vadd.f32 %v3008, %v3016
    %v3019 = vtanh.pop %v3018
    %3021 = vrot.lane.b32.xlu0 %v3019, 64
    %v3022 = vpop.permute.xlu0 %3021
    %v3024 = vmul.f32 %v3006, %v3022
    %v3026 = vrot.slane %v2945, 1
    %v3028 = vsel %vm2954, %v3026, %v2948
    %v3029 = vpack.c.bf16 %v3024, %v3024
    %3031 = vrot.lane.b32.xlu0 %v3029, 32
    %v3032 = vpop.permute.xlu0 %3031
    %v3034 = vsel %vm2956, %v3032, 0
    %3036 = vmatprep.subr.bf16.mxu0 0
    %3037 = vmatpush1.bf16.msra.mxu0 0
    %3038 = vmatprep.subr.bf16.mxu0 0
    %3039 = vmatpush1.bf16.msra.mxu0 0
    %3040 = vmatprep.subr.bf16.mxu0 0
    %3041 = vmatpush1.bf16.msra.mxu0 0
    %3042 = vmatprep.subr.bf16.mxu0 0
    %3043 = vmatpush1.bf16.msra.mxu0 0
    %3044 = vmatprep.subr.bf16.mxu0 0
    %3045 = vmatpush1.bf16.msra.mxu0 0
    %3046 = vmatprep.subr.bf16.mxu0 0
    %3047 = vmatpush1.bf16.msra.mxu0 0
    %3048 = vmatprep.subr.bf16.mxu0 0
    %3049 = vmatpush1.bf16.msra.mxu0 %v84
    %3050 = vmatprep.subr.bf16.mxu0 0
    %3051 = vmatpush1.bf16.msra.mxu0 %v83
    %3052 = vmatprep.subr.bf16.mxu0 0
    %3053 = vmatpush2.bf16.msra.mxu0 0
    %3054 = vmatprep.subr.bf16.mxu0 0
    %3055 = vmatpush2.bf16.msra.mxu0 0
    %3056 = vmatprep.subr.bf16.mxu0 0
    %3057 = vmatpush2.bf16.msra.mxu0 0
    %3058 = vmatprep.subr.bf16.mxu0 0
    %3059 = vmatpush2.bf16.msra.mxu0 0
    %3060 = vmatprep.subr.bf16.mxu0 0
    %3061 = vmatpush2.bf16.msra.mxu0 0
    %3062 = vmatprep.subr.bf16.mxu0 0
    %3063 = vmatpush2.bf16.msra.mxu0 0
    %3064 = vmatprep.subr.bf16.mxu0 0
    %3065 = vmatpush2.bf16.msra.mxu0 0
    %3066 = vmatprep.subr.bf16.mxu0 0
    %3067 = vmatpush2.bf16.msra.mxu0 0
    %3068 = vmatprep.mubr.bf16.mxu0 0
    %3069 = vmatmul.mubr.bf16.gmra.mxu0 %v3034
    %v3070 = vpop.f32.mrf.mxu0
    %v3071 = vadd.f32 0.0, %v3070
    %v3072 = vpop.f32.mrf.mxu0
    %v3073 = vpop.f32.mrf.mxu0
    %v3074 = vpop.f32.mrf.mxu0
    %3075 = vdwg.mxu0
    %v3076 = vadd.f32 %v3028, %v3071
    %v3077 = vxor.u32 %v3076, 2147483648
    %v3078 = vmul.f32 %v3077, 1.442695
    %v3079 = vpow.pop %v3078
    %v3080 = vadd.f32 %v3079, 1.0
    %v3081 = vrcp.pop %v3080
    %v3082 = vmul.f32 1.0, %v3081
    %v3083 = vtanh.pop %v3076
    %v3084 = vmul.f32 %v3082, %v3018
    %3086 = vrot.lane.b32.xlu0 %v3083, 64
    %v3087 = vpop.permute.xlu0 %3086
    %v3089 = vmul.f32 %v3082, %v3087
    %3091 = vrot.lane.b32.xlu0 %v3089, 32
    %v3092 = vpop.permute.xlu0 %3091
    %v3094 = vadd.f32 %v3084, %v3092
    %v3095 = vtanh.pop %v3094
    %3097 = vrot.lane.b32.xlu0 %v3095, 64
    %v3098 = vpop.permute.xlu0 %3097
    %v3100 = vmul.f32 %v3082, %v3098
    %v3101 = vrot.slane %v2945, 2
    %v3103 = vrot.slane %v2948, 1
    %v3105 = vsel %vm2954, %v3101, %v3103
    %v3106 = vpack.c.bf16 %v3100, %v3100
    %3108 = vrot.lane.b32.xlu0 %v3106, 32
    %v3109 = vpop.permute.xlu0 %3108
    %v3111 = vsel %vm2956, %v3109, 0
    %3113 = vmatprep.subr.bf16.mxu0 0
    %3114 = vmatpush1.bf16.msra.mxu0 0
    %3115 = vmatprep.subr.bf16.mxu0 0
    %3116 = vmatpush1.bf16.msra.mxu0 0
    %3117 = vmatprep.subr.bf16.mxu0 0
    %3118 = vmatpush1.bf16.msra.mxu0 0
    %3119 = vmatprep.subr.bf16.mxu0 0
    %3120 = vmatpush1.bf16.msra.mxu0 0
    %3121 = vmatprep.subr.bf16.mxu0 0
    %3122 = vmatpush1.bf16.msra.mxu0 0
    %3123 = vmatprep.subr.bf16.mxu0 0
    %3124 = vmatpush1.bf16.msra.mxu0 0
    %3125 = vmatprep.subr.bf16.mxu0 0
    %3126 = vmatpush1.bf16.msra.mxu0 %v84
    %3127 = vmatprep.subr.bf16.mxu0 0
    %3128 = vmatpush1.bf16.msra.mxu0 %v83
    %3129 = vmatprep.subr.bf16.mxu0 0
    %3130 = vmatpush2.bf16.msra.mxu0 0
    %3131 = vmatprep.subr.bf16.mxu0 0
    %3132 = vmatpush2.bf16.msra.mxu0 0
    %3133 = vmatprep.subr.bf16.mxu0 0
    %3134 = vmatpush2.bf16.msra.mxu0 0
    %3135 = vmatprep.subr.bf16.mxu0 0
    %3136 = vmatpush2.bf16.msra.mxu0 0
    %3137 = vmatprep.subr.bf16.mxu0 0
    %3138 = vmatpush2.bf16.msra.mxu0 0
    %3139 = vmatprep.subr.bf16.mxu0 0
    %3140 = vmatpush2.bf16.msra.mxu0 0
    %3141 = vmatprep.subr.bf16.mxu0 0
    %3142 = vmatpush2.bf16.msra.mxu0 0
    %3143 = vmatprep.subr.bf16.mxu0 0
    %3144 = vmatpush2.bf16.msra.mxu0 0
    %3145 = vmatprep.mubr.bf16.mxu0 0
    %3146 = vmatmul.mubr.bf16.gmra.mxu0 %v3111
    %v3147 = vpop.f32.mrf.mxu0
    %v3148 = vadd.f32 0.0, %v3147
    %v3149 = vpop.f32.mrf.mxu0
    %v3150 = vpop.f32.mrf.mxu0
    %v3151 = vpop.f32.mrf.mxu0
    %3152 = vdwg.mxu0
    %v3153 = vadd.f32 %v3105, %v3148
    %v3154 = vxor.u32 %v3153, 2147483648
    %v3155 = vmul.f32 %v3154, 1.442695
    %v3156 = vpow.pop %v3155
    %v3157 = vadd.f32 %v3156, 1.0
    %v3158 = vrcp.pop %v3157
    %v3159 = vmul.f32 1.0, %v3158
    %v3160 = vtanh.pop %v3153
    %v3161 = vmul.f32 %v3159, %v3094
    %3163 = vrot.lane.b32.xlu0 %v3160, 64
    %v3164 = vpop.permute.xlu0 %3163
    %v3166 = vmul.f32 %v3159, %v3164
    %3168 = vrot.lane.b32.xlu0 %v3166, 32
    %v3169 = vpop.permute.xlu0 %3168
    %v3171 = vadd.f32 %v3161, %v3169
    %v3172 = vtanh.pop %v3171
    %3174 = vrot.lane.b32.xlu0 %v3172, 64
    %v3175 = vpop.permute.xlu0 %3174
    %v3177 = vmul.f32 %v3159, %v3175
    %v3178 = vrot.slane %v2945, 3
    %v3180 = vrot.slane %v2948, 2
    %v3182 = vsel %vm2954, %v3178, %v3180
    %v3183 = vpack.c.bf16 %v3177, %v3177
    %3185 = vrot.lane.b32.xlu0 %v3183, 32
    %v3186 = vpop.permute.xlu0 %3185
    %v3188 = vsel %vm2956, %v3186, 0
    %3190 = vmatprep.subr.bf16.mxu0 0
    %3191 = vmatpush1.bf16.msra.mxu0 0
    %3192 = vmatprep.subr.bf16.mxu0 0
    %3193 = vmatpush1.bf16.msra.mxu0 0
    %3194 = vmatprep.subr.bf16.mxu0 0
    %3195 = vmatpush1.bf16.msra.mxu0 0
    %3196 = vmatprep.subr.bf16.mxu0 0
    %3197 = vmatpush1.bf16.msra.mxu0 0
    %3198 = vmatprep.subr.bf16.mxu0 0
    %3199 = vmatpush1.bf16.msra.mxu0 0
    %3200 = vmatprep.subr.bf16.mxu0 0
    %3201 = vmatpush1.bf16.msra.mxu0 0
    %3202 = vmatprep.subr.bf16.mxu0 0
    %3203 = vmatpush1.bf16.msra.mxu0 %v84
    %3204 = vmatprep.subr.bf16.mxu0 0
    %3205 = vmatpush1.bf16.msra.mxu0 %v83
    %3206 = vmatprep.subr.bf16.mxu0 0
    %3207 = vmatpush2.bf16.msra.mxu0 0
    %3208 = vmatprep.subr.bf16.mxu0 0
    %3209 = vmatpush2.bf16.msra.mxu0 0
    %3210 = vmatprep.subr.bf16.mxu0 0
    %3211 = vmatpush2.bf16.msra.mxu0 0
    %3212 = vmatprep.subr.bf16.mxu0 0
    %3213 = vmatpush2.bf16.msra.mxu0 0
    %3214 = vmatprep.subr.bf16.mxu0 0
    %3215 = vmatpush2.bf16.msra.mxu0 0
    %3216 = vmatprep.subr.bf16.mxu0 0
    %3217 = vmatpush2.bf16.msra.mxu0 0
    %3218 = vmatprep.subr.bf16.mxu0 0
    %3219 = vmatpush2.bf16.msra.mxu0 0
    %3220 = vmatprep.subr.bf16.mxu0 0
    %3221 = vmatpush2.bf16.msra.mxu0 0
    %3222 = vmatprep.mubr.bf16.mxu0 0
    %3223 = vmatmul.mubr.bf16.gmra.mxu0 %v3188
    %v3224 = vpop.f32.mrf.mxu0
    %v3225 = vadd.f32 0.0, %v3224
    %v3226 = vpop.f32.mrf.mxu0
    %v3227 = vpop.f32.mrf.mxu0
    %v3228 = vpop.f32.mrf.mxu0
    %3229 = vdwg.mxu0
    %v3230 = vadd.f32 %v3182, %v3225
    %v3231 = vxor.u32 %v3230, 2147483648
    %v3232 = vmul.f32 %v3231, 1.442695
    %v3233 = vpow.pop %v3232
    %v3234 = vadd.f32 %v3233, 1.0
    %v3235 = vrcp.pop %v3234
    %v3236 = vmul.f32 1.0, %v3235
    %v3237 = vtanh.pop %v3230
    %v3238 = vmul.f32 %v3236, %v3171
    %3240 = vrot.lane.b32.xlu0 %v3237, 64
    %v3241 = vpop.permute.xlu0 %3240
    %v3243 = vmul.f32 %v3236, %v3241
    %3245 = vrot.lane.b32.xlu0 %v3243, 32
    %v3246 = vpop.permute.xlu0 %3245
    %v3248 = vadd.f32 %v3238, %v3246
    %v3249 = vtanh.pop %v3248
    %3251 = vrot.lane.b32.xlu0 %v3249, 64
    %v3252 = vpop.permute.xlu0 %3251
    %v3254 = vmul.f32 %v3236, %v3252
    %v3255 = vrot.slane %v2945, 4
    %v3257 = vrot.slane %v2948, 3
    %v3259 = vsel %vm2954, %v3255, %v3257
    %v3260 = vpack.c.bf16 %v3254, %v3254
    %3262 = vrot.lane.b32.xlu0 %v3260, 32
    %v3263 = vpop.permute.xlu0 %3262
    %v3265 = vsel %vm2956, %v3263, 0
    %3267 = vmatprep.subr.bf16.mxu0 0
    %3268 = vmatpush1.bf16.msra.mxu0 0
    %3269 = vmatprep.subr.bf16.mxu0 0
    %3270 = vmatpush1.bf16.msra.mxu0 0
    %3271 = vmatprep.subr.bf16.mxu0 0
    %3272 = vmatpush1.bf16.msra.mxu0 0
    %3273 = vmatprep.subr.bf16.mxu0 0
    %3274 = vmatpush1.bf16.msra.mxu0 0
    %3275 = vmatprep.subr.bf16.mxu0 0
    %3276 = vmatpush1.bf16.msra.mxu0 0
    %3277 = vmatprep.subr.bf16.mxu0 0
    %3278 = vmatpush1.bf16.msra.mxu0 0
    %3279 = vmatprep.subr.bf16.mxu0 0
    %3280 = vmatpush1.bf16.msra.mxu0 %v84
    %3281 = vmatprep.subr.bf16.mxu0 0
    %3282 = vmatpush1.bf16.msra.mxu0 %v83
    %3283 = vmatprep.subr.bf16.mxu0 0
    %3284 = vmatpush2.bf16.msra.mxu0 0
    %3285 = vmatprep.subr.bf16.mxu0 0
    %3286 = vmatpush2.bf16.msra.mxu0 0
    %3287 = vmatprep.subr.bf16.mxu0 0
    %3288 = vmatpush2.bf16.msra.mxu0 0
    %3289 = vmatprep.subr.bf16.mxu0 0
    %3290 = vmatpush2.bf16.msra.mxu0 0
    %3291 = vmatprep.subr.bf16.mxu0 0
    %3292 = vmatpush2.bf16.msra.mxu0 0
    %3293 = vmatprep.subr.bf16.mxu0 0
    %3294 = vmatpush2.bf16.msra.mxu0 0
    %3295 = vmatprep.subr.bf16.mxu0 0
    %3296 = vmatpush2.bf16.msra.mxu0 0
    %3297 = vmatprep.subr.bf16.mxu0 0
    %3298 = vmatpush2.bf16.msra.mxu0 0
    %3299 = vmatprep.mubr.bf16.mxu0 0
    %3300 = vmatmul.mubr.bf16.gmra.mxu0 %v3265
    %v3301 = vpop.f32.mrf.mxu0
    %v3302 = vadd.f32 0.0, %v3301
    %v3303 = vpop.f32.mrf.mxu0
    %v3304 = vpop.f32.mrf.mxu0
    %v3305 = vpop.f32.mrf.mxu0
    %3306 = vdwg.mxu0
    %v3307 = vadd.f32 %v3259, %v3302
    %v3308 = vxor.u32 %v3307, 2147483648
    %v3309 = vmul.f32 %v3308, 1.442695
    %v3310 = vpow.pop %v3309
    %v3311 = vadd.f32 %v3310, 1.0
    %v3312 = vrcp.pop %v3311
    %v3313 = vmul.f32 1.0, %v3312
    %v3314 = vtanh.pop %v3307
    %v3315 = vmul.f32 %v3313, %v3248
    %3317 = vrot.lane.b32.xlu0 %v3314, 64
    %v3318 = vpop.permute.xlu0 %3317
    %v3320 = vmul.f32 %v3313, %v3318
    %3322 = vrot.lane.b32.xlu0 %v3320, 32
    %v3323 = vpop.permute.xlu0 %3322
    %v3325 = vadd.f32 %v3315, %v3323
    %v3326 = vtanh.pop %v3325
    %3328 = vrot.lane.b32.xlu0 %v3326, 64
    %v3329 = vpop.permute.xlu0 %3328
    %v3331 = vmul.f32 %v3313, %v3329
    %v3332 = vrot.slane %v2945, 5
    %v3334 = vrot.slane %v2948, 4
    %v3336 = vsel %vm2954, %v3332, %v3334
    %v3337 = vpack.c.bf16 %v3331, %v3331
    %3339 = vrot.lane.b32.xlu0 %v3337, 32
    %v3340 = vpop.permute.xlu0 %3339
    %v3342 = vsel %vm2956, %v3340, 0
    %3344 = vmatprep.subr.bf16.mxu0 0
    %3345 = vmatpush1.bf16.msra.mxu0 0
    %3346 = vmatprep.subr.bf16.mxu0 0
    %3347 = vmatpush1.bf16.msra.mxu0 0
    %3348 = vmatprep.subr.bf16.mxu0 0
    %3349 = vmatpush1.bf16.msra.mxu0 0
    %3350 = vmatprep.subr.bf16.mxu0 0
    %3351 = vmatpush1.bf16.msra.mxu0 0
    %3352 = vmatprep.subr.bf16.mxu0 0
    %3353 = vmatpush1.bf16.msra.mxu0 0
    %3354 = vmatprep.subr.bf16.mxu0 0
    %3355 = vmatpush1.bf16.msra.mxu0 0
    %3356 = vmatprep.subr.bf16.mxu0 0
    %3357 = vmatpush1.bf16.msra.mxu0 %v84
    %3358 = vmatprep.subr.bf16.mxu0 0
    %3359 = vmatpush1.bf16.msra.mxu0 %v83
    %3360 = vmatprep.subr.bf16.mxu0 0
    %3361 = vmatpush2.bf16.msra.mxu0 0
    %3362 = vmatprep.subr.bf16.mxu0 0
    %3363 = vmatpush2.bf16.msra.mxu0 0
    %3364 = vmatprep.subr.bf16.mxu0 0
    %3365 = vmatpush2.bf16.msra.mxu0 0
    %3366 = vmatprep.subr.bf16.mxu0 0
    %3367 = vmatpush2.bf16.msra.mxu0 0
    %3368 = vmatprep.subr.bf16.mxu0 0
    %3369 = vmatpush2.bf16.msra.mxu0 0
    %3370 = vmatprep.subr.bf16.mxu0 0
    %3371 = vmatpush2.bf16.msra.mxu0 0
    %3372 = vmatprep.subr.bf16.mxu0 0
    %3373 = vmatpush2.bf16.msra.mxu0 0
    %3374 = vmatprep.subr.bf16.mxu0 0
    %3375 = vmatpush2.bf16.msra.mxu0 0
    %3376 = vmatprep.mubr.bf16.mxu0 0
    %3377 = vmatmul.mubr.bf16.gmra.mxu0 %v3342
    %v3378 = vpop.f32.mrf.mxu0
    %v3379 = vadd.f32 0.0, %v3378
    %v3380 = vpop.f32.mrf.mxu0
    %v3381 = vpop.f32.mrf.mxu0
    %v3382 = vpop.f32.mrf.mxu0
    %3383 = vdwg.mxu0
    %v3384 = vadd.f32 %v3336, %v3379
    %v3385 = vxor.u32 %v3384, 2147483648
    %v3386 = vmul.f32 %v3385, 1.442695
    %v3387 = vpow.pop %v3386
    %v3388 = vadd.f32 %v3387, 1.0
    %v3389 = vrcp.pop %v3388
    %v3390 = vmul.f32 1.0, %v3389
    %v3391 = vtanh.pop %v3384
    %v3392 = vmul.f32 %v3390, %v3325
    %3394 = vrot.lane.b32.xlu0 %v3391, 64
    %v3395 = vpop.permute.xlu0 %3394
    %v3397 = vmul.f32 %v3390, %v3395
    %3399 = vrot.lane.b32.xlu0 %v3397, 32
    %v3400 = vpop.permute.xlu0 %3399
    %v3402 = vadd.f32 %v3392, %v3400
    %v3403 = vtanh.pop %v3402
    %3405 = vrot.lane.b32.xlu0 %v3403, 64
    %v3406 = vpop.permute.xlu0 %3405
    %v3408 = vmul.f32 %v3390, %v3406
    %v3409 = vrot.slane %v2945, 6
    %v3411 = vrot.slane %v2948, 5
    %v3413 = vsel %vm2954, %v3409, %v3411
    %v3414 = vpack.c.bf16 %v3408, %v3408
    %3416 = vrot.lane.b32.xlu0 %v3414, 32
    %v3417 = vpop.permute.xlu0 %3416
    %v3419 = vsel %vm2956, %v3417, 0
    %3421 = vmatprep.subr.bf16.mxu0 0
    %3422 = vmatpush1.bf16.msra.mxu0 0
    %3423 = vmatprep.subr.bf16.mxu0 0
    %3424 = vmatpush1.bf16.msra.mxu0 0
    %3425 = vmatprep.subr.bf16.mxu0 0
    %3426 = vmatpush1.bf16.msra.mxu0 0
    %3427 = vmatprep.subr.bf16.mxu0 0
    %3428 = vmatpush1.bf16.msra.mxu0 0
    %3429 = vmatprep.subr.bf16.mxu0 0
    %3430 = vmatpush1.bf16.msra.mxu0 0
    %3431 = vmatprep.subr.bf16.mxu0 0
    %3432 = vmatpush1.bf16.msra.mxu0 0
    %3433 = vmatprep.subr.bf16.mxu0 0
    %3434 = vmatpush1.bf16.msra.mxu0 %v84
    %3435 = vmatprep.subr.bf16.mxu0 0
    %3436 = vmatpush1.bf16.msra.mxu0 %v83
    %3437 = vmatprep.subr.bf16.mxu0 0
    %3438 = vmatpush2.bf16.msra.mxu0 0
    %3439 = vmatprep.subr.bf16.mxu0 0
    %3440 = vmatpush2.bf16.msra.mxu0 0
    %3441 = vmatprep.subr.bf16.mxu0 0
    %3442 = vmatpush2.bf16.msra.mxu0 0
    %3443 = vmatprep.subr.bf16.mxu0 0
    %3444 = vmatpush2.bf16.msra.mxu0 0
    %3445 = vmatprep.subr.bf16.mxu0 0
    %3446 = vmatpush2.bf16.msra.mxu0 0
    %3447 = vmatprep.subr.bf16.mxu0 0
    %3448 = vmatpush2.bf16.msra.mxu0 0
    %3449 = vmatprep.subr.bf16.mxu0 0
    %3450 = vmatpush2.bf16.msra.mxu0 0
    %3451 = vmatprep.subr.bf16.mxu0 0
    %3452 = vmatpush2.bf16.msra.mxu0 0
    %3453 = vmatprep.mubr.bf16.mxu0 0
    %3454 = vmatmul.mubr.bf16.gmra.mxu0 %v3419
    %v3455 = vpop.f32.mrf.mxu0
    %v3456 = vadd.f32 0.0, %v3455
    %v3457 = vpop.f32.mrf.mxu0
    %v3458 = vpop.f32.mrf.mxu0
    %v3459 = vpop.f32.mrf.mxu0
    %3460 = vdwg.mxu0
    %v3461 = vadd.f32 %v3413, %v3456
    %v3462 = vxor.u32 %v3461, 2147483648
    %v3463 = vmul.f32 %v3462, 1.442695
    %v3464 = vpow.pop %v3463
    %v3465 = vadd.f32 %v3464, 1.0
    %v3466 = vrcp.pop %v3465
    %v3467 = vmul.f32 1.0, %v3466
    %v3468 = vtanh.pop %v3461
    %v3469 = vmul.f32 %v3467, %v3402
    %3471 = vrot.lane.b32.xlu0 %v3468, 64
    %v3472 = vpop.permute.xlu0 %3471
    %v3474 = vmul.f32 %v3467, %v3472
    %3476 = vrot.lane.b32.xlu0 %v3474, 32
    %v3477 = vpop.permute.xlu0 %3476
    %v3479 = vadd.f32 %v3469, %v3477
    %v3480 = vtanh.pop %v3479
    %3482 = vrot.lane.b32.xlu0 %v3480, 64
    %v3483 = vpop.permute.xlu0 %3482
    %v3485 = vmul.f32 %v3467, %v3483
    %v3486 = vrot.slane %v2945, 7
    %v3488 = vrot.slane %v2948, 6
    %v3490 = vsel %vm2954, %v3486, %v3488
    %v3491 = vpack.c.bf16 %v3485, %v3485
    %3493 = vrot.lane.b32.xlu0 %v3491, 32
    %v3494 = vpop.permute.xlu0 %3493
    %v3496 = vsel %vm2956, %v3494, 0
    %3498 = vmatprep.subr.bf16.mxu0 0
    %3499 = vmatpush1.bf16.msra.mxu0 0
    %3500 = vmatprep.subr.bf16.mxu0 0
    %3501 = vmatpush1.bf16.msra.mxu0 0
    %3502 = vmatprep.subr.bf16.mxu0 0
    %3503 = vmatpush1.bf16.msra.mxu0 0
    %3504 = vmatprep.subr.bf16.mxu0 0
    %3505 = vmatpush1.bf16.msra.mxu0 0
    %3506 = vmatprep.subr.bf16.mxu0 0
    %3507 = vmatpush1.bf16.msra.mxu0 0
    %3508 = vmatprep.subr.bf16.mxu0 0
    %3509 = vmatpush1.bf16.msra.mxu0 0
    %3510 = vmatprep.subr.bf16.mxu0 0
    %3511 = vmatpush1.bf16.msra.mxu0 %v84
    %3512 = vmatprep.subr.bf16.mxu0 0
    %3513 = vmatpush1.bf16.msra.mxu0 %v83
    %3514 = vmatprep.subr.bf16.mxu0 0
    %3515 = vmatpush2.bf16.msra.mxu0 0
    %3516 = vmatprep.subr.bf16.mxu0 0
    %3517 = vmatpush2.bf16.msra.mxu0 0
    %3518 = vmatprep.subr.bf16.mxu0 0
    %3519 = vmatpush2.bf16.msra.mxu0 0
    %3520 = vmatprep.subr.bf16.mxu0 0
    %3521 = vmatpush2.bf16.msra.mxu0 0
    %3522 = vmatprep.subr.bf16.mxu0 0
    %3523 = vmatpush2.bf16.msra.mxu0 0
    %3524 = vmatprep.subr.bf16.mxu0 0
    %3525 = vmatpush2.bf16.msra.mxu0 0
    %3526 = vmatprep.subr.bf16.mxu0 0
    %3527 = vmatpush2.bf16.msra.mxu0 0
    %3528 = vmatprep.subr.bf16.mxu0 0
    %3529 = vmatpush2.bf16.msra.mxu0 0
    %3530 = vmatprep.mubr.bf16.mxu0 0
    %3531 = vmatmul.mubr.bf16.gmra.mxu0 %v3496
    %v3532 = vpop.f32.mrf.mxu0
    %v3533 = vadd.f32 0.0, %v3532
    %v3534 = vpop.f32.mrf.mxu0
    %v3535 = vpop.f32.mrf.mxu0
    %v3536 = vpop.f32.mrf.mxu0
    %3537 = vdwg.mxu0
    %v3538 = vadd.f32 %v3490, %v3533
    %v3539 = vxor.u32 %v3538, 2147483648
    %v3540 = vmul.f32 %v3539, 1.442695
    %v3541 = vpow.pop %v3540
    %v3542 = vadd.f32 %v3541, 1.0
    %v3543 = vrcp.pop %v3542
    %v3544 = vmul.f32 1.0, %v3543
    %v3545 = vtanh.pop %v3538
    %v3546 = vmul.f32 %v3544, %v3479
    %3548 = vrot.lane.b32.xlu0 %v3545, 64
    %v3549 = vpop.permute.xlu0 %3548
    %v3551 = vmul.f32 %v3544, %v3549
    %3553 = vrot.lane.b32.xlu0 %v3551, 32
    %v3554 = vpop.permute.xlu0 %3553
    %v3556 = vadd.f32 %v3546, %v3554
    %v3557 = vtanh.pop %v3556
    %3559 = vrot.lane.b32.xlu0 %v3557, 64
    %v3560 = vpop.permute.xlu0 %3559
    %v3562 = vmul.f32 %v3544, %v3560
    %v3564 = vrot.slane %v3100, 7
    %v3567 = vrot.slane %v3177, 6
    %v3570 = vrot.slane %v3254, 5
    %v3573 = vrot.slane %v3331, 4
    %v3576 = vrot.slane %v3408, 3
    %v3579 = vrot.slane %v3485, 2
    %v3582 = vrot.slane %v3562, 1
    %v3584 = vsel %vm2954, %v3024, %v3564
    %vm3585 = vcmask 1041408
    %v3586 = vsel %vm3585, %v3584, %v3567
    %vm3587 = vcmask 1042432
    %v3588 = vsel %vm3587, %v3586, %v3570
    %vm3589 = vcmask 1043456
    %v3590 = vsel %vm3589, %v3588, %v3573
    %vm3591 = vcmask 1044480
    %v3592 = vsel %vm3591, %v3590, %v3576
    %vm3593 = vcmask 1045504
    %v3594 = vsel %vm3593, %v3592, %v3579
    %vm3595 = vcmask 1046528
    %v3596 = vsel %vm3595, %v3594, %v3582
    %3598 = vrot.lane.b32.xlu0 %v3596, 32
    %v3599 = vpop.permute.xlu0 %3598
    %3601 = vst.msk [vmem:[#allocation7] sm:$0xff] %vm2956, %v3599
    %v3603 = vrot.slane %v3024, 1
    %v3605 = vrot.slane %v3177, 7
    %v3607 = vrot.slane %v3254, 6
    %v3609 = vrot.slane %v3331, 5
    %v3611 = vrot.slane %v3408, 4
    %v3613 = vrot.slane %v3485, 3
    %v3615 = vrot.slane %v3562, 2
    %v3617 = vsel %vm2954, %v3603, %v3100
    %v3618 = vsel %vm3585, %v3617, %v3605
    %v3619 = vsel %vm3587, %v3618, %v3607
    %v3620 = vsel %vm3589, %v3619, %v3609
    %v3621 = vsel %vm3591, %v3620, %v3611
    %v3622 = vsel %vm3593, %v3621, %v3613
    %v3623 = vsel %vm3595, %v3622, %v3615
    %3625 = vrot.lane.b32.xlu0 %v3623, 32
    %v3626 = vpop.permute.xlu0 %3625
    %s3628 = scalar_lea.vmem [#allocation7], 8
    %3629 = vst.msk [vmem:[%s3628] sm:$0xff] %vm2956, %v3626
    %v3631 = vrot.slane %v142, 5
    %v3633 = vsel %vm2954, %v142, %v3631
    %v3634 = vpack.c.bf16 %v3633, %v3633
    %3635 = vmatprep.subr.bf16.mxu0 0
    %3636 = vmatpush1.bf16.msra.mxu0 0
    %3637 = vmatprep.subr.bf16.mxu0 0
    %3638 = vmatpush1.bf16.msra.mxu0 0
    %3639 = vmatprep.subr.bf16.mxu0 0
    %3640 = vmatpush1.bf16.msra.mxu0 0
    %3641 = vmatprep.subr.bf16.mxu0 0
    %3642 = vmatpush1.bf16.msra.mxu0 0
    %3643 = vmatprep.subr.bf16.mxu0 0
    %3644 = vmatpush1.bf16.msra.mxu0 0
    %3645 = vmatprep.subr.bf16.mxu0 0
    %3646 = vmatpush1.bf16.msra.mxu0 0
    %3647 = vmatprep.subr.bf16.mxu0 0
    %3648 = vmatpush1.bf16.msra.mxu0 %v96
    %3649 = vmatprep.subr.bf16.mxu0 0
    %3650 = vmatpush1.bf16.msra.mxu0 %v95
    %3651 = vmatprep.subr.bf16.mxu0 0
    %3652 = vmatpush2.bf16.msra.mxu0 0
    %3653 = vmatprep.subr.bf16.mxu0 0
    %3654 = vmatpush2.bf16.msra.mxu0 0
    %3655 = vmatprep.subr.bf16.mxu0 0
    %3656 = vmatpush2.bf16.msra.mxu0 0
    %3657 = vmatprep.subr.bf16.mxu0 0
    %3658 = vmatpush2.bf16.msra.mxu0 0
    %3659 = vmatprep.subr.bf16.mxu0 0
    %3660 = vmatpush2.bf16.msra.mxu0 0
    %3661 = vmatprep.subr.bf16.mxu0 0
    %3662 = vmatpush2.bf16.msra.mxu0 0
    %3663 = vmatprep.subr.bf16.mxu0 0
    %3664 = vmatpush2.bf16.msra.mxu0 0
    %3665 = vmatprep.subr.bf16.mxu0 0
    %3666 = vmatpush2.bf16.msra.mxu0 0
    %3667 = vmatprep.mubr.bf16.mxu0 0
    %3668 = vmatmul.mubr.bf16.gmra.mxu0 %v2958
    %v3669 = vpop.f32.mrf.mxu0
    %v3670 = vadd.f32 0.0, %v3669
    %v3671 = vpop.f32.mrf.mxu0
    %v3672 = vpop.f32.mrf.mxu0
    %v3673 = vpop.f32.mrf.mxu0
    %3674 = vdwg.mxu0
    %v3676 = vsel %vm2956, %v3634, 0
    %3678 = vmatprep.subr.bf16.mxu0 0
    %3679 = vmatpush1.bf16.msra.mxu0 0
    %3680 = vmatprep.subr.bf16.mxu0 0
    %3681 = vmatpush1.bf16.msra.mxu0 0
    %3682 = vmatprep.subr.bf16.mxu0 0
    %3683 = vmatpush1.bf16.msra.mxu0 0
    %3684 = vmatprep.subr.bf16.mxu0 0
    %3685 = vmatpush1.bf16.msra.mxu0 0
    %3686 = vmatprep.subr.bf16.mxu0 0
    %3687 = vmatpush1.bf16.msra.mxu0 0
    %3688 = vmatprep.subr.bf16.mxu0 0
    %3689 = vmatpush1.bf16.msra.mxu0 0
    %3690 = vmatprep.subr.bf16.mxu0 0
    %3691 = vmatpush1.bf16.msra.mxu0 %v90
    %3692 = vmatprep.subr.bf16.mxu0 0
    %3693 = vmatpush1.bf16.msra.mxu0 %v89
    %3694 = vmatprep.subr.bf16.mxu0 0
    %3695 = vmatpush2.bf16.msra.mxu0 0
    %3696 = vmatprep.subr.bf16.mxu0 0
    %3697 = vmatpush2.bf16.msra.mxu0 0
    %3698 = vmatprep.subr.bf16.mxu0 0
    %3699 = vmatpush2.bf16.msra.mxu0 0
    %3700 = vmatprep.subr.bf16.mxu0 0
    %3701 = vmatpush2.bf16.msra.mxu0 0
    %3702 = vmatprep.subr.bf16.mxu0 0
    %3703 = vmatpush2.bf16.msra.mxu0 0
    %3704 = vmatprep.subr.bf16.mxu0 0
    %3705 = vmatpush2.bf16.msra.mxu0 0
    %3706 = vmatprep.subr.bf16.mxu0 0
    %3707 = vmatpush2.bf16.msra.mxu0 0
    %3708 = vmatprep.subr.bf16.mxu0 0
    %3709 = vmatpush2.bf16.msra.mxu0 0
    %3710 = vmatprep.mubr.bf16.mxu0 0
    %3711 = vmatmul.mubr.bf16.gmra.mxu0 %v3676
    %v3712 = vpop.f32.mrf.mxu0
    %v3713 = vadd.f32 %v3670, %v3712
    %v3714 = vpop.f32.mrf.mxu0
    %v3715 = vpop.f32.mrf.mxu0
    %v3716 = vpop.f32.mrf.mxu0
    %3717 = vdwg.mxu0
    %v3718 = vpack.c.bf16 %v3562, %v3562
    %3720 = vrot.lane.b32.xlu0 %v3718, 32
    %v3721 = vpop.permute.xlu0 %3720
    %v3723 = vsel %vm2956, %v3721, 0
    %3725 = vmatprep.subr.bf16.mxu0 0
    %3726 = vmatpush1.bf16.msra.mxu0 0
    %3727 = vmatprep.subr.bf16.mxu0 0
    %3728 = vmatpush1.bf16.msra.mxu0 0
    %3729 = vmatprep.subr.bf16.mxu0 0
    %3730 = vmatpush1.bf16.msra.mxu0 0
    %3731 = vmatprep.subr.bf16.mxu0 0
    %3732 = vmatpush1.bf16.msra.mxu0 0
    %3733 = vmatprep.subr.bf16.mxu0 0
    %3734 = vmatpush1.bf16.msra.mxu0 0
    %3735 = vmatprep.subr.bf16.mxu0 0
    %3736 = vmatpush1.bf16.msra.mxu0 0
    %3737 = vmatprep.subr.bf16.mxu0 0
    %3738 = vmatpush1.bf16.msra.mxu0 %v102
    %3739 = vmatprep.subr.bf16.mxu0 0
    %3740 = vmatpush1.bf16.msra.mxu0 %v101
    %3741 = vmatprep.subr.bf16.mxu0 0
    %3742 = vmatpush2.bf16.msra.mxu0 0
    %3743 = vmatprep.subr.bf16.mxu0 0
    %3744 = vmatpush2.bf16.msra.mxu0 0
    %3745 = vmatprep.subr.bf16.mxu0 0
    %3746 = vmatpush2.bf16.msra.mxu0 0
    %3747 = vmatprep.subr.bf16.mxu0 0
    %3748 = vmatpush2.bf16.msra.mxu0 0
    %3749 = vmatprep.subr.bf16.mxu0 0
    %3750 = vmatpush2.bf16.msra.mxu0 0
    %3751 = vmatprep.subr.bf16.mxu0 0
    %3752 = vmatpush2.bf16.msra.mxu0 0
    %3753 = vmatprep.subr.bf16.mxu0 0
    %3754 = vmatpush2.bf16.msra.mxu0 0
    %3755 = vmatprep.subr.bf16.mxu0 0
    %3756 = vmatpush2.bf16.msra.mxu0 0
    %3757 = vmatprep.mubr.bf16.mxu0 0
    %3758 = vmatmul.mubr.bf16.gmra.mxu0 %v3723
    %v3759 = vpop.f32.mrf.mxu0
    %v3760 = vadd.f32 0.0, %v3759
    %v3761 = vpop.f32.mrf.mxu0
    %v3762 = vpop.f32.mrf.mxu0
    %v3763 = vpop.f32.mrf.mxu0
    %3764 = vdwg.mxu0
    %v3765 = vadd.f32 %v3713, %v3760
    %v3766 = vadd.f32 %v3765, %v126
    %v3767 = vxor.u32 %v3766, 2147483648
    %v3768 = vmul.f32 %v3767, 1.442695
    %v3769 = vpow.pop %v3768
    %v3770 = vadd.f32 %v3769, 1.0
    %v3771 = vrcp.pop %v3770
    %v3772 = vmul.f32 1.0, %v3771
    %v3773 = vtanh.pop %v3766
    %v3774 = vmul.f32 %v3772, %v3556
    %3776 = vrot.lane.b32.xlu0 %v3773, 64
    %v3777 = vpop.permute.xlu0 %3776
    %v3779 = vmul.f32 %v3772, %v3777
    %3781 = vrot.lane.b32.xlu0 %v3779, 32
    %v3782 = vpop.permute.xlu0 %3781
    %v3784 = vadd.f32 %v3774, %v3782
    %v3785 = vtanh.pop %v3784
    %3787 = vrot.lane.b32.xlu0 %v3785, 64
    %v3788 = vpop.permute.xlu0 %3787
    %v3790 = vmul.f32 %v3772, %v3788
    %v3791 = vpack.c.bf16 %v3790, %v3790
    %3793 = vrot.lane.b32.xlu0 %v3791, 32
    %v3794 = vpop.permute.xlu0 %3793
    %v3796 = vsel %vm2956, %v3794, 0
    %3798 = vmatprep.subr.bf16.mxu0 0
    %3799 = vmatpush1.bf16.msra.mxu0 0
    %3800 = vmatprep.subr.bf16.mxu0 0
    %3801 = vmatpush1.bf16.msra.mxu0 0
    %3802 = vmatprep.subr.bf16.mxu0 0
    %3803 = vmatpush1.bf16.msra.mxu0 0
    %3804 = vmatprep.subr.bf16.mxu0 0
    %3805 = vmatpush1.bf16.msra.mxu0 0
    %3806 = vmatprep.subr.bf16.mxu0 0
    %3807 = vmatpush1.bf16.msra.mxu0 0
    %3808 = vmatprep.subr.bf16.mxu0 0
    %3809 = vmatpush1.bf16.msra.mxu0 0
    %3810 = vmatprep.subr.bf16.mxu0 0
    %3811 = vmatpush1.bf16.msra.mxu0 %v108
    %3812 = vmatprep.subr.bf16.mxu0 0
    %3813 = vmatpush1.bf16.msra.mxu0 %v107
    %3814 = vmatprep.subr.bf16.mxu0 0
    %3815 = vmatpush2.bf16.msra.mxu0 0
    %3816 = vmatprep.subr.bf16.mxu0 0
    %3817 = vmatpush2.bf16.msra.mxu0 0
    %3818 = vmatprep.subr.bf16.mxu0 0
    %3819 = vmatpush2.bf16.msra.mxu0 0
    %3820 = vmatprep.subr.bf16.mxu0 0
    %3821 = vmatpush2.bf16.msra.mxu0 0
    %3822 = vmatprep.subr.bf16.mxu0 0
    %3823 = vmatpush2.bf16.msra.mxu0 0
    %3824 = vmatprep.subr.bf16.mxu0 0
    %3825 = vmatpush2.bf16.msra.mxu0 0
    %3826 = vmatprep.subr.bf16.mxu0 0
    %3827 = vmatpush2.bf16.msra.mxu0 0
    %3828 = vmatprep.subr.bf16.mxu0 0
    %3829 = vmatpush2.bf16.msra.mxu0 0
    %3830 = vmatprep.mubr.bf16.mxu0 0
    %3831 = vmatmul.mubr.bf16.gmra.mxu0 %v3796
    %v3832 = vpop.f32.mrf.mxu0
    %v3833 = vadd.f32 %v133, %v3832
    %v3834 = vpop.f32.mrf.mxu0
    %v3835 = vpop.f32.mrf.mxu0
    %v3836 = vpop.f32.mrf.mxu0
    %3837 = vdwg.mxu0
    %3838 = vrot.lane.b32.xlu0 %v3024, 32
    %v3839 = vpop.permute.xlu0 %3838
    %v3841 = vmul.f32 %v3833, %v3839
    %vm3842 = vcmask 254976
    %v3843 = vsel %vm3842, %v3841, 0.0
    %3844 = vadd.xlane.f32.xlu0 %v3843
    %v3845 = vpop.xlane.xlu0 %3844
    %3846 = vrot.lane.b32.xlu0 %v3100, 32
    %v3847 = vpop.permute.xlu0 %3846
    %v3849 = vmul.f32 %v3833, %v3847
    %v3850 = vsel %vm3842, %v3849, 0.0
    %3851 = vadd.xlane.f32.xlu0 %v3850
    %v3852 = vpop.xlane.xlu0 %3851
    %3853 = vrot.lane.b32.xlu0 %v3177, 32
    %v3854 = vpop.permute.xlu0 %3853
    %v3856 = vmul.f32 %v3833, %v3854
    %v3857 = vsel %vm3842, %v3856, 0.0
    %3858 = vadd.xlane.f32.xlu0 %v3857
    %v3859 = vpop.xlane.xlu0 %3858
    %3860 = vrot.lane.b32.xlu0 %v3254, 32
    %v3861 = vpop.permute.xlu0 %3860
    %v3863 = vmul.f32 %v3833, %v3861
    %v3864 = vsel %vm3842, %v3863, 0.0
    %3865 = vadd.xlane.f32.xlu0 %v3864
    %v3866 = vpop.xlane.xlu0 %3865
    %3867 = vrot.lane.b32.xlu0 %v3331, 32
    %v3868 = vpop.permute.xlu0 %3867
    %v3870 = vmul.f32 %v3833, %v3868
    %v3871 = vsel %vm3842, %v3870, 0.0
    %3872 = vadd.xlane.f32.xlu0 %v3871
    %v3873 = vpop.xlane.xlu0 %3872
    %3874 = vrot.lane.b32.xlu0 %v3408, 32
    %v3875 = vpop.permute.xlu0 %3874
    %v3877 = vmul.f32 %v3833, %v3875
    %v3878 = vsel %vm3842, %v3877, 0.0
    %3879 = vadd.xlane.f32.xlu0 %v3878
    %v3880 = vpop.xlane.xlu0 %3879
    %3881 = vrot.lane.b32.xlu0 %v3485, 32
    %v3882 = vpop.permute.xlu0 %3881
    %v3884 = vmul.f32 %v3833, %v3882
    %v3885 = vsel %vm3842, %v3884, 0.0
    %3886 = vadd.xlane.f32.xlu0 %v3885
    %v3887 = vpop.xlane.xlu0 %3886
    %3888 = vrot.lane.b32.xlu0 %v3562, 32
    %v3889 = vpop.permute.xlu0 %3888
    %v3891 = vmul.f32 %v3833, %v3889
    %v3892 = vsel %vm3842, %v3891, 0.0
    %3893 = vadd.xlane.f32.xlu0 %v3892
    %v3894 = vpop.xlane.xlu0 %3893
    %vm3895 = vcmask 7168
    %v3896 = vsel %vm3895, %v3845, %v3852
    %vm3897 = vcmask 15360
    %v3898 = vsel %vm3897, %v3896, %v3859
    %vm3899 = vcmask 23552
    %v3900 = vsel %vm3899, %v3898, %v3866
    %vm3901 = vcmask 31744
    %v3902 = vsel %vm3901, %v3900, %v3873
    %vm3903 = vcmask 39936
    %v3904 = vsel %vm3903, %v3902, %v3880
    %vm3905 = vcmask 48128
    %v3906 = vsel %vm3905, %v3904, %v3887
    %vm3907 = vcmask 56320
    %v3908 = vsel %vm3907, %v3906, %v3894
    %vm3909 = vcmask 58368
    %v3910 = vsel %vm3909, %v3908, -inf
    %3911 = vmax.xlane.f32.xlu0 %v3910
    %v3912 = vpop.xlane.xlu0 %3911
    %v3913 = vsub.f32 %v3908, %v3912
    %v3914 = vmul.f32 %v3913, 1.442695
    %v3915 = vpow.pop %v3914
    %v3916 = vsel %vm3909, %v3915, 0.0
    %3917 = vadd.xlane.f32.xlu0 %v3916
    %v3918 = vpop.xlane.xlu0 %3917
    %v3919 = vrcp.pop %v3918
    %v3920 = vmul.f32 %v3915, %v3919
    %3922 = vset.pattern.permute.xlu0 0
    %3923 = vperm.xlu0 %3922, %v3920
    %v3924 = vpop.permute.xlu0 %3923
    %v3926 = vmul.f32 %v3924, %v3024
    %v3927 = vadd.f32 %v3926, 0.0
    %3928 = vset.pattern.permute.xlu0 1
    %3929 = vperm.xlu0 %3928, %v3920
    %v3930 = vpop.permute.xlu0 %3929
    %v3932 = vmul.f32 %v3930, %v3100
    %v3933 = vadd.f32 %v3927, %v3932
    %3934 = vset.pattern.permute.xlu0 2
    %3935 = vperm.xlu0 %3934, %v3920
    %v3936 = vpop.permute.xlu0 %3935
    %v3938 = vmul.f32 %v3936, %v3177
    %v3939 = vadd.f32 %v3933, %v3938
    %3940 = vset.pattern.permute.xlu0 3
    %3941 = vperm.xlu0 %3940, %v3920
    %v3942 = vpop.permute.xlu0 %3941
    %v3944 = vmul.f32 %v3942, %v3254
    %v3945 = vadd.f32 %v3939, %v3944
    %3946 = vset.pattern.permute.xlu0 4
    %3947 = vperm.xlu0 %3946, %v3920
    %v3948 = vpop.permute.xlu0 %3947
    %v3950 = vmul.f32 %v3948, %v3331
    %v3951 = vadd.f32 %v3945, %v3950
    %3952 = vset.pattern.permute.xlu0 5
    %3953 = vperm.xlu0 %3952, %v3920
    %v3954 = vpop.permute.xlu0 %3953
    %v3956 = vmul.f32 %v3954, %v3408
    %v3957 = vadd.f32 %v3951, %v3956
    %3958 = vset.pattern.permute.xlu0 6
    %3959 = vperm.xlu0 %3958, %v3920
    %v3960 = vpop.permute.xlu0 %3959
    %v3962 = vmul.f32 %v3960, %v3485
    %v3963 = vadd.f32 %v3957, %v3962
    %3964 = vset.pattern.permute.xlu0 7
    %3965 = vperm.xlu0 %3964, %v3920
    %v3966 = vpop.permute.xlu0 %3965
    %v3968 = vmul.f32 %v3966, %v3562
    %v3969 = vadd.f32 %v3963, %v3968
    %v3970 = vrot.slane %v142, 1
    %v3972 = vrot.slane %v142, 6
    %v3974 = vsel %vm2954, %v3970, %v3972
    %v3975 = vpack.c.bf16 %v3974, %v3974
    %v3976 = vpack.c.bf16 %v3969, %v3969
    %3978 = vrot.lane.b32.xlu0 %v3976, 32
    %v3979 = vpop.permute.xlu0 %3978
    %v3981 = vsel %vm2956, %v3979, 0
    %3983 = vmatprep.subr.bf16.mxu0 0
    %3984 = vmatpush1.bf16.msra.mxu0 0
    %3985 = vmatprep.subr.bf16.mxu0 0
    %3986 = vmatpush1.bf16.msra.mxu0 0
    %3987 = vmatprep.subr.bf16.mxu0 0
    %3988 = vmatpush1.bf16.msra.mxu0 0
    %3989 = vmatprep.subr.bf16.mxu0 0
    %3990 = vmatpush1.bf16.msra.mxu0 0
    %3991 = vmatprep.subr.bf16.mxu0 0
    %3992 = vmatpush1.bf16.msra.mxu0 0
    %3993 = vmatprep.subr.bf16.mxu0 0
    %3994 = vmatpush1.bf16.msra.mxu0 0
    %3995 = vmatprep.subr.bf16.mxu0 0
    %3996 = vmatpush1.bf16.msra.mxu0 %v96
    %3997 = vmatprep.subr.bf16.mxu0 0
    %3998 = vmatpush1.bf16.msra.mxu0 %v95
    %3999 = vmatprep.subr.bf16.mxu0 0
    %4000 = vmatpush2.bf16.msra.mxu0 0
    %4001 = vmatprep.subr.bf16.mxu0 0
    %4002 = vmatpush2.bf16.msra.mxu0 0
    %4003 = vmatprep.subr.bf16.mxu0 0
    %4004 = vmatpush2.bf16.msra.mxu0 0
    %4005 = vmatprep.subr.bf16.mxu0 0
    %4006 = vmatpush2.bf16.msra.mxu0 0
    %4007 = vmatprep.subr.bf16.mxu0 0
    %4008 = vmatpush2.bf16.msra.mxu0 0
    %4009 = vmatprep.subr.bf16.mxu0 0
    %4010 = vmatpush2.bf16.msra.mxu0 0
    %4011 = vmatprep.subr.bf16.mxu0 0
    %4012 = vmatpush2.bf16.msra.mxu0 0
    %4013 = vmatprep.subr.bf16.mxu0 0
    %4014 = vmatpush2.bf16.msra.mxu0 0
    %4015 = vmatprep.mubr.bf16.mxu0 0
    %4016 = vmatmul.mubr.bf16.gmra.mxu0 %v3981
    %v4017 = vpop.f32.mrf.mxu0
    %v4018 = vadd.f32 0.0, %v4017
    %v4019 = vpop.f32.mrf.mxu0
    %v4020 = vpop.f32.mrf.mxu0
    %v4021 = vpop.f32.mrf.mxu0
    %4022 = vdwg.mxu0
    %v4024 = vsel %vm2956, %v3975, 0
    %4026 = vmatprep.subr.bf16.mxu0 0
    %4027 = vmatpush1.bf16.msra.mxu0 0
    %4028 = vmatprep.subr.bf16.mxu0 0
    %4029 = vmatpush1.bf16.msra.mxu0 0
    %4030 = vmatprep.subr.bf16.mxu0 0
    %4031 = vmatpush1.bf16.msra.mxu0 0
    %4032 = vmatprep.subr.bf16.mxu0 0
    %4033 = vmatpush1.bf16.msra.mxu0 0
    %4034 = vmatprep.subr.bf16.mxu0 0
    %4035 = vmatpush1.bf16.msra.mxu0 0
    %4036 = vmatprep.subr.bf16.mxu0 0
    %4037 = vmatpush1.bf16.msra.mxu0 0
    %4038 = vmatprep.subr.bf16.mxu0 0
    %4039 = vmatpush1.bf16.msra.mxu0 %v90
    %4040 = vmatprep.subr.bf16.mxu0 0
    %4041 = vmatpush1.bf16.msra.mxu0 %v89
    %4042 = vmatprep.subr.bf16.mxu0 0
    %4043 = vmatpush2.bf16.msra.mxu0 0
    %4044 = vmatprep.subr.bf16.mxu0 0
    %4045 = vmatpush2.bf16.msra.mxu0 0
    %4046 = vmatprep.subr.bf16.mxu0 0
    %4047 = vmatpush2.bf16.msra.mxu0 0
    %4048 = vmatprep.subr.bf16.mxu0 0
    %4049 = vmatpush2.bf16.msra.mxu0 0
    %4050 = vmatprep.subr.bf16.mxu0 0
    %4051 = vmatpush2.bf16.msra.mxu0 0
    %4052 = vmatprep.subr.bf16.mxu0 0
    %4053 = vmatpush2.bf16.msra.mxu0 0
    %4054 = vmatprep.subr.bf16.mxu0 0
    %4055 = vmatpush2.bf16.msra.mxu0 0
    %4056 = vmatprep.subr.bf16.mxu0 0
    %4057 = vmatpush2.bf16.msra.mxu0 0
    %4058 = vmatprep.mubr.bf16.mxu0 0
    %4059 = vmatmul.mubr.bf16.gmra.mxu0 %v4024
    %v4060 = vpop.f32.mrf.mxu0
    %v4061 = vadd.f32 %v4018, %v4060
    %v4062 = vpop.f32.mrf.mxu0
    %v4063 = vpop.f32.mrf.mxu0
    %v4064 = vpop.f32.mrf.mxu0
    %4065 = vdwg.mxu0
    %4066 = vmatprep.subr.bf16.mxu0 0
    %4067 = vmatpush1.bf16.msra.mxu0 0
    %4068 = vmatprep.subr.bf16.mxu0 0
    %4069 = vmatpush1.bf16.msra.mxu0 0
    %4070 = vmatprep.subr.bf16.mxu0 0
    %4071 = vmatpush1.bf16.msra.mxu0 0
    %4072 = vmatprep.subr.bf16.mxu0 0
    %4073 = vmatpush1.bf16.msra.mxu0 0
    %4074 = vmatprep.subr.bf16.mxu0 0
    %4075 = vmatpush1.bf16.msra.mxu0 0
    %4076 = vmatprep.subr.bf16.mxu0 0
    %4077 = vmatpush1.bf16.msra.mxu0 0
    %4078 = vmatprep.subr.bf16.mxu0 0
    %4079 = vmatpush1.bf16.msra.mxu0 %v102
    %4080 = vmatprep.subr.bf16.mxu0 0
    %4081 = vmatpush1.bf16.msra.mxu0 %v101
    %4082 = vmatprep.subr.bf16.mxu0 0
    %4083 = vmatpush2.bf16.msra.mxu0 0
    %4084 = vmatprep.subr.bf16.mxu0 0
    %4085 = vmatpush2.bf16.msra.mxu0 0
    %4086 = vmatprep.subr.bf16.mxu0 0
    %4087 = vmatpush2.bf16.msra.mxu0 0
    %4088 = vmatprep.subr.bf16.mxu0 0
    %4089 = vmatpush2.bf16.msra.mxu0 0
    %4090 = vmatprep.subr.bf16.mxu0 0
    %4091 = vmatpush2.bf16.msra.mxu0 0
    %4092 = vmatprep.subr.bf16.mxu0 0
    %4093 = vmatpush2.bf16.msra.mxu0 0
    %4094 = vmatprep.subr.bf16.mxu0 0
    %4095 = vmatpush2.bf16.msra.mxu0 0
    %4096 = vmatprep.subr.bf16.mxu0 0
    %4097 = vmatpush2.bf16.msra.mxu0 0
    %4098 = vmatprep.mubr.bf16.mxu0 0
    %4099 = vmatmul.mubr.bf16.gmra.mxu0 %v3796
    %v4100 = vpop.f32.mrf.mxu0
    %v4101 = vadd.f32 0.0, %v4100
    %v4102 = vpop.f32.mrf.mxu0
    %v4103 = vpop.f32.mrf.mxu0
    %v4104 = vpop.f32.mrf.mxu0
    %4105 = vdwg.mxu0
    %v4106 = vadd.f32 %v4061, %v4101
    %v4107 = vadd.f32 %v4106, %v126
    %v4108 = vxor.u32 %v4107, 2147483648
    %v4109 = vmul.f32 %v4108, 1.442695
    %v4110 = vpow.pop %v4109
    %v4111 = vadd.f32 %v4110, 1.0
    %v4112 = vrcp.pop %v4111
    %v4113 = vmul.f32 1.0, %v4112
    %v4114 = vtanh.pop %v4107
    %v4115 = vmul.f32 %v4113, %v3784
    %4117 = vrot.lane.b32.xlu0 %v4114, 64
    %v4118 = vpop.permute.xlu0 %4117
    %v4120 = vmul.f32 %v4113, %v4118
    %4122 = vrot.lane.b32.xlu0 %v4120, 32
    %v4123 = vpop.permute.xlu0 %4122
    %v4125 = vadd.f32 %v4115, %v4123
    %v4126 = vtanh.pop %v4125
    %4128 = vrot.lane.b32.xlu0 %v4126, 64
    %v4129 = vpop.permute.xlu0 %4128
    %v4131 = vmul.f32 %v4113, %v4129
    %v4132 = vpack.c.bf16 %v4131, %v4131
    %4134 = vrot.lane.b32.xlu0 %v4132, 32
    %v4135 = vpop.permute.xlu0 %4134
    %v4137 = vsel %vm2956, %v4135, 0
    %4139 = vmatprep.subr.bf16.mxu0 0
    %4140 = vmatpush1.bf16.msra.mxu0 0
    %4141 = vmatprep.subr.bf16.mxu0 0
    %4142 = vmatpush1.bf16.msra.mxu0 0
    %4143 = vmatprep.subr.bf16.mxu0 0
    %4144 = vmatpush1.bf16.msra.mxu0 0
    %4145 = vmatprep.subr.bf16.mxu0 0
    %4146 = vmatpush1.bf16.msra.mxu0 0
    %4147 = vmatprep.subr.bf16.mxu0 0
    %4148 = vmatpush1.bf16.msra.mxu0 0
    %4149 = vmatprep.subr.bf16.mxu0 0
    %4150 = vmatpush1.bf16.msra.mxu0 0
    %4151 = vmatprep.subr.bf16.mxu0 0
    %4152 = vmatpush1.bf16.msra.mxu0 %v108
    %4153 = vmatprep.subr.bf16.mxu0 0
    %4154 = vmatpush1.bf16.msra.mxu0 %v107
    %4155 = vmatprep.subr.bf16.mxu0 0
    %4156 = vmatpush2.bf16.msra.mxu0 0
    %4157 = vmatprep.subr.bf16.mxu0 0
    %4158 = vmatpush2.bf16.msra.mxu0 0
    %4159 = vmatprep.subr.bf16.mxu0 0
    %4160 = vmatpush2.bf16.msra.mxu0 0
    %4161 = vmatprep.subr.bf16.mxu0 0
    %4162 = vmatpush2.bf16.msra.mxu0 0
    %4163 = vmatprep.subr.bf16.mxu0 0
    %4164 = vmatpush2.bf16.msra.mxu0 0
    %4165 = vmatprep.subr.bf16.mxu0 0
    %4166 = vmatpush2.bf16.msra.mxu0 0
    %4167 = vmatprep.subr.bf16.mxu0 0
    %4168 = vmatpush2.bf16.msra.mxu0 0
    %4169 = vmatprep.subr.bf16.mxu0 0
    %4170 = vmatpush2.bf16.msra.mxu0 0
    %4171 = vmatprep.mubr.bf16.mxu0 0
    %4172 = vmatmul.mubr.bf16.gmra.mxu0 %v4137
    %v4173 = vpop.f32.mrf.mxu0
    %v4174 = vadd.f32 %v133, %v4173
    %v4175 = vpop.f32.mrf.mxu0
    %v4176 = vpop.f32.mrf.mxu0
    %v4177 = vpop.f32.mrf.mxu0
    %4178 = vdwg.mxu0
    %v4179 = vmul.f32 %v4174, %v3839
    %v4180 = vsel %vm3842, %v4179, 0.0
    %4181 = vadd.xlane.f32.xlu0 %v4180
    %v4182 = vpop.xlane.xlu0 %4181
    %v4183 = vmul.f32 %v4174, %v3847
    %v4184 = vsel %vm3842, %v4183, 0.0
    %4185 = vadd.xlane.f32.xlu0 %v4184
    %v4186 = vpop.xlane.xlu0 %4185
    %v4187 = vmul.f32 %v4174, %v3854
    %v4188 = vsel %vm3842, %v4187, 0.0
    %4189 = vadd.xlane.f32.xlu0 %v4188
    %v4190 = vpop.xlane.xlu0 %4189
    %v4191 = vmul.f32 %v4174, %v3861
    %v4192 = vsel %vm3842, %v4191, 0.0
    %4193 = vadd.xlane.f32.xlu0 %v4192
    %v4194 = vpop.xlane.xlu0 %4193
    %v4195 = vmul.f32 %v4174, %v3868
    %v4196 = vsel %vm3842, %v4195, 0.0
    %4197 = vadd.xlane.f32.xlu0 %v4196
    %v4198 = vpop.xlane.xlu0 %4197
    %v4199 = vmul.f32 %v4174, %v3875
    %v4200 = vsel %vm3842, %v4199, 0.0
    %4201 = vadd.xlane.f32.xlu0 %v4200
    %v4202 = vpop.xlane.xlu0 %4201
    %v4203 = vmul.f32 %v4174, %v3882
    %v4204 = vsel %vm3842, %v4203, 0.0
    %4205 = vadd.xlane.f32.xlu0 %v4204
    %v4206 = vpop.xlane.xlu0 %4205
    %v4207 = vmul.f32 %v4174, %v3889
    %v4208 = vsel %vm3842, %v4207, 0.0
    %4209 = vadd.xlane.f32.xlu0 %v4208
    %v4210 = vpop.xlane.xlu0 %4209
    %v4211 = vsel %vm3895, %v4182, %v4186
    %v4212 = vsel %vm3897, %v4211, %v4190
    %v4213 = vsel %vm3899, %v4212, %v4194
    %v4214 = vsel %vm3901, %v4213, %v4198
    %v4215 = vsel %vm3903, %v4214, %v4202
    %v4216 = vsel %vm3905, %v4215, %v4206
    %v4217 = vsel %vm3907, %v4216, %v4210
    %v4218 = vsel %vm3909, %v4217, -inf
    %4219 = vmax.xlane.f32.xlu0 %v4218
    %v4220 = vpop.xlane.xlu0 %4219
    %v4221 = vsub.f32 %v4217, %v4220
    %v4222 = vmul.f32 %v4221, 1.442695
    %v4223 = vpow.pop %v4222
    %v4224 = vsel %vm3909, %v4223, 0.0
    %4225 = vadd.xlane.f32.xlu0 %v4224
    %v4226 = vpop.xlane.xlu0 %4225
    %v4227 = vrcp.pop %v4226
    %v4228 = vmul.f32 %v4223, %v4227
    %4230 = vset.pattern.permute.xlu0 0
    %4231 = vperm.xlu0 %4230, %v4228
    %v4232 = vpop.permute.xlu0 %4231
    %v4234 = vmul.f32 %v4232, %v3024
    %v4235 = vadd.f32 %v4234, 0.0
    %4236 = vset.pattern.permute.xlu0 1
    %4237 = vperm.xlu0 %4236, %v4228
    %v4238 = vpop.permute.xlu0 %4237
    %v4240 = vmul.f32 %v4238, %v3100
    %v4241 = vadd.f32 %v4235, %v4240
    %4242 = vset.pattern.permute.xlu0 2
    %4243 = vperm.xlu0 %4242, %v4228
    %v4244 = vpop.permute.xlu0 %4243
    %v4246 = vmul.f32 %v4244, %v3177
    %v4247 = vadd.f32 %v4241, %v4246
    %4248 = vset.pattern.permute.xlu0 3
    %4249 = vperm.xlu0 %4248, %v4228
    %v4250 = vpop.permute.xlu0 %4249
    %v4252 = vmul.f32 %v4250, %v3254
    %v4253 = vadd.f32 %v4247, %v4252
    %4254 = vset.pattern.permute.xlu0 4
    %4255 = vperm.xlu0 %4254, %v4228
    %v4256 = vpop.permute.xlu0 %4255
    %v4258 = vmul.f32 %v4256, %v3331
    %v4259 = vadd.f32 %v4253, %v4258
    %4260 = vset.pattern.permute.xlu0 5
    %4261 = vperm.xlu0 %4260, %v4228
    %v4262 = vpop.permute.xlu0 %4261
    %v4264 = vmul.f32 %v4262, %v3408
    %v4265 = vadd.f32 %v4259, %v4264
    %4266 = vset.pattern.permute.xlu0 6
    %4267 = vperm.xlu0 %4266, %v4228
    %v4268 = vpop.permute.xlu0 %4267
    %v4270 = vmul.f32 %v4268, %v3485
    %v4271 = vadd.f32 %v4265, %v4270
    %4272 = vset.pattern.permute.xlu0 7
    %4273 = vperm.xlu0 %4272, %v4228
    %v4274 = vpop.permute.xlu0 %4273
    %v4276 = vmul.f32 %v4274, %v3562
    %v4277 = vadd.f32 %v4271, %v4276
    %v4278 = vrot.slane %v142, 2
    %v4281 = vrot.slane %v143, 7
    %v4283 = vsel %vm2954, %v4278, %v4281
    %v4284 = vpack.c.bf16 %v4283, %v4283
    %v4285 = vpack.c.bf16 %v4277, %v4277
    %4287 = vrot.lane.b32.xlu0 %v4285, 32
    %v4288 = vpop.permute.xlu0 %4287
    %v4290 = vsel %vm2956, %v4288, 0
    %4292 = vmatprep.subr.bf16.mxu0 0
    %4293 = vmatpush1.bf16.msra.mxu0 0
    %4294 = vmatprep.subr.bf16.mxu0 0
    %4295 = vmatpush1.bf16.msra.mxu0 0
    %4296 = vmatprep.subr.bf16.mxu0 0
    %4297 = vmatpush1.bf16.msra.mxu0 0
    %4298 = vmatprep.subr.bf16.mxu0 0
    %4299 = vmatpush1.bf16.msra.mxu0 0
    %4300 = vmatprep.subr.bf16.mxu0 0
    %4301 = vmatpush1.bf16.msra.mxu0 0
    %4302 = vmatprep.subr.bf16.mxu0 0
    %4303 = vmatpush1.bf16.msra.mxu0 0
    %4304 = vmatprep.subr.bf16.mxu0 0
    %4305 = vmatpush1.bf16.msra.mxu0 %v96
    %4306 = vmatprep.subr.bf16.mxu0 0
    %4307 = vmatpush1.bf16.msra.mxu0 %v95
    %4308 = vmatprep.subr.bf16.mxu0 0
    %4309 = vmatpush2.bf16.msra.mxu0 0
    %4310 = vmatprep.subr.bf16.mxu0 0
    %4311 = vmatpush2.bf16.msra.mxu0 0
    %4312 = vmatprep.subr.bf16.mxu0 0
    %4313 = vmatpush2.bf16.msra.mxu0 0
    %4314 = vmatprep.subr.bf16.mxu0 0
    %4315 = vmatpush2.bf16.msra.mxu0 0
    %4316 = vmatprep.subr.bf16.mxu0 0
    %4317 = vmatpush2.bf16.msra.mxu0 0
    %4318 = vmatprep.subr.bf16.mxu0 0
    %4319 = vmatpush2.bf16.msra.mxu0 0
    %4320 = vmatprep.subr.bf16.mxu0 0
    %4321 = vmatpush2.bf16.msra.mxu0 0
    %4322 = vmatprep.subr.bf16.mxu0 0
    %4323 = vmatpush2.bf16.msra.mxu0 0
    %4324 = vmatprep.mubr.bf16.mxu0 0
    %4325 = vmatmul.mubr.bf16.gmra.mxu0 %v4290
    %v4326 = vpop.f32.mrf.mxu0
    %v4327 = vadd.f32 0.0, %v4326
    %v4328 = vpop.f32.mrf.mxu0
    %v4329 = vpop.f32.mrf.mxu0
    %v4330 = vpop.f32.mrf.mxu0
    %4331 = vdwg.mxu0
    %v4333 = vsel %vm2956, %v4284, 0
    %4335 = vmatprep.subr.bf16.mxu0 0
    %4336 = vmatpush1.bf16.msra.mxu0 0
    %4337 = vmatprep.subr.bf16.mxu0 0
    %4338 = vmatpush1.bf16.msra.mxu0 0
    %4339 = vmatprep.subr.bf16.mxu0 0
    %4340 = vmatpush1.bf16.msra.mxu0 0
    %4341 = vmatprep.subr.bf16.mxu0 0
    %4342 = vmatpush1.bf16.msra.mxu0 0
    %4343 = vmatprep.subr.bf16.mxu0 0
    %4344 = vmatpush1.bf16.msra.mxu0 0
    %4345 = vmatprep.subr.bf16.mxu0 0
    %4346 = vmatpush1.bf16.msra.mxu0 0
    %4347 = vmatprep.subr.bf16.mxu0 0
    %4348 = vmatpush1.bf16.msra.mxu0 %v90
    %4349 = vmatprep.subr.bf16.mxu0 0
    %4350 = vmatpush1.bf16.msra.mxu0 %v89
    %4351 = vmatprep.subr.bf16.mxu0 0
    %4352 = vmatpush2.bf16.msra.mxu0 0
    %4353 = vmatprep.subr.bf16.mxu0 0
    %4354 = vmatpush2.bf16.msra.mxu0 0
    %4355 = vmatprep.subr.bf16.mxu0 0
    %4356 = vmatpush2.bf16.msra.mxu0 0
    %4357 = vmatprep.subr.bf16.mxu0 0
    %4358 = vmatpush2.bf16.msra.mxu0 0
    %4359 = vmatprep.subr.bf16.mxu0 0
    %4360 = vmatpush2.bf16.msra.mxu0 0
    %4361 = vmatprep.subr.bf16.mxu0 0
    %4362 = vmatpush2.bf16.msra.mxu0 0
    %4363 = vmatprep.subr.bf16.mxu0 0
    %4364 = vmatpush2.bf16.msra.mxu0 0
    %4365 = vmatprep.subr.bf16.mxu0 0
    %4366 = vmatpush2.bf16.msra.mxu0 0
    %4367 = vmatprep.mubr.bf16.mxu0 0
    %4368 = vmatmul.mubr.bf16.gmra.mxu0 %v4333
    %v4369 = vpop.f32.mrf.mxu0
    %v4370 = vadd.f32 %v4327, %v4369
    %v4371 = vpop.f32.mrf.mxu0
    %v4372 = vpop.f32.mrf.mxu0
    %v4373 = vpop.f32.mrf.mxu0
    %4374 = vdwg.mxu0
    %4375 = vmatprep.subr.bf16.mxu0 0
    %4376 = vmatpush1.bf16.msra.mxu0 0
    %4377 = vmatprep.subr.bf16.mxu0 0
    %4378 = vmatpush1.bf16.msra.mxu0 0
    %4379 = vmatprep.subr.bf16.mxu0 0
    %4380 = vmatpush1.bf16.msra.mxu0 0
    %4381 = vmatprep.subr.bf16.mxu0 0
    %4382 = vmatpush1.bf16.msra.mxu0 0
    %4383 = vmatprep.subr.bf16.mxu0 0
    %4384 = vmatpush1.bf16.msra.mxu0 0
    %4385 = vmatprep.subr.bf16.mxu0 0
    %4386 = vmatpush1.bf16.msra.mxu0 0
    %4387 = vmatprep.subr.bf16.mxu0 0
    %4388 = vmatpush1.bf16.msra.mxu0 %v102
    %4389 = vmatprep.subr.bf16.mxu0 0
    %4390 = vmatpush1.bf16.msra.mxu0 %v101
    %4391 = vmatprep.subr.bf16.mxu0 0
    %4392 = vmatpush2.bf16.msra.mxu0 0
    %4393 = vmatprep.subr.bf16.mxu0 0
    %4394 = vmatpush2.bf16.msra.mxu0 0
    %4395 = vmatprep.subr.bf16.mxu0 0
    %4396 = vmatpush2.bf16.msra.mxu0 0
    %4397 = vmatprep.subr.bf16.mxu0 0
    %4398 = vmatpush2.bf16.msra.mxu0 0
    %4399 = vmatprep.subr.bf16.mxu0 0
    %4400 = vmatpush2.bf16.msra.mxu0 0
    %4401 = vmatprep.subr.bf16.mxu0 0
    %4402 = vmatpush2.bf16.msra.mxu0 0
    %4403 = vmatprep.subr.bf16.mxu0 0
    %4404 = vmatpush2.bf16.msra.mxu0 0
    %4405 = vmatprep.subr.bf16.mxu0 0
    %4406 = vmatpush2.bf16.msra.mxu0 0
    %4407 = vmatprep.mubr.bf16.mxu0 0
    %4408 = vmatmul.mubr.bf16.gmra.mxu0 %v4137
    %v4409 = vpop.f32.mrf.mxu0
    %v4410 = vadd.f32 0.0, %v4409
    %v4411 = vpop.f32.mrf.mxu0
    %v4412 = vpop.f32.mrf.mxu0
    %v4413 = vpop.f32.mrf.mxu0
    %4414 = vdwg.mxu0
    %v4415 = vadd.f32 %v4370, %v4410
    %v4416 = vadd.f32 %v4415, %v126
    %v4417 = vxor.u32 %v4416, 2147483648
    %v4418 = vmul.f32 %v4417, 1.442695
    %v4419 = vpow.pop %v4418
    %v4420 = vadd.f32 %v4419, 1.0
    %v4421 = vrcp.pop %v4420
    %v4422 = vmul.f32 1.0, %v4421
    %v4423 = vtanh.pop %v4416
    %v4424 = vmul.f32 %v4422, %v4125
    %4426 = vrot.lane.b32.xlu0 %v4423, 64
    %v4427 = vpop.permute.xlu0 %4426
    %v4429 = vmul.f32 %v4422, %v4427
    %4431 = vrot.lane.b32.xlu0 %v4429, 32
    %v4432 = vpop.permute.xlu0 %4431
    %v4434 = vadd.f32 %v4424, %v4432
    %v4435 = vtanh.pop %v4434
    %4437 = vrot.lane.b32.xlu0 %v4435, 64
    %v4438 = vpop.permute.xlu0 %4437
    %v4440 = vmul.f32 %v4422, %v4438
    %v4441 = vpack.c.bf16 %v4440, %v4440
    %4443 = vrot.lane.b32.xlu0 %v4441, 32
    %v4444 = vpop.permute.xlu0 %4443
    %v4446 = vsel %vm2956, %v4444, 0
    %4448 = vmatprep.subr.bf16.mxu0 0
    %4449 = vmatpush1.bf16.msra.mxu0 0
    %4450 = vmatprep.subr.bf16.mxu0 0
    %4451 = vmatpush1.bf16.msra.mxu0 0
    %4452 = vmatprep.subr.bf16.mxu0 0
    %4453 = vmatpush1.bf16.msra.mxu0 0
    %4454 = vmatprep.subr.bf16.mxu0 0
    %4455 = vmatpush1.bf16.msra.mxu0 0
    %4456 = vmatprep.subr.bf16.mxu0 0
    %4457 = vmatpush1.bf16.msra.mxu0 0
    %4458 = vmatprep.subr.bf16.mxu0 0
    %4459 = vmatpush1.bf16.msra.mxu0 0
    %4460 = vmatprep.subr.bf16.mxu0 0
    %4461 = vmatpush1.bf16.msra.mxu0 %v108
    %4462 = vmatprep.subr.bf16.mxu0 0
    %4463 = vmatpush1.bf16.msra.mxu0 %v107
    %4464 = vmatprep.subr.bf16.mxu0 0
    %4465 = vmatpush2.bf16.msra.mxu0 0
    %4466 = vmatprep.subr.bf16.mxu0 0
    %4467 = vmatpush2.bf16.msra.mxu0 0
    %4468 = vmatprep.subr.bf16.mxu0 0
    %4469 = vmatpush2.bf16.msra.mxu0 0
    %4470 = vmatprep.subr.bf16.mxu0 0
    %4471 = vmatpush2.bf16.msra.mxu0 0
    %4472 = vmatprep.subr.bf16.mxu0 0
    %4473 = vmatpush2.bf16.msra.mxu0 0
    %4474 = vmatprep.subr.bf16.mxu0 0
    %4475 = vmatpush2.bf16.msra.mxu0 0
    %4476 = vmatprep.subr.bf16.mxu0 0
    %4477 = vmatpush2.bf16.msra.mxu0 0
    %4478 = vmatprep.subr.bf16.mxu0 0
    %4479 = vmatpush2.bf16.msra.mxu0 0
    %4480 = vmatprep.mubr.bf16.mxu0 0
    %4481 = vmatmul.mubr.bf16.gmra.mxu0 %v4446
    %v4482 = vpop.f32.mrf.mxu0
    %v4483 = vadd.f32 %v133, %v4482
    %v4484 = vpop.f32.mrf.mxu0
    %v4485 = vpop.f32.mrf.mxu0
    %v4486 = vpop.f32.mrf.mxu0
    %4487 = vdwg.mxu0
    %v4488 = vmul.f32 %v4483, %v3839
    %v4489 = vsel %vm3842, %v4488, 0.0
    %4490 = vadd.xlane.f32.xlu0 %v4489
    %v4491 = vpop.xlane.xlu0 %4490
    %v4492 = vmul.f32 %v4483, %v3847
    %v4493 = vsel %vm3842, %v4492, 0.0
    %4494 = vadd.xlane.f32.xlu0 %v4493
    %v4495 = vpop.xlane.xlu0 %4494
    %v4496 = vmul.f32 %v4483, %v3854
    %v4497 = vsel %vm3842, %v4496, 0.0
    %4498 = vadd.xlane.f32.xlu0 %v4497
    %v4499 = vpop.xlane.xlu0 %4498
    %v4500 = vmul.f32 %v4483, %v3861
    %v4501 = vsel %vm3842, %v4500, 0.0
    %4502 = vadd.xlane.f32.xlu0 %v4501
    %v4503 = vpop.xlane.xlu0 %4502
    %v4504 = vmul.f32 %v4483, %v3868
    %v4505 = vsel %vm3842, %v4504, 0.0
    %4506 = vadd.xlane.f32.xlu0 %v4505
    %v4507 = vpop.xlane.xlu0 %4506
    %v4508 = vmul.f32 %v4483, %v3875
    %v4509 = vsel %vm3842, %v4508, 0.0
    %4510 = vadd.xlane.f32.xlu0 %v4509
    %v4511 = vpop.xlane.xlu0 %4510
    %v4512 = vmul.f32 %v4483, %v3882
    %v4513 = vsel %vm3842, %v4512, 0.0
    %4514 = vadd.xlane.f32.xlu0 %v4513
    %v4515 = vpop.xlane.xlu0 %4514
    %v4516 = vmul.f32 %v4483, %v3889
    %v4517 = vsel %vm3842, %v4516, 0.0
    %4518 = vadd.xlane.f32.xlu0 %v4517
    %v4519 = vpop.xlane.xlu0 %4518
    %v4520 = vsel %vm3895, %v4491, %v4495
    %v4521 = vsel %vm3897, %v4520, %v4499
    %v4522 = vsel %vm3899, %v4521, %v4503
    %v4523 = vsel %vm3901, %v4522, %v4507
    %v4524 = vsel %vm3903, %v4523, %v4511
    %v4525 = vsel %vm3905, %v4524, %v4515
    %v4526 = vsel %vm3907, %v4525, %v4519
    %v4527 = vsel %vm3909, %v4526, -inf
    %4528 = vmax.xlane.f32.xlu0 %v4527
    %v4529 = vpop.xlane.xlu0 %4528
    %v4530 = vsub.f32 %v4526, %v4529
    %v4531 = vmul.f32 %v4530, 1.442695
    %v4532 = vpow.pop %v4531
    %v4533 = vsel %vm3909, %v4532, 0.0
    %4534 = vadd.xlane.f32.xlu0 %v4533
    %v4535 = vpop.xlane.xlu0 %4534
    %v4536 = vrcp.pop %v4535
    %v4537 = vmul.f32 %v4532, %v4536
    %4539 = vset.pattern.permute.xlu0 0
    %4540 = vperm.xlu0 %4539, %v4537
    %v4541 = vpop.permute.xlu0 %4540
    %v4543 = vmul.f32 %v4541, %v3024
    %v4544 = vadd.f32 %v4543, 0.0
    %4545 = vset.pattern.permute.xlu0 1
    %4546 = vperm.xlu0 %4545, %v4537
    %v4547 = vpop.permute.xlu0 %4546
    %v4549 = vmul.f32 %v4547, %v3100
    %v4550 = vadd.f32 %v4544, %v4549
    %4551 = vset.pattern.permute.xlu0 2
    %4552 = vperm.xlu0 %4551, %v4537
    %v4553 = vpop.permute.xlu0 %4552
    %v4555 = vmul.f32 %v4553, %v3177
    %v4556 = vadd.f32 %v4550, %v4555
    %4557 = vset.pattern.permute.xlu0 3
    %4558 = vperm.xlu0 %4557, %v4537
    %v4559 = vpop.permute.xlu0 %4558
    %v4561 = vmul.f32 %v4559, %v3254
    %v4562 = vadd.f32 %v4556, %v4561
    %4563 = vset.pattern.permute.xlu0 4
    %4564 = vperm.xlu0 %4563, %v4537
    %v4565 = vpop.permute.xlu0 %4564
    %v4567 = vmul.f32 %v4565, %v3331
    %v4568 = vadd.f32 %v4562, %v4567
    %4569 = vset.pattern.permute.xlu0 5
    %4570 = vperm.xlu0 %4569, %v4537
    %v4571 = vpop.permute.xlu0 %4570
    %v4573 = vmul.f32 %v4571, %v3408
    %v4574 = vadd.f32 %v4568, %v4573
    %4575 = vset.pattern.permute.xlu0 6
    %4576 = vperm.xlu0 %4575, %v4537
    %v4577 = vpop.permute.xlu0 %4576
    %v4579 = vmul.f32 %v4577, %v3485
    %v4580 = vadd.f32 %v4574, %v4579
    %4581 = vset.pattern.permute.xlu0 7
    %4582 = vperm.xlu0 %4581, %v4537
    %v4583 = vpop.permute.xlu0 %4582
    %v4585 = vmul.f32 %v4583, %v3562
    %v4586 = vadd.f32 %v4580, %v4585
    %v4587 = vrot.slane %v142, 3
    %v4589 = vsel %vm2954, %v4587, %v143
    %v4590 = vpack.c.bf16 %v4589, %v4589
    %v4591 = vpack.c.bf16 %v4586, %v4586
    %4593 = vrot.lane.b32.xlu0 %v4591, 32
    %v4594 = vpop.permute.xlu0 %4593
    %v4596 = vsel %vm2956, %v4594, 0
    %4598 = vmatprep.subr.bf16.mxu0 0
    %4599 = vmatpush1.bf16.msra.mxu0 0
    %4600 = vmatprep.subr.bf16.mxu0 0
    %4601 = vmatpush1.bf16.msra.mxu0 0
    %4602 = vmatprep.subr.bf16.mxu0 0
    %4603 = vmatpush1.bf16.msra.mxu0 0
    %4604 = vmatprep.subr.bf16.mxu0 0
    %4605 = vmatpush1.bf16.msra.mxu0 0
    %4606 = vmatprep.subr.bf16.mxu0 0
    %4607 = vmatpush1.bf16.msra.mxu0 0
    %4608 = vmatprep.subr.bf16.mxu0 0
    %4609 = vmatpush1.bf16.msra.mxu0 0
    %4610 = vmatprep.subr.bf16.mxu0 0
    %4611 = vmatpush1.bf16.msra.mxu0 %v96
    %4612 = vmatprep.subr.bf16.mxu0 0
    %4613 = vmatpush1.bf16.msra.mxu0 %v95
    %4614 = vmatprep.subr.bf16.mxu0 0
    %4615 = vmatpush2.bf16.msra.mxu0 0
    %4616 = vmatprep.subr.bf16.mxu0 0
    %4617 = vmatpush2.bf16.msra.mxu0 0
    %4618 = vmatprep.subr.bf16.mxu0 0
    %4619 = vmatpush2.bf16.msra.mxu0 0
    %4620 = vmatprep.subr.bf16.mxu0 0
    %4621 = vmatpush2.bf16.msra.mxu0 0
    %4622 = vmatprep.subr.bf16.mxu0 0
    %4623 = vmatpush2.bf16.msra.mxu0 0
    %4624 = vmatprep.subr.bf16.mxu0 0
    %4625 = vmatpush2.bf16.msra.mxu0 0
    %4626 = vmatprep.subr.bf16.mxu0 0
    %4627 = vmatpush2.bf16.msra.mxu0 0
    %4628 = vmatprep.subr.bf16.mxu0 0
    %4629 = vmatpush2.bf16.msra.mxu0 0
    %4630 = vmatprep.mubr.bf16.mxu0 0
    %4631 = vmatmul.mubr.bf16.gmra.mxu0 %v4596
    %v4632 = vpop.f32.mrf.mxu0
    %v4633 = vadd.f32 0.0, %v4632
    %v4634 = vpop.f32.mrf.mxu0
    %v4635 = vpop.f32.mrf.mxu0
    %v4636 = vpop.f32.mrf.mxu0
    %4637 = vdwg.mxu0
    %v4639 = vsel %vm2956, %v4590, 0
    %4641 = vmatprep.subr.bf16.mxu0 0
    %4642 = vmatpush1.bf16.msra.mxu0 0
    %4643 = vmatprep.subr.bf16.mxu0 0
    %4644 = vmatpush1.bf16.msra.mxu0 0
    %4645 = vmatprep.subr.bf16.mxu0 0
    %4646 = vmatpush1.bf16.msra.mxu0 0
    %4647 = vmatprep.subr.bf16.mxu0 0
    %4648 = vmatpush1.bf16.msra.mxu0 0
    %4649 = vmatprep.subr.bf16.mxu0 0
    %4650 = vmatpush1.bf16.msra.mxu0 0
    %4651 = vmatprep.subr.bf16.mxu0 0
    %4652 = vmatpush1.bf16.msra.mxu0 0
    %4653 = vmatprep.subr.bf16.mxu0 0
    %4654 = vmatpush1.bf16.msra.mxu0 %v90
    %4655 = vmatprep.subr.bf16.mxu0 0
    %4656 = vmatpush1.bf16.msra.mxu0 %v89
    %4657 = vmatprep.subr.bf16.mxu0 0
    %4658 = vmatpush2.bf16.msra.mxu0 0
    %4659 = vmatprep.subr.bf16.mxu0 0
    %4660 = vmatpush2.bf16.msra.mxu0 0
    %4661 = vmatprep.subr.bf16.mxu0 0
    %4662 = vmatpush2.bf16.msra.mxu0 0
    %4663 = vmatprep.subr.bf16.mxu0 0
    %4664 = vmatpush2.bf16.msra.mxu0 0
    %4665 = vmatprep.subr.bf16.mxu0 0
    %4666 = vmatpush2.bf16.msra.mxu0 0
    %4667 = vmatprep.subr.bf16.mxu0 0
    %4668 = vmatpush2.bf16.msra.mxu0 0
    %4669 = vmatprep.subr.bf16.mxu0 0
    %4670 = vmatpush2.bf16.msra.mxu0 0
    %4671 = vmatprep.subr.bf16.mxu0 0
    %4672 = vmatpush2.bf16.msra.mxu0 0
    %4673 = vmatprep.mubr.bf16.mxu0 0
    %4674 = vmatmul.mubr.bf16.gmra.mxu0 %v4639
    %v4675 = vpop.f32.mrf.mxu0
    %v4676 = vadd.f32 %v4633, %v4675
    %v4677 = vpop.f32.mrf.mxu0
    %v4678 = vpop.f32.mrf.mxu0
    %v4679 = vpop.f32.mrf.mxu0
    %4680 = vdwg.mxu0
    %4681 = vmatprep.subr.bf16.mxu0 0
    %4682 = vmatpush1.bf16.msra.mxu0 0
    %4683 = vmatprep.subr.bf16.mxu0 0
    %4684 = vmatpush1.bf16.msra.mxu0 0
    %4685 = vmatprep.subr.bf16.mxu0 0
    %4686 = vmatpush1.bf16.msra.mxu0 0
    %4687 = vmatprep.subr.bf16.mxu0 0
    %4688 = vmatpush1.bf16.msra.mxu0 0
    %4689 = vmatprep.subr.bf16.mxu0 0
    %4690 = vmatpush1.bf16.msra.mxu0 0
    %4691 = vmatprep.subr.bf16.mxu0 0
    %4692 = vmatpush1.bf16.msra.mxu0 0
    %4693 = vmatprep.subr.bf16.mxu0 0
    %4694 = vmatpush1.bf16.msra.mxu0 %v102
    %4695 = vmatprep.subr.bf16.mxu0 0
    %4696 = vmatpush1.bf16.msra.mxu0 %v101
    %4697 = vmatprep.subr.bf16.mxu0 0
    %4698 = vmatpush2.bf16.msra.mxu0 0
    %4699 = vmatprep.subr.bf16.mxu0 0
    %4700 = vmatpush2.bf16.msra.mxu0 0
    %4701 = vmatprep.subr.bf16.mxu0 0
    %4702 = vmatpush2.bf16.msra.mxu0 0
    %4703 = vmatprep.subr.bf16.mxu0 0
    %4704 = vmatpush2.bf16.msra.mxu0 0
    %4705 = vmatprep.subr.bf16.mxu0 0
    %4706 = vmatpush2.bf16.msra.mxu0 0
    %4707 = vmatprep.subr.bf16.mxu0 0
    %4708 = vmatpush2.bf16.msra.mxu0 0
    %4709 = vmatprep.subr.bf16.mxu0 0
    %4710 = vmatpush2.bf16.msra.mxu0 0
    %4711 = vmatprep.subr.bf16.mxu0 0
    %4712 = vmatpush2.bf16.msra.mxu0 0
    %4713 = vmatprep.mubr.bf16.mxu0 0
    %4714 = vmatmul.mubr.bf16.gmra.mxu0 %v4446
    %v4715 = vpop.f32.mrf.mxu0
    %v4716 = vadd.f32 0.0, %v4715
    %v4717 = vpop.f32.mrf.mxu0
    %v4718 = vpop.f32.mrf.mxu0
    %v4719 = vpop.f32.mrf.mxu0
    %4720 = vdwg.mxu0
    %v4721 = vadd.f32 %v4676, %v4716
    %v4722 = vadd.f32 %v4721, %v126
    %v4723 = vxor.u32 %v4722, 2147483648
    %v4724 = vmul.f32 %v4723, 1.442695
    %v4725 = vpow.pop %v4724
    %v4726 = vadd.f32 %v4725, 1.0
    %v4727 = vrcp.pop %v4726
    %v4728 = vmul.f32 1.0, %v4727
    %v4729 = vtanh.pop %v4722
    %v4730 = vmul.f32 %v4728, %v4434
    %4732 = vrot.lane.b32.xlu0 %v4729, 64
    %v4733 = vpop.permute.xlu0 %4732
    %v4735 = vmul.f32 %v4728, %v4733
    %4737 = vrot.lane.b32.xlu0 %v4735, 32
    %v4738 = vpop.permute.xlu0 %4737
    %v4740 = vadd.f32 %v4730, %v4738
    %v4741 = vtanh.pop %v4740
    %4743 = vrot.lane.b32.xlu0 %v4741, 64
    %v4744 = vpop.permute.xlu0 %4743
    %v4746 = vmul.f32 %v4728, %v4744
    %v4747 = vpack.c.bf16 %v4746, %v4746
    %4749 = vrot.lane.b32.xlu0 %v4747, 32
    %v4750 = vpop.permute.xlu0 %4749
    %v4752 = vsel %vm2956, %v4750, 0
    %4754 = vmatprep.subr.bf16.mxu0 0
    %4755 = vmatpush1.bf16.msra.mxu0 0
    %4756 = vmatprep.subr.bf16.mxu0 0
    %4757 = vmatpush1.bf16.msra.mxu0 0
    %4758 = vmatprep.subr.bf16.mxu0 0
    %4759 = vmatpush1.bf16.msra.mxu0 0
    %4760 = vmatprep.subr.bf16.mxu0 0
    %4761 = vmatpush1.bf16.msra.mxu0 0
    %4762 = vmatprep.subr.bf16.mxu0 0
    %4763 = vmatpush1.bf16.msra.mxu0 0
    %4764 = vmatprep.subr.bf16.mxu0 0
    %4765 = vmatpush1.bf16.msra.mxu0 0
    %4766 = vmatprep.subr.bf16.mxu0 0
    %4767 = vmatpush1.bf16.msra.mxu0 %v108
    %4768 = vmatprep.subr.bf16.mxu0 0
    %4769 = vmatpush1.bf16.msra.mxu0 %v107
    %4770 = vmatprep.subr.bf16.mxu0 0
    %4771 = vmatpush2.bf16.msra.mxu0 0
    %4772 = vmatprep.subr.bf16.mxu0 0
    %4773 = vmatpush2.bf16.msra.mxu0 0
    %4774 = vmatprep.subr.bf16.mxu0 0
    %4775 = vmatpush2.bf16.msra.mxu0 0
    %4776 = vmatprep.subr.bf16.mxu0 0
    %4777 = vmatpush2.bf16.msra.mxu0 0
    %4778 = vmatprep.subr.bf16.mxu0 0
    %4779 = vmatpush2.bf16.msra.mxu0 0
    %4780 = vmatprep.subr.bf16.mxu0 0
    %4781 = vmatpush2.bf16.msra.mxu0 0
    %4782 = vmatprep.subr.bf16.mxu0 0
    %4783 = vmatpush2.bf16.msra.mxu0 0
    %4784 = vmatprep.subr.bf16.mxu0 0
    %4785 = vmatpush2.bf16.msra.mxu0 0
    %4786 = vmatprep.mubr.bf16.mxu0 0
    %4787 = vmatmul.mubr.bf16.gmra.mxu0 %v4752
    %v4788 = vpop.f32.mrf.mxu0
    %v4789 = vadd.f32 %v133, %v4788
    %v4790 = vpop.f32.mrf.mxu0
    %v4791 = vpop.f32.mrf.mxu0
    %v4792 = vpop.f32.mrf.mxu0
    %4793 = vdwg.mxu0
    %v4794 = vmul.f32 %v4789, %v3839
    %v4795 = vsel %vm3842, %v4794, 0.0
    %4796 = vadd.xlane.f32.xlu0 %v4795
    %v4797 = vpop.xlane.xlu0 %4796
    %v4798 = vmul.f32 %v4789, %v3847
    %v4799 = vsel %vm3842, %v4798, 0.0
    %4800 = vadd.xlane.f32.xlu0 %v4799
    %v4801 = vpop.xlane.xlu0 %4800
    %v4802 = vmul.f32 %v4789, %v3854
    %v4803 = vsel %vm3842, %v4802, 0.0
    %4804 = vadd.xlane.f32.xlu0 %v4803
    %v4805 = vpop.xlane.xlu0 %4804
    %v4806 = vmul.f32 %v4789, %v3861
    %v4807 = vsel %vm3842, %v4806, 0.0
    %4808 = vadd.xlane.f32.xlu0 %v4807
    %v4809 = vpop.xlane.xlu0 %4808
    %v4810 = vmul.f32 %v4789, %v3868
    %v4811 = vsel %vm3842, %v4810, 0.0
    %4812 = vadd.xlane.f32.xlu0 %v4811
    %v4813 = vpop.xlane.xlu0 %4812
    %v4814 = vmul.f32 %v4789, %v3875
    %v4815 = vsel %vm3842, %v4814, 0.0
    %4816 = vadd.xlane.f32.xlu0 %v4815
    %v4817 = vpop.xlane.xlu0 %4816
    %v4818 = vmul.f32 %v4789, %v3882
    %v4819 = vsel %vm3842, %v4818, 0.0
    %4820 = vadd.xlane.f32.xlu0 %v4819
    %v4821 = vpop.xlane.xlu0 %4820
    %v4822 = vmul.f32 %v4789, %v3889
    %v4823 = vsel %vm3842, %v4822, 0.0
    %4824 = vadd.xlane.f32.xlu0 %v4823
    %v4825 = vpop.xlane.xlu0 %4824
    %v4826 = vsel %vm3895, %v4797, %v4801
    %v4827 = vsel %vm3897, %v4826, %v4805
    %v4828 = vsel %vm3899, %v4827, %v4809
    %v4829 = vsel %vm3901, %v4828, %v4813
    %v4830 = vsel %vm3903, %v4829, %v4817
    %v4831 = vsel %vm3905, %v4830, %v4821
    %v4832 = vsel %vm3907, %v4831, %v4825
    %v4833 = vsel %vm3909, %v4832, -inf
    %4834 = vmax.xlane.f32.xlu0 %v4833
    %v4835 = vpop.xlane.xlu0 %4834
    %v4836 = vsub.f32 %v4832, %v4835
    %v4837 = vmul.f32 %v4836, 1.442695
    %v4838 = vpow.pop %v4837
    %v4839 = vsel %vm3909, %v4838, 0.0
    %4840 = vadd.xlane.f32.xlu0 %v4839
    %v4841 = vpop.xlane.xlu0 %4840
    %v4842 = vrcp.pop %v4841
    %v4843 = vmul.f32 %v4838, %v4842
    %4845 = vset.pattern.permute.xlu0 0
    %4846 = vperm.xlu0 %4845, %v4843
    %v4847 = vpop.permute.xlu0 %4846
    %v4849 = vmul.f32 %v4847, %v3024
    %v4850 = vadd.f32 %v4849, 0.0
    %4851 = vset.pattern.permute.xlu0 1
    %4852 = vperm.xlu0 %4851, %v4843
    %v4853 = vpop.permute.xlu0 %4852
    %v4855 = vmul.f32 %v4853, %v3100
    %v4856 = vadd.f32 %v4850, %v4855
    %4857 = vset.pattern.permute.xlu0 2
    %4858 = vperm.xlu0 %4857, %v4843
    %v4859 = vpop.permute.xlu0 %4858
    %v4861 = vmul.f32 %v4859, %v3177
    %v4862 = vadd.f32 %v4856, %v4861
    %4863 = vset.pattern.permute.xlu0 3
    %4864 = vperm.xlu0 %4863, %v4843
    %v4865 = vpop.permute.xlu0 %4864
    %v4867 = vmul.f32 %v4865, %v3254
    %v4868 = vadd.f32 %v4862, %v4867
    %4869 = vset.pattern.permute.xlu0 4
    %4870 = vperm.xlu0 %4869, %v4843
    %v4871 = vpop.permute.xlu0 %4870
    %v4873 = vmul.f32 %v4871, %v3331
    %v4874 = vadd.f32 %v4868, %v4873
    %4875 = vset.pattern.permute.xlu0 5
    %4876 = vperm.xlu0 %4875, %v4843
    %v4877 = vpop.permute.xlu0 %4876
    %v4879 = vmul.f32 %v4877, %v3408
    %v4880 = vadd.f32 %v4874, %v4879
    %4881 = vset.pattern.permute.xlu0 6
    %4882 = vperm.xlu0 %4881, %v4843
    %v4883 = vpop.permute.xlu0 %4882
    %v4885 = vmul.f32 %v4883, %v3485
    %v4886 = vadd.f32 %v4880, %v4885
    %4887 = vset.pattern.permute.xlu0 7
    %4888 = vperm.xlu0 %4887, %v4843
    %v4889 = vpop.permute.xlu0 %4888
    %v4891 = vmul.f32 %v4889, %v3562
    %v4892 = vadd.f32 %v4886, %v4891
    %v4893 = vrot.slane %v142, 4
    %v4895 = vrot.slane %v143, 1
    %v4897 = vsel %vm2954, %v4893, %v4895
    %v4898 = vpack.c.bf16 %v4897, %v4897
    %v4899 = vpack.c.bf16 %v4892, %v4892
    %4901 = vrot.lane.b32.xlu0 %v4899, 32
    %v4902 = vpop.permute.xlu0 %4901
    %v4904 = vsel %vm2956, %v4902, 0
    %4906 = vmatprep.subr.bf16.mxu0 0
    %4907 = vmatpush1.bf16.msra.mxu0 0
    %4908 = vmatprep.subr.bf16.mxu0 0
    %4909 = vmatpush1.bf16.msra.mxu0 0
    %4910 = vmatprep.subr.bf16.mxu0 0
    %4911 = vmatpush1.bf16.msra.mxu0 0
    %4912 = vmatprep.subr.bf16.mxu0 0
    %4913 = vmatpush1.bf16.msra.mxu0 0
    %4914 = vmatprep.subr.bf16.mxu0 0
    %4915 = vmatpush1.bf16.msra.mxu0 0
    %4916 = vmatprep.subr.bf16.mxu0 0
    %4917 = vmatpush1.bf16.msra.mxu0 0
    %4918 = vmatprep.subr.bf16.mxu0 0
    %4919 = vmatpush1.bf16.msra.mxu0 %v96
    %4920 = vmatprep.subr.bf16.mxu0 0
    %4921 = vmatpush1.bf16.msra.mxu0 %v95
    %4922 = vmatprep.subr.bf16.mxu0 0
    %4923 = vmatpush2.bf16.msra.mxu0 0
    %4924 = vmatprep.subr.bf16.mxu0 0
    %4925 = vmatpush2.bf16.msra.mxu0 0
    %4926 = vmatprep.subr.bf16.mxu0 0
    %4927 = vmatpush2.bf16.msra.mxu0 0
    %4928 = vmatprep.subr.bf16.mxu0 0
    %4929 = vmatpush2.bf16.msra.mxu0 0
    %4930 = vmatprep.subr.bf16.mxu0 0
    %4931 = vmatpush2.bf16.msra.mxu0 0
    %4932 = vmatprep.subr.bf16.mxu0 0
    %4933 = vmatpush2.bf16.msra.mxu0 0
    %4934 = vmatprep.subr.bf16.mxu0 0
    %4935 = vmatpush2.bf16.msra.mxu0 0
    %4936 = vmatprep.subr.bf16.mxu0 0
    %4937 = vmatpush2.bf16.msra.mxu0 0
    %4938 = vmatprep.mubr.bf16.mxu0 0
    %4939 = vmatmul.mubr.bf16.gmra.mxu0 %v4904
    %v4940 = vpop.f32.mrf.mxu0
    %v4941 = vadd.f32 0.0, %v4940
    %v4942 = vpop.f32.mrf.mxu0
    %v4943 = vpop.f32.mrf.mxu0
    %v4944 = vpop.f32.mrf.mxu0
    %4945 = vdwg.mxu0
    %v4947 = vsel %vm2956, %v4898, 0
    %4949 = vmatprep.subr.bf16.mxu0 0
    %4950 = vmatpush1.bf16.msra.mxu0 0
    %4951 = vmatprep.subr.bf16.mxu0 0
    %4952 = vmatpush1.bf16.msra.mxu0 0
    %4953 = vmatprep.subr.bf16.mxu0 0
    %4954 = vmatpush1.bf16.msra.mxu0 0
    %4955 = vmatprep.subr.bf16.mxu0 0
    %4956 = vmatpush1.bf16.msra.mxu0 0
    %4957 = vmatprep.subr.bf16.mxu0 0
    %4958 = vmatpush1.bf16.msra.mxu0 0
    %4959 = vmatprep.subr.bf16.mxu0 0
    %4960 = vmatpush1.bf16.msra.mxu0 0
    %4961 = vmatprep.subr.bf16.mxu0 0
    %4962 = vmatpush1.bf16.msra.mxu0 %v90
    %4963 = vmatprep.subr.bf16.mxu0 0
    %4964 = vmatpush1.bf16.msra.mxu0 %v89
    %4965 = vmatprep.subr.bf16.mxu0 0
    %4966 = vmatpush2.bf16.msra.mxu0 0
    %4967 = vmatprep.subr.bf16.mxu0 0
    %4968 = vmatpush2.bf16.msra.mxu0 0
    %4969 = vmatprep.subr.bf16.mxu0 0
    %4970 = vmatpush2.bf16.msra.mxu0 0
    %4971 = vmatprep.subr.bf16.mxu0 0
    %4972 = vmatpush2.bf16.msra.mxu0 0
    %4973 = vmatprep.subr.bf16.mxu0 0
    %4974 = vmatpush2.bf16.msra.mxu0 0
    %4975 = vmatprep.subr.bf16.mxu0 0
    %4976 = vmatpush2.bf16.msra.mxu0 0
    %4977 = vmatprep.subr.bf16.mxu0 0
    %4978 = vmatpush2.bf16.msra.mxu0 0
    %4979 = vmatprep.subr.bf16.mxu0 0
    %4980 = vmatpush2.bf16.msra.mxu0 0
    %4981 = vmatprep.mubr.bf16.mxu0 0
    %4982 = vmatmul.mubr.bf16.gmra.mxu0 %v4947
    %v4983 = vpop.f32.mrf.mxu0
    %v4984 = vadd.f32 %v4941, %v4983
    %v4985 = vpop.f32.mrf.mxu0
    %v4986 = vpop.f32.mrf.mxu0
    %v4987 = vpop.f32.mrf.mxu0
    %4988 = vdwg.mxu0
    %4989 = vmatprep.subr.bf16.mxu0 0
    %4990 = vmatpush1.bf16.msra.mxu0 0
    %4991 = vmatprep.subr.bf16.mxu0 0
    %4992 = vmatpush1.bf16.msra.mxu0 0
    %4993 = vmatprep.subr.bf16.mxu0 0
    %4994 = vmatpush1.bf16.msra.mxu0 0
    %4995 = vmatprep.subr.bf16.mxu0 0
    %4996 = vmatpush1.bf16.msra.mxu0 0
    %4997 = vmatprep.subr.bf16.mxu0 0
    %4998 = vmatpush1.bf16.msra.mxu0 0
    %4999 = vmatprep.subr.bf16.mxu0 0
    %5000 = vmatpush1.bf16.msra.mxu0 0
    %5001 = vmatprep.subr.bf16.mxu0 0
    %5002 = vmatpush1.bf16.msra.mxu0 %v102
    %5003 = vmatprep.subr.bf16.mxu0 0
    %5004 = vmatpush1.bf16.msra.mxu0 %v101
    %5005 = vmatprep.subr.bf16.mxu0 0
    %5006 = vmatpush2.bf16.msra.mxu0 0
    %5007 = vmatprep.subr.bf16.mxu0 0
    %5008 = vmatpush2.bf16.msra.mxu0 0
    %5009 = vmatprep.subr.bf16.mxu0 0
    %5010 = vmatpush2.bf16.msra.mxu0 0
    %5011 = vmatprep.subr.bf16.mxu0 0
    %5012 = vmatpush2.bf16.msra.mxu0 0
    %5013 = vmatprep.subr.bf16.mxu0 0
    %5014 = vmatpush2.bf16.msra.mxu0 0
    %5015 = vmatprep.subr.bf16.mxu0 0
    %5016 = vmatpush2.bf16.msra.mxu0 0
    %5017 = vmatprep.subr.bf16.mxu0 0
    %5018 = vmatpush2.bf16.msra.mxu0 0
    %5019 = vmatprep.subr.bf16.mxu0 0
    %5020 = vmatpush2.bf16.msra.mxu0 0
    %5021 = vmatprep.mubr.bf16.mxu0 0
    %5022 = vmatmul.mubr.bf16.gmra.mxu0 %v4752
    %v5023 = vpop.f32.mrf.mxu0
    %v5024 = vadd.f32 0.0, %v5023
    %v5025 = vpop.f32.mrf.mxu0
    %v5026 = vpop.f32.mrf.mxu0
    %v5027 = vpop.f32.mrf.mxu0
    %5028 = vdwg.mxu0
    %v5029 = vadd.f32 %v4984, %v5024
    %v5030 = vadd.f32 %v5029, %v126
    %v5031 = vxor.u32 %v5030, 2147483648
    %v5032 = vmul.f32 %v5031, 1.442695
    %v5033 = vpow.pop %v5032
    %v5034 = vadd.f32 %v5033, 1.0
    %v5035 = vrcp.pop %v5034
    %v5036 = vmul.f32 1.0, %v5035
    %v5037 = vtanh.pop %v5030
    %v5038 = vmul.f32 %v5036, %v4740
    %5040 = vrot.lane.b32.xlu0 %v5037, 64
    %v5041 = vpop.permute.xlu0 %5040
    %v5043 = vmul.f32 %v5036, %v5041
    %5045 = vrot.lane.b32.xlu0 %v5043, 32
    %v5046 = vpop.permute.xlu0 %5045
    %v5048 = vadd.f32 %v5038, %v5046
    %v5049 = vtanh.pop %v5048
    %5051 = vrot.lane.b32.xlu0 %v5049, 64
    %v5052 = vpop.permute.xlu0 %5051
    %v5054 = vmul.f32 %v5036, %v5052
    %v5055 = vpack.c.bf16 %v5054, %v5054
    %5057 = vrot.lane.b32.xlu0 %v5055, 32
    %v5058 = vpop.permute.xlu0 %5057
    %v5060 = vsel %vm2956, %v5058, 0
    %5062 = vmatprep.subr.bf16.mxu0 0
    %5063 = vmatpush1.bf16.msra.mxu0 0
    %5064 = vmatprep.subr.bf16.mxu0 0
    %5065 = vmatpush1.bf16.msra.mxu0 0
    %5066 = vmatprep.subr.bf16.mxu0 0
    %5067 = vmatpush1.bf16.msra.mxu0 0
    %5068 = vmatprep.subr.bf16.mxu0 0
    %5069 = vmatpush1.bf16.msra.mxu0 0
    %5070 = vmatprep.subr.bf16.mxu0 0
    %5071 = vmatpush1.bf16.msra.mxu0 0
    %5072 = vmatprep.subr.bf16.mxu0 0
    %5073 = vmatpush1.bf16.msra.mxu0 0
    %5074 = vmatprep.subr.bf16.mxu0 0
    %5075 = vmatpush1.bf16.msra.mxu0 %v108
    %5076 = vmatprep.subr.bf16.mxu0 0
    %5077 = vmatpush1.bf16.msra.mxu0 %v107
    %5078 = vmatprep.subr.bf16.mxu0 0
    %5079 = vmatpush2.bf16.msra.mxu0 0
    %5080 = vmatprep.subr.bf16.mxu0 0
    %5081 = vmatpush2.bf16.msra.mxu0 0
    %5082 = vmatprep.subr.bf16.mxu0 0
    %5083 = vmatpush2.bf16.msra.mxu0 0
    %5084 = vmatprep.subr.bf16.mxu0 0
    %5085 = vmatpush2.bf16.msra.mxu0 0
    %5086 = vmatprep.subr.bf16.mxu0 0
    %5087 = vmatpush2.bf16.msra.mxu0 0
    %5088 = vmatprep.subr.bf16.mxu0 0
    %5089 = vmatpush2.bf16.msra.mxu0 0
    %5090 = vmatprep.subr.bf16.mxu0 0
    %5091 = vmatpush2.bf16.msra.mxu0 0
    %5092 = vmatprep.subr.bf16.mxu0 0
    %5093 = vmatpush2.bf16.msra.mxu0 0
    %5094 = vmatprep.mubr.bf16.mxu0 0
    %5095 = vmatmul.mubr.bf16.gmra.mxu0 %v5060
    %v5096 = vpop.f32.mrf.mxu0
    %v5097 = vadd.f32 %v133, %v5096
    %v5098 = vpop.f32.mrf.mxu0
    %v5099 = vpop.f32.mrf.mxu0
    %v5100 = vpop.f32.mrf.mxu0
    %5101 = vdwg.mxu0
    %v5102 = vmul.f32 %v5097, %v3839
    %v5103 = vsel %vm3842, %v5102, 0.0
    %5104 = vadd.xlane.f32.xlu0 %v5103
    %v5105 = vpop.xlane.xlu0 %5104
    %v5106 = vmul.f32 %v5097, %v3847
    %v5107 = vsel %vm3842, %v5106, 0.0
    %5108 = vadd.xlane.f32.xlu0 %v5107
    %v5109 = vpop.xlane.xlu0 %5108
    %v5110 = vmul.f32 %v5097, %v3854
    %v5111 = vsel %vm3842, %v5110, 0.0
    %5112 = vadd.xlane.f32.xlu0 %v5111
    %v5113 = vpop.xlane.xlu0 %5112
    %v5114 = vmul.f32 %v5097, %v3861
    %v5115 = vsel %vm3842, %v5114, 0.0
    %5116 = vadd.xlane.f32.xlu0 %v5115
    %v5117 = vpop.xlane.xlu0 %5116
    %v5118 = vmul.f32 %v5097, %v3868
    %v5119 = vsel %vm3842, %v5118, 0.0
    %5120 = vadd.xlane.f32.xlu0 %v5119
    %v5121 = vpop.xlane.xlu0 %5120
    %v5122 = vmul.f32 %v5097, %v3875
    %v5123 = vsel %vm3842, %v5122, 0.0
    %5124 = vadd.xlane.f32.xlu0 %v5123
    %v5125 = vpop.xlane.xlu0 %5124
    %v5126 = vmul.f32 %v5097, %v3882
    %v5127 = vsel %vm3842, %v5126, 0.0
    %5128 = vadd.xlane.f32.xlu0 %v5127
    %v5129 = vpop.xlane.xlu0 %5128
    %v5130 = vmul.f32 %v5097, %v3889
    %v5131 = vsel %vm3842, %v5130, 0.0
    %5132 = vadd.xlane.f32.xlu0 %v5131
    %v5133 = vpop.xlane.xlu0 %5132
    %v5134 = vsel %vm3895, %v5105, %v5109
    %v5135 = vsel %vm3897, %v5134, %v5113
    %v5136 = vsel %vm3899, %v5135, %v5117
    %v5137 = vsel %vm3901, %v5136, %v5121
    %v5138 = vsel %vm3903, %v5137, %v5125
    %v5139 = vsel %vm3905, %v5138, %v5129
    %v5140 = vsel %vm3907, %v5139, %v5133
    %v5141 = vsel %vm3909, %v5140, -inf
    %5142 = vmax.xlane.f32.xlu0 %v5141
    %v5143 = vpop.xlane.xlu0 %5142
    %v5144 = vsub.f32 %v5140, %v5143
    %v5145 = vmul.f32 %v5144, 1.442695
    %v5146 = vpow.pop %v5145
    %v5147 = vsel %vm3909, %v5146, 0.0
    %5148 = vadd.xlane.f32.xlu0 %v5147
    %v5149 = vpop.xlane.xlu0 %5148
    %v5150 = vrcp.pop %v5149
    %v5151 = vmul.f32 %v5146, %v5150
    %5153 = vset.pattern.permute.xlu0 0
    %5154 = vperm.xlu0 %5153, %v5151
    %v5155 = vpop.permute.xlu0 %5154
    %v5157 = vmul.f32 %v5155, %v3024
    %v5158 = vadd.f32 %v5157, 0.0
    %5159 = vset.pattern.permute.xlu0 1
    %5160 = vperm.xlu0 %5159, %v5151
    %v5161 = vpop.permute.xlu0 %5160
    %v5163 = vmul.f32 %v5161, %v3100
    %v5164 = vadd.f32 %v5158, %v5163
    %5165 = vset.pattern.permute.xlu0 2
    %5166 = vperm.xlu0 %5165, %v5151
    %v5167 = vpop.permute.xlu0 %5166
    %v5169 = vmul.f32 %v5167, %v3177
    %v5170 = vadd.f32 %v5164, %v5169
    %5171 = vset.pattern.permute.xlu0 3
    %5172 = vperm.xlu0 %5171, %v5151
    %v5173 = vpop.permute.xlu0 %5172
    %v5175 = vmul.f32 %v5173, %v3254
    %v5176 = vadd.f32 %v5170, %v5175
    %5177 = vset.pattern.permute.xlu0 4
    %5178 = vperm.xlu0 %5177, %v5151
    %v5179 = vpop.permute.xlu0 %5178
    %v5181 = vmul.f32 %v5179, %v3331
    %v5182 = vadd.f32 %v5176, %v5181
    %5183 = vset.pattern.permute.xlu0 5
    %5184 = vperm.xlu0 %5183, %v5151
    %v5185 = vpop.permute.xlu0 %5184
    %v5187 = vmul.f32 %v5185, %v3408
    %v5188 = vadd.f32 %v5182, %v5187
    %5189 = vset.pattern.permute.xlu0 6
    %5190 = vperm.xlu0 %5189, %v5151
    %v5191 = vpop.permute.xlu0 %5190
    %v5193 = vmul.f32 %v5191, %v3485
    %v5194 = vadd.f32 %v5188, %v5193
    %5195 = vset.pattern.permute.xlu0 7
    %5196 = vperm.xlu0 %5195, %v5151
    %v5197 = vpop.permute.xlu0 %5196
    %v5199 = vmul.f32 %v5197, %v3562
    %v5200 = vadd.f32 %v5194, %v5199
    %v5201 = vrot.slane %v143, 2
    %v5203 = vsel %vm2954, %v3631, %v5201
    %v5204 = vpack.c.bf16 %v5203, %v5203
    %v5205 = vpack.c.bf16 %v5200, %v5200
    %5207 = vrot.lane.b32.xlu0 %v5205, 32
    %v5208 = vpop.permute.xlu0 %5207
    %v5210 = vsel %vm2956, %v5208, 0
    %5212 = vmatprep.subr.bf16.mxu0 0
    %5213 = vmatpush1.bf16.msra.mxu0 0
    %5214 = vmatprep.subr.bf16.mxu0 0
    %5215 = vmatpush1.bf16.msra.mxu0 0
    %5216 = vmatprep.subr.bf16.mxu0 0
    %5217 = vmatpush1.bf16.msra.mxu0 0
    %5218 = vmatprep.subr.bf16.mxu0 0
    %5219 = vmatpush1.bf16.msra.mxu0 0
    %5220 = vmatprep.subr.bf16.mxu0 0
    %5221 = vmatpush1.bf16.msra.mxu0 0
    %5222 = vmatprep.subr.bf16.mxu0 0
    %5223 = vmatpush1.bf16.msra.mxu0 0
    %5224 = vmatprep.subr.bf16.mxu0 0
    %5225 = vmatpush1.bf16.msra.mxu0 %v96
    %5226 = vmatprep.subr.bf16.mxu0 0
    %5227 = vmatpush1.bf16.msra.mxu0 %v95
    %5228 = vmatprep.subr.bf16.mxu0 0
    %5229 = vmatpush2.bf16.msra.mxu0 0
    %5230 = vmatprep.subr.bf16.mxu0 0
    %5231 = vmatpush2.bf16.msra.mxu0 0
    %5232 = vmatprep.subr.bf16.mxu0 0
    %5233 = vmatpush2.bf16.msra.mxu0 0
    %5234 = vmatprep.subr.bf16.mxu0 0
    %5235 = vmatpush2.bf16.msra.mxu0 0
    %5236 = vmatprep.subr.bf16.mxu0 0
    %5237 = vmatpush2.bf16.msra.mxu0 0
    %5238 = vmatprep.subr.bf16.mxu0 0
    %5239 = vmatpush2.bf16.msra.mxu0 0
    %5240 = vmatprep.subr.bf16.mxu0 0
    %5241 = vmatpush2.bf16.msra.mxu0 0
    %5242 = vmatprep.subr.bf16.mxu0 0
    %5243 = vmatpush2.bf16.msra.mxu0 0
    %5244 = vmatprep.mubr.bf16.mxu0 0
    %5245 = vmatmul.mubr.bf16.gmra.mxu0 %v5210
    %v5246 = vpop.f32.mrf.mxu0
    %v5247 = vadd.f32 0.0, %v5246
    %v5248 = vpop.f32.mrf.mxu0
    %v5249 = vpop.f32.mrf.mxu0
    %v5250 = vpop.f32.mrf.mxu0
    %5251 = vdwg.mxu0
    %v5253 = vsel %vm2956, %v5204, 0
    %5255 = vmatprep.subr.bf16.mxu0 0
    %5256 = vmatpush1.bf16.msra.mxu0 0
    %5257 = vmatprep.subr.bf16.mxu0 0
    %5258 = vmatpush1.bf16.msra.mxu0 0
    %5259 = vmatprep.subr.bf16.mxu0 0
    %5260 = vmatpush1.bf16.msra.mxu0 0
    %5261 = vmatprep.subr.bf16.mxu0 0
    %5262 = vmatpush1.bf16.msra.mxu0 0
    %5263 = vmatprep.subr.bf16.mxu0 0
    %5264 = vmatpush1.bf16.msra.mxu0 0
    %5265 = vmatprep.subr.bf16.mxu0 0
    %5266 = vmatpush1.bf16.msra.mxu0 0
    %5267 = vmatprep.subr.bf16.mxu0 0
    %5268 = vmatpush1.bf16.msra.mxu0 %v90
    %5269 = vmatprep.subr.bf16.mxu0 0
    %5270 = vmatpush1.bf16.msra.mxu0 %v89
    %5271 = vmatprep.subr.bf16.mxu0 0
    %5272 = vmatpush2.bf16.msra.mxu0 0
    %5273 = vmatprep.subr.bf16.mxu0 0
    %5274 = vmatpush2.bf16.msra.mxu0 0
    %5275 = vmatprep.subr.bf16.mxu0 0
    %5276 = vmatpush2.bf16.msra.mxu0 0
    %5277 = vmatprep.subr.bf16.mxu0 0
    %5278 = vmatpush2.bf16.msra.mxu0 0
    %5279 = vmatprep.subr.bf16.mxu0 0
    %5280 = vmatpush2.bf16.msra.mxu0 0
    %5281 = vmatprep.subr.bf16.mxu0 0
    %5282 = vmatpush2.bf16.msra.mxu0 0
    %5283 = vmatprep.subr.bf16.mxu0 0
    %5284 = vmatpush2.bf16.msra.mxu0 0
    %5285 = vmatprep.subr.bf16.mxu0 0
    %5286 = vmatpush2.bf16.msra.mxu0 0
    %5287 = vmatprep.mubr.bf16.mxu0 0
    %5288 = vmatmul.mubr.bf16.gmra.mxu0 %v5253
    %v5289 = vpop.f32.mrf.mxu0
    %v5290 = vadd.f32 %v5247, %v5289
    %v5291 = vpop.f32.mrf.mxu0
    %v5292 = vpop.f32.mrf.mxu0
    %v5293 = vpop.f32.mrf.mxu0
    %5294 = vdwg.mxu0
    %5295 = vmatprep.subr.bf16.mxu0 0
    %5296 = vmatpush1.bf16.msra.mxu0 0
    %5297 = vmatprep.subr.bf16.mxu0 0
    %5298 = vmatpush1.bf16.msra.mxu0 0
    %5299 = vmatprep.subr.bf16.mxu0 0
    %5300 = vmatpush1.bf16.msra.mxu0 0
    %5301 = vmatprep.subr.bf16.mxu0 0
    %5302 = vmatpush1.bf16.msra.mxu0 0
    %5303 = vmatprep.subr.bf16.mxu0 0
    %5304 = vmatpush1.bf16.msra.mxu0 0
    %5305 = vmatprep.subr.bf16.mxu0 0
    %5306 = vmatpush1.bf16.msra.mxu0 0
    %5307 = vmatprep.subr.bf16.mxu0 0
    %5308 = vmatpush1.bf16.msra.mxu0 %v102
    %5309 = vmatprep.subr.bf16.mxu0 0
    %5310 = vmatpush1.bf16.msra.mxu0 %v101
    %5311 = vmatprep.subr.bf16.mxu0 0
    %5312 = vmatpush2.bf16.msra.mxu0 0
    %5313 = vmatprep.subr.bf16.mxu0 0
    %5314 = vmatpush2.bf16.msra.mxu0 0
    %5315 = vmatprep.subr.bf16.mxu0 0
    %5316 = vmatpush2.bf16.msra.mxu0 0
    %5317 = vmatprep.subr.bf16.mxu0 0
    %5318 = vmatpush2.bf16.msra.mxu0 0
    %5319 = vmatprep.subr.bf16.mxu0 0
    %5320 = vmatpush2.bf16.msra.mxu0 0
    %5321 = vmatprep.subr.bf16.mxu0 0
    %5322 = vmatpush2.bf16.msra.mxu0 0
    %5323 = vmatprep.subr.bf16.mxu0 0
    %5324 = vmatpush2.bf16.msra.mxu0 0
    %5325 = vmatprep.subr.bf16.mxu0 0
    %5326 = vmatpush2.bf16.msra.mxu0 0
    %5327 = vmatprep.mubr.bf16.mxu0 0
    %5328 = vmatmul.mubr.bf16.gmra.mxu0 %v5060
    %v5329 = vpop.f32.mrf.mxu0
    %v5330 = vadd.f32 0.0, %v5329
    %v5331 = vpop.f32.mrf.mxu0
    %v5332 = vpop.f32.mrf.mxu0
    %v5333 = vpop.f32.mrf.mxu0
    %5334 = vdwg.mxu0
    %v5335 = vadd.f32 %v5290, %v5330
    %v5336 = vadd.f32 %v5335, %v126
    %v5337 = vxor.u32 %v5336, 2147483648
    %v5338 = vmul.f32 %v5337, 1.442695
    %v5339 = vpow.pop %v5338
    %v5340 = vadd.f32 %v5339, 1.0
    %v5341 = vrcp.pop %v5340
    %v5342 = vmul.f32 1.0, %v5341
    %v5343 = vtanh.pop %v5336
    %v5344 = vmul.f32 %v5342, %v5048
    %5346 = vrot.lane.b32.xlu0 %v5343, 64
    %v5347 = vpop.permute.xlu0 %5346
    %v5349 = vmul.f32 %v5342, %v5347
    %5351 = vrot.lane.b32.xlu0 %v5349, 32
    %v5352 = vpop.permute.xlu0 %5351
    %v5354 = vadd.f32 %v5344, %v5352
    %v5355 = vtanh.pop %v5354
    %5357 = vrot.lane.b32.xlu0 %v5355, 64
    %v5358 = vpop.permute.xlu0 %5357
    %v5360 = vmul.f32 %v5342, %v5358
    %v5361 = vpack.c.bf16 %v5360, %v5360
    %5363 = vrot.lane.b32.xlu0 %v5361, 32
    %v5364 = vpop.permute.xlu0 %5363
    %v5366 = vsel %vm2956, %v5364, 0
    %5368 = vmatprep.subr.bf16.mxu0 0
    %5369 = vmatpush1.bf16.msra.mxu0 0
    %5370 = vmatprep.subr.bf16.mxu0 0
    %5371 = vmatpush1.bf16.msra.mxu0 0
    %5372 = vmatprep.subr.bf16.mxu0 0
    %5373 = vmatpush1.bf16.msra.mxu0 0
    %5374 = vmatprep.subr.bf16.mxu0 0
    %5375 = vmatpush1.bf16.msra.mxu0 0
    %5376 = vmatprep.subr.bf16.mxu0 0
    %5377 = vmatpush1.bf16.msra.mxu0 0
    %5378 = vmatprep.subr.bf16.mxu0 0
    %5379 = vmatpush1.bf16.msra.mxu0 0
    %5380 = vmatprep.subr.bf16.mxu0 0
    %5381 = vmatpush1.bf16.msra.mxu0 %v108
    %5382 = vmatprep.subr.bf16.mxu0 0
    %5383 = vmatpush1.bf16.msra.mxu0 %v107
    %5384 = vmatprep.subr.bf16.mxu0 0
    %5385 = vmatpush2.bf16.msra.mxu0 0
    %5386 = vmatprep.subr.bf16.mxu0 0
    %5387 = vmatpush2.bf16.msra.mxu0 0
    %5388 = vmatprep.subr.bf16.mxu0 0
    %5389 = vmatpush2.bf16.msra.mxu0 0
    %5390 = vmatprep.subr.bf16.mxu0 0
    %5391 = vmatpush2.bf16.msra.mxu0 0
    %5392 = vmatprep.subr.bf16.mxu0 0
    %5393 = vmatpush2.bf16.msra.mxu0 0
    %5394 = vmatprep.subr.bf16.mxu0 0
    %5395 = vmatpush2.bf16.msra.mxu0 0
    %5396 = vmatprep.subr.bf16.mxu0 0
    %5397 = vmatpush2.bf16.msra.mxu0 0
    %5398 = vmatprep.subr.bf16.mxu0 0
    %5399 = vmatpush2.bf16.msra.mxu0 0
    %5400 = vmatprep.mubr.bf16.mxu0 0
    %5401 = vmatmul.mubr.bf16.gmra.mxu0 %v5366
    %v5402 = vpop.f32.mrf.mxu0
    %v5403 = vadd.f32 %v133, %v5402
    %v5404 = vpop.f32.mrf.mxu0
    %v5405 = vpop.f32.mrf.mxu0
    %v5406 = vpop.f32.mrf.mxu0
    %5407 = vdwg.mxu0
    %v5408 = vmul.f32 %v5403, %v3839
    %v5409 = vsel %vm3842, %v5408, 0.0
    %5410 = vadd.xlane.f32.xlu0 %v5409
    %v5411 = vpop.xlane.xlu0 %5410
    %v5412 = vmul.f32 %v5403, %v3847
    %v5413 = vsel %vm3842, %v5412, 0.0
    %5414 = vadd.xlane.f32.xlu0 %v5413
    %v5415 = vpop.xlane.xlu0 %5414
    %v5416 = vmul.f32 %v5403, %v3854
    %v5417 = vsel %vm3842, %v5416, 0.0
    %5418 = vadd.xlane.f32.xlu0 %v5417
    %v5419 = vpop.xlane.xlu0 %5418
    %v5420 = vmul.f32 %v5403, %v3861
    %v5421 = vsel %vm3842, %v5420, 0.0
    %5422 = vadd.xlane.f32.xlu0 %v5421
    %v5423 = vpop.xlane.xlu0 %5422
    %v5424 = vmul.f32 %v5403, %v3868
    %v5425 = vsel %vm3842, %v5424, 0.0
    %5426 = vadd.xlane.f32.xlu0 %v5425
    %v5427 = vpop.xlane.xlu0 %5426
    %v5428 = vmul.f32 %v5403, %v3875
    %v5429 = vsel %vm3842, %v5428, 0.0
    %5430 = vadd.xlane.f32.xlu0 %v5429
    %v5431 = vpop.xlane.xlu0 %5430
    %v5432 = vmul.f32 %v5403, %v3882
    %v5433 = vsel %vm3842, %v5432, 0.0
    %5434 = vadd.xlane.f32.xlu0 %v5433
    %v5435 = vpop.xlane.xlu0 %5434
    %v5436 = vmul.f32 %v5403, %v3889
    %v5437 = vsel %vm3842, %v5436, 0.0
    %5438 = vadd.xlane.f32.xlu0 %v5437
    %v5439 = vpop.xlane.xlu0 %5438
    %v5440 = vsel %vm3895, %v5411, %v5415
    %v5441 = vsel %vm3897, %v5440, %v5419
    %v5442 = vsel %vm3899, %v5441, %v5423
    %v5443 = vsel %vm3901, %v5442, %v5427
    %v5444 = vsel %vm3903, %v5443, %v5431
    %v5445 = vsel %vm3905, %v5444, %v5435
    %v5446 = vsel %vm3907, %v5445, %v5439
    %v5447 = vsel %vm3909, %v5446, -inf
    %5448 = vmax.xlane.f32.xlu0 %v5447
    %v5449 = vpop.xlane.xlu0 %5448
    %v5450 = vsub.f32 %v5446, %v5449
    %v5451 = vmul.f32 %v5450, 1.442695
    %v5452 = vpow.pop %v5451
    %v5453 = vsel %vm3909, %v5452, 0.0
    %5454 = vadd.xlane.f32.xlu0 %v5453
    %v5455 = vpop.xlane.xlu0 %5454
    %v5456 = vrcp.pop %v5455
    %v5457 = vmul.f32 %v5452, %v5456
    %5459 = vset.pattern.permute.xlu0 0
    %5460 = vperm.xlu0 %5459, %v5457
    %v5461 = vpop.permute.xlu0 %5460
    %v5463 = vmul.f32 %v5461, %v3024
    %v5464 = vadd.f32 %v5463, 0.0
    %5465 = vset.pattern.permute.xlu0 1
    %5466 = vperm.xlu0 %5465, %v5457
    %v5467 = vpop.permute.xlu0 %5466
    %v5469 = vmul.f32 %v5467, %v3100
    %v5470 = vadd.f32 %v5464, %v5469
    %5471 = vset.pattern.permute.xlu0 2
    %5472 = vperm.xlu0 %5471, %v5457
    %v5473 = vpop.permute.xlu0 %5472
    %v5475 = vmul.f32 %v5473, %v3177
    %v5476 = vadd.f32 %v5470, %v5475
    %5477 = vset.pattern.permute.xlu0 3
    %5478 = vperm.xlu0 %5477, %v5457
    %v5479 = vpop.permute.xlu0 %5478
    %v5481 = vmul.f32 %v5479, %v3254
    %v5482 = vadd.f32 %v5476, %v5481
    %5483 = vset.pattern.permute.xlu0 4
    %5484 = vperm.xlu0 %5483, %v5457
    %v5485 = vpop.permute.xlu0 %5484
    %v5487 = vmul.f32 %v5485, %v3331
    %v5488 = vadd.f32 %v5482, %v5487
    %5489 = vset.pattern.permute.xlu0 5
    %5490 = vperm.xlu0 %5489, %v5457
    %v5491 = vpop.permute.xlu0 %5490
    %v5493 = vmul.f32 %v5491, %v3408
    %v5494 = vadd.f32 %v5488, %v5493
    %5495 = vset.pattern.permute.xlu0 6
    %5496 = vperm.xlu0 %5495, %v5457
    %v5497 = vpop.permute.xlu0 %5496
    %v5499 = vmul.f32 %v5497, %v3485
    %v5500 = vadd.f32 %v5494, %v5499
    %5501 = vset.pattern.permute.xlu0 7
    %5502 = vperm.xlu0 %5501, %v5457
    %v5503 = vpop.permute.xlu0 %5502
    %v5505 = vmul.f32 %v5503, %v3562
    %v5506 = vadd.f32 %v5500, %v5505
    %v5508 = vrot.slane %v4131, 7
    %v5511 = vrot.slane %v4440, 6
    %v5514 = vrot.slane %v4746, 5
    %v5517 = vrot.slane %v5054, 4
    %v5520 = vrot.slane %v5360, 3
    %v5522 = vsel %vm2954, %v3790, %v5508
    %v5523 = vsel %vm3585, %v5522, %v5511
    %v5524 = vsel %vm3587, %v5523, %v5514
    %v5525 = vsel %vm3589, %v5524, %v5517
    %v5526 = vsel %vm3591, %v5525, %v5520
    %v5527 = vpack.c.bf16 %v5526, %v5526
    %v5529 = vrot.slane %v4277, 7
    %v5532 = vrot.slane %v4586, 6
    %v5535 = vrot.slane %v4892, 5
    %v5538 = vrot.slane %v5200, 4
    %v5541 = vrot.slane %v5506, 3
    %v5543 = vsel %vm2954, %v3969, %v5529
    %v5544 = vsel %vm3585, %v5543, %v5532
    %v5545 = vsel %vm3587, %v5544, %v5535
    %v5546 = vsel %vm3589, %v5545, %v5538
    %v5547 = vsel %vm3591, %v5546, %v5541
    %v5548 = vpack.c.bf16 %v5547, %v5547
    %5550 = vrot.lane.b32.xlu0 %v5548, 32
    %v5551 = vpop.permute.xlu0 %5550
    %v5553 = vsel %vm2956, %v5551, 0
    %5555 = vmatprep.subr.bf16.mxu0 0
    %5556 = vmatpush1.bf16.msra.mxu0 0
    %5557 = vmatprep.subr.bf16.mxu0 0
    %5558 = vmatpush1.bf16.msra.mxu0 0
    %5559 = vmatprep.subr.bf16.mxu0 0
    %5560 = vmatpush1.bf16.msra.mxu0 0
    %5561 = vmatprep.subr.bf16.mxu0 0
    %5562 = vmatpush1.bf16.msra.mxu0 0
    %5563 = vmatprep.subr.bf16.mxu0 0
    %5564 = vmatpush1.bf16.msra.mxu0 0
    %5565 = vmatprep.subr.bf16.mxu0 0
    %5566 = vmatpush1.bf16.msra.mxu0 0
    %5567 = vmatprep.subr.bf16.mxu0 0
    %5568 = vmatpush1.bf16.msra.mxu0 %v120
    %5569 = vmatprep.subr.bf16.mxu0 0
    %5570 = vmatpush1.bf16.msra.mxu0 %v119
    %5571 = vmatprep.subr.bf16.mxu0 0
    %5572 = vmatpush2.bf16.msra.mxu0 0
    %5573 = vmatprep.subr.bf16.mxu0 0
    %5574 = vmatpush2.bf16.msra.mxu0 0
    %5575 = vmatprep.subr.bf16.mxu0 0
    %5576 = vmatpush2.bf16.msra.mxu0 0
    %5577 = vmatprep.subr.bf16.mxu0 0
    %5578 = vmatpush2.bf16.msra.mxu0 0
    %5579 = vmatprep.subr.bf16.mxu0 0
    %5580 = vmatpush2.bf16.msra.mxu0 0
    %5581 = vmatprep.subr.bf16.mxu0 0
    %5582 = vmatpush2.bf16.msra.mxu0 0
    %5583 = vmatprep.subr.bf16.mxu0 0
    %5584 = vmatpush2.bf16.msra.mxu0 0
    %5585 = vmatprep.subr.bf16.mxu0 0
    %5586 = vmatpush2.bf16.msra.mxu0 0
    %5587 = vmatprep.mubr.bf16.mxu0 0
    %5588 = vmatmul.mubr.bf16.gmra.mxu0 %v5553
    %v5589 = vpop.f32.mrf.mxu0
    %v5590 = vadd.f32 0.0, %v5589
    %v5591 = vpop.f32.mrf.mxu0
    %v5592 = vpop.f32.mrf.mxu0
    %v5593 = vpop.f32.mrf.mxu0
    %5594 = vdwg.mxu0
    %5596 = vrot.lane.b32.xlu0 %v5527, 32
    %v5597 = vpop.permute.xlu0 %5596
    %v5599 = vsel %vm2956, %v5597, 0
    %5601 = vmatprep.subr.bf16.mxu0 0
    %5602 = vmatpush1.bf16.msra.mxu0 0
    %5603 = vmatprep.subr.bf16.mxu0 0
    %5604 = vmatpush1.bf16.msra.mxu0 0
    %5605 = vmatprep.subr.bf16.mxu0 0
    %5606 = vmatpush1.bf16.msra.mxu0 0
    %5607 = vmatprep.subr.bf16.mxu0 0
    %5608 = vmatpush1.bf16.msra.mxu0 0
    %5609 = vmatprep.subr.bf16.mxu0 0
    %5610 = vmatpush1.bf16.msra.mxu0 0
    %5611 = vmatprep.subr.bf16.mxu0 0
    %5612 = vmatpush1.bf16.msra.mxu0 0
    %5613 = vmatprep.subr.bf16.mxu0 0
    %5614 = vmatpush1.bf16.msra.mxu0 %v114
    %5615 = vmatprep.subr.bf16.mxu0 0
    %5616 = vmatpush1.bf16.msra.mxu0 %v113
    %5617 = vmatprep.subr.bf16.mxu0 0
    %5618 = vmatpush2.bf16.msra.mxu0 0
    %5619 = vmatprep.subr.bf16.mxu0 0
    %5620 = vmatpush2.bf16.msra.mxu0 0
    %5621 = vmatprep.subr.bf16.mxu0 0
    %5622 = vmatpush2.bf16.msra.mxu0 0
    %5623 = vmatprep.subr.bf16.mxu0 0
    %5624 = vmatpush2.bf16.msra.mxu0 0
    %5625 = vmatprep.subr.bf16.mxu0 0
    %5626 = vmatpush2.bf16.msra.mxu0 0
    %5627 = vmatprep.subr.bf16.mxu0 0
    %5628 = vmatpush2.bf16.msra.mxu0 0
    %5629 = vmatprep.subr.bf16.mxu0 0
    %5630 = vmatpush2.bf16.msra.mxu0 0
    %5631 = vmatprep.subr.bf16.mxu0 0
    %5632 = vmatpush2.bf16.msra.mxu0 0
    %5633 = vmatprep.mubr.bf16.mxu0 0
    %5634 = vmatmul.mubr.bf16.gmra.mxu0 %v5599
    %v5635 = vpop.f32.mrf.mxu0
    %v5636 = vadd.f32 %v5590, %v5635
    %v5637 = vpop.f32.mrf.mxu0
    %v5638 = vpop.f32.mrf.mxu0
    %v5639 = vpop.f32.mrf.mxu0
    %5640 = vdwg.mxu0
    %v5641 = vadd.f32 %v5636, %v140
    %5642 = vst [vmem:[%s15] sm:$0x3f] %v5641
    %v5644 = vrot.slane %v3790, 1
    %v5646 = vrot.slane %v4440, 7
    %v5648 = vrot.slane %v4746, 6
    %v5650 = vrot.slane %v5054, 5
    %v5652 = vrot.slane %v5360, 4
    %v5654 = vsel %vm2954, %v5644, %v4131
    %v5655 = vsel %vm3585, %v5654, %v5646
    %v5656 = vsel %vm3587, %v5655, %v5648
    %v5657 = vsel %vm3589, %v5656, %v5650
    %v5658 = vsel %vm3591, %v5657, %v5652
    %v5659 = vpack.c.bf16 %v5658, %v5658
    %v5661 = vrot.slane %v3969, 1
    %v5663 = vrot.slane %v4586, 7
    %v5665 = vrot.slane %v4892, 6
    %v5667 = vrot.slane %v5200, 5
    %v5669 = vrot.slane %v5506, 4
    %v5671 = vsel %vm2954, %v5661, %v4277
    %v5672 = vsel %vm3585, %v5671, %v5663
    %v5673 = vsel %vm3587, %v5672, %v5665
    %v5674 = vsel %vm3589, %v5673, %v5667
    %v5675 = vsel %vm3591, %v5674, %v5669
    %v5676 = vpack.c.bf16 %v5675, %v5675
    %5678 = vrot.lane.b32.xlu0 %v5676, 32
    %v5679 = vpop.permute.xlu0 %5678
    %v5681 = vsel %vm2956, %v5679, 0
    %5683 = vmatprep.subr.bf16.mxu0 0
    %5684 = vmatpush1.bf16.msra.mxu0 0
    %5685 = vmatprep.subr.bf16.mxu0 0
    %5686 = vmatpush1.bf16.msra.mxu0 0
    %5687 = vmatprep.subr.bf16.mxu0 0
    %5688 = vmatpush1.bf16.msra.mxu0 0
    %5689 = vmatprep.subr.bf16.mxu0 0
    %5690 = vmatpush1.bf16.msra.mxu0 0
    %5691 = vmatprep.subr.bf16.mxu0 0
    %5692 = vmatpush1.bf16.msra.mxu0 0
    %5693 = vmatprep.subr.bf16.mxu0 0
    %5694 = vmatpush1.bf16.msra.mxu0 0
    %5695 = vmatprep.subr.bf16.mxu0 0
    %5696 = vmatpush1.bf16.msra.mxu0 %v120
    %5697 = vmatprep.subr.bf16.mxu0 0
    %5698 = vmatpush1.bf16.msra.mxu0 %v119
    %5699 = vmatprep.subr.bf16.mxu0 0
    %5700 = vmatpush2.bf16.msra.mxu0 0
    %5701 = vmatprep.subr.bf16.mxu0 0
    %5702 = vmatpush2.bf16.msra.mxu0 0
    %5703 = vmatprep.subr.bf16.mxu0 0
    %5704 = vmatpush2.bf16.msra.mxu0 0
    %5705 = vmatprep.subr.bf16.mxu0 0
    %5706 = vmatpush2.bf16.msra.mxu0 0
    %5707 = vmatprep.subr.bf16.mxu0 0
    %5708 = vmatpush2.bf16.msra.mxu0 0
    %5709 = vmatprep.subr.bf16.mxu0 0
    %5710 = vmatpush2.bf16.msra.mxu0 0
    %5711 = vmatprep.subr.bf16.mxu0 0
    %5712 = vmatpush2.bf16.msra.mxu0 0
    %5713 = vmatprep.subr.bf16.mxu0 0
    %5714 = vmatpush2.bf16.msra.mxu0 0
    %5715 = vmatprep.mubr.bf16.mxu0 0
    %5716 = vmatmul.mubr.bf16.gmra.mxu0 %v5681
    %v5717 = vpop.f32.mrf.mxu0
    %v5718 = vadd.f32 0.0, %v5717
    %v5719 = vpop.f32.mrf.mxu0
    %v5720 = vpop.f32.mrf.mxu0
    %v5721 = vpop.f32.mrf.mxu0
    %5722 = vdwg.mxu0
    %5724 = vrot.lane.b32.xlu0 %v5659, 32
    %v5725 = vpop.permute.xlu0 %5724
    %v5727 = vsel %vm2956, %v5725, 0
    %5729 = vmatprep.subr.bf16.mxu0 0
    %5730 = vmatpush1.bf16.msra.mxu0 0
    %5731 = vmatprep.subr.bf16.mxu0 0
    %5732 = vmatpush1.bf16.msra.mxu0 0
    %5733 = vmatprep.subr.bf16.mxu0 0
    %5734 = vmatpush1.bf16.msra.mxu0 0
    %5735 = vmatprep.subr.bf16.mxu0 0
    %5736 = vmatpush1.bf16.msra.mxu0 0
    %5737 = vmatprep.subr.bf16.mxu0 0
    %5738 = vmatpush1.bf16.msra.mxu0 0
    %5739 = vmatprep.subr.bf16.mxu0 0
    %5740 = vmatpush1.bf16.msra.mxu0 0
    %5741 = vmatprep.subr.bf16.mxu0 0
    %5742 = vmatpush1.bf16.msra.mxu0 %v114
    %5743 = vmatprep.subr.bf16.mxu0 0
    %5744 = vmatpush1.bf16.msra.mxu0 %v113
    %5745 = vmatprep.subr.bf16.mxu0 0
    %5746 = vmatpush2.bf16.msra.mxu0 0
    %5747 = vmatprep.subr.bf16.mxu0 0
    %5748 = vmatpush2.bf16.msra.mxu0 0
    %5749 = vmatprep.subr.bf16.mxu0 0
    %5750 = vmatpush2.bf16.msra.mxu0 0
    %5751 = vmatprep.subr.bf16.mxu0 0
    %5752 = vmatpush2.bf16.msra.mxu0 0
    %5753 = vmatprep.subr.bf16.mxu0 0
    %5754 = vmatpush2.bf16.msra.mxu0 0
    %5755 = vmatprep.subr.bf16.mxu0 0
    %5756 = vmatpush2.bf16.msra.mxu0 0
    %5757 = vmatprep.subr.bf16.mxu0 0
    %5758 = vmatpush2.bf16.msra.mxu0 0
    %5759 = vmatprep.subr.bf16.mxu0 0
    %5760 = vmatpush2.bf16.msra.mxu0 0
    %5761 = vmatprep.mubr.bf16.mxu0 0
    %5762 = vmatmul.mubr.bf16.gmra.mxu0 %v5727
    %v5763 = vpop.f32.mrf.mxu0
    %v5764 = vadd.f32 %v5718, %v5763
    %v5765 = vpop.f32.mrf.mxu0
    %v5766 = vpop.f32.mrf.mxu0
    %v5767 = vpop.f32.mrf.mxu0
    %5768 = vdwg.mxu0
    %v5769 = vadd.f32 %v5764, %v140
    %s5770 = scalar_lea.vmem %s15, 8
    %5771 = vst [vmem:[%s5770] sm:$0x3f] %v5769
    // Predicated region
    $region66: #{s2s_pallas.1} parent=1 // pred_check
      _
    $region67: #{s2s_pallas.1} parent=1 // pred_check_branch
      %5773 = sbr.rel (0) target = $region69
    $region68: #{s2s_pallas.1} parent=1 // pred_region
      %s5775 = ssub.s32 256, 256
      %5776 = vsyncadd [#allocation4], %s5775
      %s5777 = sshll.u32 [#allocation7], 4
      %s5778 = int_to_ptr.vmem [resolvable:$true] %s5777
      %5783 = dma.vmem_to_hbm [thread:$0]  %s5778, 256, %s14, [#allocation4], 128, 128, 8
    $region69: #{s2s_pallas.1} parent=1 // pred_fallthru
      _
    // Predicated region
    $region70: #{s2s_pallas.1} parent=1 // pred_check
      _
    $region71: #{s2s_pallas.1} parent=1 // pred_check_branch
      %5785 = sbr.rel (0) target = $region73
    $region72: #{s2s_pallas.1} parent=1 // pred_region
      _
    $region73: #{s2s_pallas.1} parent=1 // pred_fallthru
      _
    // Predicated region
    $region74: #{s2s_pallas.1} parent=1 // pred_check
      _
    $region75: #{s2s_pallas.1} parent=1 // pred_check_branch
      %5787 = sbr.rel (0) target = $region77
    $region76: #{s2s_pallas.1} parent=1 // pred_region
      %5788 = dma.done [#allocation4], 256
    $region77: #{s2s_pallas.1} parent=1 // pred_fallthru
      _
    // Predicated region
    $region78: #{s2s_pallas.1} parent=1 // pred_check
      _
    $region79: #{s2s_pallas.1} parent=1 // pred_check_branch
      %5790 = sbr.rel (0) target = $region81
    $region80: #{s2s_pallas.1} parent=1 // pred_region
      _
    $region81: #{s2s_pallas.1} parent=1 // pred_fallthru
      _
    %5791 = vsyncpa [#allocation3], 1
    %5792 = vsyncpa [#allocation6], 1
    %5793 = vsyncpa [#allocation4], 1

</llo_original>
